<compile_context>
chip_gen: v7x
topology: tpu7x:2x2x1
jax: 0.10.0
libtpu: 0.0.40
codegen_flags: <defaults>
</compile_context>

<pallas_src>
import functools

import numpy as np
import jax
import jax.numpy as jnp
from jax.experimental import pallas as pl
from jax.experimental.pallas import tpu as pltpu

EPS = 1e-5


# --------------------------- one-time weight prep --------------------------- #

def _fold_bn(bias, gamma, beta, mean, var):
    """Fold (x @ W + bias) followed by eval-mode BN into per-channel scale/shift."""
    scale = gamma / jnp.sqrt(var + EPS)
    shift = beta + scale * (bias - mean)
    return scale, shift


def _stage1_megaweight(w):
    """Conv1 (OC, C, 5, 5) -> (64*C, 16*OC) matmul weight.

    LHS rows are 8x8 input patches (one per 2x2 block of pooled outputs) taken
    from the space-to-depth(4) input; feature order = (i, j, a, b, c), patch
    pixel (4*i + a, 4*j + b).  Columns pack the 16 conv-output positions of the
    patch ordered (dy, dx, u, v, oc) with conv position (2*u + dy, 2*v + dx):
    (u, v) = pooled output inside the 2x2 block, (dy, dx) = max-pool candidate,
    so the pool is a max over the four leading 4*OC-wide lane groups.
    """
    OC, C, KH, KW = w.shape
    i, j, a, b = np.meshgrid(np.arange(2), np.arange(2),
                             np.arange(4), np.arange(4), indexing="ij")
    dr = (4 * i + a).reshape(-1)          # (64,) patch row offset in [0, 8)
    dc = (4 * j + b).reshape(-1)          # (64,) patch col offset in [0, 8)
    dy, dx, u, v = np.meshgrid(np.arange(2), np.arange(2),
                               np.arange(2), np.arange(2), indexing="ij")
    s = (2 * u + dy).reshape(-1)          # (16,) conv row offset in [0, 4)
    t = (2 * v + dx).reshape(-1)          # (16,) conv col offset in [0, 4)
    kh = dr[:, None] - s[None, :]         # (64, 16)
    kw = dc[:, None] - t[None, :]
    valid = (kh >= 0) & (kh < KH) & (kw >= 0) & (kw < KW)
    wt = jnp.transpose(w, (2, 3, 1, 0))   # (KH, KW, C, OC)
    g = wt[np.clip(kh, 0, KH - 1), np.clip(kw, 0, KW - 1)]         # (64,16,C,OC)
    g = g * jnp.asarray(valid, jnp.float32)[:, :, None, None]
    return jnp.transpose(g, (0, 2, 1, 3)).reshape(64 * C, 16 * OC)


def _stage2_megaweight(w):
    """Conv2 (OC, C1, 5, 5) -> (36*C1, 4*OC) matmul weight.

    LHS rows are 6x6 windows of the pooled conv1 map held as space-to-depth(2)
    cells; feature order = (i, j, u, v, c1), map pixel (2*i + u, 2*j + v).
    Columns are (dy, dx, oc): the four max-pool candidates of one pooled
    output, as OC-wide lane groups.
    """
    OC, C, KH, KW = w.shape
    i, j, u, v = np.meshgrid(np.arange(3), np.arange(3),
                             np.arange(2), np.arange(2), indexing="ij")
    dr = (2 * i + u).reshape(-1)          # (36,) window row offset in [0, 6)
    dc = (2 * j + v).reshape(-1)
    dy, dx = np.meshgrid(np.arange(2), np.arange(2), indexing="ij")
    s = dy.reshape(-1)                    # (4,)
    t = dx.reshape(-1)
    kh = dr[:, None] - s[None, :]         # (36, 4)
    kw = dc[:, None] - t[None, :]
    valid = (kh >= 0) & (kh < KH) & (kw >= 0) & (kw < KW)
    wt = jnp.transpose(w, (2, 3, 1, 0))   # (KH, KW, C1, OC)
    g = wt[np.clip(kh, 0, KH - 1), np.clip(kw, 0, KW - 1)]         # (36,4,C1,OC)
    g = g * jnp.asarray(valid, jnp.float32)[:, :, None, None]
    return jnp.transpose(g, (0, 2, 1, 3)).reshape(36 * C, 4 * OC)


def prepare_params(p):
    """One-time parameter preparation (keep OUT of the per-call path)."""
    s1, t1 = _fold_bn(p["conv1_b"], p["bn_c1_g"], p["bn_c1_b"], p["bn_c1_m"], p["bn_c1_v"])
    s2, t2 = _fold_bn(p["conv2_b"], p["bn_c2_g"], p["bn_c2_b"], p["bn_c2_m"], p["bn_c2_v"])
    sf1, tf1 = _fold_bn(p["fc1_b"], p["bn1_g"], p["bn1_b"], p["bn1_m"], p["bn1_v"])
    sf2, tf2 = _fold_bn(p["fc2_b"], p["bn2_g"], p["bn2_b"], p["bn2_m"], p["bn2_v"])
    oc2 = p["conv2_w"].shape[0]
    h1 = p["fc1_w"].shape[0]
    d = int(round(np.sqrt(p["fc1_w"].shape[1] // oc2)))            # 5 for dims=32
    # PyTorch flattens (C, H, W); the kernel produces (H, W, C) -> permute the
    # fc1 columns once so no activation transpose is needed at run time.
    wf1 = jnp.transpose(p["fc1_w"].reshape(h1, oc2, d, d), (0, 2, 3, 1))
    wf1 = wf1.reshape(h1, d * d * oc2).T                           # (400, 120)
    # Pad the classifier to 128 lanes so the kernel output block is lane-dense.
    ncls = p["fc_w"].shape[0]
    npad = ((ncls + 127) // 128) * 128
    wf3 = jnp.zeros((p["fc_w"].shape[1], npad), jnp.float32).at[:, :ncls].set(p["fc_w"].T)
    bf3 = jnp.zeros((1, npad), jnp.float32).at[0, :ncls].set(p["fc_b"])
    bf16 = jnp.bfloat16
    return {
        "w1": _stage1_megaweight(p["conv1_w"]).astype(bf16),       # (64*C, 16*OC1)
        "s1": jnp.tile(s1, 16).reshape(1, -1), "t1": jnp.tile(t1, 16).reshape(1, -1),
        "w2": _stage2_megaweight(p["conv2_w"]).astype(bf16),       # (36*OC1, 4*OC2)
        "s2": jnp.tile(s2, 4).reshape(1, -1), "t2": jnp.tile(t2, 4).reshape(1, -1),
        "wf1": wf1.astype(bf16), "sf1": sf1.reshape(1, -1), "tf1": tf1.reshape(1, -1),
        "wf2": p["fc2_w"].T.astype(bf16),
        "sf2": sf2.reshape(1, -1), "tf2": tf2.reshape(1, -1),
        "wf3": wf3.astype(bf16), "bf3": bf3,
    }


# ------------------------- fused Pallas forward pass ------------------------ #

def _lenet_fused_call(x4, w, *, bt):
    """Single pallas_call for the whole network; each grid step = bt images.

    x4: (n_c1, n_c1, Bp, 16*C) bf16 space-to-depth(4) cell map, batch on dim 2
    so per-cell batch slabs are leading-dim indexed with no relayout.
    """
    n_c1, _, bp, c16 = x4.shape
    n_o1 = n_c1 - 1                  # layer-1 output cells per side (7 for 32x32)
    n_o2 = n_o1 - 2                  # layer-2 pooled outputs per side (5)
    M1, M2 = n_o1 * n_o1, n_o2 * n_o2
    K1, N1 = w["w1"].shape           # (192, 96)
    K2, N2 = w["w2"].shape           # (216, 64)
    OC1, OC2 = N1 // 16, N2 // 4     # 6, 16
    F, H1 = w["wf1"].shape           # (400, 120)
    H2 = w["wf2"].shape[1]           # 84
    NP = w["wf3"].shape[1]           # 128 (padded classes)
    assert bp % bt == 0 and bt % 16 == 0
    assert K1 == 4 * c16 and K2 == 9 * 4 * OC1 and F == M2 * OC2 and NP % 128 == 0

    def kernel(x_ref, w1_ref, s1_ref, t1_ref, w2_ref, s2_ref, t2_ref,
               wf1_ref, sf1_ref, tf1_ref, wf2_ref, sf2_ref, tf2_ref,
               wf3_ref, bf3_ref, out_ref, lhs1, lhs2):
        # ---- layer 1: conv5x5 + BN + ReLU + maxpool2, one MXU matmul -------
        # LHS rows ordered (conv block (i, j), image b); every store is a
        # dense (bt, K1) slab at a bf16-tile-aligned row offset.
        for i in range(n_o1):
            for j in range(n_o1):
                slab = jnp.concatenate(
                    [x_ref[i + di, j + dj] for di in range(2) for dj in range(2)],
                    axis=-1)                                        # (bt, K1) bf16
                lhs1[pl.ds((i * n_o1 + j) * bt, bt), :] = slab
        z1 = jnp.dot(lhs1[...], w1_ref[...], preferred_element_type=jnp.float32)
        y1 = jnp.maximum(z1 * s1_ref[...] + t1_ref[...], 0.0)       # (M1*bt, 16*OC1)
        g1 = 4 * OC1
        p1 = jnp.maximum(jnp.maximum(y1[:, 0:g1], y1[:, g1:2 * g1]),
                         jnp.maximum(y1[:, 2 * g1:3 * g1], y1[:, 3 * g1:4 * g1]))
        p1 = p1.astype(jnp.bfloat16)         # pooled conv1 map, rows (cell, image)

        # ---- layer 2: conv5x5 + BN + ReLU + maxpool2, one MXU matmul -------
        for oi in range(n_o2):
            for oj in range(n_o2):
                slab = jnp.concatenate(
                    [p1[((oi + wi) * n_o1 + (oj + wj)) * bt:
                        ((oi + wi) * n_o1 + (oj + wj) + 1) * bt, :]
                     for wi in range(3) for wj in range(3)], axis=-1)   # (bt, K2)
                lhs2[pl.ds((oi * n_o2 + oj) * bt, bt), :] = slab
        z2 = jnp.dot(lhs2[...], w2_ref[...], preferred_element_type=jnp.float32)
        y2 = jnp.maximum(z2 * s2_ref[...] + t2_ref[...], 0.0)       # (M2*bt, 4*OC2)
        p2 = jnp.maximum(jnp.maximum(y2[:, 0:OC2], y2[:, OC2:2 * OC2]),
                         jnp.maximum(y2[:, 2 * OC2:3 * OC2], y2[:, 3 * OC2:4 * OC2]))
        p2 = p2.astype(jnp.bfloat16)

        # ---- flatten (H, W, C): single value-level lane concat, no scratch -
        flat = jnp.concatenate([p2[s * bt:(s + 1) * bt, :] for s in range(M2)],
                               axis=-1)                              # (bt, F) bf16

        # ---- fused MLP head: fc1+BN+ReLU -> fc2+BN+ReLU -> fc --------------
        h = jnp.dot(flat, wf1_ref[...], preferred_element_type=jnp.float32)
        h = jnp.maximum(h * sf1_ref[...] + tf1_ref[...], 0.0).astype(jnp.bfloat16)
        h = jnp.dot(h, wf2_ref[...], preferred_element_type=jnp.float32)
        h = jnp.maximum(h * sf2_ref[...] + tf2_ref[...], 0.0).astype(jnp.bfloat16)
        out_ref[...] = (jnp.dot(h, wf3_ref[...], preferred_element_type=jnp.float32)
                        + bf3_ref[...])                              # (bt, NP) f32

    weight_args = (w["w1"], w["s1"], w["t1"], w["w2"], w["s2"], w["t2"],
                   w["wf1"], w["sf1"], w["tf1"], w["wf2"], w["sf2"], w["tf2"],
                   w["wf3"], w["bf3"])

    def _whole(a):                    # whole-array block; DMA'd once (constant index)
        return pl.BlockSpec(a.shape, lambda g: (0, 0))

    grid_spec = pltpu.PrefetchScalarGridSpec(
        num_scalar_prefetch=0,
        grid=(bp // bt,),
        in_specs=[pl.BlockSpec((n_c1, n_c1, bt, c16), lambda g: (0, 0, g, 0))]
                 + [_whole(a) for a in weight_args],
        out_specs=pl.BlockSpec((bt, NP), lambda g: (g, 0)),
        scratch_shapes=[
            pltpu.VMEM((M1 * bt, K1), jnp.bfloat16),   # layer-1 im2col LHS
            pltpu.VMEM((M2 * bt, K2), jnp.bfloat16),   # layer-2 im2col LHS
        ],
    )

    flops = 2 * bp * (M1 * K1 * N1 + M2 * K2 * N2 + F * H1 + H1 * H2 + H2 * NP)
    bytes_accessed = (int(x4.size) * x4.dtype.itemsize
                      + sum(int(np.prod(a.shape)) * a.dtype.itemsize
                            for a in weight_args)
                      + bp * NP * 4)
    cost = pl.CostEstimate(flops=flops, transcendentals=0,
                           bytes_accessed=int(bytes_accessed))

    return pl.pallas_call(
        kernel,
        out_shape=jax.ShapeDtypeStruct((bp, NP), jnp.float32),
        grid_spec=grid_spec,
        compiler_params=pltpu.CompilerParams(
            dimension_semantics=("parallel",)),    # batch tiles split across TCs
        cost_estimate=cost,
    )(x4, *weight_args)


@functools.partial(jax.jit, static_argnames=("num_classes", "bt"))
def lenet5_bn_forward_prepared(x_nchw, prep, *, num_classes=10, bt=16):
    B, C, H, W = x_nchw.shape
    assert H == W and H % 4 == 0, "spatial size must be a multiple of 4"
    assert bt % 16 == 0, "bt must be a multiple of 16 (bf16 sublane packing)"
    bp = ((B + bt - 1) // bt) * bt
    x = x_nchw.astype(jnp.bfloat16)
    if bp != B:
        x = jnp.pad(x, ((0, bp - B), (0, 0), (0, 0), (0, 0)))
    n = H // 4
    # NCHW -> space-to-depth(4) cell map, batch second-minor: (n, n, Bp, 16*C);
    # within-cell lane order = (row-in-cell, col-in-cell, channel).
    # For repeated inference over the same images, hoist/cache this relayout.
    x4 = (x.reshape(bp, C, n, 4, n, 4)
           .transpose(2, 4, 0, 3, 5, 1)
           .reshape(n, n, bp, 16 * C))
    out = _lenet_fused_call(x4, prep, bt=bt)         # (Bp, 128) f32, zero-padded cols
    return out[:B, :num_classes]


def lenet5_bn_forward(x_nchw, params, *, bt=16):
    """Parity wrapper with the PyTorch module signature (re-preps every call).
    Prefer prepare_params() once + lenet5_bn_forward_prepared() in a loop."""
    prep = prepare_params(params)
    return lenet5_bn_forward_prepared(x_nchw, prep,
                                      num_classes=params["fc_w"].shape[0], bt=bt)


# ----------------------- deterministic parameter init ----------------------- #

def init_params(key, input_channels=3, num_classes=10):
    ks = iter(jax.random.split(key, 32))
    n = lambda shape, s=0.1: s * jax.random.normal(next(ks), shape, jnp.float32)
    u = lambda shape: jax.random.uniform(next(ks), shape, jnp.float32, 0.5, 1.5)
    d = 5  # after two (conv5 + pool2) stages on dims=32
    return {
        "conv1_w": n((6, input_channels, 5, 5)), "conv1_b": n((6,)),
        "bn_c1_g": u((6,)), "bn_c1_b": n((6,)), "bn_c1_m": n((6,)), "bn_c1_v": u((6,)),
        "conv2_w": n((16, 6, 5, 5)), "conv2_b": n((16,)),
        "bn_c2_g": u((16,)), "bn_c2_b": n((16,)), "bn_c2_m": n((16,)), "bn_c2_v": u((16,)),
        "fc1_w": n((120, 16 * d * d)), "fc1_b": n((120,)),
        "bn1_g": u((120,)), "bn1_b": n((120,)), "bn1_m": n((120,)), "bn1_v": u((120,)),
        "fc2_w": n((84, 120)), "fc2_b": n((84,)),
        "bn2_g": u((84,)), "bn2_b": n((84,)), "bn2_m": n((84,)), "bn2_v": u((84,)),
        "fc_w": n((num_classes, 84)), "fc_b": n((num_classes,)),
    }


# ------------------------- pure-JAX reference check ------------------------- #

def _reference_forward(x, p):
    def conv(x, w, b):
        y = jax.lax.conv_general_dilated(
            x, w, (1, 1), "VALID", dimension_numbers=("NCHW", "OIHW", "NCHW"))
        return y + b[None, :, None, None]

    def bn(x, g, be, m, v):
        sh = [1] * x.ndim
        sh[1 if x.ndim == 4 else -1] = -1
        return ((x - m.reshape(sh)) / jnp.sqrt(v.reshape(sh) + EPS)
                * g.reshape(sh) + be.reshape(sh))

    def pool(x):
        return jax.lax.reduce_window(x, -jnp.inf, jax.lax.max,
                                     (1, 1, 2, 2), (1, 1, 2, 2), "VALID")

    h = pool(jnp.maximum(bn(conv(x, p["conv1_w"], p["conv1_b"]),
                            p["bn_c1_g"], p["bn_c1_b"], p["bn_c1_m"], p["bn_c1_v"]), 0))
    h = pool(jnp.maximum(bn(conv(h, p["conv2_w"], p["conv2_b"]),
                            p["bn_c2_g"], p["bn_c2_b"], p["bn_c2_m"], p["bn_c2_v"]), 0))
    h = h.reshape(h.shape[0], -1)
    h = jnp.maximum(bn(h @ p["fc1_w"].T + p["fc1_b"],
                       p["bn1_g"], p["bn1_b"], p["bn1_m"], p["bn1_v"]), 0)
    h = jnp.maximum(bn(h @ p["fc2_w"].T + p["fc2_b"],
                       p["bn2_g"], p["bn2_b"], p["bn2_m"], p["bn2_v"]), 0)
    return h @ p["fc_w"].T + p["fc_b"]


# ----------------------------------- main ------------------------------------ #

if __name__ == "__main__":
    key = jax.random.PRNGKey(0)
    k_x, k_p = jax.random.split(key)
    B = 32
    x = jax.random.normal(k_x, (B, 3, 32, 32), jnp.float32)   # NCHW, dims=32
    params = init_params(k_p)

    prep = prepare_params(params)     # one-time: BN fold, mega-weights, bf16 cast
    out = jax.block_until_ready(
        lenet5_bn_forward_prepared(x, prep, num_classes=10, bt=16))
    assert out.shape == (B, 10), out.shape

    ref = jax.block_until_ready(_reference_forward(x, params))
    err = float(jnp.max(jnp.abs(out - ref)))
    # bf16 MXU operands with f32 accumulation -> ~1e-2-level max deviation.
    assert jnp.allclose(out, ref, rtol=2e-2, atol=2e-2), err

    print("KERNEL_OK")
</pallas_src>

<mosaic_0001>
module attributes {stable_mosaic.version = 11 : i64} {
  func.func @kernel(%arg0: i32, %arg1: memref<8x8x16x48xbf16, #tpu.memory_space<vmem>>, %arg2: memref<192x96xbf16, #tpu.memory_space<vmem>>, %arg3: memref<1x96xf32, #tpu.memory_space<vmem>>, %arg4: memref<1x96xf32, #tpu.memory_space<vmem>>, %arg5: memref<216x64xbf16, #tpu.memory_space<vmem>>, %arg6: memref<1x64xf32, #tpu.memory_space<vmem>>, %arg7: memref<1x64xf32, #tpu.memory_space<vmem>>, %arg8: memref<400x120xbf16, #tpu.memory_space<vmem>>, %arg9: memref<1x120xf32, #tpu.memory_space<vmem>>, %arg10: memref<1x120xf32, #tpu.memory_space<vmem>>, %arg11: memref<120x84xbf16, #tpu.memory_space<vmem>>, %arg12: memref<1x84xf32, #tpu.memory_space<vmem>>, %arg13: memref<1x84xf32, #tpu.memory_space<vmem>>, %arg14: memref<84x128xbf16, #tpu.memory_space<vmem>>, %arg15: memref<1x128xf32, #tpu.memory_space<vmem>>, %arg16: memref<16x128xf32, #tpu.memory_space<vmem>>, %arg17: memref<784x192xbf16, #tpu.memory_space<vmem>>, %arg18: memref<400x216xbf16, #tpu.memory_space<vmem>>) attributes {dimension_semantics = [#tpu.dimension_semantics<parallel>], iteration_bounds = array<i64: 2>, scalar_prefetch = 0 : i64, scratch_operands = 2 : i64, tpu.core_type = #tpu.core_type<tc>, window_params = [{transform_indices = @transform_0, window_bounds = array<i64: 8, 8, 16, 48>}, {pipeline_mode = #tpu.pipeline_mode<synchronous>, transform_indices = @transform_1, window_bounds = array<i64: 192, 96>}, {pipeline_mode = #tpu.pipeline_mode<synchronous>, transform_indices = @transform_2, window_bounds = array<i64: 1, 96>}, {pipeline_mode = #tpu.pipeline_mode<synchronous>, transform_indices = @transform_3, window_bounds = array<i64: 1, 96>}, {pipeline_mode = #tpu.pipeline_mode<synchronous>, transform_indices = @transform_4, window_bounds = array<i64: 216, 64>}, {pipeline_mode = #tpu.pipeline_mode<synchronous>, transform_indices = @transform_5, window_bounds = array<i64: 1, 64>}, {pipeline_mode = #tpu.pipeline_mode<synchronous>, transform_indices = @transform_6, window_bounds = array<i64: 1, 64>}, {pipeline_mode = #tpu.pipeline_mode<synchronous>, transform_indices = @transform_7, window_bounds = array<i64: 400, 120>}, {pipeline_mode = #tpu.pipeline_mode<synchronous>, transform_indices = @transform_8, window_bounds = array<i64: 1, 120>}, {pipeline_mode = #tpu.pipeline_mode<synchronous>, transform_indices = @transform_9, window_bounds = array<i64: 1, 120>}, {pipeline_mode = #tpu.pipeline_mode<synchronous>, transform_indices = @transform_10, window_bounds = array<i64: 120, 84>}, {pipeline_mode = #tpu.pipeline_mode<synchronous>, transform_indices = @transform_11, window_bounds = array<i64: 1, 84>}, {pipeline_mode = #tpu.pipeline_mode<synchronous>, transform_indices = @transform_12, window_bounds = array<i64: 1, 84>}, {pipeline_mode = #tpu.pipeline_mode<synchronous>, transform_indices = @transform_13, window_bounds = array<i64: 84, 128>}, {pipeline_mode = #tpu.pipeline_mode<synchronous>, transform_indices = @transform_14, window_bounds = array<i64: 1, 128>}, {transform_indices = @transform_15, window_bounds = array<i64: 16, 128>}]} {
    %c0 = arith.constant 0 : index
    %c0_0 = arith.constant 0 : index
    %c0_1 = arith.constant 0 : index
    %c0_2 = arith.constant 0 : index
    %0 = vector.load %arg1[%c0, %c0_0, %c0_1, %c0_2] : memref<8x8x16x48xbf16, #tpu.memory_space<vmem>>, vector<1x1x16x48xbf16>
    %1 = vector.shape_cast %0 : vector<1x1x16x48xbf16> to vector<16x48xbf16>
    %c0_3 = arith.constant 0 : index
    %c1 = arith.constant 1 : index
    %c0_4 = arith.constant 0 : index
    %c0_5 = arith.constant 0 : index
    %2 = vector.load %arg1[%c0_3, %c1, %c0_4, %c0_5] : memref<8x8x16x48xbf16, #tpu.memory_space<vmem>>, vector<1x1x16x48xbf16>
    %3 = vector.shape_cast %2 : vector<1x1x16x48xbf16> to vector<16x48xbf16>
    %c1_6 = arith.constant 1 : index
    %c0_7 = arith.constant 0 : index
    %c0_8 = arith.constant 0 : index
    %c0_9 = arith.constant 0 : index
    %4 = vector.load %arg1[%c1_6, %c0_7, %c0_8, %c0_9] : memref<8x8x16x48xbf16, #tpu.memory_space<vmem>>, vector<1x1x16x48xbf16>
    %5 = vector.shape_cast %4 : vector<1x1x16x48xbf16> to vector<16x48xbf16>
    %c1_10 = arith.constant 1 : index
    %c1_11 = arith.constant 1 : index
    %c0_12 = arith.constant 0 : index
    %c0_13 = arith.constant 0 : index
    %6 = vector.load %arg1[%c1_10, %c1_11, %c0_12, %c0_13] : memref<8x8x16x48xbf16, #tpu.memory_space<vmem>>, vector<1x1x16x48xbf16>
    %7 = vector.shape_cast %6 : vector<1x1x16x48xbf16> to vector<16x48xbf16>
    %8 = tpu.concatenate %1, %3, %5, %7 in 1 : vector<16x48xbf16>, vector<16x48xbf16>, vector<16x48xbf16>, vector<16x48xbf16> -> vector<16x192xbf16>
    %c0_14 = arith.constant 0 : index
    %c0_15 = arith.constant 0 : index
    %9 = vector.load %arg17[%c0_14, %c0_15] : memref<784x192xbf16, #tpu.memory_space<vmem>>, vector<16x192xbf16>
    tpu.vector_store %arg17[%c0_14, %c0_15], %8 {strides = array<i32>} : memref<784x192xbf16, #tpu.memory_space<vmem>>, vector<16x192xbf16>,
    %c0_16 = arith.constant 0 : index
    %c1_17 = arith.constant 1 : index
    %c0_18 = arith.constant 0 : index
    %c0_19 = arith.constant 0 : index
    %10 = vector.load %arg1[%c0_16, %c1_17, %c0_18, %c0_19] : memref<8x8x16x48xbf16, #tpu.memory_space<vmem>>, vector<1x1x16x48xbf16>
    %11 = vector.shape_cast %10 : vector<1x1x16x48xbf16> to vector<16x48xbf16>
    %c0_20 = arith.constant 0 : index
    %c2 = arith.constant 2 : index
    %c0_21 = arith.constant 0 : index
    %c0_22 = arith.constant 0 : index
    %12 = vector.load %arg1[%c0_20, %c2, %c0_21, %c0_22] : memref<8x8x16x48xbf16, #tpu.memory_space<vmem>>, vector<1x1x16x48xbf16>
    %13 = vector.shape_cast %12 : vector<1x1x16x48xbf16> to vector<16x48xbf16>
    %c1_23 = arith.constant 1 : index
    %c1_24 = arith.constant 1 : index
    %c0_25 = arith.constant 0 : index
    %c0_26 = arith.constant 0 : index
    %14 = vector.load %arg1[%c1_23, %c1_24, %c0_25, %c0_26] : memref<8x8x16x48xbf16, #tpu.memory_space<vmem>>, vector<1x1x16x48xbf16>
    %15 = vector.shape_cast %14 : vector<1x1x16x48xbf16> to vector<16x48xbf16>
    %c1_27 = arith.constant 1 : index
    %c2_28 = arith.constant 2 : index
    %c0_29 = arith.constant 0 : index
    %c0_30 = arith.constant 0 : index
    %16 = vector.load %arg1[%c1_27, %c2_28, %c0_29, %c0_30] : memref<8x8x16x48xbf16, #tpu.memory_space<vmem>>, vector<1x1x16x48xbf16>
    %17 = vector.shape_cast %16 : vector<1x1x16x48xbf16> to vector<16x48xbf16>
    %18 = tpu.concatenate %11, %13, %15, %17 in 1 : vector<16x48xbf16>, vector<16x48xbf16>, vector<16x48xbf16>, vector<16x48xbf16> -> vector<16x192xbf16>
    %c16 = arith.constant 16 : index
    %c0_31 = arith.constant 0 : index
    %19 = vector.load %arg17[%c16, %c0_31] : memref<784x192xbf16, #tpu.memory_space<vmem>>, vector<16x192xbf16>
    tpu.vector_store %arg17[%c16, %c0_31], %18 {strides = array<i32>} : memref<784x192xbf16, #tpu.memory_space<vmem>>, vector<16x192xbf16>,
    %c0_32 = arith.constant 0 : index
    %c2_33 = arith.constant 2 : index
    %c0_34 = arith.constant 0 : index
    %c0_35 = arith.constant 0 : index
    %20 = vector.load %arg1[%c0_32, %c2_33, %c0_34, %c0_35] : memref<8x8x16x48xbf16, #tpu.memory_space<vmem>>, vector<1x1x16x48xbf16>
    %21 = vector.shape_cast %20 : vector<1x1x16x48xbf16> to vector<16x48xbf16>
    %c0_36 = arith.constant 0 : index
    %c3 = arith.constant 3 : index
    %c0_37 = arith.constant 0 : index
    %c0_38 = arith.constant 0 : index
    %22 = vector.load %arg1[%c0_36, %c3, %c0_37, %c0_38] : memref<8x8x16x48xbf16, #tpu.memory_space<vmem>>, vector<1x1x16x48xbf16>
    %23 = vector.shape_cast %22 : vector<1x1x16x48xbf16> to vector<16x48xbf16>
    %c1_39 = arith.constant 1 : index
    %c2_40 = arith.constant 2 : index
    %c0_41 = arith.constant 0 : index
    %c0_42 = arith.constant 0 : index
    %24 = vector.load %arg1[%c1_39, %c2_40, %c0_41, %c0_42] : memref<8x8x16x48xbf16, #tpu.memory_space<vmem>>, vector<1x1x16x48xbf16>
    %25 = vector.shape_cast %24 : vector<1x1x16x48xbf16> to vector<16x48xbf16>
    %c1_43 = arith.constant 1 : index
    %c3_44 = arith.constant 3 : index
    %c0_45 = arith.constant 0 : index
    %c0_46 = arith.constant 0 : index
    %26 = vector.load %arg1[%c1_43, %c3_44, %c0_45, %c0_46] : memref<8x8x16x48xbf16, #tpu.memory_space<vmem>>, vector<1x1x16x48xbf16>
    %27 = vector.shape_cast %26 : vector<1x1x16x48xbf16> to vector<16x48xbf16>
    %28 = tpu.concatenate %21, %23, %25, %27 in 1 : vector<16x48xbf16>, vector<16x48xbf16>, vector<16x48xbf16>, vector<16x48xbf16> -> vector<16x192xbf16>
    %c32 = arith.constant 32 : index
    %c0_47 = arith.constant 0 : index
    %29 = vector.load %arg17[%c32, %c0_47] : memref<784x192xbf16, #tpu.memory_space<vmem>>, vector<16x192xbf16>
    tpu.vector_store %arg17[%c32, %c0_47], %28 {strides = array<i32>} : memref<784x192xbf16, #tpu.memory_space<vmem>>, vector<16x192xbf16>,
    %c0_48 = arith.constant 0 : index
    %c3_49 = arith.constant 3 : index
    %c0_50 = arith.constant 0 : index
    %c0_51 = arith.constant 0 : index
    %30 = vector.load %arg1[%c0_48, %c3_49, %c0_50, %c0_51] : memref<8x8x16x48xbf16, #tpu.memory_space<vmem>>, vector<1x1x16x48xbf16>
    %31 = vector.shape_cast %30 : vector<1x1x16x48xbf16> to vector<16x48xbf16>
    %c0_52 = arith.constant 0 : index
    %c4 = arith.constant 4 : index
    %c0_53 = arith.constant 0 : index
    %c0_54 = arith.constant 0 : index
    %32 = vector.load %arg1[%c0_52, %c4, %c0_53, %c0_54] : memref<8x8x16x48xbf16, #tpu.memory_space<vmem>>, vector<1x1x16x48xbf16>
    %33 = vector.shape_cast %32 : vector<1x1x16x48xbf16> to vector<16x48xbf16>
    %c1_55 = arith.constant 1 : index
    %c3_56 = arith.constant 3 : index
    %c0_57 = arith.constant 0 : index
    %c0_58 = arith.constant 0 : index
    %34 = vector.load %arg1[%c1_55, %c3_56, %c0_57, %c0_58] : memref<8x8x16x48xbf16, #tpu.memory_space<vmem>>, vector<1x1x16x48xbf16>
    %35 = vector.shape_cast %34 : vector<1x1x16x48xbf16> to vector<16x48xbf16>
    %c1_59 = arith.constant 1 : index
    %c4_60 = arith.constant 4 : index
    %c0_61 = arith.constant 0 : index
    %c0_62 = arith.constant 0 : index
    %36 = vector.load %arg1[%c1_59, %c4_60, %c0_61, %c0_62] : memref<8x8x16x48xbf16, #tpu.memory_space<vmem>>, vector<1x1x16x48xbf16>
    %37 = vector.shape_cast %36 : vector<1x1x16x48xbf16> to vector<16x48xbf16>
    %38 = tpu.concatenate %31, %33, %35, %37 in 1 : vector<16x48xbf16>, vector<16x48xbf16>, vector<16x48xbf16>, vector<16x48xbf16> -> vector<16x192xbf16>
    %c48 = arith.constant 48 : index
    %c0_63 = arith.constant 0 : index
    %39 = vector.load %arg17[%c48, %c0_63] : memref<784x192xbf16, #tpu.memory_space<vmem>>, vector<16x192xbf16>
    tpu.vector_store %arg17[%c48, %c0_63], %38 {strides = array<i32>} : memref<784x192xbf16, #tpu.memory_space<vmem>>, vector<16x192xbf16>,
    %c0_64 = arith.constant 0 : index
    %c4_65 = arith.constant 4 : index
    %c0_66 = arith.constant 0 : index
    %c0_67 = arith.constant 0 : index
    %40 = vector.load %arg1[%c0_64, %c4_65, %c0_66, %c0_67] : memref<8x8x16x48xbf16, #tpu.memory_space<vmem>>, vector<1x1x16x48xbf16>
    %41 = vector.shape_cast %40 : vector<1x1x16x48xbf16> to vector<16x48xbf16>
    %c0_68 = arith.constant 0 : index
    %c5 = arith.constant 5 : index
    %c0_69 = arith.constant 0 : index
    %c0_70 = arith.constant 0 : index
    %42 = vector.load %arg1[%c0_68, %c5, %c0_69, %c0_70] : memref<8x8x16x48xbf16, #tpu.memory_space<vmem>>, vector<1x1x16x48xbf16>
    %43 = vector.shape_cast %42 : vector<1x1x16x48xbf16> to vector<16x48xbf16>
    %c1_71 = arith.constant 1 : index
    %c4_72 = arith.constant 4 : index
    %c0_73 = arith.constant 0 : index
    %c0_74 = arith.constant 0 : index
    %44 = vector.load %arg1[%c1_71, %c4_72, %c0_73, %c0_74] : memref<8x8x16x48xbf16, #tpu.memory_space<vmem>>, vector<1x1x16x48xbf16>
    %45 = vector.shape_cast %44 : vector<1x1x16x48xbf16> to vector<16x48xbf16>
    %c1_75 = arith.constant 1 : index
    %c5_76 = arith.constant 5 : index
    %c0_77 = arith.constant 0 : index
    %c0_78 = arith.constant 0 : index
    %46 = vector.load %arg1[%c1_75, %c5_76, %c0_77, %c0_78] : memref<8x8x16x48xbf16, #tpu.memory_space<vmem>>, vector<1x1x16x48xbf16>
    %47 = vector.shape_cast %46 : vector<1x1x16x48xbf16> to vector<16x48xbf16>
    %48 = tpu.concatenate %41, %43, %45, %47 in 1 : vector<16x48xbf16>, vector<16x48xbf16>, vector<16x48xbf16>, vector<16x48xbf16> -> vector<16x192xbf16>
    %c64 = arith.constant 64 : index
    %c0_79 = arith.constant 0 : index
    %49 = vector.load %arg17[%c64, %c0_79] : memref<784x192xbf16, #tpu.memory_space<vmem>>, vector<16x192xbf16>
    tpu.vector_store %arg17[%c64, %c0_79], %48 {strides = array<i32>} : memref<784x192xbf16, #tpu.memory_space<vmem>>, vector<16x192xbf16>,
    %c0_80 = arith.constant 0 : index
    %c5_81 = arith.constant 5 : index
    %c0_82 = arith.constant 0 : index
    %c0_83 = arith.constant 0 : index
    %50 = vector.load %arg1[%c0_80, %c5_81, %c0_82, %c0_83] : memref<8x8x16x48xbf16, #tpu.memory_space<vmem>>, vector<1x1x16x48xbf16>
    %51 = vector.shape_cast %50 : vector<1x1x16x48xbf16> to vector<16x48xbf16>
    %c0_84 = arith.constant 0 : index
    %c6 = arith.constant 6 : index
    %c0_85 = arith.constant 0 : index
    %c0_86 = arith.constant 0 : index
    %52 = vector.load %arg1[%c0_84, %c6, %c0_85, %c0_86] : memref<8x8x16x48xbf16, #tpu.memory_space<vmem>>, vector<1x1x16x48xbf16>
    %53 = vector.shape_cast %52 : vector<1x1x16x48xbf16> to vector<16x48xbf16>
    %c1_87 = arith.constant 1 : index
    %c5_88 = arith.constant 5 : index
    %c0_89 = arith.constant 0 : index
    %c0_90 = arith.constant 0 : index
    %54 = vector.load %arg1[%c1_87, %c5_88, %c0_89, %c0_90] : memref<8x8x16x48xbf16, #tpu.memory_space<vmem>>, vector<1x1x16x48xbf16>
    %55 = vector.shape_cast %54 : vector<1x1x16x48xbf16> to vector<16x48xbf16>
    %c1_91 = arith.constant 1 : index
    %c6_92 = arith.constant 6 : index
    %c0_93 = arith.constant 0 : index
    %c0_94 = arith.constant 0 : index
    %56 = vector.load %arg1[%c1_91, %c6_92, %c0_93, %c0_94] : memref<8x8x16x48xbf16, #tpu.memory_space<vmem>>, vector<1x1x16x48xbf16>
    %57 = vector.shape_cast %56 : vector<1x1x16x48xbf16> to vector<16x48xbf16>
    %58 = tpu.concatenate %51, %53, %55, %57 in 1 : vector<16x48xbf16>, vector<16x48xbf16>, vector<16x48xbf16>, vector<16x48xbf16> -> vector<16x192xbf16>
    %c80 = arith.constant 80 : index
    %c0_95 = arith.constant 0 : index
    %59 = vector.load %arg17[%c80, %c0_95] : memref<784x192xbf16, #tpu.memory_space<vmem>>, vector<16x192xbf16>
    tpu.vector_store %arg17[%c80, %c0_95], %58 {strides = array<i32>} : memref<784x192xbf16, #tpu.memory_space<vmem>>, vector<16x192xbf16>,
    %c0_96 = arith.constant 0 : index
    %c6_97 = arith.constant 6 : index
    %c0_98 = arith.constant 0 : index
    %c0_99 = arith.constant 0 : index
    %60 = vector.load %arg1[%c0_96, %c6_97, %c0_98, %c0_99] : memref<8x8x16x48xbf16, #tpu.memory_space<vmem>>, vector<1x1x16x48xbf16>
    %61 = vector.shape_cast %60 : vector<1x1x16x48xbf16> to vector<16x48xbf16>
    %c0_100 = arith.constant 0 : index
    %c7 = arith.constant 7 : index
    %c0_101 = arith.constant 0 : index
    %c0_102 = arith.constant 0 : index
    %62 = vector.load %arg1[%c0_100, %c7, %c0_101, %c0_102] : memref<8x8x16x48xbf16, #tpu.memory_space<vmem>>, vector<1x1x16x48xbf16>
    %63 = vector.shape_cast %62 : vector<1x1x16x48xbf16> to vector<16x48xbf16>
    %c1_103 = arith.constant 1 : index
    %c6_104 = arith.constant 6 : index
    %c0_105 = arith.constant 0 : index
    %c0_106 = arith.constant 0 : index
    %64 = vector.load %arg1[%c1_103, %c6_104, %c0_105, %c0_106] : memref<8x8x16x48xbf16, #tpu.memory_space<vmem>>, vector<1x1x16x48xbf16>
    %65 = vector.shape_cast %64 : vector<1x1x16x48xbf16> to vector<16x48xbf16>
    %c1_107 = arith.constant 1 : index
    %c7_108 = arith.constant 7 : index
    %c0_109 = arith.constant 0 : index
    %c0_110 = arith.constant 0 : index
    %66 = vector.load %arg1[%c1_107, %c7_108, %c0_109, %c0_110] : memref<8x8x16x48xbf16, #tpu.memory_space<vmem>>, vector<1x1x16x48xbf16>
    %67 = vector.shape_cast %66 : vector<1x1x16x48xbf16> to vector<16x48xbf16>
    %68 = tpu.concatenate %61, %63, %65, %67 in 1 : vector<16x48xbf16>, vector<16x48xbf16>, vector<16x48xbf16>, vector<16x48xbf16> -> vector<16x192xbf16>
    %c96 = arith.constant 96 : index
    %c0_111 = arith.constant 0 : index
    %69 = vector.load %arg17[%c96, %c0_111] : memref<784x192xbf16, #tpu.memory_space<vmem>>, vector<16x192xbf16>
    tpu.vector_store %arg17[%c96, %c0_111], %68 {strides = array<i32>} : memref<784x192xbf16, #tpu.memory_space<vmem>>, vector<16x192xbf16>,
    %c1_112 = arith.constant 1 : index
    %c0_113 = arith.constant 0 : index
    %c0_114 = arith.constant 0 : index
    %c0_115 = arith.constant 0 : index
    %70 = vector.load %arg1[%c1_112, %c0_113, %c0_114, %c0_115] : memref<8x8x16x48xbf16, #tpu.memory_space<vmem>>, vector<1x1x16x48xbf16>
    %71 = vector.shape_cast %70 : vector<1x1x16x48xbf16> to vector<16x48xbf16>
    %c1_116 = arith.constant 1 : index
    %c1_117 = arith.constant 1 : index
    %c0_118 = arith.constant 0 : index
    %c0_119 = arith.constant 0 : index
    %72 = vector.load %arg1[%c1_116, %c1_117, %c0_118, %c0_119] : memref<8x8x16x48xbf16, #tpu.memory_space<vmem>>, vector<1x1x16x48xbf16>
    %73 = vector.shape_cast %72 : vector<1x1x16x48xbf16> to vector<16x48xbf16>
    %c2_120 = arith.constant 2 : index
    %c0_121 = arith.constant 0 : index
    %c0_122 = arith.constant 0 : index
    %c0_123 = arith.constant 0 : index
    %74 = vector.load %arg1[%c2_120, %c0_121, %c0_122, %c0_123] : memref<8x8x16x48xbf16, #tpu.memory_space<vmem>>, vector<1x1x16x48xbf16>
    %75 = vector.shape_cast %74 : vector<1x1x16x48xbf16> to vector<16x48xbf16>
    %c2_124 = arith.constant 2 : index
    %c1_125 = arith.constant 1 : index
    %c0_126 = arith.constant 0 : index
    %c0_127 = arith.constant 0 : index
    %76 = vector.load %arg1[%c2_124, %c1_125, %c0_126, %c0_127] : memref<8x8x16x48xbf16, #tpu.memory_space<vmem>>, vector<1x1x16x48xbf16>
    %77 = vector.shape_cast %76 : vector<1x1x16x48xbf16> to vector<16x48xbf16>
    %78 = tpu.concatenate %71, %73, %75, %77 in 1 : vector<16x48xbf16>, vector<16x48xbf16>, vector<16x48xbf16>, vector<16x48xbf16> -> vector<16x192xbf16>
    %c112 = arith.constant 112 : index
    %c0_128 = arith.constant 0 : index
    %79 = vector.load %arg17[%c112, %c0_128] : memref<784x192xbf16, #tpu.memory_space<vmem>>, vector<16x192xbf16>
    tpu.vector_store %arg17[%c112, %c0_128], %78 {strides = array<i32>} : memref<784x192xbf16, #tpu.memory_space<vmem>>, vector<16x192xbf16>,
    %c1_129 = arith.constant 1 : index
    %c1_130 = arith.constant 1 : index
    %c0_131 = arith.constant 0 : index
    %c0_132 = arith.constant 0 : index
    %80 = vector.load %arg1[%c1_129, %c1_130, %c0_131, %c0_132] : memref<8x8x16x48xbf16, #tpu.memory_space<vmem>>, vector<1x1x16x48xbf16>
    %81 = vector.shape_cast %80 : vector<1x1x16x48xbf16> to vector<16x48xbf16>
    %c1_133 = arith.constant 1 : index
    %c2_134 = arith.constant 2 : index
    %c0_135 = arith.constant 0 : index
    %c0_136 = arith.constant 0 : index
    %82 = vector.load %arg1[%c1_133, %c2_134, %c0_135, %c0_136] : memref<8x8x16x48xbf16, #tpu.memory_space<vmem>>, vector<1x1x16x48xbf16>
    %83 = vector.shape_cast %82 : vector<1x1x16x48xbf16> to vector<16x48xbf16>
    %c2_137 = arith.constant 2 : index
    %c1_138 = arith.constant 1 : index
    %c0_139 = arith.constant 0 : index
    %c0_140 = arith.constant 0 : index
    %84 = vector.load %arg1[%c2_137, %c1_138, %c0_139, %c0_140] : memref<8x8x16x48xbf16, #tpu.memory_space<vmem>>, vector<1x1x16x48xbf16>
    %85 = vector.shape_cast %84 : vector<1x1x16x48xbf16> to vector<16x48xbf16>
    %c2_141 = arith.constant 2 : index
    %c2_142 = arith.constant 2 : index
    %c0_143 = arith.constant 0 : index
    %c0_144 = arith.constant 0 : index
    %86 = vector.load %arg1[%c2_141, %c2_142, %c0_143, %c0_144] : memref<8x8x16x48xbf16, #tpu.memory_space<vmem>>, vector<1x1x16x48xbf16>
    %87 = vector.shape_cast %86 : vector<1x1x16x48xbf16> to vector<16x48xbf16>
    %88 = tpu.concatenate %81, %83, %85, %87 in 1 : vector<16x48xbf16>, vector<16x48xbf16>, vector<16x48xbf16>, vector<16x48xbf16> -> vector<16x192xbf16>
    %c128 = arith.constant 128 : index
    %c0_145 = arith.constant 0 : index
    %89 = vector.load %arg17[%c128, %c0_145] : memref<784x192xbf16, #tpu.memory_space<vmem>>, vector<16x192xbf16>
    tpu.vector_store %arg17[%c128, %c0_145], %88 {strides = array<i32>} : memref<784x192xbf16, #tpu.memory_space<vmem>>, vector<16x192xbf16>,
    %c1_146 = arith.constant 1 : index
    %c2_147 = arith.constant 2 : index
    %c0_148 = arith.constant 0 : index
    %c0_149 = arith.constant 0 : index
    %90 = vector.load %arg1[%c1_146, %c2_147, %c0_148, %c0_149] : memref<8x8x16x48xbf16, #tpu.memory_space<vmem>>, vector<1x1x16x48xbf16>
    %91 = vector.shape_cast %90 : vector<1x1x16x48xbf16> to vector<16x48xbf16>
    %c1_150 = arith.constant 1 : index
    %c3_151 = arith.constant 3 : index
    %c0_152 = arith.constant 0 : index
    %c0_153 = arith.constant 0 : index
    %92 = vector.load %arg1[%c1_150, %c3_151, %c0_152, %c0_153] : memref<8x8x16x48xbf16, #tpu.memory_space<vmem>>, vector<1x1x16x48xbf16>
    %93 = vector.shape_cast %92 : vector<1x1x16x48xbf16> to vector<16x48xbf16>
    %c2_154 = arith.constant 2 : index
    %c2_155 = arith.constant 2 : index
    %c0_156 = arith.constant 0 : index
    %c0_157 = arith.constant 0 : index
    %94 = vector.load %arg1[%c2_154, %c2_155, %c0_156, %c0_157] : memref<8x8x16x48xbf16, #tpu.memory_space<vmem>>, vector<1x1x16x48xbf16>
    %95 = vector.shape_cast %94 : vector<1x1x16x48xbf16> to vector<16x48xbf16>
    %c2_158 = arith.constant 2 : index
    %c3_159 = arith.constant 3 : index
    %c0_160 = arith.constant 0 : index
    %c0_161 = arith.constant 0 : index
    %96 = vector.load %arg1[%c2_158, %c3_159, %c0_160, %c0_161] : memref<8x8x16x48xbf16, #tpu.memory_space<vmem>>, vector<1x1x16x48xbf16>
    %97 = vector.shape_cast %96 : vector<1x1x16x48xbf16> to vector<16x48xbf16>
    %98 = tpu.concatenate %91, %93, %95, %97 in 1 : vector<16x48xbf16>, vector<16x48xbf16>, vector<16x48xbf16>, vector<16x48xbf16> -> vector<16x192xbf16>
    %c144 = arith.constant 144 : index
    %c0_162 = arith.constant 0 : index
    %99 = vector.load %arg17[%c144, %c0_162] : memref<784x192xbf16, #tpu.memory_space<vmem>>, vector<16x192xbf16>
    tpu.vector_store %arg17[%c144, %c0_162], %98 {strides = array<i32>} : memref<784x192xbf16, #tpu.memory_space<vmem>>, vector<16x192xbf16>,
    %c1_163 = arith.constant 1 : index
    %c3_164 = arith.constant 3 : index
    %c0_165 = arith.constant 0 : index
    %c0_166 = arith.constant 0 : index
    %100 = vector.load %arg1[%c1_163, %c3_164, %c0_165, %c0_166] : memref<8x8x16x48xbf16, #tpu.memory_space<vmem>>, vector<1x1x16x48xbf16>
    %101 = vector.shape_cast %100 : vector<1x1x16x48xbf16> to vector<16x48xbf16>
    %c1_167 = arith.constant 1 : index
    %c4_168 = arith.constant 4 : index
    %c0_169 = arith.constant 0 : index
    %c0_170 = arith.constant 0 : index
    %102 = vector.load %arg1[%c1_167, %c4_168, %c0_169, %c0_170] : memref<8x8x16x48xbf16, #tpu.memory_space<vmem>>, vector<1x1x16x48xbf16>
    %103 = vector.shape_cast %102 : vector<1x1x16x48xbf16> to vector<16x48xbf16>
    %c2_171 = arith.constant 2 : index
    %c3_172 = arith.constant 3 : index
    %c0_173 = arith.constant 0 : index
    %c0_174 = arith.constant 0 : index
    %104 = vector.load %arg1[%c2_171, %c3_172, %c0_173, %c0_174] : memref<8x8x16x48xbf16, #tpu.memory_space<vmem>>, vector<1x1x16x48xbf16>
    %105 = vector.shape_cast %104 : vector<1x1x16x48xbf16> to vector<16x48xbf16>
    %c2_175 = arith.constant 2 : index
    %c4_176 = arith.constant 4 : index
    %c0_177 = arith.constant 0 : index
    %c0_178 = arith.constant 0 : index
    %106 = vector.load %arg1[%c2_175, %c4_176, %c0_177, %c0_178] : memref<8x8x16x48xbf16, #tpu.memory_space<vmem>>, vector<1x1x16x48xbf16>
    %107 = vector.shape_cast %106 : vector<1x1x16x48xbf16> to vector<16x48xbf16>
    %108 = tpu.concatenate %101, %103, %105, %107 in 1 : vector<16x48xbf16>, vector<16x48xbf16>, vector<16x48xbf16>, vector<16x48xbf16> -> vector<16x192xbf16>
    %c160 = arith.constant 160 : index
    %c0_179 = arith.constant 0 : index
    %109 = vector.load %arg17[%c160, %c0_179] : memref<784x192xbf16, #tpu.memory_space<vmem>>, vector<16x192xbf16>
    tpu.vector_store %arg17[%c160, %c0_179], %108 {strides = array<i32>} : memref<784x192xbf16, #tpu.memory_space<vmem>>, vector<16x192xbf16>,
    %c1_180 = arith.constant 1 : index
    %c4_181 = arith.constant 4 : index
    %c0_182 = arith.constant 0 : index
    %c0_183 = arith.constant 0 : index
    %110 = vector.load %arg1[%c1_180, %c4_181, %c0_182, %c0_183] : memref<8x8x16x48xbf16, #tpu.memory_space<vmem>>, vector<1x1x16x48xbf16>
    %111 = vector.shape_cast %110 : vector<1x1x16x48xbf16> to vector<16x48xbf16>
    %c1_184 = arith.constant 1 : index
    %c5_185 = arith.constant 5 : index
    %c0_186 = arith.constant 0 : index
    %c0_187 = arith.constant 0 : index
    %112 = vector.load %arg1[%c1_184, %c5_185, %c0_186, %c0_187] : memref<8x8x16x48xbf16, #tpu.memory_space<vmem>>, vector<1x1x16x48xbf16>
    %113 = vector.shape_cast %112 : vector<1x1x16x48xbf16> to vector<16x48xbf16>
    %c2_188 = arith.constant 2 : index
    %c4_189 = arith.constant 4 : index
    %c0_190 = arith.constant 0 : index
    %c0_191 = arith.constant 0 : index
    %114 = vector.load %arg1[%c2_188, %c4_189, %c0_190, %c0_191] : memref<8x8x16x48xbf16, #tpu.memory_space<vmem>>, vector<1x1x16x48xbf16>
    %115 = vector.shape_cast %114 : vector<1x1x16x48xbf16> to vector<16x48xbf16>
    %c2_192 = arith.constant 2 : index
    %c5_193 = arith.constant 5 : index
    %c0_194 = arith.constant 0 : index
    %c0_195 = arith.constant 0 : index
    %116 = vector.load %arg1[%c2_192, %c5_193, %c0_194, %c0_195] : memref<8x8x16x48xbf16, #tpu.memory_space<vmem>>, vector<1x1x16x48xbf16>
    %117 = vector.shape_cast %116 : vector<1x1x16x48xbf16> to vector<16x48xbf16>
    %118 = tpu.concatenate %111, %113, %115, %117 in 1 : vector<16x48xbf16>, vector<16x48xbf16>, vector<16x48xbf16>, vector<16x48xbf16> -> vector<16x192xbf16>
    %c176 = arith.constant 176 : index
    %c0_196 = arith.constant 0 : index
    %119 = vector.load %arg17[%c176, %c0_196] : memref<784x192xbf16, #tpu.memory_space<vmem>>, vector<16x192xbf16>
    tpu.vector_store %arg17[%c176, %c0_196], %118 {strides = array<i32>} : memref<784x192xbf16, #tpu.memory_space<vmem>>, vector<16x192xbf16>,
    %c1_197 = arith.constant 1 : index
    %c5_198 = arith.constant 5 : index
    %c0_199 = arith.constant 0 : index
    %c0_200 = arith.constant 0 : index
    %120 = vector.load %arg1[%c1_197, %c5_198, %c0_199, %c0_200] : memref<8x8x16x48xbf16, #tpu.memory_space<vmem>>, vector<1x1x16x48xbf16>
    %121 = vector.shape_cast %120 : vector<1x1x16x48xbf16> to vector<16x48xbf16>
    %c1_201 = arith.constant 1 : index
    %c6_202 = arith.constant 6 : index
    %c0_203 = arith.constant 0 : index
    %c0_204 = arith.constant 0 : index
    %122 = vector.load %arg1[%c1_201, %c6_202, %c0_203, %c0_204] : memref<8x8x16x48xbf16, #tpu.memory_space<vmem>>, vector<1x1x16x48xbf16>
    %123 = vector.shape_cast %122 : vector<1x1x16x48xbf16> to vector<16x48xbf16>
    %c2_205 = arith.constant 2 : index
    %c5_206 = arith.constant 5 : index
    %c0_207 = arith.constant 0 : index
    %c0_208 = arith.constant 0 : index
    %124 = vector.load %arg1[%c2_205, %c5_206, %c0_207, %c0_208] : memref<8x8x16x48xbf16, #tpu.memory_space<vmem>>, vector<1x1x16x48xbf16>
    %125 = vector.shape_cast %124 : vector<1x1x16x48xbf16> to vector<16x48xbf16>
    %c2_209 = arith.constant 2 : index
    %c6_210 = arith.constant 6 : index
    %c0_211 = arith.constant 0 : index
    %c0_212 = arith.constant 0 : index
    %126 = vector.load %arg1[%c2_209, %c6_210, %c0_211, %c0_212] : memref<8x8x16x48xbf16, #tpu.memory_space<vmem>>, vector<1x1x16x48xbf16>
    %127 = vector.shape_cast %126 : vector<1x1x16x48xbf16> to vector<16x48xbf16>
    %128 = tpu.concatenate %121, %123, %125, %127 in 1 : vector<16x48xbf16>, vector<16x48xbf16>, vector<16x48xbf16>, vector<16x48xbf16> -> vector<16x192xbf16>
    %c192 = arith.constant 192 : index
    %c0_213 = arith.constant 0 : index
    %129 = vector.load %arg17[%c192, %c0_213] : memref<784x192xbf16, #tpu.memory_space<vmem>>, vector<16x192xbf16>
    tpu.vector_store %arg17[%c192, %c0_213], %128 {strides = array<i32>} : memref<784x192xbf16, #tpu.memory_space<vmem>>, vector<16x192xbf16>,
    %c1_214 = arith.constant 1 : index
    %c6_215 = arith.constant 6 : index
    %c0_216 = arith.constant 0 : index
    %c0_217 = arith.constant 0 : index
    %130 = vector.load %arg1[%c1_214, %c6_215, %c0_216, %c0_217] : memref<8x8x16x48xbf16, #tpu.memory_space<vmem>>, vector<1x1x16x48xbf16>
    %131 = vector.shape_cast %130 : vector<1x1x16x48xbf16> to vector<16x48xbf16>
    %c1_218 = arith.constant 1 : index
    %c7_219 = arith.constant 7 : index
    %c0_220 = arith.constant 0 : index
    %c0_221 = arith.constant 0 : index
    %132 = vector.load %arg1[%c1_218, %c7_219, %c0_220, %c0_221] : memref<8x8x16x48xbf16, #tpu.memory_space<vmem>>, vector<1x1x16x48xbf16>
    %133 = vector.shape_cast %132 : vector<1x1x16x48xbf16> to vector<16x48xbf16>
    %c2_222 = arith.constant 2 : index
    %c6_223 = arith.constant 6 : index
    %c0_224 = arith.constant 0 : index
    %c0_225 = arith.constant 0 : index
    %134 = vector.load %arg1[%c2_222, %c6_223, %c0_224, %c0_225] : memref<8x8x16x48xbf16, #tpu.memory_space<vmem>>, vector<1x1x16x48xbf16>
    %135 = vector.shape_cast %134 : vector<1x1x16x48xbf16> to vector<16x48xbf16>
    %c2_226 = arith.constant 2 : index
    %c7_227 = arith.constant 7 : index
    %c0_228 = arith.constant 0 : index
    %c0_229 = arith.constant 0 : index
    %136 = vector.load %arg1[%c2_226, %c7_227, %c0_228, %c0_229] : memref<8x8x16x48xbf16, #tpu.memory_space<vmem>>, vector<1x1x16x48xbf16>
    %137 = vector.shape_cast %136 : vector<1x1x16x48xbf16> to vector<16x48xbf16>
    %138 = tpu.concatenate %131, %133, %135, %137 in 1 : vector<16x48xbf16>, vector<16x48xbf16>, vector<16x48xbf16>, vector<16x48xbf16> -> vector<16x192xbf16>
    %c208 = arith.constant 208 : index
    %c0_230 = arith.constant 0 : index
    %139 = vector.load %arg17[%c208, %c0_230] : memref<784x192xbf16, #tpu.memory_space<vmem>>, vector<16x192xbf16>
    tpu.vector_store %arg17[%c208, %c0_230], %138 {strides = array<i32>} : memref<784x192xbf16, #tpu.memory_space<vmem>>, vector<16x192xbf16>,
    %c2_231 = arith.constant 2 : index
    %c0_232 = arith.constant 0 : index
    %c0_233 = arith.constant 0 : index
    %c0_234 = arith.constant 0 : index
    %140 = vector.load %arg1[%c2_231, %c0_232, %c0_233, %c0_234] : memref<8x8x16x48xbf16, #tpu.memory_space<vmem>>, vector<1x1x16x48xbf16>
    %141 = vector.shape_cast %140 : vector<1x1x16x48xbf16> to vector<16x48xbf16>
    %c2_235 = arith.constant 2 : index
    %c1_236 = arith.constant 1 : index
    %c0_237 = arith.constant 0 : index
    %c0_238 = arith.constant 0 : index
    %142 = vector.load %arg1[%c2_235, %c1_236, %c0_237, %c0_238] : memref<8x8x16x48xbf16, #tpu.memory_space<vmem>>, vector<1x1x16x48xbf16>
    %143 = vector.shape_cast %142 : vector<1x1x16x48xbf16> to vector<16x48xbf16>
    %c3_239 = arith.constant 3 : index
    %c0_240 = arith.constant 0 : index
    %c0_241 = arith.constant 0 : index
    %c0_242 = arith.constant 0 : index
    %144 = vector.load %arg1[%c3_239, %c0_240, %c0_241, %c0_242] : memref<8x8x16x48xbf16, #tpu.memory_space<vmem>>, vector<1x1x16x48xbf16>
    %145 = vector.shape_cast %144 : vector<1x1x16x48xbf16> to vector<16x48xbf16>
    %c3_243 = arith.constant 3 : index
    %c1_244 = arith.constant 1 : index
    %c0_245 = arith.constant 0 : index
    %c0_246 = arith.constant 0 : index
    %146 = vector.load %arg1[%c3_243, %c1_244, %c0_245, %c0_246] : memref<8x8x16x48xbf16, #tpu.memory_space<vmem>>, vector<1x1x16x48xbf16>
    %147 = vector.shape_cast %146 : vector<1x1x16x48xbf16> to vector<16x48xbf16>
    %148 = tpu.concatenate %141, %143, %145, %147 in 1 : vector<16x48xbf16>, vector<16x48xbf16>, vector<16x48xbf16>, vector<16x48xbf16> -> vector<16x192xbf16>
    %c224 = arith.constant 224 : index
    %c0_247 = arith.constant 0 : index
    %149 = vector.load %arg17[%c224, %c0_247] : memref<784x192xbf16, #tpu.memory_space<vmem>>, vector<16x192xbf16>
    tpu.vector_store %arg17[%c224, %c0_247], %148 {strides = array<i32>} : memref<784x192xbf16, #tpu.memory_space<vmem>>, vector<16x192xbf16>,
    %c2_248 = arith.constant 2 : index
    %c1_249 = arith.constant 1 : index
    %c0_250 = arith.constant 0 : index
    %c0_251 = arith.constant 0 : index
    %150 = vector.load %arg1[%c2_248, %c1_249, %c0_250, %c0_251] : memref<8x8x16x48xbf16, #tpu.memory_space<vmem>>, vector<1x1x16x48xbf16>
    %151 = vector.shape_cast %150 : vector<1x1x16x48xbf16> to vector<16x48xbf16>
    %c2_252 = arith.constant 2 : index
    %c2_253 = arith.constant 2 : index
    %c0_254 = arith.constant 0 : index
    %c0_255 = arith.constant 0 : index
    %152 = vector.load %arg1[%c2_252, %c2_253, %c0_254, %c0_255] : memref<8x8x16x48xbf16, #tpu.memory_space<vmem>>, vector<1x1x16x48xbf16>
    %153 = vector.shape_cast %152 : vector<1x1x16x48xbf16> to vector<16x48xbf16>
    %c3_256 = arith.constant 3 : index
    %c1_257 = arith.constant 1 : index
    %c0_258 = arith.constant 0 : index
    %c0_259 = arith.constant 0 : index
    %154 = vector.load %arg1[%c3_256, %c1_257, %c0_258, %c0_259] : memref<8x8x16x48xbf16, #tpu.memory_space<vmem>>, vector<1x1x16x48xbf16>
    %155 = vector.shape_cast %154 : vector<1x1x16x48xbf16> to vector<16x48xbf16>
    %c3_260 = arith.constant 3 : index
    %c2_261 = arith.constant 2 : index
    %c0_262 = arith.constant 0 : index
    %c0_263 = arith.constant 0 : index
    %156 = vector.load %arg1[%c3_260, %c2_261, %c0_262, %c0_263] : memref<8x8x16x48xbf16, #tpu.memory_space<vmem>>, vector<1x1x16x48xbf16>
    %157 = vector.shape_cast %156 : vector<1x1x16x48xbf16> to vector<16x48xbf16>
    %158 = tpu.concatenate %151, %153, %155, %157 in 1 : vector<16x48xbf16>, vector<16x48xbf16>, vector<16x48xbf16>, vector<16x48xbf16> -> vector<16x192xbf16>
    %c240 = arith.constant 240 : index
    %c0_264 = arith.constant 0 : index
    %159 = vector.load %arg17[%c240, %c0_264] : memref<784x192xbf16, #tpu.memory_space<vmem>>, vector<16x192xbf16>
    tpu.vector_store %arg17[%c240, %c0_264], %158 {strides = array<i32>} : memref<784x192xbf16, #tpu.memory_space<vmem>>, vector<16x192xbf16>,
    %c2_265 = arith.constant 2 : index
    %c2_266 = arith.constant 2 : index
    %c0_267 = arith.constant 0 : index
    %c0_268 = arith.constant 0 : index
    %160 = vector.load %arg1[%c2_265, %c2_266, %c0_267, %c0_268] : memref<8x8x16x48xbf16, #tpu.memory_space<vmem>>, vector<1x1x16x48xbf16>
    %161 = vector.shape_cast %160 : vector<1x1x16x48xbf16> to vector<16x48xbf16>
    %c2_269 = arith.constant 2 : index
    %c3_270 = arith.constant 3 : index
    %c0_271 = arith.constant 0 : index
    %c0_272 = arith.constant 0 : index
    %162 = vector.load %arg1[%c2_269, %c3_270, %c0_271, %c0_272] : memref<8x8x16x48xbf16, #tpu.memory_space<vmem>>, vector<1x1x16x48xbf16>
    %163 = vector.shape_cast %162 : vector<1x1x16x48xbf16> to vector<16x48xbf16>
    %c3_273 = arith.constant 3 : index
    %c2_274 = arith.constant 2 : index
    %c0_275 = arith.constant 0 : index
    %c0_276 = arith.constant 0 : index
    %164 = vector.load %arg1[%c3_273, %c2_274, %c0_275, %c0_276] : memref<8x8x16x48xbf16, #tpu.memory_space<vmem>>, vector<1x1x16x48xbf16>
    %165 = vector.shape_cast %164 : vector<1x1x16x48xbf16> to vector<16x48xbf16>
    %c3_277 = arith.constant 3 : index
    %c3_278 = arith.constant 3 : index
    %c0_279 = arith.constant 0 : index
    %c0_280 = arith.constant 0 : index
    %166 = vector.load %arg1[%c3_277, %c3_278, %c0_279, %c0_280] : memref<8x8x16x48xbf16, #tpu.memory_space<vmem>>, vector<1x1x16x48xbf16>
    %167 = vector.shape_cast %166 : vector<1x1x16x48xbf16> to vector<16x48xbf16>
    %168 = tpu.concatenate %161, %163, %165, %167 in 1 : vector<16x48xbf16>, vector<16x48xbf16>, vector<16x48xbf16>, vector<16x48xbf16> -> vector<16x192xbf16>
    %c256 = arith.constant 256 : index
    %c0_281 = arith.constant 0 : index
    %169 = vector.load %arg17[%c256, %c0_281] : memref<784x192xbf16, #tpu.memory_space<vmem>>, vector<16x192xbf16>
    tpu.vector_store %arg17[%c256, %c0_281], %168 {strides = array<i32>} : memref<784x192xbf16, #tpu.memory_space<vmem>>, vector<16x192xbf16>,
    %c2_282 = arith.constant 2 : index
    %c3_283 = arith.constant 3 : index
    %c0_284 = arith.constant 0 : index
    %c0_285 = arith.constant 0 : index
    %170 = vector.load %arg1[%c2_282, %c3_283, %c0_284, %c0_285] : memref<8x8x16x48xbf16, #tpu.memory_space<vmem>>, vector<1x1x16x48xbf16>
    %171 = vector.shape_cast %170 : vector<1x1x16x48xbf16> to vector<16x48xbf16>
    %c2_286 = arith.constant 2 : index
    %c4_287 = arith.constant 4 : index
    %c0_288 = arith.constant 0 : index
    %c0_289 = arith.constant 0 : index
    %172 = vector.load %arg1[%c2_286, %c4_287, %c0_288, %c0_289] : memref<8x8x16x48xbf16, #tpu.memory_space<vmem>>, vector<1x1x16x48xbf16>
    %173 = vector.shape_cast %172 : vector<1x1x16x48xbf16> to vector<16x48xbf16>
    %c3_290 = arith.constant 3 : index
    %c3_291 = arith.constant 3 : index
    %c0_292 = arith.constant 0 : index
    %c0_293 = arith.constant 0 : index
    %174 = vector.load %arg1[%c3_290, %c3_291, %c0_292, %c0_293] : memref<8x8x16x48xbf16, #tpu.memory_space<vmem>>, vector<1x1x16x48xbf16>
    %175 = vector.shape_cast %174 : vector<1x1x16x48xbf16> to vector<16x48xbf16>
    %c3_294 = arith.constant 3 : index
    %c4_295 = arith.constant 4 : index
    %c0_296 = arith.constant 0 : index
    %c0_297 = arith.constant 0 : index
    %176 = vector.load %arg1[%c3_294, %c4_295, %c0_296, %c0_297] : memref<8x8x16x48xbf16, #tpu.memory_space<vmem>>, vector<1x1x16x48xbf16>
    %177 = vector.shape_cast %176 : vector<1x1x16x48xbf16> to vector<16x48xbf16>
    %178 = tpu.concatenate %171, %173, %175, %177 in 1 : vector<16x48xbf16>, vector<16x48xbf16>, vector<16x48xbf16>, vector<16x48xbf16> -> vector<16x192xbf16>
    %c272 = arith.constant 272 : index
    %c0_298 = arith.constant 0 : index
    %179 = vector.load %arg17[%c272, %c0_298] : memref<784x192xbf16, #tpu.memory_space<vmem>>, vector<16x192xbf16>
    tpu.vector_store %arg17[%c272, %c0_298], %178 {strides = array<i32>} : memref<784x192xbf16, #tpu.memory_space<vmem>>, vector<16x192xbf16>,
    %c2_299 = arith.constant 2 : index
    %c4_300 = arith.constant 4 : index
    %c0_301 = arith.constant 0 : index
    %c0_302 = arith.constant 0 : index
    %180 = vector.load %arg1[%c2_299, %c4_300, %c0_301, %c0_302] : memref<8x8x16x48xbf16, #tpu.memory_space<vmem>>, vector<1x1x16x48xbf16>
    %181 = vector.shape_cast %180 : vector<1x1x16x48xbf16> to vector<16x48xbf16>
    %c2_303 = arith.constant 2 : index
    %c5_304 = arith.constant 5 : index
    %c0_305 = arith.constant 0 : index
    %c0_306 = arith.constant 0 : index
    %182 = vector.load %arg1[%c2_303, %c5_304, %c0_305, %c0_306] : memref<8x8x16x48xbf16, #tpu.memory_space<vmem>>, vector<1x1x16x48xbf16>
    %183 = vector.shape_cast %182 : vector<1x1x16x48xbf16> to vector<16x48xbf16>
    %c3_307 = arith.constant 3 : index
    %c4_308 = arith.constant 4 : index
    %c0_309 = arith.constant 0 : index
    %c0_310 = arith.constant 0 : index
    %184 = vector.load %arg1[%c3_307, %c4_308, %c0_309, %c0_310] : memref<8x8x16x48xbf16, #tpu.memory_space<vmem>>, vector<1x1x16x48xbf16>
    %185 = vector.shape_cast %184 : vector<1x1x16x48xbf16> to vector<16x48xbf16>
    %c3_311 = arith.constant 3 : index
    %c5_312 = arith.constant 5 : index
    %c0_313 = arith.constant 0 : index
    %c0_314 = arith.constant 0 : index
    %186 = vector.load %arg1[%c3_311, %c5_312, %c0_313, %c0_314] : memref<8x8x16x48xbf16, #tpu.memory_space<vmem>>, vector<1x1x16x48xbf16>
    %187 = vector.shape_cast %186 : vector<1x1x16x48xbf16> to vector<16x48xbf16>
    %188 = tpu.concatenate %181, %183, %185, %187 in 1 : vector<16x48xbf16>, vector<16x48xbf16>, vector<16x48xbf16>, vector<16x48xbf16> -> vector<16x192xbf16>
    %c288 = arith.constant 288 : index
    %c0_315 = arith.constant 0 : index
    %189 = vector.load %arg17[%c288, %c0_315] : memref<784x192xbf16, #tpu.memory_space<vmem>>, vector<16x192xbf16>
    tpu.vector_store %arg17[%c288, %c0_315], %188 {strides = array<i32>} : memref<784x192xbf16, #tpu.memory_space<vmem>>, vector<16x192xbf16>,
    %c2_316 = arith.constant 2 : index
    %c5_317 = arith.constant 5 : index
    %c0_318 = arith.constant 0 : index
    %c0_319 = arith.constant 0 : index
    %190 = vector.load %arg1[%c2_316, %c5_317, %c0_318, %c0_319] : memref<8x8x16x48xbf16, #tpu.memory_space<vmem>>, vector<1x1x16x48xbf16>
    %191 = vector.shape_cast %190 : vector<1x1x16x48xbf16> to vector<16x48xbf16>
    %c2_320 = arith.constant 2 : index
    %c6_321 = arith.constant 6 : index
    %c0_322 = arith.constant 0 : index
    %c0_323 = arith.constant 0 : index
    %192 = vector.load %arg1[%c2_320, %c6_321, %c0_322, %c0_323] : memref<8x8x16x48xbf16, #tpu.memory_space<vmem>>, vector<1x1x16x48xbf16>
    %193 = vector.shape_cast %192 : vector<1x1x16x48xbf16> to vector<16x48xbf16>
    %c3_324 = arith.constant 3 : index
    %c5_325 = arith.constant 5 : index
    %c0_326 = arith.constant 0 : index
    %c0_327 = arith.constant 0 : index
    %194 = vector.load %arg1[%c3_324, %c5_325, %c0_326, %c0_327] : memref<8x8x16x48xbf16, #tpu.memory_space<vmem>>, vector<1x1x16x48xbf16>
    %195 = vector.shape_cast %194 : vector<1x1x16x48xbf16> to vector<16x48xbf16>
    %c3_328 = arith.constant 3 : index
    %c6_329 = arith.constant 6 : index
    %c0_330 = arith.constant 0 : index
    %c0_331 = arith.constant 0 : index
    %196 = vector.load %arg1[%c3_328, %c6_329, %c0_330, %c0_331] : memref<8x8x16x48xbf16, #tpu.memory_space<vmem>>, vector<1x1x16x48xbf16>
    %197 = vector.shape_cast %196 : vector<1x1x16x48xbf16> to vector<16x48xbf16>
    %198 = tpu.concatenate %191, %193, %195, %197 in 1 : vector<16x48xbf16>, vector<16x48xbf16>, vector<16x48xbf16>, vector<16x48xbf16> -> vector<16x192xbf16>
    %c304 = arith.constant 304 : index
    %c0_332 = arith.constant 0 : index
    %199 = vector.load %arg17[%c304, %c0_332] : memref<784x192xbf16, #tpu.memory_space<vmem>>, vector<16x192xbf16>
    tpu.vector_store %arg17[%c304, %c0_332], %198 {strides = array<i32>} : memref<784x192xbf16, #tpu.memory_space<vmem>>, vector<16x192xbf16>,
    %c2_333 = arith.constant 2 : index
    %c6_334 = arith.constant 6 : index
    %c0_335 = arith.constant 0 : index
    %c0_336 = arith.constant 0 : index
    %200 = vector.load %arg1[%c2_333, %c6_334, %c0_335, %c0_336] : memref<8x8x16x48xbf16, #tpu.memory_space<vmem>>, vector<1x1x16x48xbf16>
    %201 = vector.shape_cast %200 : vector<1x1x16x48xbf16> to vector<16x48xbf16>
    %c2_337 = arith.constant 2 : index
    %c7_338 = arith.constant 7 : index
    %c0_339 = arith.constant 0 : index
    %c0_340 = arith.constant 0 : index
    %202 = vector.load %arg1[%c2_337, %c7_338, %c0_339, %c0_340] : memref<8x8x16x48xbf16, #tpu.memory_space<vmem>>, vector<1x1x16x48xbf16>
    %203 = vector.shape_cast %202 : vector<1x1x16x48xbf16> to vector<16x48xbf16>
    %c3_341 = arith.constant 3 : index
    %c6_342 = arith.constant 6 : index
    %c0_343 = arith.constant 0 : index
    %c0_344 = arith.constant 0 : index
    %204 = vector.load %arg1[%c3_341, %c6_342, %c0_343, %c0_344] : memref<8x8x16x48xbf16, #tpu.memory_space<vmem>>, vector<1x1x16x48xbf16>
    %205 = vector.shape_cast %204 : vector<1x1x16x48xbf16> to vector<16x48xbf16>
    %c3_345 = arith.constant 3 : index
    %c7_346 = arith.constant 7 : index
    %c0_347 = arith.constant 0 : index
    %c0_348 = arith.constant 0 : index
    %206 = vector.load %arg1[%c3_345, %c7_346, %c0_347, %c0_348] : memref<8x8x16x48xbf16, #tpu.memory_space<vmem>>, vector<1x1x16x48xbf16>
    %207 = vector.shape_cast %206 : vector<1x1x16x48xbf16> to vector<16x48xbf16>
    %208 = tpu.concatenate %201, %203, %205, %207 in 1 : vector<16x48xbf16>, vector<16x48xbf16>, vector<16x48xbf16>, vector<16x48xbf16> -> vector<16x192xbf16>
    %c320 = arith.constant 320 : index
    %c0_349 = arith.constant 0 : index
    %209 = vector.load %arg17[%c320, %c0_349] : memref<784x192xbf16, #tpu.memory_space<vmem>>, vector<16x192xbf16>
    tpu.vector_store %arg17[%c320, %c0_349], %208 {strides = array<i32>} : memref<784x192xbf16, #tpu.memory_space<vmem>>, vector<16x192xbf16>,
    %c3_350 = arith.constant 3 : index
    %c0_351 = arith.constant 0 : index
    %c0_352 = arith.constant 0 : index
    %c0_353 = arith.constant 0 : index
    %210 = vector.load %arg1[%c3_350, %c0_351, %c0_352, %c0_353] : memref<8x8x16x48xbf16, #tpu.memory_space<vmem>>, vector<1x1x16x48xbf16>
    %211 = vector.shape_cast %210 : vector<1x1x16x48xbf16> to vector<16x48xbf16>
    %c3_354 = arith.constant 3 : index
    %c1_355 = arith.constant 1 : index
    %c0_356 = arith.constant 0 : index
    %c0_357 = arith.constant 0 : index
    %212 = vector.load %arg1[%c3_354, %c1_355, %c0_356, %c0_357] : memref<8x8x16x48xbf16, #tpu.memory_space<vmem>>, vector<1x1x16x48xbf16>
    %213 = vector.shape_cast %212 : vector<1x1x16x48xbf16> to vector<16x48xbf16>
    %c4_358 = arith.constant 4 : index
    %c0_359 = arith.constant 0 : index
    %c0_360 = arith.constant 0 : index
    %c0_361 = arith.constant 0 : index
    %214 = vector.load %arg1[%c4_358, %c0_359, %c0_360, %c0_361] : memref<8x8x16x48xbf16, #tpu.memory_space<vmem>>, vector<1x1x16x48xbf16>
    %215 = vector.shape_cast %214 : vector<1x1x16x48xbf16> to vector<16x48xbf16>
    %c4_362 = arith.constant 4 : index
    %c1_363 = arith.constant 1 : index
    %c0_364 = arith.constant 0 : index
    %c0_365 = arith.constant 0 : index
    %216 = vector.load %arg1[%c4_362, %c1_363, %c0_364, %c0_365] : memref<8x8x16x48xbf16, #tpu.memory_space<vmem>>, vector<1x1x16x48xbf16>
    %217 = vector.shape_cast %216 : vector<1x1x16x48xbf16> to vector<16x48xbf16>
    %218 = tpu.concatenate %211, %213, %215, %217 in 1 : vector<16x48xbf16>, vector<16x48xbf16>, vector<16x48xbf16>, vector<16x48xbf16> -> vector<16x192xbf16>
    %c336 = arith.constant 336 : index
    %c0_366 = arith.constant 0 : index
    %219 = vector.load %arg17[%c336, %c0_366] : memref<784x192xbf16, #tpu.memory_space<vmem>>, vector<16x192xbf16>
    tpu.vector_store %arg17[%c336, %c0_366], %218 {strides = array<i32>} : memref<784x192xbf16, #tpu.memory_space<vmem>>, vector<16x192xbf16>,
    %c3_367 = arith.constant 3 : index
    %c1_368 = arith.constant 1 : index
    %c0_369 = arith.constant 0 : index
    %c0_370 = arith.constant 0 : index
    %220 = vector.load %arg1[%c3_367, %c1_368, %c0_369, %c0_370] : memref<8x8x16x48xbf16, #tpu.memory_space<vmem>>, vector<1x1x16x48xbf16>
    %221 = vector.shape_cast %220 : vector<1x1x16x48xbf16> to vector<16x48xbf16>
    %c3_371 = arith.constant 3 : index
    %c2_372 = arith.constant 2 : index
    %c0_373 = arith.constant 0 : index
    %c0_374 = arith.constant 0 : index
    %222 = vector.load %arg1[%c3_371, %c2_372, %c0_373, %c0_374] : memref<8x8x16x48xbf16, #tpu.memory_space<vmem>>, vector<1x1x16x48xbf16>
    %223 = vector.shape_cast %222 : vector<1x1x16x48xbf16> to vector<16x48xbf16>
    %c4_375 = arith.constant 4 : index
    %c1_376 = arith.constant 1 : index
    %c0_377 = arith.constant 0 : index
    %c0_378 = arith.constant 0 : index
    %224 = vector.load %arg1[%c4_375, %c1_376, %c0_377, %c0_378] : memref<8x8x16x48xbf16, #tpu.memory_space<vmem>>, vector<1x1x16x48xbf16>
    %225 = vector.shape_cast %224 : vector<1x1x16x48xbf16> to vector<16x48xbf16>
    %c4_379 = arith.constant 4 : index
    %c2_380 = arith.constant 2 : index
    %c0_381 = arith.constant 0 : index
    %c0_382 = arith.constant 0 : index
    %226 = vector.load %arg1[%c4_379, %c2_380, %c0_381, %c0_382] : memref<8x8x16x48xbf16, #tpu.memory_space<vmem>>, vector<1x1x16x48xbf16>
    %227 = vector.shape_cast %226 : vector<1x1x16x48xbf16> to vector<16x48xbf16>
    %228 = tpu.concatenate %221, %223, %225, %227 in 1 : vector<16x48xbf16>, vector<16x48xbf16>, vector<16x48xbf16>, vector<16x48xbf16> -> vector<16x192xbf16>
    %c352 = arith.constant 352 : index
    %c0_383 = arith.constant 0 : index
    %229 = vector.load %arg17[%c352, %c0_383] : memref<784x192xbf16, #tpu.memory_space<vmem>>, vector<16x192xbf16>
    tpu.vector_store %arg17[%c352, %c0_383], %228 {strides = array<i32>} : memref<784x192xbf16, #tpu.memory_space<vmem>>, vector<16x192xbf16>,
    %c3_384 = arith.constant 3 : index
    %c2_385 = arith.constant 2 : index
    %c0_386 = arith.constant 0 : index
    %c0_387 = arith.constant 0 : index
    %230 = vector.load %arg1[%c3_384, %c2_385, %c0_386, %c0_387] : memref<8x8x16x48xbf16, #tpu.memory_space<vmem>>, vector<1x1x16x48xbf16>
    %231 = vector.shape_cast %230 : vector<1x1x16x48xbf16> to vector<16x48xbf16>
    %c3_388 = arith.constant 3 : index
    %c3_389 = arith.constant 3 : index
    %c0_390 = arith.constant 0 : index
    %c0_391 = arith.constant 0 : index
    %232 = vector.load %arg1[%c3_388, %c3_389, %c0_390, %c0_391] : memref<8x8x16x48xbf16, #tpu.memory_space<vmem>>, vector<1x1x16x48xbf16>
    %233 = vector.shape_cast %232 : vector<1x1x16x48xbf16> to vector<16x48xbf16>
    %c4_392 = arith.constant 4 : index
    %c2_393 = arith.constant 2 : index
    %c0_394 = arith.constant 0 : index
    %c0_395 = arith.constant 0 : index
    %234 = vector.load %arg1[%c4_392, %c2_393, %c0_394, %c0_395] : memref<8x8x16x48xbf16, #tpu.memory_space<vmem>>, vector<1x1x16x48xbf16>
    %235 = vector.shape_cast %234 : vector<1x1x16x48xbf16> to vector<16x48xbf16>
    %c4_396 = arith.constant 4 : index
    %c3_397 = arith.constant 3 : index
    %c0_398 = arith.constant 0 : index
    %c0_399 = arith.constant 0 : index
    %236 = vector.load %arg1[%c4_396, %c3_397, %c0_398, %c0_399] : memref<8x8x16x48xbf16, #tpu.memory_space<vmem>>, vector<1x1x16x48xbf16>
    %237 = vector.shape_cast %236 : vector<1x1x16x48xbf16> to vector<16x48xbf16>
    %238 = tpu.concatenate %231, %233, %235, %237 in 1 : vector<16x48xbf16>, vector<16x48xbf16>, vector<16x48xbf16>, vector<16x48xbf16> -> vector<16x192xbf16>
    %c368 = arith.constant 368 : index
    %c0_400 = arith.constant 0 : index
    %239 = vector.load %arg17[%c368, %c0_400] : memref<784x192xbf16, #tpu.memory_space<vmem>>, vector<16x192xbf16>
    tpu.vector_store %arg17[%c368, %c0_400], %238 {strides = array<i32>} : memref<784x192xbf16, #tpu.memory_space<vmem>>, vector<16x192xbf16>,
    %c3_401 = arith.constant 3 : index
    %c3_402 = arith.constant 3 : index
    %c0_403 = arith.constant 0 : index
    %c0_404 = arith.constant 0 : index
    %240 = vector.load %arg1[%c3_401, %c3_402, %c0_403, %c0_404] : memref<8x8x16x48xbf16, #tpu.memory_space<vmem>>, vector<1x1x16x48xbf16>
    %241 = vector.shape_cast %240 : vector<1x1x16x48xbf16> to vector<16x48xbf16>
    %c3_405 = arith.constant 3 : index
    %c4_406 = arith.constant 4 : index
    %c0_407 = arith.constant 0 : index
    %c0_408 = arith.constant 0 : index
    %242 = vector.load %arg1[%c3_405, %c4_406, %c0_407, %c0_408] : memref<8x8x16x48xbf16, #tpu.memory_space<vmem>>, vector<1x1x16x48xbf16>
    %243 = vector.shape_cast %242 : vector<1x1x16x48xbf16> to vector<16x48xbf16>
    %c4_409 = arith.constant 4 : index
    %c3_410 = arith.constant 3 : index
    %c0_411 = arith.constant 0 : index
    %c0_412 = arith.constant 0 : index
    %244 = vector.load %arg1[%c4_409, %c3_410, %c0_411, %c0_412] : memref<8x8x16x48xbf16, #tpu.memory_space<vmem>>, vector<1x1x16x48xbf16>
    %245 = vector.shape_cast %244 : vector<1x1x16x48xbf16> to vector<16x48xbf16>
    %c4_413 = arith.constant 4 : index
    %c4_414 = arith.constant 4 : index
    %c0_415 = arith.constant 0 : index
    %c0_416 = arith.constant 0 : index
    %246 = vector.load %arg1[%c4_413, %c4_414, %c0_415, %c0_416] : memref<8x8x16x48xbf16, #tpu.memory_space<vmem>>, vector<1x1x16x48xbf16>
    %247 = vector.shape_cast %246 : vector<1x1x16x48xbf16> to vector<16x48xbf16>
    %248 = tpu.concatenate %241, %243, %245, %247 in 1 : vector<16x48xbf16>, vector<16x48xbf16>, vector<16x48xbf16>, vector<16x48xbf16> -> vector<16x192xbf16>
    %c384 = arith.constant 384 : index
    %c0_417 = arith.constant 0 : index
    %249 = vector.load %arg17[%c384, %c0_417] : memref<784x192xbf16, #tpu.memory_space<vmem>>, vector<16x192xbf16>
    tpu.vector_store %arg17[%c384, %c0_417], %248 {strides = array<i32>} : memref<784x192xbf16, #tpu.memory_space<vmem>>, vector<16x192xbf16>,
    %c3_418 = arith.constant 3 : index
    %c4_419 = arith.constant 4 : index
    %c0_420 = arith.constant 0 : index
    %c0_421 = arith.constant 0 : index
    %250 = vector.load %arg1[%c3_418, %c4_419, %c0_420, %c0_421] : memref<8x8x16x48xbf16, #tpu.memory_space<vmem>>, vector<1x1x16x48xbf16>
    %251 = vector.shape_cast %250 : vector<1x1x16x48xbf16> to vector<16x48xbf16>
    %c3_422 = arith.constant 3 : index
    %c5_423 = arith.constant 5 : index
    %c0_424 = arith.constant 0 : index
    %c0_425 = arith.constant 0 : index
    %252 = vector.load %arg1[%c3_422, %c5_423, %c0_424, %c0_425] : memref<8x8x16x48xbf16, #tpu.memory_space<vmem>>, vector<1x1x16x48xbf16>
    %253 = vector.shape_cast %252 : vector<1x1x16x48xbf16> to vector<16x48xbf16>
    %c4_426 = arith.constant 4 : index
    %c4_427 = arith.constant 4 : index
    %c0_428 = arith.constant 0 : index
    %c0_429 = arith.constant 0 : index
    %254 = vector.load %arg1[%c4_426, %c4_427, %c0_428, %c0_429] : memref<8x8x16x48xbf16, #tpu.memory_space<vmem>>, vector<1x1x16x48xbf16>
    %255 = vector.shape_cast %254 : vector<1x1x16x48xbf16> to vector<16x48xbf16>
    %c4_430 = arith.constant 4 : index
    %c5_431 = arith.constant 5 : index
    %c0_432 = arith.constant 0 : index
    %c0_433 = arith.constant 0 : index
    %256 = vector.load %arg1[%c4_430, %c5_431, %c0_432, %c0_433] : memref<8x8x16x48xbf16, #tpu.memory_space<vmem>>, vector<1x1x16x48xbf16>
    %257 = vector.shape_cast %256 : vector<1x1x16x48xbf16> to vector<16x48xbf16>
    %258 = tpu.concatenate %251, %253, %255, %257 in 1 : vector<16x48xbf16>, vector<16x48xbf16>, vector<16x48xbf16>, vector<16x48xbf16> -> vector<16x192xbf16>
    %c400 = arith.constant 400 : index
    %c0_434 = arith.constant 0 : index
    %259 = vector.load %arg17[%c400, %c0_434] : memref<784x192xbf16, #tpu.memory_space<vmem>>, vector<16x192xbf16>
    tpu.vector_store %arg17[%c400, %c0_434], %258 {strides = array<i32>} : memref<784x192xbf16, #tpu.memory_space<vmem>>, vector<16x192xbf16>,
    %c3_435 = arith.constant 3 : index
    %c5_436 = arith.constant 5 : index
    %c0_437 = arith.constant 0 : index
    %c0_438 = arith.constant 0 : index
    %260 = vector.load %arg1[%c3_435, %c5_436, %c0_437, %c0_438] : memref<8x8x16x48xbf16, #tpu.memory_space<vmem>>, vector<1x1x16x48xbf16>
    %261 = vector.shape_cast %260 : vector<1x1x16x48xbf16> to vector<16x48xbf16>
    %c3_439 = arith.constant 3 : index
    %c6_440 = arith.constant 6 : index
    %c0_441 = arith.constant 0 : index
    %c0_442 = arith.constant 0 : index
    %262 = vector.load %arg1[%c3_439, %c6_440, %c0_441, %c0_442] : memref<8x8x16x48xbf16, #tpu.memory_space<vmem>>, vector<1x1x16x48xbf16>
    %263 = vector.shape_cast %262 : vector<1x1x16x48xbf16> to vector<16x48xbf16>
    %c4_443 = arith.constant 4 : index
    %c5_444 = arith.constant 5 : index
    %c0_445 = arith.constant 0 : index
    %c0_446 = arith.constant 0 : index
    %264 = vector.load %arg1[%c4_443, %c5_444, %c0_445, %c0_446] : memref<8x8x16x48xbf16, #tpu.memory_space<vmem>>, vector<1x1x16x48xbf16>
    %265 = vector.shape_cast %264 : vector<1x1x16x48xbf16> to vector<16x48xbf16>
    %c4_447 = arith.constant 4 : index
    %c6_448 = arith.constant 6 : index
    %c0_449 = arith.constant 0 : index
    %c0_450 = arith.constant 0 : index
    %266 = vector.load %arg1[%c4_447, %c6_448, %c0_449, %c0_450] : memref<8x8x16x48xbf16, #tpu.memory_space<vmem>>, vector<1x1x16x48xbf16>
    %267 = vector.shape_cast %266 : vector<1x1x16x48xbf16> to vector<16x48xbf16>
    %268 = tpu.concatenate %261, %263, %265, %267 in 1 : vector<16x48xbf16>, vector<16x48xbf16>, vector<16x48xbf16>, vector<16x48xbf16> -> vector<16x192xbf16>
    %c416 = arith.constant 416 : index
    %c0_451 = arith.constant 0 : index
    %269 = vector.load %arg17[%c416, %c0_451] : memref<784x192xbf16, #tpu.memory_space<vmem>>, vector<16x192xbf16>
    tpu.vector_store %arg17[%c416, %c0_451], %268 {strides = array<i32>} : memref<784x192xbf16, #tpu.memory_space<vmem>>, vector<16x192xbf16>,
    %c3_452 = arith.constant 3 : index
    %c6_453 = arith.constant 6 : index
    %c0_454 = arith.constant 0 : index
    %c0_455 = arith.constant 0 : index
    %270 = vector.load %arg1[%c3_452, %c6_453, %c0_454, %c0_455] : memref<8x8x16x48xbf16, #tpu.memory_space<vmem>>, vector<1x1x16x48xbf16>
    %271 = vector.shape_cast %270 : vector<1x1x16x48xbf16> to vector<16x48xbf16>
    %c3_456 = arith.constant 3 : index
    %c7_457 = arith.constant 7 : index
    %c0_458 = arith.constant 0 : index
    %c0_459 = arith.constant 0 : index
    %272 = vector.load %arg1[%c3_456, %c7_457, %c0_458, %c0_459] : memref<8x8x16x48xbf16, #tpu.memory_space<vmem>>, vector<1x1x16x48xbf16>
    %273 = vector.shape_cast %272 : vector<1x1x16x48xbf16> to vector<16x48xbf16>
    %c4_460 = arith.constant 4 : index
    %c6_461 = arith.constant 6 : index
    %c0_462 = arith.constant 0 : index
    %c0_463 = arith.constant 0 : index
    %274 = vector.load %arg1[%c4_460, %c6_461, %c0_462, %c0_463] : memref<8x8x16x48xbf16, #tpu.memory_space<vmem>>, vector<1x1x16x48xbf16>
    %275 = vector.shape_cast %274 : vector<1x1x16x48xbf16> to vector<16x48xbf16>
    %c4_464 = arith.constant 4 : index
    %c7_465 = arith.constant 7 : index
    %c0_466 = arith.constant 0 : index
    %c0_467 = arith.constant 0 : index
    %276 = vector.load %arg1[%c4_464, %c7_465, %c0_466, %c0_467] : memref<8x8x16x48xbf16, #tpu.memory_space<vmem>>, vector<1x1x16x48xbf16>
    %277 = vector.shape_cast %276 : vector<1x1x16x48xbf16> to vector<16x48xbf16>
    %278 = tpu.concatenate %271, %273, %275, %277 in 1 : vector<16x48xbf16>, vector<16x48xbf16>, vector<16x48xbf16>, vector<16x48xbf16> -> vector<16x192xbf16>
    %c432 = arith.constant 432 : index
    %c0_468 = arith.constant 0 : index
    %279 = vector.load %arg17[%c432, %c0_468] : memref<784x192xbf16, #tpu.memory_space<vmem>>, vector<16x192xbf16>
    tpu.vector_store %arg17[%c432, %c0_468], %278 {strides = array<i32>} : memref<784x192xbf16, #tpu.memory_space<vmem>>, vector<16x192xbf16>,
    %c4_469 = arith.constant 4 : index
    %c0_470 = arith.constant 0 : index
    %c0_471 = arith.constant 0 : index
    %c0_472 = arith.constant 0 : index
    %280 = vector.load %arg1[%c4_469, %c0_470, %c0_471, %c0_472] : memref<8x8x16x48xbf16, #tpu.memory_space<vmem>>, vector<1x1x16x48xbf16>
    %281 = vector.shape_cast %280 : vector<1x1x16x48xbf16> to vector<16x48xbf16>
    %c4_473 = arith.constant 4 : index
    %c1_474 = arith.constant 1 : index
    %c0_475 = arith.constant 0 : index
    %c0_476 = arith.constant 0 : index
    %282 = vector.load %arg1[%c4_473, %c1_474, %c0_475, %c0_476] : memref<8x8x16x48xbf16, #tpu.memory_space<vmem>>, vector<1x1x16x48xbf16>
    %283 = vector.shape_cast %282 : vector<1x1x16x48xbf16> to vector<16x48xbf16>
    %c5_477 = arith.constant 5 : index
    %c0_478 = arith.constant 0 : index
    %c0_479 = arith.constant 0 : index
    %c0_480 = arith.constant 0 : index
    %284 = vector.load %arg1[%c5_477, %c0_478, %c0_479, %c0_480] : memref<8x8x16x48xbf16, #tpu.memory_space<vmem>>, vector<1x1x16x48xbf16>
    %285 = vector.shape_cast %284 : vector<1x1x16x48xbf16> to vector<16x48xbf16>
    %c5_481 = arith.constant 5 : index
    %c1_482 = arith.constant 1 : index
    %c0_483 = arith.constant 0 : index
    %c0_484 = arith.constant 0 : index
    %286 = vector.load %arg1[%c5_481, %c1_482, %c0_483, %c0_484] : memref<8x8x16x48xbf16, #tpu.memory_space<vmem>>, vector<1x1x16x48xbf16>
    %287 = vector.shape_cast %286 : vector<1x1x16x48xbf16> to vector<16x48xbf16>
    %288 = tpu.concatenate %281, %283, %285, %287 in 1 : vector<16x48xbf16>, vector<16x48xbf16>, vector<16x48xbf16>, vector<16x48xbf16> -> vector<16x192xbf16>
    %c448 = arith.constant 448 : index
    %c0_485 = arith.constant 0 : index
    %289 = vector.load %arg17[%c448, %c0_485] : memref<784x192xbf16, #tpu.memory_space<vmem>>, vector<16x192xbf16>
    tpu.vector_store %arg17[%c448, %c0_485], %288 {strides = array<i32>} : memref<784x192xbf16, #tpu.memory_space<vmem>>, vector<16x192xbf16>,
    %c4_486 = arith.constant 4 : index
    %c1_487 = arith.constant 1 : index
    %c0_488 = arith.constant 0 : index
    %c0_489 = arith.constant 0 : index
    %290 = vector.load %arg1[%c4_486, %c1_487, %c0_488, %c0_489] : memref<8x8x16x48xbf16, #tpu.memory_space<vmem>>, vector<1x1x16x48xbf16>
    %291 = vector.shape_cast %290 : vector<1x1x16x48xbf16> to vector<16x48xbf16>
    %c4_490 = arith.constant 4 : index
    %c2_491 = arith.constant 2 : index
    %c0_492 = arith.constant 0 : index
    %c0_493 = arith.constant 0 : index
    %292 = vector.load %arg1[%c4_490, %c2_491, %c0_492, %c0_493] : memref<8x8x16x48xbf16, #tpu.memory_space<vmem>>, vector<1x1x16x48xbf16>
    %293 = vector.shape_cast %292 : vector<1x1x16x48xbf16> to vector<16x48xbf16>
    %c5_494 = arith.constant 5 : index
    %c1_495 = arith.constant 1 : index
    %c0_496 = arith.constant 0 : index
    %c0_497 = arith.constant 0 : index
    %294 = vector.load %arg1[%c5_494, %c1_495, %c0_496, %c0_497] : memref<8x8x16x48xbf16, #tpu.memory_space<vmem>>, vector<1x1x16x48xbf16>
    %295 = vector.shape_cast %294 : vector<1x1x16x48xbf16> to vector<16x48xbf16>
    %c5_498 = arith.constant 5 : index
    %c2_499 = arith.constant 2 : index
    %c0_500 = arith.constant 0 : index
    %c0_501 = arith.constant 0 : index
    %296 = vector.load %arg1[%c5_498, %c2_499, %c0_500, %c0_501] : memref<8x8x16x48xbf16, #tpu.memory_space<vmem>>, vector<1x1x16x48xbf16>
    %297 = vector.shape_cast %296 : vector<1x1x16x48xbf16> to vector<16x48xbf16>
    %298 = tpu.concatenate %291, %293, %295, %297 in 1 : vector<16x48xbf16>, vector<16x48xbf16>, vector<16x48xbf16>, vector<16x48xbf16> -> vector<16x192xbf16>
    %c464 = arith.constant 464 : index
    %c0_502 = arith.constant 0 : index
    %299 = vector.load %arg17[%c464, %c0_502] : memref<784x192xbf16, #tpu.memory_space<vmem>>, vector<16x192xbf16>
    tpu.vector_store %arg17[%c464, %c0_502], %298 {strides = array<i32>} : memref<784x192xbf16, #tpu.memory_space<vmem>>, vector<16x192xbf16>,
    %c4_503 = arith.constant 4 : index
    %c2_504 = arith.constant 2 : index
    %c0_505 = arith.constant 0 : index
    %c0_506 = arith.constant 0 : index
    %300 = vector.load %arg1[%c4_503, %c2_504, %c0_505, %c0_506] : memref<8x8x16x48xbf16, #tpu.memory_space<vmem>>, vector<1x1x16x48xbf16>
    %301 = vector.shape_cast %300 : vector<1x1x16x48xbf16> to vector<16x48xbf16>
    %c4_507 = arith.constant 4 : index
    %c3_508 = arith.constant 3 : index
    %c0_509 = arith.constant 0 : index
    %c0_510 = arith.constant 0 : index
    %302 = vector.load %arg1[%c4_507, %c3_508, %c0_509, %c0_510] : memref<8x8x16x48xbf16, #tpu.memory_space<vmem>>, vector<1x1x16x48xbf16>
    %303 = vector.shape_cast %302 : vector<1x1x16x48xbf16> to vector<16x48xbf16>
    %c5_511 = arith.constant 5 : index
    %c2_512 = arith.constant 2 : index
    %c0_513 = arith.constant 0 : index
    %c0_514 = arith.constant 0 : index
    %304 = vector.load %arg1[%c5_511, %c2_512, %c0_513, %c0_514] : memref<8x8x16x48xbf16, #tpu.memory_space<vmem>>, vector<1x1x16x48xbf16>
    %305 = vector.shape_cast %304 : vector<1x1x16x48xbf16> to vector<16x48xbf16>
    %c5_515 = arith.constant 5 : index
    %c3_516 = arith.constant 3 : index
    %c0_517 = arith.constant 0 : index
    %c0_518 = arith.constant 0 : index
    %306 = vector.load %arg1[%c5_515, %c3_516, %c0_517, %c0_518] : memref<8x8x16x48xbf16, #tpu.memory_space<vmem>>, vector<1x1x16x48xbf16>
    %307 = vector.shape_cast %306 : vector<1x1x16x48xbf16> to vector<16x48xbf16>
    %308 = tpu.concatenate %301, %303, %305, %307 in 1 : vector<16x48xbf16>, vector<16x48xbf16>, vector<16x48xbf16>, vector<16x48xbf16> -> vector<16x192xbf16>
    %c480 = arith.constant 480 : index
    %c0_519 = arith.constant 0 : index
    %309 = vector.load %arg17[%c480, %c0_519] : memref<784x192xbf16, #tpu.memory_space<vmem>>, vector<16x192xbf16>
    tpu.vector_store %arg17[%c480, %c0_519], %308 {strides = array<i32>} : memref<784x192xbf16, #tpu.memory_space<vmem>>, vector<16x192xbf16>,
    %c4_520 = arith.constant 4 : index
    %c3_521 = arith.constant 3 : index
    %c0_522 = arith.constant 0 : index
    %c0_523 = arith.constant 0 : index
    %310 = vector.load %arg1[%c4_520, %c3_521, %c0_522, %c0_523] : memref<8x8x16x48xbf16, #tpu.memory_space<vmem>>, vector<1x1x16x48xbf16>
    %311 = vector.shape_cast %310 : vector<1x1x16x48xbf16> to vector<16x48xbf16>
    %c4_524 = arith.constant 4 : index
    %c4_525 = arith.constant 4 : index
    %c0_526 = arith.constant 0 : index
    %c0_527 = arith.constant 0 : index
    %312 = vector.load %arg1[%c4_524, %c4_525, %c0_526, %c0_527] : memref<8x8x16x48xbf16, #tpu.memory_space<vmem>>, vector<1x1x16x48xbf16>
    %313 = vector.shape_cast %312 : vector<1x1x16x48xbf16> to vector<16x48xbf16>
    %c5_528 = arith.constant 5 : index
    %c3_529 = arith.constant 3 : index
    %c0_530 = arith.constant 0 : index
    %c0_531 = arith.constant 0 : index
    %314 = vector.load %arg1[%c5_528, %c3_529, %c0_530, %c0_531] : memref<8x8x16x48xbf16, #tpu.memory_space<vmem>>, vector<1x1x16x48xbf16>
    %315 = vector.shape_cast %314 : vector<1x1x16x48xbf16> to vector<16x48xbf16>
    %c5_532 = arith.constant 5 : index
    %c4_533 = arith.constant 4 : index
    %c0_534 = arith.constant 0 : index
    %c0_535 = arith.constant 0 : index
    %316 = vector.load %arg1[%c5_532, %c4_533, %c0_534, %c0_535] : memref<8x8x16x48xbf16, #tpu.memory_space<vmem>>, vector<1x1x16x48xbf16>
    %317 = vector.shape_cast %316 : vector<1x1x16x48xbf16> to vector<16x48xbf16>
    %318 = tpu.concatenate %311, %313, %315, %317 in 1 : vector<16x48xbf16>, vector<16x48xbf16>, vector<16x48xbf16>, vector<16x48xbf16> -> vector<16x192xbf16>
    %c496 = arith.constant 496 : index
    %c0_536 = arith.constant 0 : index
    %319 = vector.load %arg17[%c496, %c0_536] : memref<784x192xbf16, #tpu.memory_space<vmem>>, vector<16x192xbf16>
    tpu.vector_store %arg17[%c496, %c0_536], %318 {strides = array<i32>} : memref<784x192xbf16, #tpu.memory_space<vmem>>, vector<16x192xbf16>,
    %c4_537 = arith.constant 4 : index
    %c4_538 = arith.constant 4 : index
    %c0_539 = arith.constant 0 : index
    %c0_540 = arith.constant 0 : index
    %320 = vector.load %arg1[%c4_537, %c4_538, %c0_539, %c0_540] : memref<8x8x16x48xbf16, #tpu.memory_space<vmem>>, vector<1x1x16x48xbf16>
    %321 = vector.shape_cast %320 : vector<1x1x16x48xbf16> to vector<16x48xbf16>
    %c4_541 = arith.constant 4 : index
    %c5_542 = arith.constant 5 : index
    %c0_543 = arith.constant 0 : index
    %c0_544 = arith.constant 0 : index
    %322 = vector.load %arg1[%c4_541, %c5_542, %c0_543, %c0_544] : memref<8x8x16x48xbf16, #tpu.memory_space<vmem>>, vector<1x1x16x48xbf16>
    %323 = vector.shape_cast %322 : vector<1x1x16x48xbf16> to vector<16x48xbf16>
    %c5_545 = arith.constant 5 : index
    %c4_546 = arith.constant 4 : index
    %c0_547 = arith.constant 0 : index
    %c0_548 = arith.constant 0 : index
    %324 = vector.load %arg1[%c5_545, %c4_546, %c0_547, %c0_548] : memref<8x8x16x48xbf16, #tpu.memory_space<vmem>>, vector<1x1x16x48xbf16>
    %325 = vector.shape_cast %324 : vector<1x1x16x48xbf16> to vector<16x48xbf16>
    %c5_549 = arith.constant 5 : index
    %c5_550 = arith.constant 5 : index
    %c0_551 = arith.constant 0 : index
    %c0_552 = arith.constant 0 : index
    %326 = vector.load %arg1[%c5_549, %c5_550, %c0_551, %c0_552] : memref<8x8x16x48xbf16, #tpu.memory_space<vmem>>, vector<1x1x16x48xbf16>
    %327 = vector.shape_cast %326 : vector<1x1x16x48xbf16> to vector<16x48xbf16>
    %328 = tpu.concatenate %321, %323, %325, %327 in 1 : vector<16x48xbf16>, vector<16x48xbf16>, vector<16x48xbf16>, vector<16x48xbf16> -> vector<16x192xbf16>
    %c512 = arith.constant 512 : index
    %c0_553 = arith.constant 0 : index
    %329 = vector.load %arg17[%c512, %c0_553] : memref<784x192xbf16, #tpu.memory_space<vmem>>, vector<16x192xbf16>
    tpu.vector_store %arg17[%c512, %c0_553], %328 {strides = array<i32>} : memref<784x192xbf16, #tpu.memory_space<vmem>>, vector<16x192xbf16>,
    %c4_554 = arith.constant 4 : index
    %c5_555 = arith.constant 5 : index
    %c0_556 = arith.constant 0 : index
    %c0_557 = arith.constant 0 : index
    %330 = vector.load %arg1[%c4_554, %c5_555, %c0_556, %c0_557] : memref<8x8x16x48xbf16, #tpu.memory_space<vmem>>, vector<1x1x16x48xbf16>
    %331 = vector.shape_cast %330 : vector<1x1x16x48xbf16> to vector<16x48xbf16>
    %c4_558 = arith.constant 4 : index
    %c6_559 = arith.constant 6 : index
    %c0_560 = arith.constant 0 : index
    %c0_561 = arith.constant 0 : index
    %332 = vector.load %arg1[%c4_558, %c6_559, %c0_560, %c0_561] : memref<8x8x16x48xbf16, #tpu.memory_space<vmem>>, vector<1x1x16x48xbf16>
    %333 = vector.shape_cast %332 : vector<1x1x16x48xbf16> to vector<16x48xbf16>
    %c5_562 = arith.constant 5 : index
    %c5_563 = arith.constant 5 : index
    %c0_564 = arith.constant 0 : index
    %c0_565 = arith.constant 0 : index
    %334 = vector.load %arg1[%c5_562, %c5_563, %c0_564, %c0_565] : memref<8x8x16x48xbf16, #tpu.memory_space<vmem>>, vector<1x1x16x48xbf16>
    %335 = vector.shape_cast %334 : vector<1x1x16x48xbf16> to vector<16x48xbf16>
    %c5_566 = arith.constant 5 : index
    %c6_567 = arith.constant 6 : index
    %c0_568 = arith.constant 0 : index
    %c0_569 = arith.constant 0 : index
    %336 = vector.load %arg1[%c5_566, %c6_567, %c0_568, %c0_569] : memref<8x8x16x48xbf16, #tpu.memory_space<vmem>>, vector<1x1x16x48xbf16>
    %337 = vector.shape_cast %336 : vector<1x1x16x48xbf16> to vector<16x48xbf16>
    %338 = tpu.concatenate %331, %333, %335, %337 in 1 : vector<16x48xbf16>, vector<16x48xbf16>, vector<16x48xbf16>, vector<16x48xbf16> -> vector<16x192xbf16>
    %c528 = arith.constant 528 : index
    %c0_570 = arith.constant 0 : index
    %339 = vector.load %arg17[%c528, %c0_570] : memref<784x192xbf16, #tpu.memory_space<vmem>>, vector<16x192xbf16>
    tpu.vector_store %arg17[%c528, %c0_570], %338 {strides = array<i32>} : memref<784x192xbf16, #tpu.memory_space<vmem>>, vector<16x192xbf16>,
    %c4_571 = arith.constant 4 : index
    %c6_572 = arith.constant 6 : index
    %c0_573 = arith.constant 0 : index
    %c0_574 = arith.constant 0 : index
    %340 = vector.load %arg1[%c4_571, %c6_572, %c0_573, %c0_574] : memref<8x8x16x48xbf16, #tpu.memory_space<vmem>>, vector<1x1x16x48xbf16>
    %341 = vector.shape_cast %340 : vector<1x1x16x48xbf16> to vector<16x48xbf16>
    %c4_575 = arith.constant 4 : index
    %c7_576 = arith.constant 7 : index
    %c0_577 = arith.constant 0 : index
    %c0_578 = arith.constant 0 : index
    %342 = vector.load %arg1[%c4_575, %c7_576, %c0_577, %c0_578] : memref<8x8x16x48xbf16, #tpu.memory_space<vmem>>, vector<1x1x16x48xbf16>
    %343 = vector.shape_cast %342 : vector<1x1x16x48xbf16> to vector<16x48xbf16>
    %c5_579 = arith.constant 5 : index
    %c6_580 = arith.constant 6 : index
    %c0_581 = arith.constant 0 : index
    %c0_582 = arith.constant 0 : index
    %344 = vector.load %arg1[%c5_579, %c6_580, %c0_581, %c0_582] : memref<8x8x16x48xbf16, #tpu.memory_space<vmem>>, vector<1x1x16x48xbf16>
    %345 = vector.shape_cast %344 : vector<1x1x16x48xbf16> to vector<16x48xbf16>
    %c5_583 = arith.constant 5 : index
    %c7_584 = arith.constant 7 : index
    %c0_585 = arith.constant 0 : index
    %c0_586 = arith.constant 0 : index
    %346 = vector.load %arg1[%c5_583, %c7_584, %c0_585, %c0_586] : memref<8x8x16x48xbf16, #tpu.memory_space<vmem>>, vector<1x1x16x48xbf16>
    %347 = vector.shape_cast %346 : vector<1x1x16x48xbf16> to vector<16x48xbf16>
    %348 = tpu.concatenate %341, %343, %345, %347 in 1 : vector<16x48xbf16>, vector<16x48xbf16>, vector<16x48xbf16>, vector<16x48xbf16> -> vector<16x192xbf16>
    %c544 = arith.constant 544 : index
    %c0_587 = arith.constant 0 : index
    %349 = vector.load %arg17[%c544, %c0_587] : memref<784x192xbf16, #tpu.memory_space<vmem>>, vector<16x192xbf16>
    tpu.vector_store %arg17[%c544, %c0_587], %348 {strides = array<i32>} : memref<784x192xbf16, #tpu.memory_space<vmem>>, vector<16x192xbf16>,
    %c5_588 = arith.constant 5 : index
    %c0_589 = arith.constant 0 : index
    %c0_590 = arith.constant 0 : index
    %c0_591 = arith.constant 0 : index
    %350 = vector.load %arg1[%c5_588, %c0_589, %c0_590, %c0_591] : memref<8x8x16x48xbf16, #tpu.memory_space<vmem>>, vector<1x1x16x48xbf16>
    %351 = vector.shape_cast %350 : vector<1x1x16x48xbf16> to vector<16x48xbf16>
    %c5_592 = arith.constant 5 : index
    %c1_593 = arith.constant 1 : index
    %c0_594 = arith.constant 0 : index
    %c0_595 = arith.constant 0 : index
    %352 = vector.load %arg1[%c5_592, %c1_593, %c0_594, %c0_595] : memref<8x8x16x48xbf16, #tpu.memory_space<vmem>>, vector<1x1x16x48xbf16>
    %353 = vector.shape_cast %352 : vector<1x1x16x48xbf16> to vector<16x48xbf16>
    %c6_596 = arith.constant 6 : index
    %c0_597 = arith.constant 0 : index
    %c0_598 = arith.constant 0 : index
    %c0_599 = arith.constant 0 : index
    %354 = vector.load %arg1[%c6_596, %c0_597, %c0_598, %c0_599] : memref<8x8x16x48xbf16, #tpu.memory_space<vmem>>, vector<1x1x16x48xbf16>
    %355 = vector.shape_cast %354 : vector<1x1x16x48xbf16> to vector<16x48xbf16>
    %c6_600 = arith.constant 6 : index
    %c1_601 = arith.constant 1 : index
    %c0_602 = arith.constant 0 : index
    %c0_603 = arith.constant 0 : index
    %356 = vector.load %arg1[%c6_600, %c1_601, %c0_602, %c0_603] : memref<8x8x16x48xbf16, #tpu.memory_space<vmem>>, vector<1x1x16x48xbf16>
    %357 = vector.shape_cast %356 : vector<1x1x16x48xbf16> to vector<16x48xbf16>
    %358 = tpu.concatenate %351, %353, %355, %357 in 1 : vector<16x48xbf16>, vector<16x48xbf16>, vector<16x48xbf16>, vector<16x48xbf16> -> vector<16x192xbf16>
    %c560 = arith.constant 560 : index
    %c0_604 = arith.constant 0 : index
    %359 = vector.load %arg17[%c560, %c0_604] : memref<784x192xbf16, #tpu.memory_space<vmem>>, vector<16x192xbf16>
    tpu.vector_store %arg17[%c560, %c0_604], %358 {strides = array<i32>} : memref<784x192xbf16, #tpu.memory_space<vmem>>, vector<16x192xbf16>,
    %c5_605 = arith.constant 5 : index
    %c1_606 = arith.constant 1 : index
    %c0_607 = arith.constant 0 : index
    %c0_608 = arith.constant 0 : index
    %360 = vector.load %arg1[%c5_605, %c1_606, %c0_607, %c0_608] : memref<8x8x16x48xbf16, #tpu.memory_space<vmem>>, vector<1x1x16x48xbf16>
    %361 = vector.shape_cast %360 : vector<1x1x16x48xbf16> to vector<16x48xbf16>
    %c5_609 = arith.constant 5 : index
    %c2_610 = arith.constant 2 : index
    %c0_611 = arith.constant 0 : index
    %c0_612 = arith.constant 0 : index
    %362 = vector.load %arg1[%c5_609, %c2_610, %c0_611, %c0_612] : memref<8x8x16x48xbf16, #tpu.memory_space<vmem>>, vector<1x1x16x48xbf16>
    %363 = vector.shape_cast %362 : vector<1x1x16x48xbf16> to vector<16x48xbf16>
    %c6_613 = arith.constant 6 : index
    %c1_614 = arith.constant 1 : index
    %c0_615 = arith.constant 0 : index
    %c0_616 = arith.constant 0 : index
    %364 = vector.load %arg1[%c6_613, %c1_614, %c0_615, %c0_616] : memref<8x8x16x48xbf16, #tpu.memory_space<vmem>>, vector<1x1x16x48xbf16>
    %365 = vector.shape_cast %364 : vector<1x1x16x48xbf16> to vector<16x48xbf16>
    %c6_617 = arith.constant 6 : index
    %c2_618 = arith.constant 2 : index
    %c0_619 = arith.constant 0 : index
    %c0_620 = arith.constant 0 : index
    %366 = vector.load %arg1[%c6_617, %c2_618, %c0_619, %c0_620] : memref<8x8x16x48xbf16, #tpu.memory_space<vmem>>, vector<1x1x16x48xbf16>
    %367 = vector.shape_cast %366 : vector<1x1x16x48xbf16> to vector<16x48xbf16>
    %368 = tpu.concatenate %361, %363, %365, %367 in 1 : vector<16x48xbf16>, vector<16x48xbf16>, vector<16x48xbf16>, vector<16x48xbf16> -> vector<16x192xbf16>
    %c576 = arith.constant 576 : index
    %c0_621 = arith.constant 0 : index
    %369 = vector.load %arg17[%c576, %c0_621] : memref<784x192xbf16, #tpu.memory_space<vmem>>, vector<16x192xbf16>
    tpu.vector_store %arg17[%c576, %c0_621], %368 {strides = array<i32>} : memref<784x192xbf16, #tpu.memory_space<vmem>>, vector<16x192xbf16>,
    %c5_622 = arith.constant 5 : index
    %c2_623 = arith.constant 2 : index
    %c0_624 = arith.constant 0 : index
    %c0_625 = arith.constant 0 : index
    %370 = vector.load %arg1[%c5_622, %c2_623, %c0_624, %c0_625] : memref<8x8x16x48xbf16, #tpu.memory_space<vmem>>, vector<1x1x16x48xbf16>
    %371 = vector.shape_cast %370 : vector<1x1x16x48xbf16> to vector<16x48xbf16>
    %c5_626 = arith.constant 5 : index
    %c3_627 = arith.constant 3 : index
    %c0_628 = arith.constant 0 : index
    %c0_629 = arith.constant 0 : index
    %372 = vector.load %arg1[%c5_626, %c3_627, %c0_628, %c0_629] : memref<8x8x16x48xbf16, #tpu.memory_space<vmem>>, vector<1x1x16x48xbf16>
    %373 = vector.shape_cast %372 : vector<1x1x16x48xbf16> to vector<16x48xbf16>
    %c6_630 = arith.constant 6 : index
    %c2_631 = arith.constant 2 : index
    %c0_632 = arith.constant 0 : index
    %c0_633 = arith.constant 0 : index
    %374 = vector.load %arg1[%c6_630, %c2_631, %c0_632, %c0_633] : memref<8x8x16x48xbf16, #tpu.memory_space<vmem>>, vector<1x1x16x48xbf16>
    %375 = vector.shape_cast %374 : vector<1x1x16x48xbf16> to vector<16x48xbf16>
    %c6_634 = arith.constant 6 : index
    %c3_635 = arith.constant 3 : index
    %c0_636 = arith.constant 0 : index
    %c0_637 = arith.constant 0 : index
    %376 = vector.load %arg1[%c6_634, %c3_635, %c0_636, %c0_637] : memref<8x8x16x48xbf16, #tpu.memory_space<vmem>>, vector<1x1x16x48xbf16>
    %377 = vector.shape_cast %376 : vector<1x1x16x48xbf16> to vector<16x48xbf16>
    %378 = tpu.concatenate %371, %373, %375, %377 in 1 : vector<16x48xbf16>, vector<16x48xbf16>, vector<16x48xbf16>, vector<16x48xbf16> -> vector<16x192xbf16>
    %c592 = arith.constant 592 : index
    %c0_638 = arith.constant 0 : index
    %379 = vector.load %arg17[%c592, %c0_638] : memref<784x192xbf16, #tpu.memory_space<vmem>>, vector<16x192xbf16>
    tpu.vector_store %arg17[%c592, %c0_638], %378 {strides = array<i32>} : memref<784x192xbf16, #tpu.memory_space<vmem>>, vector<16x192xbf16>,
    %c5_639 = arith.constant 5 : index
    %c3_640 = arith.constant 3 : index
    %c0_641 = arith.constant 0 : index
    %c0_642 = arith.constant 0 : index
    %380 = vector.load %arg1[%c5_639, %c3_640, %c0_641, %c0_642] : memref<8x8x16x48xbf16, #tpu.memory_space<vmem>>, vector<1x1x16x48xbf16>
    %381 = vector.shape_cast %380 : vector<1x1x16x48xbf16> to vector<16x48xbf16>
    %c5_643 = arith.constant 5 : index
    %c4_644 = arith.constant 4 : index
    %c0_645 = arith.constant 0 : index
    %c0_646 = arith.constant 0 : index
    %382 = vector.load %arg1[%c5_643, %c4_644, %c0_645, %c0_646] : memref<8x8x16x48xbf16, #tpu.memory_space<vmem>>, vector<1x1x16x48xbf16>
    %383 = vector.shape_cast %382 : vector<1x1x16x48xbf16> to vector<16x48xbf16>
    %c6_647 = arith.constant 6 : index
    %c3_648 = arith.constant 3 : index
    %c0_649 = arith.constant 0 : index
    %c0_650 = arith.constant 0 : index
    %384 = vector.load %arg1[%c6_647, %c3_648, %c0_649, %c0_650] : memref<8x8x16x48xbf16, #tpu.memory_space<vmem>>, vector<1x1x16x48xbf16>
    %385 = vector.shape_cast %384 : vector<1x1x16x48xbf16> to vector<16x48xbf16>
    %c6_651 = arith.constant 6 : index
    %c4_652 = arith.constant 4 : index
    %c0_653 = arith.constant 0 : index
    %c0_654 = arith.constant 0 : index
    %386 = vector.load %arg1[%c6_651, %c4_652, %c0_653, %c0_654] : memref<8x8x16x48xbf16, #tpu.memory_space<vmem>>, vector<1x1x16x48xbf16>
    %387 = vector.shape_cast %386 : vector<1x1x16x48xbf16> to vector<16x48xbf16>
    %388 = tpu.concatenate %381, %383, %385, %387 in 1 : vector<16x48xbf16>, vector<16x48xbf16>, vector<16x48xbf16>, vector<16x48xbf16> -> vector<16x192xbf16>
    %c608 = arith.constant 608 : index
    %c0_655 = arith.constant 0 : index
    %389 = vector.load %arg17[%c608, %c0_655] : memref<784x192xbf16, #tpu.memory_space<vmem>>, vector<16x192xbf16>
    tpu.vector_store %arg17[%c608, %c0_655], %388 {strides = array<i32>} : memref<784x192xbf16, #tpu.memory_space<vmem>>, vector<16x192xbf16>,
    %c5_656 = arith.constant 5 : index
    %c4_657 = arith.constant 4 : index
    %c0_658 = arith.constant 0 : index
    %c0_659 = arith.constant 0 : index
    %390 = vector.load %arg1[%c5_656, %c4_657, %c0_658, %c0_659] : memref<8x8x16x48xbf16, #tpu.memory_space<vmem>>, vector<1x1x16x48xbf16>
    %391 = vector.shape_cast %390 : vector<1x1x16x48xbf16> to vector<16x48xbf16>
    %c5_660 = arith.constant 5 : index
    %c5_661 = arith.constant 5 : index
    %c0_662 = arith.constant 0 : index
    %c0_663 = arith.constant 0 : index
    %392 = vector.load %arg1[%c5_660, %c5_661, %c0_662, %c0_663] : memref<8x8x16x48xbf16, #tpu.memory_space<vmem>>, vector<1x1x16x48xbf16>
    %393 = vector.shape_cast %392 : vector<1x1x16x48xbf16> to vector<16x48xbf16>
    %c6_664 = arith.constant 6 : index
    %c4_665 = arith.constant 4 : index
    %c0_666 = arith.constant 0 : index
    %c0_667 = arith.constant 0 : index
    %394 = vector.load %arg1[%c6_664, %c4_665, %c0_666, %c0_667] : memref<8x8x16x48xbf16, #tpu.memory_space<vmem>>, vector<1x1x16x48xbf16>
    %395 = vector.shape_cast %394 : vector<1x1x16x48xbf16> to vector<16x48xbf16>
    %c6_668 = arith.constant 6 : index
    %c5_669 = arith.constant 5 : index
    %c0_670 = arith.constant 0 : index
    %c0_671 = arith.constant 0 : index
    %396 = vector.load %arg1[%c6_668, %c5_669, %c0_670, %c0_671] : memref<8x8x16x48xbf16, #tpu.memory_space<vmem>>, vector<1x1x16x48xbf16>
    %397 = vector.shape_cast %396 : vector<1x1x16x48xbf16> to vector<16x48xbf16>
    %398 = tpu.concatenate %391, %393, %395, %397 in 1 : vector<16x48xbf16>, vector<16x48xbf16>, vector<16x48xbf16>, vector<16x48xbf16> -> vector<16x192xbf16>
    %c624 = arith.constant 624 : index
    %c0_672 = arith.constant 0 : index
    %399 = vector.load %arg17[%c624, %c0_672] : memref<784x192xbf16, #tpu.memory_space<vmem>>, vector<16x192xbf16>
    tpu.vector_store %arg17[%c624, %c0_672], %398 {strides = array<i32>} : memref<784x192xbf16, #tpu.memory_space<vmem>>, vector<16x192xbf16>,
    %c5_673 = arith.constant 5 : index
    %c5_674 = arith.constant 5 : index
    %c0_675 = arith.constant 0 : index
    %c0_676 = arith.constant 0 : index
    %400 = vector.load %arg1[%c5_673, %c5_674, %c0_675, %c0_676] : memref<8x8x16x48xbf16, #tpu.memory_space<vmem>>, vector<1x1x16x48xbf16>
    %401 = vector.shape_cast %400 : vector<1x1x16x48xbf16> to vector<16x48xbf16>
    %c5_677 = arith.constant 5 : index
    %c6_678 = arith.constant 6 : index
    %c0_679 = arith.constant 0 : index
    %c0_680 = arith.constant 0 : index
    %402 = vector.load %arg1[%c5_677, %c6_678, %c0_679, %c0_680] : memref<8x8x16x48xbf16, #tpu.memory_space<vmem>>, vector<1x1x16x48xbf16>
    %403 = vector.shape_cast %402 : vector<1x1x16x48xbf16> to vector<16x48xbf16>
    %c6_681 = arith.constant 6 : index
    %c5_682 = arith.constant 5 : index
    %c0_683 = arith.constant 0 : index
    %c0_684 = arith.constant 0 : index
    %404 = vector.load %arg1[%c6_681, %c5_682, %c0_683, %c0_684] : memref<8x8x16x48xbf16, #tpu.memory_space<vmem>>, vector<1x1x16x48xbf16>
    %405 = vector.shape_cast %404 : vector<1x1x16x48xbf16> to vector<16x48xbf16>
    %c6_685 = arith.constant 6 : index
    %c6_686 = arith.constant 6 : index
    %c0_687 = arith.constant 0 : index
    %c0_688 = arith.constant 0 : index
    %406 = vector.load %arg1[%c6_685, %c6_686, %c0_687, %c0_688] : memref<8x8x16x48xbf16, #tpu.memory_space<vmem>>, vector<1x1x16x48xbf16>
    %407 = vector.shape_cast %406 : vector<1x1x16x48xbf16> to vector<16x48xbf16>
    %408 = tpu.concatenate %401, %403, %405, %407 in 1 : vector<16x48xbf16>, vector<16x48xbf16>, vector<16x48xbf16>, vector<16x48xbf16> -> vector<16x192xbf16>
    %c640 = arith.constant 640 : index
    %c0_689 = arith.constant 0 : index
    %409 = vector.load %arg17[%c640, %c0_689] : memref<784x192xbf16, #tpu.memory_space<vmem>>, vector<16x192xbf16>
    tpu.vector_store %arg17[%c640, %c0_689], %408 {strides = array<i32>} : memref<784x192xbf16, #tpu.memory_space<vmem>>, vector<16x192xbf16>,
    %c5_690 = arith.constant 5 : index
    %c6_691 = arith.constant 6 : index
    %c0_692 = arith.constant 0 : index
    %c0_693 = arith.constant 0 : index
    %410 = vector.load %arg1[%c5_690, %c6_691, %c0_692, %c0_693] : memref<8x8x16x48xbf16, #tpu.memory_space<vmem>>, vector<1x1x16x48xbf16>
    %411 = vector.shape_cast %410 : vector<1x1x16x48xbf16> to vector<16x48xbf16>
    %c5_694 = arith.constant 5 : index
    %c7_695 = arith.constant 7 : index
    %c0_696 = arith.constant 0 : index
    %c0_697 = arith.constant 0 : index
    %412 = vector.load %arg1[%c5_694, %c7_695, %c0_696, %c0_697] : memref<8x8x16x48xbf16, #tpu.memory_space<vmem>>, vector<1x1x16x48xbf16>
    %413 = vector.shape_cast %412 : vector<1x1x16x48xbf16> to vector<16x48xbf16>
    %c6_698 = arith.constant 6 : index
    %c6_699 = arith.constant 6 : index
    %c0_700 = arith.constant 0 : index
    %c0_701 = arith.constant 0 : index
    %414 = vector.load %arg1[%c6_698, %c6_699, %c0_700, %c0_701] : memref<8x8x16x48xbf16, #tpu.memory_space<vmem>>, vector<1x1x16x48xbf16>
    %415 = vector.shape_cast %414 : vector<1x1x16x48xbf16> to vector<16x48xbf16>
    %c6_702 = arith.constant 6 : index
    %c7_703 = arith.constant 7 : index
    %c0_704 = arith.constant 0 : index
    %c0_705 = arith.constant 0 : index
    %416 = vector.load %arg1[%c6_702, %c7_703, %c0_704, %c0_705] : memref<8x8x16x48xbf16, #tpu.memory_space<vmem>>, vector<1x1x16x48xbf16>
    %417 = vector.shape_cast %416 : vector<1x1x16x48xbf16> to vector<16x48xbf16>
    %418 = tpu.concatenate %411, %413, %415, %417 in 1 : vector<16x48xbf16>, vector<16x48xbf16>, vector<16x48xbf16>, vector<16x48xbf16> -> vector<16x192xbf16>
    %c656 = arith.constant 656 : index
    %c0_706 = arith.constant 0 : index
    %419 = vector.load %arg17[%c656, %c0_706] : memref<784x192xbf16, #tpu.memory_space<vmem>>, vector<16x192xbf16>
    tpu.vector_store %arg17[%c656, %c0_706], %418 {strides = array<i32>} : memref<784x192xbf16, #tpu.memory_space<vmem>>, vector<16x192xbf16>,
    %c6_707 = arith.constant 6 : index
    %c0_708 = arith.constant 0 : index
    %c0_709 = arith.constant 0 : index
    %c0_710 = arith.constant 0 : index
    %420 = vector.load %arg1[%c6_707, %c0_708, %c0_709, %c0_710] : memref<8x8x16x48xbf16, #tpu.memory_space<vmem>>, vector<1x1x16x48xbf16>
    %421 = vector.shape_cast %420 : vector<1x1x16x48xbf16> to vector<16x48xbf16>
    %c6_711 = arith.constant 6 : index
    %c1_712 = arith.constant 1 : index
    %c0_713 = arith.constant 0 : index
    %c0_714 = arith.constant 0 : index
    %422 = vector.load %arg1[%c6_711, %c1_712, %c0_713, %c0_714] : memref<8x8x16x48xbf16, #tpu.memory_space<vmem>>, vector<1x1x16x48xbf16>
    %423 = vector.shape_cast %422 : vector<1x1x16x48xbf16> to vector<16x48xbf16>
    %c7_715 = arith.constant 7 : index
    %c0_716 = arith.constant 0 : index
    %c0_717 = arith.constant 0 : index
    %c0_718 = arith.constant 0 : index
    %424 = vector.load %arg1[%c7_715, %c0_716, %c0_717, %c0_718] : memref<8x8x16x48xbf16, #tpu.memory_space<vmem>>, vector<1x1x16x48xbf16>
    %425 = vector.shape_cast %424 : vector<1x1x16x48xbf16> to vector<16x48xbf16>
    %c7_719 = arith.constant 7 : index
    %c1_720 = arith.constant 1 : index
    %c0_721 = arith.constant 0 : index
    %c0_722 = arith.constant 0 : index
    %426 = vector.load %arg1[%c7_719, %c1_720, %c0_721, %c0_722] : memref<8x8x16x48xbf16, #tpu.memory_space<vmem>>, vector<1x1x16x48xbf16>
    %427 = vector.shape_cast %426 : vector<1x1x16x48xbf16> to vector<16x48xbf16>
    %428 = tpu.concatenate %421, %423, %425, %427 in 1 : vector<16x48xbf16>, vector<16x48xbf16>, vector<16x48xbf16>, vector<16x48xbf16> -> vector<16x192xbf16>
    %c672 = arith.constant 672 : index
    %c0_723 = arith.constant 0 : index
    %429 = vector.load %arg17[%c672, %c0_723] : memref<784x192xbf16, #tpu.memory_space<vmem>>, vector<16x192xbf16>
    tpu.vector_store %arg17[%c672, %c0_723], %428 {strides = array<i32>} : memref<784x192xbf16, #tpu.memory_space<vmem>>, vector<16x192xbf16>,
    %c6_724 = arith.constant 6 : index
    %c1_725 = arith.constant 1 : index
    %c0_726 = arith.constant 0 : index
    %c0_727 = arith.constant 0 : index
    %430 = vector.load %arg1[%c6_724, %c1_725, %c0_726, %c0_727] : memref<8x8x16x48xbf16, #tpu.memory_space<vmem>>, vector<1x1x16x48xbf16>
    %431 = vector.shape_cast %430 : vector<1x1x16x48xbf16> to vector<16x48xbf16>
    %c6_728 = arith.constant 6 : index
    %c2_729 = arith.constant 2 : index
    %c0_730 = arith.constant 0 : index
    %c0_731 = arith.constant 0 : index
    %432 = vector.load %arg1[%c6_728, %c2_729, %c0_730, %c0_731] : memref<8x8x16x48xbf16, #tpu.memory_space<vmem>>, vector<1x1x16x48xbf16>
    %433 = vector.shape_cast %432 : vector<1x1x16x48xbf16> to vector<16x48xbf16>
    %c7_732 = arith.constant 7 : index
    %c1_733 = arith.constant 1 : index
    %c0_734 = arith.constant 0 : index
    %c0_735 = arith.constant 0 : index
    %434 = vector.load %arg1[%c7_732, %c1_733, %c0_734, %c0_735] : memref<8x8x16x48xbf16, #tpu.memory_space<vmem>>, vector<1x1x16x48xbf16>
    %435 = vector.shape_cast %434 : vector<1x1x16x48xbf16> to vector<16x48xbf16>
    %c7_736 = arith.constant 7 : index
    %c2_737 = arith.constant 2 : index
    %c0_738 = arith.constant 0 : index
    %c0_739 = arith.constant 0 : index
    %436 = vector.load %arg1[%c7_736, %c2_737, %c0_738, %c0_739] : memref<8x8x16x48xbf16, #tpu.memory_space<vmem>>, vector<1x1x16x48xbf16>
    %437 = vector.shape_cast %436 : vector<1x1x16x48xbf16> to vector<16x48xbf16>
    %438 = tpu.concatenate %431, %433, %435, %437 in 1 : vector<16x48xbf16>, vector<16x48xbf16>, vector<16x48xbf16>, vector<16x48xbf16> -> vector<16x192xbf16>
    %c688 = arith.constant 688 : index
    %c0_740 = arith.constant 0 : index
    %439 = vector.load %arg17[%c688, %c0_740] : memref<784x192xbf16, #tpu.memory_space<vmem>>, vector<16x192xbf16>
    tpu.vector_store %arg17[%c688, %c0_740], %438 {strides = array<i32>} : memref<784x192xbf16, #tpu.memory_space<vmem>>, vector<16x192xbf16>,
    %c6_741 = arith.constant 6 : index
    %c2_742 = arith.constant 2 : index
    %c0_743 = arith.constant 0 : index
    %c0_744 = arith.constant 0 : index
    %440 = vector.load %arg1[%c6_741, %c2_742, %c0_743, %c0_744] : memref<8x8x16x48xbf16, #tpu.memory_space<vmem>>, vector<1x1x16x48xbf16>
    %441 = vector.shape_cast %440 : vector<1x1x16x48xbf16> to vector<16x48xbf16>
    %c6_745 = arith.constant 6 : index
    %c3_746 = arith.constant 3 : index
    %c0_747 = arith.constant 0 : index
    %c0_748 = arith.constant 0 : index
    %442 = vector.load %arg1[%c6_745, %c3_746, %c0_747, %c0_748] : memref<8x8x16x48xbf16, #tpu.memory_space<vmem>>, vector<1x1x16x48xbf16>
    %443 = vector.shape_cast %442 : vector<1x1x16x48xbf16> to vector<16x48xbf16>
    %c7_749 = arith.constant 7 : index
    %c2_750 = arith.constant 2 : index
    %c0_751 = arith.constant 0 : index
    %c0_752 = arith.constant 0 : index
    %444 = vector.load %arg1[%c7_749, %c2_750, %c0_751, %c0_752] : memref<8x8x16x48xbf16, #tpu.memory_space<vmem>>, vector<1x1x16x48xbf16>
    %445 = vector.shape_cast %444 : vector<1x1x16x48xbf16> to vector<16x48xbf16>
    %c7_753 = arith.constant 7 : index
    %c3_754 = arith.constant 3 : index
    %c0_755 = arith.constant 0 : index
    %c0_756 = arith.constant 0 : index
    %446 = vector.load %arg1[%c7_753, %c3_754, %c0_755, %c0_756] : memref<8x8x16x48xbf16, #tpu.memory_space<vmem>>, vector<1x1x16x48xbf16>
    %447 = vector.shape_cast %446 : vector<1x1x16x48xbf16> to vector<16x48xbf16>
    %448 = tpu.concatenate %441, %443, %445, %447 in 1 : vector<16x48xbf16>, vector<16x48xbf16>, vector<16x48xbf16>, vector<16x48xbf16> -> vector<16x192xbf16>
    %c704 = arith.constant 704 : index
    %c0_757 = arith.constant 0 : index
    %449 = vector.load %arg17[%c704, %c0_757] : memref<784x192xbf16, #tpu.memory_space<vmem>>, vector<16x192xbf16>
    tpu.vector_store %arg17[%c704, %c0_757], %448 {strides = array<i32>} : memref<784x192xbf16, #tpu.memory_space<vmem>>, vector<16x192xbf16>,
    %c6_758 = arith.constant 6 : index
    %c3_759 = arith.constant 3 : index
    %c0_760 = arith.constant 0 : index
    %c0_761 = arith.constant 0 : index
    %450 = vector.load %arg1[%c6_758, %c3_759, %c0_760, %c0_761] : memref<8x8x16x48xbf16, #tpu.memory_space<vmem>>, vector<1x1x16x48xbf16>
    %451 = vector.shape_cast %450 : vector<1x1x16x48xbf16> to vector<16x48xbf16>
    %c6_762 = arith.constant 6 : index
    %c4_763 = arith.constant 4 : index
    %c0_764 = arith.constant 0 : index
    %c0_765 = arith.constant 0 : index
    %452 = vector.load %arg1[%c6_762, %c4_763, %c0_764, %c0_765] : memref<8x8x16x48xbf16, #tpu.memory_space<vmem>>, vector<1x1x16x48xbf16>
    %453 = vector.shape_cast %452 : vector<1x1x16x48xbf16> to vector<16x48xbf16>
    %c7_766 = arith.constant 7 : index
    %c3_767 = arith.constant 3 : index
    %c0_768 = arith.constant 0 : index
    %c0_769 = arith.constant 0 : index
    %454 = vector.load %arg1[%c7_766, %c3_767, %c0_768, %c0_769] : memref<8x8x16x48xbf16, #tpu.memory_space<vmem>>, vector<1x1x16x48xbf16>
    %455 = vector.shape_cast %454 : vector<1x1x16x48xbf16> to vector<16x48xbf16>
    %c7_770 = arith.constant 7 : index
    %c4_771 = arith.constant 4 : index
    %c0_772 = arith.constant 0 : index
    %c0_773 = arith.constant 0 : index
    %456 = vector.load %arg1[%c7_770, %c4_771, %c0_772, %c0_773] : memref<8x8x16x48xbf16, #tpu.memory_space<vmem>>, vector<1x1x16x48xbf16>
    %457 = vector.shape_cast %456 : vector<1x1x16x48xbf16> to vector<16x48xbf16>
    %458 = tpu.concatenate %451, %453, %455, %457 in 1 : vector<16x48xbf16>, vector<16x48xbf16>, vector<16x48xbf16>, vector<16x48xbf16> -> vector<16x192xbf16>
    %c720 = arith.constant 720 : index
    %c0_774 = arith.constant 0 : index
    %459 = vector.load %arg17[%c720, %c0_774] : memref<784x192xbf16, #tpu.memory_space<vmem>>, vector<16x192xbf16>
    tpu.vector_store %arg17[%c720, %c0_774], %458 {strides = array<i32>} : memref<784x192xbf16, #tpu.memory_space<vmem>>, vector<16x192xbf16>,
    %c6_775 = arith.constant 6 : index
    %c4_776 = arith.constant 4 : index
    %c0_777 = arith.constant 0 : index
    %c0_778 = arith.constant 0 : index
    %460 = vector.load %arg1[%c6_775, %c4_776, %c0_777, %c0_778] : memref<8x8x16x48xbf16, #tpu.memory_space<vmem>>, vector<1x1x16x48xbf16>
    %461 = vector.shape_cast %460 : vector<1x1x16x48xbf16> to vector<16x48xbf16>
    %c6_779 = arith.constant 6 : index
    %c5_780 = arith.constant 5 : index
    %c0_781 = arith.constant 0 : index
    %c0_782 = arith.constant 0 : index
    %462 = vector.load %arg1[%c6_779, %c5_780, %c0_781, %c0_782] : memref<8x8x16x48xbf16, #tpu.memory_space<vmem>>, vector<1x1x16x48xbf16>
    %463 = vector.shape_cast %462 : vector<1x1x16x48xbf16> to vector<16x48xbf16>
    %c7_783 = arith.constant 7 : index
    %c4_784 = arith.constant 4 : index
    %c0_785 = arith.constant 0 : index
    %c0_786 = arith.constant 0 : index
    %464 = vector.load %arg1[%c7_783, %c4_784, %c0_785, %c0_786] : memref<8x8x16x48xbf16, #tpu.memory_space<vmem>>, vector<1x1x16x48xbf16>
    %465 = vector.shape_cast %464 : vector<1x1x16x48xbf16> to vector<16x48xbf16>
    %c7_787 = arith.constant 7 : index
    %c5_788 = arith.constant 5 : index
    %c0_789 = arith.constant 0 : index
    %c0_790 = arith.constant 0 : index
    %466 = vector.load %arg1[%c7_787, %c5_788, %c0_789, %c0_790] : memref<8x8x16x48xbf16, #tpu.memory_space<vmem>>, vector<1x1x16x48xbf16>
    %467 = vector.shape_cast %466 : vector<1x1x16x48xbf16> to vector<16x48xbf16>
    %468 = tpu.concatenate %461, %463, %465, %467 in 1 : vector<16x48xbf16>, vector<16x48xbf16>, vector<16x48xbf16>, vector<16x48xbf16> -> vector<16x192xbf16>
    %c736 = arith.constant 736 : index
    %c0_791 = arith.constant 0 : index
    %469 = vector.load %arg17[%c736, %c0_791] : memref<784x192xbf16, #tpu.memory_space<vmem>>, vector<16x192xbf16>
    tpu.vector_store %arg17[%c736, %c0_791], %468 {strides = array<i32>} : memref<784x192xbf16, #tpu.memory_space<vmem>>, vector<16x192xbf16>,
    %c6_792 = arith.constant 6 : index
    %c5_793 = arith.constant 5 : index
    %c0_794 = arith.constant 0 : index
    %c0_795 = arith.constant 0 : index
    %470 = vector.load %arg1[%c6_792, %c5_793, %c0_794, %c0_795] : memref<8x8x16x48xbf16, #tpu.memory_space<vmem>>, vector<1x1x16x48xbf16>
    %471 = vector.shape_cast %470 : vector<1x1x16x48xbf16> to vector<16x48xbf16>
    %c6_796 = arith.constant 6 : index
    %c6_797 = arith.constant 6 : index
    %c0_798 = arith.constant 0 : index
    %c0_799 = arith.constant 0 : index
    %472 = vector.load %arg1[%c6_796, %c6_797, %c0_798, %c0_799] : memref<8x8x16x48xbf16, #tpu.memory_space<vmem>>, vector<1x1x16x48xbf16>
    %473 = vector.shape_cast %472 : vector<1x1x16x48xbf16> to vector<16x48xbf16>
    %c7_800 = arith.constant 7 : index
    %c5_801 = arith.constant 5 : index
    %c0_802 = arith.constant 0 : index
    %c0_803 = arith.constant 0 : index
    %474 = vector.load %arg1[%c7_800, %c5_801, %c0_802, %c0_803] : memref<8x8x16x48xbf16, #tpu.memory_space<vmem>>, vector<1x1x16x48xbf16>
    %475 = vector.shape_cast %474 : vector<1x1x16x48xbf16> to vector<16x48xbf16>
    %c7_804 = arith.constant 7 : index
    %c6_805 = arith.constant 6 : index
    %c0_806 = arith.constant 0 : index
    %c0_807 = arith.constant 0 : index
    %476 = vector.load %arg1[%c7_804, %c6_805, %c0_806, %c0_807] : memref<8x8x16x48xbf16, #tpu.memory_space<vmem>>, vector<1x1x16x48xbf16>
    %477 = vector.shape_cast %476 : vector<1x1x16x48xbf16> to vector<16x48xbf16>
    %478 = tpu.concatenate %471, %473, %475, %477 in 1 : vector<16x48xbf16>, vector<16x48xbf16>, vector<16x48xbf16>, vector<16x48xbf16> -> vector<16x192xbf16>
    %c752 = arith.constant 752 : index
    %c0_808 = arith.constant 0 : index
    %479 = vector.load %arg17[%c752, %c0_808] : memref<784x192xbf16, #tpu.memory_space<vmem>>, vector<16x192xbf16>
    tpu.vector_store %arg17[%c752, %c0_808], %478 {strides = array<i32>} : memref<784x192xbf16, #tpu.memory_space<vmem>>, vector<16x192xbf16>,
    %c6_809 = arith.constant 6 : index
    %c6_810 = arith.constant 6 : index
    %c0_811 = arith.constant 0 : index
    %c0_812 = arith.constant 0 : index
    %480 = vector.load %arg1[%c6_809, %c6_810, %c0_811, %c0_812] : memref<8x8x16x48xbf16, #tpu.memory_space<vmem>>, vector<1x1x16x48xbf16>
    %481 = vector.shape_cast %480 : vector<1x1x16x48xbf16> to vector<16x48xbf16>
    %c6_813 = arith.constant 6 : index
    %c7_814 = arith.constant 7 : index
    %c0_815 = arith.constant 0 : index
    %c0_816 = arith.constant 0 : index
    %482 = vector.load %arg1[%c6_813, %c7_814, %c0_815, %c0_816] : memref<8x8x16x48xbf16, #tpu.memory_space<vmem>>, vector<1x1x16x48xbf16>
    %483 = vector.shape_cast %482 : vector<1x1x16x48xbf16> to vector<16x48xbf16>
    %c7_817 = arith.constant 7 : index
    %c6_818 = arith.constant 6 : index
    %c0_819 = arith.constant 0 : index
    %c0_820 = arith.constant 0 : index
    %484 = vector.load %arg1[%c7_817, %c6_818, %c0_819, %c0_820] : memref<8x8x16x48xbf16, #tpu.memory_space<vmem>>, vector<1x1x16x48xbf16>
    %485 = vector.shape_cast %484 : vector<1x1x16x48xbf16> to vector<16x48xbf16>
    %c7_821 = arith.constant 7 : index
    %c7_822 = arith.constant 7 : index
    %c0_823 = arith.constant 0 : index
    %c0_824 = arith.constant 0 : index
    %486 = vector.load %arg1[%c7_821, %c7_822, %c0_823, %c0_824] : memref<8x8x16x48xbf16, #tpu.memory_space<vmem>>, vector<1x1x16x48xbf16>
    %487 = vector.shape_cast %486 : vector<1x1x16x48xbf16> to vector<16x48xbf16>
    %488 = tpu.concatenate %481, %483, %485, %487 in 1 : vector<16x48xbf16>, vector<16x48xbf16>, vector<16x48xbf16>, vector<16x48xbf16> -> vector<16x192xbf16>
    %c768 = arith.constant 768 : index
    %c0_825 = arith.constant 0 : index
    %489 = vector.load %arg17[%c768, %c0_825] : memref<784x192xbf16, #tpu.memory_space<vmem>>, vector<16x192xbf16>
    tpu.vector_store %arg17[%c768, %c0_825], %488 {strides = array<i32>} : memref<784x192xbf16, #tpu.memory_space<vmem>>, vector<16x192xbf16>,
    %c0_826 = arith.constant 0 : index
    %c0_827 = arith.constant 0 : index
    %490 = vector.load %arg17[%c0_826, %c0_827] : memref<784x192xbf16, #tpu.memory_space<vmem>>, vector<784x192xbf16>
    %c0_828 = arith.constant 0 : index
    %c0_829 = arith.constant 0 : index
    %491 = vector.load %arg2[%c0_828, %c0_829] : memref<192x96xbf16, #tpu.memory_space<vmem>>, vector<192x96xbf16>
    %cst = arith.constant dense<0.000000e+00> : vector<784x96xf32>
    %492 = tpu.matmul %490, %491, %cst {dimension_numbers = #tpu.dot_dimension_numbers<[1], [0], [0], [1], [0, 0, 1, 1], [], []>} : vector<784x192xbf16>, vector<192x96xbf16>, vector<784x96xf32> -> vector<784x96xf32>
    %c0_830 = arith.constant 0 : index
    %c0_831 = arith.constant 0 : index
    %493 = vector.load %arg3[%c0_830, %c0_831] : memref<1x96xf32, #tpu.memory_space<vmem>>, vector<1x96xf32>
    %494 = vector.broadcast %493 : vector<1x96xf32> to vector<784x96xf32>
    %495 = arith.mulf %492, %494 : vector<784x96xf32>
    %c0_832 = arith.constant 0 : index
    %c0_833 = arith.constant 0 : index
    %496 = vector.load %arg4[%c0_832, %c0_833] : memref<1x96xf32, #tpu.memory_space<vmem>>, vector<1x96xf32>
    %497 = vector.broadcast %496 : vector<1x96xf32> to vector<784x96xf32>
    %498 = arith.addf %495, %497 : vector<784x96xf32>
    %cst_834 = arith.constant 0.000000e+00 : f32
    %499 = vector.broadcast %cst_834 : f32 to vector<784x96xf32>
    %500 = arith.maximumf %498, %499 : vector<784x96xf32>
    %501 = vector.extract_strided_slice %500 {offsets = [0, 0], sizes = [784, 24], strides = [1, 1]} : vector<784x96xf32> to vector<784x24xf32>
    %502 = vector.extract_strided_slice %500 {offsets = [0, 24], sizes = [784, 24], strides = [1, 1]} : vector<784x96xf32> to vector<784x24xf32>
    %503 = arith.maximumf %501, %502 : vector<784x24xf32>
    %504 = vector.extract_strided_slice %500 {offsets = [0, 48], sizes = [784, 24], strides = [1, 1]} : vector<784x96xf32> to vector<784x24xf32>
    %505 = vector.extract_strided_slice %500 {offsets = [0, 72], sizes = [784, 24], strides = [1, 1]} : vector<784x96xf32> to vector<784x24xf32>
    %506 = arith.maximumf %504, %505 : vector<784x24xf32>
    %507 = arith.maximumf %503, %506 : vector<784x24xf32>
    %508 = arith.truncf %507 : vector<784x24xf32> to vector<784x24xbf16>
    %509 = vector.extract_strided_slice %508 {offsets = [0, 0], sizes = [16, 24], strides = [1, 1]} : vector<784x24xbf16> to vector<16x24xbf16>
    %510 = vector.extract_strided_slice %508 {offsets = [16, 0], sizes = [16, 24], strides = [1, 1]} : vector<784x24xbf16> to vector<16x24xbf16>
    %511 = vector.extract_strided_slice %508 {offsets = [32, 0], sizes = [16, 24], strides = [1, 1]} : vector<784x24xbf16> to vector<16x24xbf16>
    %512 = vector.extract_strided_slice %508 {offsets = [112, 0], sizes = [16, 24], strides = [1, 1]} : vector<784x24xbf16> to vector<16x24xbf16>
    %513 = vector.extract_strided_slice %508 {offsets = [128, 0], sizes = [16, 24], strides = [1, 1]} : vector<784x24xbf16> to vector<16x24xbf16>
    %514 = vector.extract_strided_slice %508 {offsets = [144, 0], sizes = [16, 24], strides = [1, 1]} : vector<784x24xbf16> to vector<16x24xbf16>
    %515 = vector.extract_strided_slice %508 {offsets = [224, 0], sizes = [16, 24], strides = [1, 1]} : vector<784x24xbf16> to vector<16x24xbf16>
    %516 = vector.extract_strided_slice %508 {offsets = [240, 0], sizes = [16, 24], strides = [1, 1]} : vector<784x24xbf16> to vector<16x24xbf16>
    %517 = vector.extract_strided_slice %508 {offsets = [256, 0], sizes = [16, 24], strides = [1, 1]} : vector<784x24xbf16> to vector<16x24xbf16>
    %518 = tpu.concatenate %509, %510, %511, %512, %513, %514, %515, %516, %517 in 1 : vector<16x24xbf16>, vector<16x24xbf16>, vector<16x24xbf16>, vector<16x24xbf16>, vector<16x24xbf16>, vector<16x24xbf16>, vector<16x24xbf16>, vector<16x24xbf16>, vector<16x24xbf16> -> vector<16x216xbf16>
    %c0_835 = arith.constant 0 : index
    %c0_836 = arith.constant 0 : index
    %519 = vector.load %arg18[%c0_835, %c0_836] : memref<400x216xbf16, #tpu.memory_space<vmem>>, vector<16x216xbf16>
    tpu.vector_store %arg18[%c0_835, %c0_836], %518 {strides = array<i32>} : memref<400x216xbf16, #tpu.memory_space<vmem>>, vector<16x216xbf16>,
    %520 = vector.extract_strided_slice %508 {offsets = [16, 0], sizes = [16, 24], strides = [1, 1]} : vector<784x24xbf16> to vector<16x24xbf16>
    %521 = vector.extract_strided_slice %508 {offsets = [32, 0], sizes = [16, 24], strides = [1, 1]} : vector<784x24xbf16> to vector<16x24xbf16>
    %522 = vector.extract_strided_slice %508 {offsets = [48, 0], sizes = [16, 24], strides = [1, 1]} : vector<784x24xbf16> to vector<16x24xbf16>
    %523 = vector.extract_strided_slice %508 {offsets = [128, 0], sizes = [16, 24], strides = [1, 1]} : vector<784x24xbf16> to vector<16x24xbf16>
    %524 = vector.extract_strided_slice %508 {offsets = [144, 0], sizes = [16, 24], strides = [1, 1]} : vector<784x24xbf16> to vector<16x24xbf16>
    %525 = vector.extract_strided_slice %508 {offsets = [160, 0], sizes = [16, 24], strides = [1, 1]} : vector<784x24xbf16> to vector<16x24xbf16>
    %526 = vector.extract_strided_slice %508 {offsets = [240, 0], sizes = [16, 24], strides = [1, 1]} : vector<784x24xbf16> to vector<16x24xbf16>
    %527 = vector.extract_strided_slice %508 {offsets = [256, 0], sizes = [16, 24], strides = [1, 1]} : vector<784x24xbf16> to vector<16x24xbf16>
    %528 = vector.extract_strided_slice %508 {offsets = [272, 0], sizes = [16, 24], strides = [1, 1]} : vector<784x24xbf16> to vector<16x24xbf16>
    %529 = tpu.concatenate %520, %521, %522, %523, %524, %525, %526, %527, %528 in 1 : vector<16x24xbf16>, vector<16x24xbf16>, vector<16x24xbf16>, vector<16x24xbf16>, vector<16x24xbf16>, vector<16x24xbf16>, vector<16x24xbf16>, vector<16x24xbf16>, vector<16x24xbf16> -> vector<16x216xbf16>
    %c16_837 = arith.constant 16 : index
    %c0_838 = arith.constant 0 : index
    %530 = vector.load %arg18[%c16_837, %c0_838] : memref<400x216xbf16, #tpu.memory_space<vmem>>, vector<16x216xbf16>
    tpu.vector_store %arg18[%c16_837, %c0_838], %529 {strides = array<i32>} : memref<400x216xbf16, #tpu.memory_space<vmem>>, vector<16x216xbf16>,
    %531 = vector.extract_strided_slice %508 {offsets = [32, 0], sizes = [16, 24], strides = [1, 1]} : vector<784x24xbf16> to vector<16x24xbf16>
    %532 = vector.extract_strided_slice %508 {offsets = [48, 0], sizes = [16, 24], strides = [1, 1]} : vector<784x24xbf16> to vector<16x24xbf16>
    %533 = vector.extract_strided_slice %508 {offsets = [64, 0], sizes = [16, 24], strides = [1, 1]} : vector<784x24xbf16> to vector<16x24xbf16>
    %534 = vector.extract_strided_slice %508 {offsets = [144, 0], sizes = [16, 24], strides = [1, 1]} : vector<784x24xbf16> to vector<16x24xbf16>
    %535 = vector.extract_strided_slice %508 {offsets = [160, 0], sizes = [16, 24], strides = [1, 1]} : vector<784x24xbf16> to vector<16x24xbf16>
    %536 = vector.extract_strided_slice %508 {offsets = [176, 0], sizes = [16, 24], strides = [1, 1]} : vector<784x24xbf16> to vector<16x24xbf16>
    %537 = vector.extract_strided_slice %508 {offsets = [256, 0], sizes = [16, 24], strides = [1, 1]} : vector<784x24xbf16> to vector<16x24xbf16>
    %538 = vector.extract_strided_slice %508 {offsets = [272, 0], sizes = [16, 24], strides = [1, 1]} : vector<784x24xbf16> to vector<16x24xbf16>
    %539 = vector.extract_strided_slice %508 {offsets = [288, 0], sizes = [16, 24], strides = [1, 1]} : vector<784x24xbf16> to vector<16x24xbf16>
    %540 = tpu.concatenate %531, %532, %533, %534, %535, %536, %537, %538, %539 in 1 : vector<16x24xbf16>, vector<16x24xbf16>, vector<16x24xbf16>, vector<16x24xbf16>, vector<16x24xbf16>, vector<16x24xbf16>, vector<16x24xbf16>, vector<16x24xbf16>, vector<16x24xbf16> -> vector<16x216xbf16>
    %c32_839 = arith.constant 32 : index
    %c0_840 = arith.constant 0 : index
    %541 = vector.load %arg18[%c32_839, %c0_840] : memref<400x216xbf16, #tpu.memory_space<vmem>>, vector<16x216xbf16>
    tpu.vector_store %arg18[%c32_839, %c0_840], %540 {strides = array<i32>} : memref<400x216xbf16, #tpu.memory_space<vmem>>, vector<16x216xbf16>,
    %542 = vector.extract_strided_slice %508 {offsets = [48, 0], sizes = [16, 24], strides = [1, 1]} : vector<784x24xbf16> to vector<16x24xbf16>
    %543 = vector.extract_strided_slice %508 {offsets = [64, 0], sizes = [16, 24], strides = [1, 1]} : vector<784x24xbf16> to vector<16x24xbf16>
    %544 = vector.extract_strided_slice %508 {offsets = [80, 0], sizes = [16, 24], strides = [1, 1]} : vector<784x24xbf16> to vector<16x24xbf16>
    %545 = vector.extract_strided_slice %508 {offsets = [160, 0], sizes = [16, 24], strides = [1, 1]} : vector<784x24xbf16> to vector<16x24xbf16>
    %546 = vector.extract_strided_slice %508 {offsets = [176, 0], sizes = [16, 24], strides = [1, 1]} : vector<784x24xbf16> to vector<16x24xbf16>
    %547 = vector.extract_strided_slice %508 {offsets = [192, 0], sizes = [16, 24], strides = [1, 1]} : vector<784x24xbf16> to vector<16x24xbf16>
    %548 = vector.extract_strided_slice %508 {offsets = [272, 0], sizes = [16, 24], strides = [1, 1]} : vector<784x24xbf16> to vector<16x24xbf16>
    %549 = vector.extract_strided_slice %508 {offsets = [288, 0], sizes = [16, 24], strides = [1, 1]} : vector<784x24xbf16> to vector<16x24xbf16>
    %550 = vector.extract_strided_slice %508 {offsets = [304, 0], sizes = [16, 24], strides = [1, 1]} : vector<784x24xbf16> to vector<16x24xbf16>
    %551 = tpu.concatenate %542, %543, %544, %545, %546, %547, %548, %549, %550 in 1 : vector<16x24xbf16>, vector<16x24xbf16>, vector<16x24xbf16>, vector<16x24xbf16>, vector<16x24xbf16>, vector<16x24xbf16>, vector<16x24xbf16>, vector<16x24xbf16>, vector<16x24xbf16> -> vector<16x216xbf16>
    %c48_841 = arith.constant 48 : index
    %c0_842 = arith.constant 0 : index
    %552 = vector.load %arg18[%c48_841, %c0_842] : memref<400x216xbf16, #tpu.memory_space<vmem>>, vector<16x216xbf16>
    tpu.vector_store %arg18[%c48_841, %c0_842], %551 {strides = array<i32>} : memref<400x216xbf16, #tpu.memory_space<vmem>>, vector<16x216xbf16>,
    %553 = vector.extract_strided_slice %508 {offsets = [64, 0], sizes = [16, 24], strides = [1, 1]} : vector<784x24xbf16> to vector<16x24xbf16>
    %554 = vector.extract_strided_slice %508 {offsets = [80, 0], sizes = [16, 24], strides = [1, 1]} : vector<784x24xbf16> to vector<16x24xbf16>
    %555 = vector.extract_strided_slice %508 {offsets = [96, 0], sizes = [16, 24], strides = [1, 1]} : vector<784x24xbf16> to vector<16x24xbf16>
    %556 = vector.extract_strided_slice %508 {offsets = [176, 0], sizes = [16, 24], strides = [1, 1]} : vector<784x24xbf16> to vector<16x24xbf16>
    %557 = vector.extract_strided_slice %508 {offsets = [192, 0], sizes = [16, 24], strides = [1, 1]} : vector<784x24xbf16> to vector<16x24xbf16>
    %558 = vector.extract_strided_slice %508 {offsets = [208, 0], sizes = [16, 24], strides = [1, 1]} : vector<784x24xbf16> to vector<16x24xbf16>
    %559 = vector.extract_strided_slice %508 {offsets = [288, 0], sizes = [16, 24], strides = [1, 1]} : vector<784x24xbf16> to vector<16x24xbf16>
    %560 = vector.extract_strided_slice %508 {offsets = [304, 0], sizes = [16, 24], strides = [1, 1]} : vector<784x24xbf16> to vector<16x24xbf16>
    %561 = vector.extract_strided_slice %508 {offsets = [320, 0], sizes = [16, 24], strides = [1, 1]} : vector<784x24xbf16> to vector<16x24xbf16>
    %562 = tpu.concatenate %553, %554, %555, %556, %557, %558, %559, %560, %561 in 1 : vector<16x24xbf16>, vector<16x24xbf16>, vector<16x24xbf16>, vector<16x24xbf16>, vector<16x24xbf16>, vector<16x24xbf16>, vector<16x24xbf16>, vector<16x24xbf16>, vector<16x24xbf16> -> vector<16x216xbf16>
    %c64_843 = arith.constant 64 : index
    %c0_844 = arith.constant 0 : index
    %563 = vector.load %arg18[%c64_843, %c0_844] : memref<400x216xbf16, #tpu.memory_space<vmem>>, vector<16x216xbf16>
    tpu.vector_store %arg18[%c64_843, %c0_844], %562 {strides = array<i32>} : memref<400x216xbf16, #tpu.memory_space<vmem>>, vector<16x216xbf16>,
    %564 = vector.extract_strided_slice %508 {offsets = [112, 0], sizes = [16, 24], strides = [1, 1]} : vector<784x24xbf16> to vector<16x24xbf16>
    %565 = vector.extract_strided_slice %508 {offsets = [128, 0], sizes = [16, 24], strides = [1, 1]} : vector<784x24xbf16> to vector<16x24xbf16>
    %566 = vector.extract_strided_slice %508 {offsets = [144, 0], sizes = [16, 24], strides = [1, 1]} : vector<784x24xbf16> to vector<16x24xbf16>
    %567 = vector.extract_strided_slice %508 {offsets = [224, 0], sizes = [16, 24], strides = [1, 1]} : vector<784x24xbf16> to vector<16x24xbf16>
    %568 = vector.extract_strided_slice %508 {offsets = [240, 0], sizes = [16, 24], strides = [1, 1]} : vector<784x24xbf16> to vector<16x24xbf16>
    %569 = vector.extract_strided_slice %508 {offsets = [256, 0], sizes = [16, 24], strides = [1, 1]} : vector<784x24xbf16> to vector<16x24xbf16>
    %570 = vector.extract_strided_slice %508 {offsets = [336, 0], sizes = [16, 24], strides = [1, 1]} : vector<784x24xbf16> to vector<16x24xbf16>
    %571 = vector.extract_strided_slice %508 {offsets = [352, 0], sizes = [16, 24], strides = [1, 1]} : vector<784x24xbf16> to vector<16x24xbf16>
    %572 = vector.extract_strided_slice %508 {offsets = [368, 0], sizes = [16, 24], strides = [1, 1]} : vector<784x24xbf16> to vector<16x24xbf16>
    %573 = tpu.concatenate %564, %565, %566, %567, %568, %569, %570, %571, %572 in 1 : vector<16x24xbf16>, vector<16x24xbf16>, vector<16x24xbf16>, vector<16x24xbf16>, vector<16x24xbf16>, vector<16x24xbf16>, vector<16x24xbf16>, vector<16x24xbf16>, vector<16x24xbf16> -> vector<16x216xbf16>
    %c80_845 = arith.constant 80 : index
    %c0_846 = arith.constant 0 : index
    %574 = vector.load %arg18[%c80_845, %c0_846] : memref<400x216xbf16, #tpu.memory_space<vmem>>, vector<16x216xbf16>
    tpu.vector_store %arg18[%c80_845, %c0_846], %573 {strides = array<i32>} : memref<400x216xbf16, #tpu.memory_space<vmem>>, vector<16x216xbf16>,
    %575 = vector.extract_strided_slice %508 {offsets = [128, 0], sizes = [16, 24], strides = [1, 1]} : vector<784x24xbf16> to vector<16x24xbf16>
    %576 = vector.extract_strided_slice %508 {offsets = [144, 0], sizes = [16, 24], strides = [1, 1]} : vector<784x24xbf16> to vector<16x24xbf16>
    %577 = vector.extract_strided_slice %508 {offsets = [160, 0], sizes = [16, 24], strides = [1, 1]} : vector<784x24xbf16> to vector<16x24xbf16>
    %578 = vector.extract_strided_slice %508 {offsets = [240, 0], sizes = [16, 24], strides = [1, 1]} : vector<784x24xbf16> to vector<16x24xbf16>
    %579 = vector.extract_strided_slice %508 {offsets = [256, 0], sizes = [16, 24], strides = [1, 1]} : vector<784x24xbf16> to vector<16x24xbf16>
    %580 = vector.extract_strided_slice %508 {offsets = [272, 0], sizes = [16, 24], strides = [1, 1]} : vector<784x24xbf16> to vector<16x24xbf16>
    %581 = vector.extract_strided_slice %508 {offsets = [352, 0], sizes = [16, 24], strides = [1, 1]} : vector<784x24xbf16> to vector<16x24xbf16>
    %582 = vector.extract_strided_slice %508 {offsets = [368, 0], sizes = [16, 24], strides = [1, 1]} : vector<784x24xbf16> to vector<16x24xbf16>
    %583 = vector.extract_strided_slice %508 {offsets = [384, 0], sizes = [16, 24], strides = [1, 1]} : vector<784x24xbf16> to vector<16x24xbf16>
    %584 = tpu.concatenate %575, %576, %577, %578, %579, %580, %581, %582, %583 in 1 : vector<16x24xbf16>, vector<16x24xbf16>, vector<16x24xbf16>, vector<16x24xbf16>, vector<16x24xbf16>, vector<16x24xbf16>, vector<16x24xbf16>, vector<16x24xbf16>, vector<16x24xbf16> -> vector<16x216xbf16>
    %c96_847 = arith.constant 96 : index
    %c0_848 = arith.constant 0 : index
    %585 = vector.load %arg18[%c96_847, %c0_848] : memref<400x216xbf16, #tpu.memory_space<vmem>>, vector<16x216xbf16>
    tpu.vector_store %arg18[%c96_847, %c0_848], %584 {strides = array<i32>} : memref<400x216xbf16, #tpu.memory_space<vmem>>, vector<16x216xbf16>,
    %586 = vector.extract_strided_slice %508 {offsets = [144, 0], sizes = [16, 24], strides = [1, 1]} : vector<784x24xbf16> to vector<16x24xbf16>
    %587 = vector.extract_strided_slice %508 {offsets = [160, 0], sizes = [16, 24], strides = [1, 1]} : vector<784x24xbf16> to vector<16x24xbf16>
    %588 = vector.extract_strided_slice %508 {offsets = [176, 0], sizes = [16, 24], strides = [1, 1]} : vector<784x24xbf16> to vector<16x24xbf16>
    %589 = vector.extract_strided_slice %508 {offsets = [256, 0], sizes = [16, 24], strides = [1, 1]} : vector<784x24xbf16> to vector<16x24xbf16>
    %590 = vector.extract_strided_slice %508 {offsets = [272, 0], sizes = [16, 24], strides = [1, 1]} : vector<784x24xbf16> to vector<16x24xbf16>
    %591 = vector.extract_strided_slice %508 {offsets = [288, 0], sizes = [16, 24], strides = [1, 1]} : vector<784x24xbf16> to vector<16x24xbf16>
    %592 = vector.extract_strided_slice %508 {offsets = [368, 0], sizes = [16, 24], strides = [1, 1]} : vector<784x24xbf16> to vector<16x24xbf16>
    %593 = vector.extract_strided_slice %508 {offsets = [384, 0], sizes = [16, 24], strides = [1, 1]} : vector<784x24xbf16> to vector<16x24xbf16>
    %594 = vector.extract_strided_slice %508 {offsets = [400, 0], sizes = [16, 24], strides = [1, 1]} : vector<784x24xbf16> to vector<16x24xbf16>
    %595 = tpu.concatenate %586, %587, %588, %589, %590, %591, %592, %593, %594 in 1 : vector<16x24xbf16>, vector<16x24xbf16>, vector<16x24xbf16>, vector<16x24xbf16>, vector<16x24xbf16>, vector<16x24xbf16>, vector<16x24xbf16>, vector<16x24xbf16>, vector<16x24xbf16> -> vector<16x216xbf16>
    %c112_849 = arith.constant 112 : index
    %c0_850 = arith.constant 0 : index
    %596 = vector.load %arg18[%c112_849, %c0_850] : memref<400x216xbf16, #tpu.memory_space<vmem>>, vector<16x216xbf16>
    tpu.vector_store %arg18[%c112_849, %c0_850], %595 {strides = array<i32>} : memref<400x216xbf16, #tpu.memory_space<vmem>>, vector<16x216xbf16>,
    %597 = vector.extract_strided_slice %508 {offsets = [160, 0], sizes = [16, 24], strides = [1, 1]} : vector<784x24xbf16> to vector<16x24xbf16>
    %598 = vector.extract_strided_slice %508 {offsets = [176, 0], sizes = [16, 24], strides = [1, 1]} : vector<784x24xbf16> to vector<16x24xbf16>
    %599 = vector.extract_strided_slice %508 {offsets = [192, 0], sizes = [16, 24], strides = [1, 1]} : vector<784x24xbf16> to vector<16x24xbf16>
    %600 = vector.extract_strided_slice %508 {offsets = [272, 0], sizes = [16, 24], strides = [1, 1]} : vector<784x24xbf16> to vector<16x24xbf16>
    %601 = vector.extract_strided_slice %508 {offsets = [288, 0], sizes = [16, 24], strides = [1, 1]} : vector<784x24xbf16> to vector<16x24xbf16>
    %602 = vector.extract_strided_slice %508 {offsets = [304, 0], sizes = [16, 24], strides = [1, 1]} : vector<784x24xbf16> to vector<16x24xbf16>
    %603 = vector.extract_strided_slice %508 {offsets = [384, 0], sizes = [16, 24], strides = [1, 1]} : vector<784x24xbf16> to vector<16x24xbf16>
    %604 = vector.extract_strided_slice %508 {offsets = [400, 0], sizes = [16, 24], strides = [1, 1]} : vector<784x24xbf16> to vector<16x24xbf16>
    %605 = vector.extract_strided_slice %508 {offsets = [416, 0], sizes = [16, 24], strides = [1, 1]} : vector<784x24xbf16> to vector<16x24xbf16>
    %606 = tpu.concatenate %597, %598, %599, %600, %601, %602, %603, %604, %605 in 1 : vector<16x24xbf16>, vector<16x24xbf16>, vector<16x24xbf16>, vector<16x24xbf16>, vector<16x24xbf16>, vector<16x24xbf16>, vector<16x24xbf16>, vector<16x24xbf16>, vector<16x24xbf16> -> vector<16x216xbf16>
    %c128_851 = arith.constant 128 : index
    %c0_852 = arith.constant 0 : index
    %607 = vector.load %arg18[%c128_851, %c0_852] : memref<400x216xbf16, #tpu.memory_space<vmem>>, vector<16x216xbf16>
    tpu.vector_store %arg18[%c128_851, %c0_852], %606 {strides = array<i32>} : memref<400x216xbf16, #tpu.memory_space<vmem>>, vector<16x216xbf16>,
    %608 = vector.extract_strided_slice %508 {offsets = [176, 0], sizes = [16, 24], strides = [1, 1]} : vector<784x24xbf16> to vector<16x24xbf16>
    %609 = vector.extract_strided_slice %508 {offsets = [192, 0], sizes = [16, 24], strides = [1, 1]} : vector<784x24xbf16> to vector<16x24xbf16>
    %610 = vector.extract_strided_slice %508 {offsets = [208, 0], sizes = [16, 24], strides = [1, 1]} : vector<784x24xbf16> to vector<16x24xbf16>
    %611 = vector.extract_strided_slice %508 {offsets = [288, 0], sizes = [16, 24], strides = [1, 1]} : vector<784x24xbf16> to vector<16x24xbf16>
    %612 = vector.extract_strided_slice %508 {offsets = [304, 0], sizes = [16, 24], strides = [1, 1]} : vector<784x24xbf16> to vector<16x24xbf16>
    %613 = vector.extract_strided_slice %508 {offsets = [320, 0], sizes = [16, 24], strides = [1, 1]} : vector<784x24xbf16> to vector<16x24xbf16>
    %614 = vector.extract_strided_slice %508 {offsets = [400, 0], sizes = [16, 24], strides = [1, 1]} : vector<784x24xbf16> to vector<16x24xbf16>
    %615 = vector.extract_strided_slice %508 {offsets = [416, 0], sizes = [16, 24], strides = [1, 1]} : vector<784x24xbf16> to vector<16x24xbf16>
    %616 = vector.extract_strided_slice %508 {offsets = [432, 0], sizes = [16, 24], strides = [1, 1]} : vector<784x24xbf16> to vector<16x24xbf16>
    %617 = tpu.concatenate %608, %609, %610, %611, %612, %613, %614, %615, %616 in 1 : vector<16x24xbf16>, vector<16x24xbf16>, vector<16x24xbf16>, vector<16x24xbf16>, vector<16x24xbf16>, vector<16x24xbf16>, vector<16x24xbf16>, vector<16x24xbf16>, vector<16x24xbf16> -> vector<16x216xbf16>
    %c144_853 = arith.constant 144 : index
    %c0_854 = arith.constant 0 : index
    %618 = vector.load %arg18[%c144_853, %c0_854] : memref<400x216xbf16, #tpu.memory_space<vmem>>, vector<16x216xbf16>
    tpu.vector_store %arg18[%c144_853, %c0_854], %617 {strides = array<i32>} : memref<400x216xbf16, #tpu.memory_space<vmem>>, vector<16x216xbf16>,
    %619 = vector.extract_strided_slice %508 {offsets = [224, 0], sizes = [16, 24], strides = [1, 1]} : vector<784x24xbf16> to vector<16x24xbf16>
    %620 = vector.extract_strided_slice %508 {offsets = [240, 0], sizes = [16, 24], strides = [1, 1]} : vector<784x24xbf16> to vector<16x24xbf16>
    %621 = vector.extract_strided_slice %508 {offsets = [256, 0], sizes = [16, 24], strides = [1, 1]} : vector<784x24xbf16> to vector<16x24xbf16>
    %622 = vector.extract_strided_slice %508 {offsets = [336, 0], sizes = [16, 24], strides = [1, 1]} : vector<784x24xbf16> to vector<16x24xbf16>
    %623 = vector.extract_strided_slice %508 {offsets = [352, 0], sizes = [16, 24], strides = [1, 1]} : vector<784x24xbf16> to vector<16x24xbf16>
    %624 = vector.extract_strided_slice %508 {offsets = [368, 0], sizes = [16, 24], strides = [1, 1]} : vector<784x24xbf16> to vector<16x24xbf16>
    %625 = vector.extract_strided_slice %508 {offsets = [448, 0], sizes = [16, 24], strides = [1, 1]} : vector<784x24xbf16> to vector<16x24xbf16>
    %626 = vector.extract_strided_slice %508 {offsets = [464, 0], sizes = [16, 24], strides = [1, 1]} : vector<784x24xbf16> to vector<16x24xbf16>
    %627 = vector.extract_strided_slice %508 {offsets = [480, 0], sizes = [16, 24], strides = [1, 1]} : vector<784x24xbf16> to vector<16x24xbf16>
    %628 = tpu.concatenate %619, %620, %621, %622, %623, %624, %625, %626, %627 in 1 : vector<16x24xbf16>, vector<16x24xbf16>, vector<16x24xbf16>, vector<16x24xbf16>, vector<16x24xbf16>, vector<16x24xbf16>, vector<16x24xbf16>, vector<16x24xbf16>, vector<16x24xbf16> -> vector<16x216xbf16>
    %c160_855 = arith.constant 160 : index
    %c0_856 = arith.constant 0 : index
    %629 = vector.load %arg18[%c160_855, %c0_856] : memref<400x216xbf16, #tpu.memory_space<vmem>>, vector<16x216xbf16>
    tpu.vector_store %arg18[%c160_855, %c0_856], %628 {strides = array<i32>} : memref<400x216xbf16, #tpu.memory_space<vmem>>, vector<16x216xbf16>,
    %630 = vector.extract_strided_slice %508 {offsets = [240, 0], sizes = [16, 24], strides = [1, 1]} : vector<784x24xbf16> to vector<16x24xbf16>
    %631 = vector.extract_strided_slice %508 {offsets = [256, 0], sizes = [16, 24], strides = [1, 1]} : vector<784x24xbf16> to vector<16x24xbf16>
    %632 = vector.extract_strided_slice %508 {offsets = [272, 0], sizes = [16, 24], strides = [1, 1]} : vector<784x24xbf16> to vector<16x24xbf16>
    %633 = vector.extract_strided_slice %508 {offsets = [352, 0], sizes = [16, 24], strides = [1, 1]} : vector<784x24xbf16> to vector<16x24xbf16>
    %634 = vector.extract_strided_slice %508 {offsets = [368, 0], sizes = [16, 24], strides = [1, 1]} : vector<784x24xbf16> to vector<16x24xbf16>
    %635 = vector.extract_strided_slice %508 {offsets = [384, 0], sizes = [16, 24], strides = [1, 1]} : vector<784x24xbf16> to vector<16x24xbf16>
    %636 = vector.extract_strided_slice %508 {offsets = [464, 0], sizes = [16, 24], strides = [1, 1]} : vector<784x24xbf16> to vector<16x24xbf16>
    %637 = vector.extract_strided_slice %508 {offsets = [480, 0], sizes = [16, 24], strides = [1, 1]} : vector<784x24xbf16> to vector<16x24xbf16>
    %638 = vector.extract_strided_slice %508 {offsets = [496, 0], sizes = [16, 24], strides = [1, 1]} : vector<784x24xbf16> to vector<16x24xbf16>
    %639 = tpu.concatenate %630, %631, %632, %633, %634, %635, %636, %637, %638 in 1 : vector<16x24xbf16>, vector<16x24xbf16>, vector<16x24xbf16>, vector<16x24xbf16>, vector<16x24xbf16>, vector<16x24xbf16>, vector<16x24xbf16>, vector<16x24xbf16>, vector<16x24xbf16> -> vector<16x216xbf16>
    %c176_857 = arith.constant 176 : index
    %c0_858 = arith.constant 0 : index
    %640 = vector.load %arg18[%c176_857, %c0_858] : memref<400x216xbf16, #tpu.memory_space<vmem>>, vector<16x216xbf16>
    tpu.vector_store %arg18[%c176_857, %c0_858], %639 {strides = array<i32>} : memref<400x216xbf16, #tpu.memory_space<vmem>>, vector<16x216xbf16>,
    %641 = vector.extract_strided_slice %508 {offsets = [256, 0], sizes = [16, 24], strides = [1, 1]} : vector<784x24xbf16> to vector<16x24xbf16>
    %642 = vector.extract_strided_slice %508 {offsets = [272, 0], sizes = [16, 24], strides = [1, 1]} : vector<784x24xbf16> to vector<16x24xbf16>
    %643 = vector.extract_strided_slice %508 {offsets = [288, 0], sizes = [16, 24], strides = [1, 1]} : vector<784x24xbf16> to vector<16x24xbf16>
    %644 = vector.extract_strided_slice %508 {offsets = [368, 0], sizes = [16, 24], strides = [1, 1]} : vector<784x24xbf16> to vector<16x24xbf16>
    %645 = vector.extract_strided_slice %508 {offsets = [384, 0], sizes = [16, 24], strides = [1, 1]} : vector<784x24xbf16> to vector<16x24xbf16>
    %646 = vector.extract_strided_slice %508 {offsets = [400, 0], sizes = [16, 24], strides = [1, 1]} : vector<784x24xbf16> to vector<16x24xbf16>
    %647 = vector.extract_strided_slice %508 {offsets = [480, 0], sizes = [16, 24], strides = [1, 1]} : vector<784x24xbf16> to vector<16x24xbf16>
    %648 = vector.extract_strided_slice %508 {offsets = [496, 0], sizes = [16, 24], strides = [1, 1]} : vector<784x24xbf16> to vector<16x24xbf16>
    %649 = vector.extract_strided_slice %508 {offsets = [512, 0], sizes = [16, 24], strides = [1, 1]} : vector<784x24xbf16> to vector<16x24xbf16>
    %650 = tpu.concatenate %641, %642, %643, %644, %645, %646, %647, %648, %649 in 1 : vector<16x24xbf16>, vector<16x24xbf16>, vector<16x24xbf16>, vector<16x24xbf16>, vector<16x24xbf16>, vector<16x24xbf16>, vector<16x24xbf16>, vector<16x24xbf16>, vector<16x24xbf16> -> vector<16x216xbf16>
    %c192_859 = arith.constant 192 : index
    %c0_860 = arith.constant 0 : index
    %651 = vector.load %arg18[%c192_859, %c0_860] : memref<400x216xbf16, #tpu.memory_space<vmem>>, vector<16x216xbf16>
    tpu.vector_store %arg18[%c192_859, %c0_860], %650 {strides = array<i32>} : memref<400x216xbf16, #tpu.memory_space<vmem>>, vector<16x216xbf16>,
    %652 = vector.extract_strided_slice %508 {offsets = [272, 0], sizes = [16, 24], strides = [1, 1]} : vector<784x24xbf16> to vector<16x24xbf16>
    %653 = vector.extract_strided_slice %508 {offsets = [288, 0], sizes = [16, 24], strides = [1, 1]} : vector<784x24xbf16> to vector<16x24xbf16>
    %654 = vector.extract_strided_slice %508 {offsets = [304, 0], sizes = [16, 24], strides = [1, 1]} : vector<784x24xbf16> to vector<16x24xbf16>
    %655 = vector.extract_strided_slice %508 {offsets = [384, 0], sizes = [16, 24], strides = [1, 1]} : vector<784x24xbf16> to vector<16x24xbf16>
    %656 = vector.extract_strided_slice %508 {offsets = [400, 0], sizes = [16, 24], strides = [1, 1]} : vector<784x24xbf16> to vector<16x24xbf16>
    %657 = vector.extract_strided_slice %508 {offsets = [416, 0], sizes = [16, 24], strides = [1, 1]} : vector<784x24xbf16> to vector<16x24xbf16>
    %658 = vector.extract_strided_slice %508 {offsets = [496, 0], sizes = [16, 24], strides = [1, 1]} : vector<784x24xbf16> to vector<16x24xbf16>
    %659 = vector.extract_strided_slice %508 {offsets = [512, 0], sizes = [16, 24], strides = [1, 1]} : vector<784x24xbf16> to vector<16x24xbf16>
    %660 = vector.extract_strided_slice %508 {offsets = [528, 0], sizes = [16, 24], strides = [1, 1]} : vector<784x24xbf16> to vector<16x24xbf16>
    %661 = tpu.concatenate %652, %653, %654, %655, %656, %657, %658, %659, %660 in 1 : vector<16x24xbf16>, vector<16x24xbf16>, vector<16x24xbf16>, vector<16x24xbf16>, vector<16x24xbf16>, vector<16x24xbf16>, vector<16x24xbf16>, vector<16x24xbf16>, vector<16x24xbf16> -> vector<16x216xbf16>
    %c208_861 = arith.constant 208 : index
    %c0_862 = arith.constant 0 : index
    %662 = vector.load %arg18[%c208_861, %c0_862] : memref<400x216xbf16, #tpu.memory_space<vmem>>, vector<16x216xbf16>
    tpu.vector_store %arg18[%c208_861, %c0_862], %661 {strides = array<i32>} : memref<400x216xbf16, #tpu.memory_space<vmem>>, vector<16x216xbf16>,
    %663 = vector.extract_strided_slice %508 {offsets = [288, 0], sizes = [16, 24], strides = [1, 1]} : vector<784x24xbf16> to vector<16x24xbf16>
    %664 = vector.extract_strided_slice %508 {offsets = [304, 0], sizes = [16, 24], strides = [1, 1]} : vector<784x24xbf16> to vector<16x24xbf16>
    %665 = vector.extract_strided_slice %508 {offsets = [320, 0], sizes = [16, 24], strides = [1, 1]} : vector<784x24xbf16> to vector<16x24xbf16>
    %666 = vector.extract_strided_slice %508 {offsets = [400, 0], sizes = [16, 24], strides = [1, 1]} : vector<784x24xbf16> to vector<16x24xbf16>
    %667 = vector.extract_strided_slice %508 {offsets = [416, 0], sizes = [16, 24], strides = [1, 1]} : vector<784x24xbf16> to vector<16x24xbf16>
    %668 = vector.extract_strided_slice %508 {offsets = [432, 0], sizes = [16, 24], strides = [1, 1]} : vector<784x24xbf16> to vector<16x24xbf16>
    %669 = vector.extract_strided_slice %508 {offsets = [512, 0], sizes = [16, 24], strides = [1, 1]} : vector<784x24xbf16> to vector<16x24xbf16>
    %670 = vector.extract_strided_slice %508 {offsets = [528, 0], sizes = [16, 24], strides = [1, 1]} : vector<784x24xbf16> to vector<16x24xbf16>
    %671 = vector.extract_strided_slice %508 {offsets = [544, 0], sizes = [16, 24], strides = [1, 1]} : vector<784x24xbf16> to vector<16x24xbf16>
    %672 = tpu.concatenate %663, %664, %665, %666, %667, %668, %669, %670, %671 in 1 : vector<16x24xbf16>, vector<16x24xbf16>, vector<16x24xbf16>, vector<16x24xbf16>, vector<16x24xbf16>, vector<16x24xbf16>, vector<16x24xbf16>, vector<16x24xbf16>, vector<16x24xbf16> -> vector<16x216xbf16>
    %c224_863 = arith.constant 224 : index
    %c0_864 = arith.constant 0 : index
    %673 = vector.load %arg18[%c224_863, %c0_864] : memref<400x216xbf16, #tpu.memory_space<vmem>>, vector<16x216xbf16>
    tpu.vector_store %arg18[%c224_863, %c0_864], %672 {strides = array<i32>} : memref<400x216xbf16, #tpu.memory_space<vmem>>, vector<16x216xbf16>,
    %674 = vector.extract_strided_slice %508 {offsets = [336, 0], sizes = [16, 24], strides = [1, 1]} : vector<784x24xbf16> to vector<16x24xbf16>
    %675 = vector.extract_strided_slice %508 {offsets = [352, 0], sizes = [16, 24], strides = [1, 1]} : vector<784x24xbf16> to vector<16x24xbf16>
    %676 = vector.extract_strided_slice %508 {offsets = [368, 0], sizes = [16, 24], strides = [1, 1]} : vector<784x24xbf16> to vector<16x24xbf16>
    %677 = vector.extract_strided_slice %508 {offsets = [448, 0], sizes = [16, 24], strides = [1, 1]} : vector<784x24xbf16> to vector<16x24xbf16>
    %678 = vector.extract_strided_slice %508 {offsets = [464, 0], sizes = [16, 24], strides = [1, 1]} : vector<784x24xbf16> to vector<16x24xbf16>
    %679 = vector.extract_strided_slice %508 {offsets = [480, 0], sizes = [16, 24], strides = [1, 1]} : vector<784x24xbf16> to vector<16x24xbf16>
    %680 = vector.extract_strided_slice %508 {offsets = [560, 0], sizes = [16, 24], strides = [1, 1]} : vector<784x24xbf16> to vector<16x24xbf16>
    %681 = vector.extract_strided_slice %508 {offsets = [576, 0], sizes = [16, 24], strides = [1, 1]} : vector<784x24xbf16> to vector<16x24xbf16>
    %682 = vector.extract_strided_slice %508 {offsets = [592, 0], sizes = [16, 24], strides = [1, 1]} : vector<784x24xbf16> to vector<16x24xbf16>
    %683 = tpu.concatenate %674, %675, %676, %677, %678, %679, %680, %681, %682 in 1 : vector<16x24xbf16>, vector<16x24xbf16>, vector<16x24xbf16>, vector<16x24xbf16>, vector<16x24xbf16>, vector<16x24xbf16>, vector<16x24xbf16>, vector<16x24xbf16>, vector<16x24xbf16> -> vector<16x216xbf16>
    %c240_865 = arith.constant 240 : index
    %c0_866 = arith.constant 0 : index
    %684 = vector.load %arg18[%c240_865, %c0_866] : memref<400x216xbf16, #tpu.memory_space<vmem>>, vector<16x216xbf16>
    tpu.vector_store %arg18[%c240_865, %c0_866], %683 {strides = array<i32>} : memref<400x216xbf16, #tpu.memory_space<vmem>>, vector<16x216xbf16>,
    %685 = vector.extract_strided_slice %508 {offsets = [352, 0], sizes = [16, 24], strides = [1, 1]} : vector<784x24xbf16> to vector<16x24xbf16>
    %686 = vector.extract_strided_slice %508 {offsets = [368, 0], sizes = [16, 24], strides = [1, 1]} : vector<784x24xbf16> to vector<16x24xbf16>
    %687 = vector.extract_strided_slice %508 {offsets = [384, 0], sizes = [16, 24], strides = [1, 1]} : vector<784x24xbf16> to vector<16x24xbf16>
    %688 = vector.extract_strided_slice %508 {offsets = [464, 0], sizes = [16, 24], strides = [1, 1]} : vector<784x24xbf16> to vector<16x24xbf16>
    %689 = vector.extract_strided_slice %508 {offsets = [480, 0], sizes = [16, 24], strides = [1, 1]} : vector<784x24xbf16> to vector<16x24xbf16>
    %690 = vector.extract_strided_slice %508 {offsets = [496, 0], sizes = [16, 24], strides = [1, 1]} : vector<784x24xbf16> to vector<16x24xbf16>
    %691 = vector.extract_strided_slice %508 {offsets = [576, 0], sizes = [16, 24], strides = [1, 1]} : vector<784x24xbf16> to vector<16x24xbf16>
    %692 = vector.extract_strided_slice %508 {offsets = [592, 0], sizes = [16, 24], strides = [1, 1]} : vector<784x24xbf16> to vector<16x24xbf16>
    %693 = vector.extract_strided_slice %508 {offsets = [608, 0], sizes = [16, 24], strides = [1, 1]} : vector<784x24xbf16> to vector<16x24xbf16>
    %694 = tpu.concatenate %685, %686, %687, %688, %689, %690, %691, %692, %693 in 1 : vector<16x24xbf16>, vector<16x24xbf16>, vector<16x24xbf16>, vector<16x24xbf16>, vector<16x24xbf16>, vector<16x24xbf16>, vector<16x24xbf16>, vector<16x24xbf16>, vector<16x24xbf16> -> vector<16x216xbf16>
    %c256_867 = arith.constant 256 : index
    %c0_868 = arith.constant 0 : index
    %695 = vector.load %arg18[%c256_867, %c0_868] : memref<400x216xbf16, #tpu.memory_space<vmem>>, vector<16x216xbf16>
    tpu.vector_store %arg18[%c256_867, %c0_868], %694 {strides = array<i32>} : memref<400x216xbf16, #tpu.memory_space<vmem>>, vector<16x216xbf16>,
    %696 = vector.extract_strided_slice %508 {offsets = [368, 0], sizes = [16, 24], strides = [1, 1]} : vector<784x24xbf16> to vector<16x24xbf16>
    %697 = vector.extract_strided_slice %508 {offsets = [384, 0], sizes = [16, 24], strides = [1, 1]} : vector<784x24xbf16> to vector<16x24xbf16>
    %698 = vector.extract_strided_slice %508 {offsets = [400, 0], sizes = [16, 24], strides = [1, 1]} : vector<784x24xbf16> to vector<16x24xbf16>
    %699 = vector.extract_strided_slice %508 {offsets = [480, 0], sizes = [16, 24], strides = [1, 1]} : vector<784x24xbf16> to vector<16x24xbf16>
    %700 = vector.extract_strided_slice %508 {offsets = [496, 0], sizes = [16, 24], strides = [1, 1]} : vector<784x24xbf16> to vector<16x24xbf16>
    %701 = vector.extract_strided_slice %508 {offsets = [512, 0], sizes = [16, 24], strides = [1, 1]} : vector<784x24xbf16> to vector<16x24xbf16>
    %702 = vector.extract_strided_slice %508 {offsets = [592, 0], sizes = [16, 24], strides = [1, 1]} : vector<784x24xbf16> to vector<16x24xbf16>
    %703 = vector.extract_strided_slice %508 {offsets = [608, 0], sizes = [16, 24], strides = [1, 1]} : vector<784x24xbf16> to vector<16x24xbf16>
    %704 = vector.extract_strided_slice %508 {offsets = [624, 0], sizes = [16, 24], strides = [1, 1]} : vector<784x24xbf16> to vector<16x24xbf16>
    %705 = tpu.concatenate %696, %697, %698, %699, %700, %701, %702, %703, %704 in 1 : vector<16x24xbf16>, vector<16x24xbf16>, vector<16x24xbf16>, vector<16x24xbf16>, vector<16x24xbf16>, vector<16x24xbf16>, vector<16x24xbf16>, vector<16x24xbf16>, vector<16x24xbf16> -> vector<16x216xbf16>
    %c272_869 = arith.constant 272 : index
    %c0_870 = arith.constant 0 : index
    %706 = vector.load %arg18[%c272_869, %c0_870] : memref<400x216xbf16, #tpu.memory_space<vmem>>, vector<16x216xbf16>
    tpu.vector_store %arg18[%c272_869, %c0_870], %705 {strides = array<i32>} : memref<400x216xbf16, #tpu.memory_space<vmem>>, vector<16x216xbf16>,
    %707 = vector.extract_strided_slice %508 {offsets = [384, 0], sizes = [16, 24], strides = [1, 1]} : vector<784x24xbf16> to vector<16x24xbf16>
    %708 = vector.extract_strided_slice %508 {offsets = [400, 0], sizes = [16, 24], strides = [1, 1]} : vector<784x24xbf16> to vector<16x24xbf16>
    %709 = vector.extract_strided_slice %508 {offsets = [416, 0], sizes = [16, 24], strides = [1, 1]} : vector<784x24xbf16> to vector<16x24xbf16>
    %710 = vector.extract_strided_slice %508 {offsets = [496, 0], sizes = [16, 24], strides = [1, 1]} : vector<784x24xbf16> to vector<16x24xbf16>
    %711 = vector.extract_strided_slice %508 {offsets = [512, 0], sizes = [16, 24], strides = [1, 1]} : vector<784x24xbf16> to vector<16x24xbf16>
    %712 = vector.extract_strided_slice %508 {offsets = [528, 0], sizes = [16, 24], strides = [1, 1]} : vector<784x24xbf16> to vector<16x24xbf16>
    %713 = vector.extract_strided_slice %508 {offsets = [608, 0], sizes = [16, 24], strides = [1, 1]} : vector<784x24xbf16> to vector<16x24xbf16>
    %714 = vector.extract_strided_slice %508 {offsets = [624, 0], sizes = [16, 24], strides = [1, 1]} : vector<784x24xbf16> to vector<16x24xbf16>
    %715 = vector.extract_strided_slice %508 {offsets = [640, 0], sizes = [16, 24], strides = [1, 1]} : vector<784x24xbf16> to vector<16x24xbf16>
    %716 = tpu.concatenate %707, %708, %709, %710, %711, %712, %713, %714, %715 in 1 : vector<16x24xbf16>, vector<16x24xbf16>, vector<16x24xbf16>, vector<16x24xbf16>, vector<16x24xbf16>, vector<16x24xbf16>, vector<16x24xbf16>, vector<16x24xbf16>, vector<16x24xbf16> -> vector<16x216xbf16>
    %c288_871 = arith.constant 288 : index
    %c0_872 = arith.constant 0 : index
    %717 = vector.load %arg18[%c288_871, %c0_872] : memref<400x216xbf16, #tpu.memory_space<vmem>>, vector<16x216xbf16>
    tpu.vector_store %arg18[%c288_871, %c0_872], %716 {strides = array<i32>} : memref<400x216xbf16, #tpu.memory_space<vmem>>, vector<16x216xbf16>,
    %718 = vector.extract_strided_slice %508 {offsets = [400, 0], sizes = [16, 24], strides = [1, 1]} : vector<784x24xbf16> to vector<16x24xbf16>
    %719 = vector.extract_strided_slice %508 {offsets = [416, 0], sizes = [16, 24], strides = [1, 1]} : vector<784x24xbf16> to vector<16x24xbf16>
    %720 = vector.extract_strided_slice %508 {offsets = [432, 0], sizes = [16, 24], strides = [1, 1]} : vector<784x24xbf16> to vector<16x24xbf16>
    %721 = vector.extract_strided_slice %508 {offsets = [512, 0], sizes = [16, 24], strides = [1, 1]} : vector<784x24xbf16> to vector<16x24xbf16>
    %722 = vector.extract_strided_slice %508 {offsets = [528, 0], sizes = [16, 24], strides = [1, 1]} : vector<784x24xbf16> to vector<16x24xbf16>
    %723 = vector.extract_strided_slice %508 {offsets = [544, 0], sizes = [16, 24], strides = [1, 1]} : vector<784x24xbf16> to vector<16x24xbf16>
    %724 = vector.extract_strided_slice %508 {offsets = [624, 0], sizes = [16, 24], strides = [1, 1]} : vector<784x24xbf16> to vector<16x24xbf16>
    %725 = vector.extract_strided_slice %508 {offsets = [640, 0], sizes = [16, 24], strides = [1, 1]} : vector<784x24xbf16> to vector<16x24xbf16>
    %726 = vector.extract_strided_slice %508 {offsets = [656, 0], sizes = [16, 24], strides = [1, 1]} : vector<784x24xbf16> to vector<16x24xbf16>
    %727 = tpu.concatenate %718, %719, %720, %721, %722, %723, %724, %725, %726 in 1 : vector<16x24xbf16>, vector<16x24xbf16>, vector<16x24xbf16>, vector<16x24xbf16>, vector<16x24xbf16>, vector<16x24xbf16>, vector<16x24xbf16>, vector<16x24xbf16>, vector<16x24xbf16> -> vector<16x216xbf16>
    %c304_873 = arith.constant 304 : index
    %c0_874 = arith.constant 0 : index
    %728 = vector.load %arg18[%c304_873, %c0_874] : memref<400x216xbf16, #tpu.memory_space<vmem>>, vector<16x216xbf16>
    tpu.vector_store %arg18[%c304_873, %c0_874], %727 {strides = array<i32>} : memref<400x216xbf16, #tpu.memory_space<vmem>>, vector<16x216xbf16>,
    %729 = vector.extract_strided_slice %508 {offsets = [448, 0], sizes = [16, 24], strides = [1, 1]} : vector<784x24xbf16> to vector<16x24xbf16>
    %730 = vector.extract_strided_slice %508 {offsets = [464, 0], sizes = [16, 24], strides = [1, 1]} : vector<784x24xbf16> to vector<16x24xbf16>
    %731 = vector.extract_strided_slice %508 {offsets = [480, 0], sizes = [16, 24], strides = [1, 1]} : vector<784x24xbf16> to vector<16x24xbf16>
    %732 = vector.extract_strided_slice %508 {offsets = [560, 0], sizes = [16, 24], strides = [1, 1]} : vector<784x24xbf16> to vector<16x24xbf16>
    %733 = vector.extract_strided_slice %508 {offsets = [576, 0], sizes = [16, 24], strides = [1, 1]} : vector<784x24xbf16> to vector<16x24xbf16>
    %734 = vector.extract_strided_slice %508 {offsets = [592, 0], sizes = [16, 24], strides = [1, 1]} : vector<784x24xbf16> to vector<16x24xbf16>
    %735 = vector.extract_strided_slice %508 {offsets = [672, 0], sizes = [16, 24], strides = [1, 1]} : vector<784x24xbf16> to vector<16x24xbf16>
    %736 = vector.extract_strided_slice %508 {offsets = [688, 0], sizes = [16, 24], strides = [1, 1]} : vector<784x24xbf16> to vector<16x24xbf16>
    %737 = vector.extract_strided_slice %508 {offsets = [704, 0], sizes = [16, 24], strides = [1, 1]} : vector<784x24xbf16> to vector<16x24xbf16>
    %738 = tpu.concatenate %729, %730, %731, %732, %733, %734, %735, %736, %737 in 1 : vector<16x24xbf16>, vector<16x24xbf16>, vector<16x24xbf16>, vector<16x24xbf16>, vector<16x24xbf16>, vector<16x24xbf16>, vector<16x24xbf16>, vector<16x24xbf16>, vector<16x24xbf16> -> vector<16x216xbf16>
    %c320_875 = arith.constant 320 : index
    %c0_876 = arith.constant 0 : index
    %739 = vector.load %arg18[%c320_875, %c0_876] : memref<400x216xbf16, #tpu.memory_space<vmem>>, vector<16x216xbf16>
    tpu.vector_store %arg18[%c320_875, %c0_876], %738 {strides = array<i32>} : memref<400x216xbf16, #tpu.memory_space<vmem>>, vector<16x216xbf16>,
    %740 = vector.extract_strided_slice %508 {offsets = [464, 0], sizes = [16, 24], strides = [1, 1]} : vector<784x24xbf16> to vector<16x24xbf16>
    %741 = vector.extract_strided_slice %508 {offsets = [480, 0], sizes = [16, 24], strides = [1, 1]} : vector<784x24xbf16> to vector<16x24xbf16>
    %742 = vector.extract_strided_slice %508 {offsets = [496, 0], sizes = [16, 24], strides = [1, 1]} : vector<784x24xbf16> to vector<16x24xbf16>
    %743 = vector.extract_strided_slice %508 {offsets = [576, 0], sizes = [16, 24], strides = [1, 1]} : vector<784x24xbf16> to vector<16x24xbf16>
    %744 = vector.extract_strided_slice %508 {offsets = [592, 0], sizes = [16, 24], strides = [1, 1]} : vector<784x24xbf16> to vector<16x24xbf16>
    %745 = vector.extract_strided_slice %508 {offsets = [608, 0], sizes = [16, 24], strides = [1, 1]} : vector<784x24xbf16> to vector<16x24xbf16>
    %746 = vector.extract_strided_slice %508 {offsets = [688, 0], sizes = [16, 24], strides = [1, 1]} : vector<784x24xbf16> to vector<16x24xbf16>
    %747 = vector.extract_strided_slice %508 {offsets = [704, 0], sizes = [16, 24], strides = [1, 1]} : vector<784x24xbf16> to vector<16x24xbf16>
    %748 = vector.extract_strided_slice %508 {offsets = [720, 0], sizes = [16, 24], strides = [1, 1]} : vector<784x24xbf16> to vector<16x24xbf16>
    %749 = tpu.concatenate %740, %741, %742, %743, %744, %745, %746, %747, %748 in 1 : vector<16x24xbf16>, vector<16x24xbf16>, vector<16x24xbf16>, vector<16x24xbf16>, vector<16x24xbf16>, vector<16x24xbf16>, vector<16x24xbf16>, vector<16x24xbf16>, vector<16x24xbf16> -> vector<16x216xbf16>
    %c336_877 = arith.constant 336 : index
    %c0_878 = arith.constant 0 : index
    %750 = vector.load %arg18[%c336_877, %c0_878] : memref<400x216xbf16, #tpu.memory_space<vmem>>, vector<16x216xbf16>
    tpu.vector_store %arg18[%c336_877, %c0_878], %749 {strides = array<i32>} : memref<400x216xbf16, #tpu.memory_space<vmem>>, vector<16x216xbf16>,
    %751 = vector.extract_strided_slice %508 {offsets = [480, 0], sizes = [16, 24], strides = [1, 1]} : vector<784x24xbf16> to vector<16x24xbf16>
    %752 = vector.extract_strided_slice %508 {offsets = [496, 0], sizes = [16, 24], strides = [1, 1]} : vector<784x24xbf16> to vector<16x24xbf16>
    %753 = vector.extract_strided_slice %508 {offsets = [512, 0], sizes = [16, 24], strides = [1, 1]} : vector<784x24xbf16> to vector<16x24xbf16>
    %754 = vector.extract_strided_slice %508 {offsets = [592, 0], sizes = [16, 24], strides = [1, 1]} : vector<784x24xbf16> to vector<16x24xbf16>
    %755 = vector.extract_strided_slice %508 {offsets = [608, 0], sizes = [16, 24], strides = [1, 1]} : vector<784x24xbf16> to vector<16x24xbf16>
    %756 = vector.extract_strided_slice %508 {offsets = [624, 0], sizes = [16, 24], strides = [1, 1]} : vector<784x24xbf16> to vector<16x24xbf16>
    %757 = vector.extract_strided_slice %508 {offsets = [704, 0], sizes = [16, 24], strides = [1, 1]} : vector<784x24xbf16> to vector<16x24xbf16>
    %758 = vector.extract_strided_slice %508 {offsets = [720, 0], sizes = [16, 24], strides = [1, 1]} : vector<784x24xbf16> to vector<16x24xbf16>
    %759 = vector.extract_strided_slice %508 {offsets = [736, 0], sizes = [16, 24], strides = [1, 1]} : vector<784x24xbf16> to vector<16x24xbf16>
    %760 = tpu.concatenate %751, %752, %753, %754, %755, %756, %757, %758, %759 in 1 : vector<16x24xbf16>, vector<16x24xbf16>, vector<16x24xbf16>, vector<16x24xbf16>, vector<16x24xbf16>, vector<16x24xbf16>, vector<16x24xbf16>, vector<16x24xbf16>, vector<16x24xbf16> -> vector<16x216xbf16>
    %c352_879 = arith.constant 352 : index
    %c0_880 = arith.constant 0 : index
    %761 = vector.load %arg18[%c352_879, %c0_880] : memref<400x216xbf16, #tpu.memory_space<vmem>>, vector<16x216xbf16>
    tpu.vector_store %arg18[%c352_879, %c0_880], %760 {strides = array<i32>} : memref<400x216xbf16, #tpu.memory_space<vmem>>, vector<16x216xbf16>,
    %762 = vector.extract_strided_slice %508 {offsets = [496, 0], sizes = [16, 24], strides = [1, 1]} : vector<784x24xbf16> to vector<16x24xbf16>
    %763 = vector.extract_strided_slice %508 {offsets = [512, 0], sizes = [16, 24], strides = [1, 1]} : vector<784x24xbf16> to vector<16x24xbf16>
    %764 = vector.extract_strided_slice %508 {offsets = [528, 0], sizes = [16, 24], strides = [1, 1]} : vector<784x24xbf16> to vector<16x24xbf16>
    %765 = vector.extract_strided_slice %508 {offsets = [608, 0], sizes = [16, 24], strides = [1, 1]} : vector<784x24xbf16> to vector<16x24xbf16>
    %766 = vector.extract_strided_slice %508 {offsets = [624, 0], sizes = [16, 24], strides = [1, 1]} : vector<784x24xbf16> to vector<16x24xbf16>
    %767 = vector.extract_strided_slice %508 {offsets = [640, 0], sizes = [16, 24], strides = [1, 1]} : vector<784x24xbf16> to vector<16x24xbf16>
    %768 = vector.extract_strided_slice %508 {offsets = [720, 0], sizes = [16, 24], strides = [1, 1]} : vector<784x24xbf16> to vector<16x24xbf16>
    %769 = vector.extract_strided_slice %508 {offsets = [736, 0], sizes = [16, 24], strides = [1, 1]} : vector<784x24xbf16> to vector<16x24xbf16>
    %770 = vector.extract_strided_slice %508 {offsets = [752, 0], sizes = [16, 24], strides = [1, 1]} : vector<784x24xbf16> to vector<16x24xbf16>
    %771 = tpu.concatenate %762, %763, %764, %765, %766, %767, %768, %769, %770 in 1 : vector<16x24xbf16>, vector<16x24xbf16>, vector<16x24xbf16>, vector<16x24xbf16>, vector<16x24xbf16>, vector<16x24xbf16>, vector<16x24xbf16>, vector<16x24xbf16>, vector<16x24xbf16> -> vector<16x216xbf16>
    %c368_881 = arith.constant 368 : index
    %c0_882 = arith.constant 0 : index
    %772 = vector.load %arg18[%c368_881, %c0_882] : memref<400x216xbf16, #tpu.memory_space<vmem>>, vector<16x216xbf16>
    tpu.vector_store %arg18[%c368_881, %c0_882], %771 {strides = array<i32>} : memref<400x216xbf16, #tpu.memory_space<vmem>>, vector<16x216xbf16>,
    %773 = vector.extract_strided_slice %508 {offsets = [512, 0], sizes = [16, 24], strides = [1, 1]} : vector<784x24xbf16> to vector<16x24xbf16>
    %774 = vector.extract_strided_slice %508 {offsets = [528, 0], sizes = [16, 24], strides = [1, 1]} : vector<784x24xbf16> to vector<16x24xbf16>
    %775 = vector.extract_strided_slice %508 {offsets = [544, 0], sizes = [16, 24], strides = [1, 1]} : vector<784x24xbf16> to vector<16x24xbf16>
    %776 = vector.extract_strided_slice %508 {offsets = [624, 0], sizes = [16, 24], strides = [1, 1]} : vector<784x24xbf16> to vector<16x24xbf16>
    %777 = vector.extract_strided_slice %508 {offsets = [640, 0], sizes = [16, 24], strides = [1, 1]} : vector<784x24xbf16> to vector<16x24xbf16>
    %778 = vector.extract_strided_slice %508 {offsets = [656, 0], sizes = [16, 24], strides = [1, 1]} : vector<784x24xbf16> to vector<16x24xbf16>
    %779 = vector.extract_strided_slice %508 {offsets = [736, 0], sizes = [16, 24], strides = [1, 1]} : vector<784x24xbf16> to vector<16x24xbf16>
    %780 = vector.extract_strided_slice %508 {offsets = [752, 0], sizes = [16, 24], strides = [1, 1]} : vector<784x24xbf16> to vector<16x24xbf16>
    %781 = vector.extract_strided_slice %508 {offsets = [768, 0], sizes = [16, 24], strides = [1, 1]} : vector<784x24xbf16> to vector<16x24xbf16>
    %782 = tpu.concatenate %773, %774, %775, %776, %777, %778, %779, %780, %781 in 1 : vector<16x24xbf16>, vector<16x24xbf16>, vector<16x24xbf16>, vector<16x24xbf16>, vector<16x24xbf16>, vector<16x24xbf16>, vector<16x24xbf16>, vector<16x24xbf16>, vector<16x24xbf16> -> vector<16x216xbf16>
    %c384_883 = arith.constant 384 : index
    %c0_884 = arith.constant 0 : index
    %783 = vector.load %arg18[%c384_883, %c0_884] : memref<400x216xbf16, #tpu.memory_space<vmem>>, vector<16x216xbf16>
    tpu.vector_store %arg18[%c384_883, %c0_884], %782 {strides = array<i32>} : memref<400x216xbf16, #tpu.memory_space<vmem>>, vector<16x216xbf16>,
    %c0_885 = arith.constant 0 : index
    %c0_886 = arith.constant 0 : index
    %784 = vector.load %arg18[%c0_885, %c0_886] : memref<400x216xbf16, #tpu.memory_space<vmem>>, vector<400x216xbf16>
    %c0_887 = arith.constant 0 : index
    %c0_888 = arith.constant 0 : index
    %785 = vector.load %arg5[%c0_887, %c0_888] : memref<216x64xbf16, #tpu.memory_space<vmem>>, vector<216x64xbf16>
    %cst_889 = arith.constant dense<0.000000e+00> : vector<400x64xf32>
    %786 = tpu.matmul %784, %785, %cst_889 {dimension_numbers = #tpu.dot_dimension_numbers<[1], [0], [0], [1], [0, 0, 1, 1], [], []>} : vector<400x216xbf16>, vector<216x64xbf16>, vector<400x64xf32> -> vector<400x64xf32>
    %c0_890 = arith.constant 0 : index
    %c0_891 = arith.constant 0 : index
    %787 = vector.load %arg6[%c0_890, %c0_891] : memref<1x64xf32, #tpu.memory_space<vmem>>, vector<1x64xf32>
    %788 = vector.broadcast %787 : vector<1x64xf32> to vector<400x64xf32>
    %789 = arith.mulf %786, %788 : vector<400x64xf32>
    %c0_892 = arith.constant 0 : index
    %c0_893 = arith.constant 0 : index
    %790 = vector.load %arg7[%c0_892, %c0_893] : memref<1x64xf32, #tpu.memory_space<vmem>>, vector<1x64xf32>
    %791 = vector.broadcast %790 : vector<1x64xf32> to vector<400x64xf32>
    %792 = arith.addf %789, %791 : vector<400x64xf32>
    %cst_894 = arith.constant 0.000000e+00 : f32
    %793 = vector.broadcast %cst_894 : f32 to vector<400x64xf32>
    %794 = arith.maximumf %792, %793 : vector<400x64xf32>
    %795 = vector.extract_strided_slice %794 {offsets = [0, 0], sizes = [400, 16], strides = [1, 1]} : vector<400x64xf32> to vector<400x16xf32>
    %796 = vector.extract_strided_slice %794 {offsets = [0, 16], sizes = [400, 16], strides = [1, 1]} : vector<400x64xf32> to vector<400x16xf32>
    %797 = arith.maximumf %795, %796 : vector<400x16xf32>
    %798 = vector.extract_strided_slice %794 {offsets = [0, 32], sizes = [400, 16], strides = [1, 1]} : vector<400x64xf32> to vector<400x16xf32>
    %799 = vector.extract_strided_slice %794 {offsets = [0, 48], sizes = [400, 16], strides = [1, 1]} : vector<400x64xf32> to vector<400x16xf32>
    %800 = arith.maximumf %798, %799 : vector<400x16xf32>
    %801 = arith.maximumf %797, %800 : vector<400x16xf32>
    %802 = arith.truncf %801 : vector<400x16xf32> to vector<400x16xbf16>
    %803 = vector.extract_strided_slice %802 {offsets = [0, 0], sizes = [16, 16], strides = [1, 1]} : vector<400x16xbf16> to vector<16x16xbf16>
    %804 = vector.extract_strided_slice %802 {offsets = [16, 0], sizes = [16, 16], strides = [1, 1]} : vector<400x16xbf16> to vector<16x16xbf16>
    %805 = vector.extract_strided_slice %802 {offsets = [32, 0], sizes = [16, 16], strides = [1, 1]} : vector<400x16xbf16> to vector<16x16xbf16>
    %806 = vector.extract_strided_slice %802 {offsets = [48, 0], sizes = [16, 16], strides = [1, 1]} : vector<400x16xbf16> to vector<16x16xbf16>
    %807 = vector.extract_strided_slice %802 {offsets = [64, 0], sizes = [16, 16], strides = [1, 1]} : vector<400x16xbf16> to vector<16x16xbf16>
    %808 = vector.extract_strided_slice %802 {offsets = [80, 0], sizes = [16, 16], strides = [1, 1]} : vector<400x16xbf16> to vector<16x16xbf16>
    %809 = vector.extract_strided_slice %802 {offsets = [96, 0], sizes = [16, 16], strides = [1, 1]} : vector<400x16xbf16> to vector<16x16xbf16>
    %810 = vector.extract_strided_slice %802 {offsets = [112, 0], sizes = [16, 16], strides = [1, 1]} : vector<400x16xbf16> to vector<16x16xbf16>
    %811 = vector.extract_strided_slice %802 {offsets = [128, 0], sizes = [16, 16], strides = [1, 1]} : vector<400x16xbf16> to vector<16x16xbf16>
    %812 = vector.extract_strided_slice %802 {offsets = [144, 0], sizes = [16, 16], strides = [1, 1]} : vector<400x16xbf16> to vector<16x16xbf16>
    %813 = vector.extract_strided_slice %802 {offsets = [160, 0], sizes = [16, 16], strides = [1, 1]} : vector<400x16xbf16> to vector<16x16xbf16>
    %814 = vector.extract_strided_slice %802 {offsets = [176, 0], sizes = [16, 16], strides = [1, 1]} : vector<400x16xbf16> to vector<16x16xbf16>
    %815 = vector.extract_strided_slice %802 {offsets = [192, 0], sizes = [16, 16], strides = [1, 1]} : vector<400x16xbf16> to vector<16x16xbf16>
    %816 = vector.extract_strided_slice %802 {offsets = [208, 0], sizes = [16, 16], strides = [1, 1]} : vector<400x16xbf16> to vector<16x16xbf16>
    %817 = vector.extract_strided_slice %802 {offsets = [224, 0], sizes = [16, 16], strides = [1, 1]} : vector<400x16xbf16> to vector<16x16xbf16>
    %818 = vector.extract_strided_slice %802 {offsets = [240, 0], sizes = [16, 16], strides = [1, 1]} : vector<400x16xbf16> to vector<16x16xbf16>
    %819 = vector.extract_strided_slice %802 {offsets = [256, 0], sizes = [16, 16], strides = [1, 1]} : vector<400x16xbf16> to vector<16x16xbf16>
    %820 = vector.extract_strided_slice %802 {offsets = [272, 0], sizes = [16, 16], strides = [1, 1]} : vector<400x16xbf16> to vector<16x16xbf16>
    %821 = vector.extract_strided_slice %802 {offsets = [288, 0], sizes = [16, 16], strides = [1, 1]} : vector<400x16xbf16> to vector<16x16xbf16>
    %822 = vector.extract_strided_slice %802 {offsets = [304, 0], sizes = [16, 16], strides = [1, 1]} : vector<400x16xbf16> to vector<16x16xbf16>
    %823 = vector.extract_strided_slice %802 {offsets = [320, 0], sizes = [16, 16], strides = [1, 1]} : vector<400x16xbf16> to vector<16x16xbf16>
    %824 = vector.extract_strided_slice %802 {offsets = [336, 0], sizes = [16, 16], strides = [1, 1]} : vector<400x16xbf16> to vector<16x16xbf16>
    %825 = vector.extract_strided_slice %802 {offsets = [352, 0], sizes = [16, 16], strides = [1, 1]} : vector<400x16xbf16> to vector<16x16xbf16>
    %826 = vector.extract_strided_slice %802 {offsets = [368, 0], sizes = [16, 16], strides = [1, 1]} : vector<400x16xbf16> to vector<16x16xbf16>
    %827 = vector.extract_strided_slice %802 {offsets = [384, 0], sizes = [16, 16], strides = [1, 1]} : vector<400x16xbf16> to vector<16x16xbf16>
    %828 = tpu.concatenate %803, %804, %805, %806, %807, %808, %809, %810, %811, %812, %813, %814, %815, %816, %817, %818 in 1 : vector<16x16xbf16>, vector<16x16xbf16>, vector<16x16xbf16>, vector<16x16xbf16>, vector<16x16xbf16>, vector<16x16xbf16>, vector<16x16xbf16>, vector<16x16xbf16>, vector<16x16xbf16>, vector<16x16xbf16>, vector<16x16xbf16>, vector<16x16xbf16>, vector<16x16xbf16>, vector<16x16xbf16>, vector<16x16xbf16>, vector<16x16xbf16> -> vector<16x256xbf16>
    %829 = tpu.concatenate %819, %820, %821, %822, %823, %824, %825, %826, %827 in 1 : vector<16x16xbf16>, vector<16x16xbf16>, vector<16x16xbf16>, vector<16x16xbf16>, vector<16x16xbf16>, vector<16x16xbf16>, vector<16x16xbf16>, vector<16x16xbf16>, vector<16x16xbf16> -> vector<16x144xbf16>
    %830 = tpu.concatenate %828, %829 in 1 : vector<16x256xbf16>, vector<16x144xbf16> -> vector<16x400xbf16>
    %c0_895 = arith.constant 0 : index
    %c0_896 = arith.constant 0 : index
    %831 = vector.load %arg8[%c0_895, %c0_896] : memref<400x120xbf16, #tpu.memory_space<vmem>>, vector<400x120xbf16>
    %cst_897 = arith.constant dense<0.000000e+00> : vector<16x120xf32>
    %832 = tpu.matmul %830, %831, %cst_897 {dimension_numbers = #tpu.dot_dimension_numbers<[1], [0], [0], [1], [0, 0, 1, 1], [], []>} : vector<16x400xbf16>, vector<400x120xbf16>, vector<16x120xf32> -> vector<16x120xf32>
    %c0_898 = arith.constant 0 : index
    %c0_899 = arith.constant 0 : index
    %833 = vector.load %arg9[%c0_898, %c0_899] : memref<1x120xf32, #tpu.memory_space<vmem>>, vector<1x120xf32>
    %834 = vector.broadcast %833 : vector<1x120xf32> to vector<16x120xf32>
    %835 = arith.mulf %832, %834 : vector<16x120xf32>
    %c0_900 = arith.constant 0 : index
    %c0_901 = arith.constant 0 : index
    %836 = vector.load %arg10[%c0_900, %c0_901] : memref<1x120xf32, #tpu.memory_space<vmem>>, vector<1x120xf32>
    %837 = vector.broadcast %836 : vector<1x120xf32> to vector<16x120xf32>
    %838 = arith.addf %835, %837 : vector<16x120xf32>
    %cst_902 = arith.constant 0.000000e+00 : f32
    %839 = vector.broadcast %cst_902 : f32 to vector<16x120xf32>
    %840 = arith.maximumf %838, %839 : vector<16x120xf32>
    %841 = arith.truncf %840 : vector<16x120xf32> to vector<16x120xbf16>
    %c0_903 = arith.constant 0 : index
    %c0_904 = arith.constant 0 : index
    %842 = vector.load %arg11[%c0_903, %c0_904] : memref<120x84xbf16, #tpu.memory_space<vmem>>, vector<120x84xbf16>
    %cst_905 = arith.constant dense<0.000000e+00> : vector<16x84xf32>
    %843 = tpu.matmul %841, %842, %cst_905 {dimension_numbers = #tpu.dot_dimension_numbers<[1], [0], [0], [1], [0, 0, 1, 1], [], []>} : vector<16x120xbf16>, vector<120x84xbf16>, vector<16x84xf32> -> vector<16x84xf32>
    %c0_906 = arith.constant 0 : index
    %c0_907 = arith.constant 0 : index
    %844 = vector.load %arg12[%c0_906, %c0_907] : memref<1x84xf32, #tpu.memory_space<vmem>>, vector<1x84xf32>
    %845 = vector.broadcast %844 : vector<1x84xf32> to vector<16x84xf32>
    %846 = arith.mulf %843, %845 : vector<16x84xf32>
    %c0_908 = arith.constant 0 : index
    %c0_909 = arith.constant 0 : index
    %847 = vector.load %arg13[%c0_908, %c0_909] : memref<1x84xf32, #tpu.memory_space<vmem>>, vector<1x84xf32>
    %848 = vector.broadcast %847 : vector<1x84xf32> to vector<16x84xf32>
    %849 = arith.addf %846, %848 : vector<16x84xf32>
    %cst_910 = arith.constant 0.000000e+00 : f32
    %850 = vector.broadcast %cst_910 : f32 to vector<16x84xf32>
    %851 = arith.maximumf %849, %850 : vector<16x84xf32>
    %852 = arith.truncf %851 : vector<16x84xf32> to vector<16x84xbf16>
    %c0_911 = arith.constant 0 : index
    %c0_912 = arith.constant 0 : index
    %853 = vector.load %arg14[%c0_911, %c0_912] : memref<84x128xbf16, #tpu.memory_space<vmem>>, vector<84x128xbf16>
    %cst_913 = arith.constant dense<0.000000e+00> : vector<16x128xf32>
    %854 = tpu.matmul %852, %853, %cst_913 {dimension_numbers = #tpu.dot_dimension_numbers<[1], [0], [0], [1], [0, 0, 1, 1], [], []>} : vector<16x84xbf16>, vector<84x128xbf16>, vector<16x128xf32> -> vector<16x128xf32>
    %c0_914 = arith.constant 0 : index
    %c0_915 = arith.constant 0 : index
    %855 = vector.load %arg15[%c0_914, %c0_915] : memref<1x128xf32, #tpu.memory_space<vmem>>, vector<1x128xf32>
    %856 = vector.broadcast %855 : vector<1x128xf32> to vector<16x128xf32>
    %857 = arith.addf %854, %856 : vector<16x128xf32>
    %c0_916 = arith.constant 0 : index
    %c0_917 = arith.constant 0 : index
    %858 = vector.load %arg16[%c0_916, %c0_917] : memref<16x128xf32, #tpu.memory_space<vmem>>, vector<16x128xf32>
    tpu.vector_store %arg16[%c0_916, %c0_917], %857 {strides = array<i32>} : memref<16x128xf32, #tpu.memory_space<vmem>>, vector<16x128xf32>,
    return
  }
  func.func @transform_0(%arg0: i32) -> (i32, i32, i32, i32) {
    %c0_i32 = arith.constant 0 : i32
    %c0_i32_0 = arith.constant 0 : i32
    %c0_i32_1 = arith.constant 0 : i32
    %c0_i32_2 = arith.constant 0 : i32
    return %c0_i32, %c0_i32_0, %arg0, %c0_i32_1 : i32, i32, i32, i32
  }
  func.func @transform_1(%arg0: i32) -> (i32, i32) {
    %c0_i32 = arith.constant 0 : i32
    %c0_i32_0 = arith.constant 0 : i32
    %c0_i32_1 = arith.constant 0 : i32
    return %c0_i32, %c0_i32_0 : i32, i32
  }
  func.func @transform_2(%arg0: i32) -> (i32, i32) {
    %c0_i32 = arith.constant 0 : i32
    %c0_i32_0 = arith.constant 0 : i32
    %c0_i32_1 = arith.constant 0 : i32
    return %c0_i32, %c0_i32_0 : i32, i32
  }
  func.func @transform_3(%arg0: i32) -> (i32, i32) {
    %c0_i32 = arith.constant 0 : i32
    %c0_i32_0 = arith.constant 0 : i32
    %c0_i32_1 = arith.constant 0 : i32
    return %c0_i32, %c0_i32_0 : i32, i32
  }
  func.func @transform_4(%arg0: i32) -> (i32, i32) {
    %c0_i32 = arith.constant 0 : i32
    %c0_i32_0 = arith.constant 0 : i32
    %c0_i32_1 = arith.constant 0 : i32
    return %c0_i32, %c0_i32_0 : i32, i32
  }
  func.func @transform_5(%arg0: i32) -> (i32, i32) {
    %c0_i32 = arith.constant 0 : i32
    %c0_i32_0 = arith.constant 0 : i32
    %c0_i32_1 = arith.constant 0 : i32
    return %c0_i32, %c0_i32_0 : i32, i32
  }
  func.func @transform_6(%arg0: i32) -> (i32, i32) {
    %c0_i32 = arith.constant 0 : i32
    %c0_i32_0 = arith.constant 0 : i32
    %c0_i32_1 = arith.constant 0 : i32
    return %c0_i32, %c0_i32_0 : i32, i32
  }
  func.func @transform_7(%arg0: i32) -> (i32, i32) {
    %c0_i32 = arith.constant 0 : i32
    %c0_i32_0 = arith.constant 0 : i32
    %c0_i32_1 = arith.constant 0 : i32
    return %c0_i32, %c0_i32_0 : i32, i32
  }
  func.func @transform_8(%arg0: i32) -> (i32, i32) {
    %c0_i32 = arith.constant 0 : i32
    %c0_i32_0 = arith.constant 0 : i32
    %c0_i32_1 = arith.constant 0 : i32
    return %c0_i32, %c0_i32_0 : i32, i32
  }
  func.func @transform_9(%arg0: i32) -> (i32, i32) {
    %c0_i32 = arith.constant 0 : i32
    %c0_i32_0 = arith.constant 0 : i32
    %c0_i32_1 = arith.constant 0 : i32
    return %c0_i32, %c0_i32_0 : i32, i32
  }
  func.func @transform_10(%arg0: i32) -> (i32, i32) {
    %c0_i32 = arith.constant 0 : i32
    %c0_i32_0 = arith.constant 0 : i32
    %c0_i32_1 = arith.constant 0 : i32
    return %c0_i32, %c0_i32_0 : i32, i32
  }
  func.func @transform_11(%arg0: i32) -> (i32, i32) {
    %c0_i32 = arith.constant 0 : i32
    %c0_i32_0 = arith.constant 0 : i32
    %c0_i32_1 = arith.constant 0 : i32
    return %c0_i32, %c0_i32_0 : i32, i32
  }
  func.func @transform_12(%arg0: i32) -> (i32, i32) {
    %c0_i32 = arith.constant 0 : i32
    %c0_i32_0 = arith.constant 0 : i32
    %c0_i32_1 = arith.constant 0 : i32
    return %c0_i32, %c0_i32_0 : i32, i32
  }
  func.func @transform_13(%arg0: i32) -> (i32, i32) {
    %c0_i32 = arith.constant 0 : i32
    %c0_i32_0 = arith.constant 0 : i32
    %c0_i32_1 = arith.constant 0 : i32
    return %c0_i32, %c0_i32_0 : i32, i32
  }
  func.func @transform_14(%arg0: i32) -> (i32, i32) {
    %c0_i32 = arith.constant 0 : i32
    %c0_i32_0 = arith.constant 0 : i32
    %c0_i32_1 = arith.constant 0 : i32
    return %c0_i32, %c0_i32_0 : i32, i32
  }
  func.func @transform_15(%arg0: i32) -> (i32, i32) {
    %c0_i32 = arith.constant 0 : i32
    %c0_i32_0 = arith.constant 0 : i32
    return %arg0, %c0_i32 : i32, i32
  }
}

</mosaic_0001>

<llo_original>
// kernel: lenet5_bn_forward_prepared.1
$region0: #{lenet5_bn_forward_prepared.1}
  #allocation0 [shape = 'u32[]', space=smem, size = 0x4, offset = 0x4, fixed_abs, tag = 'smem constant byte address 0x4 - core index']
  #allocation1 [shape = 'u32[144,128]{1,0:T(1,128)}', space=vmem, size = 0x12000, scoped, tag = 'internal scratch']
  #allocation2 [shape = 'bf16[784,192]{1,0:T(16,128)(2,1)}', space=vmem, size = 0x62000, scoped, tag = 'scratch operand']
  #allocation3 [shape = 'bf16[400,216]{1,0:T(16,128)(2,1)}', space=vmem, size = 0x32000, scoped, tag = 'scratch operand']
  %s0 = inlined_call_operand.vmem [shape: bf16[8,8,32,48], index: 0, kind: input, shape index: {}]
  %s1 = inlined_call_operand.vmem [shape: bf16[192,96], index: 1, kind: input, shape index: {}]
  %s2 = inlined_call_operand.vmem [shape: f32[1,96], index: 2, kind: input, shape index: {}]
  %s3 = inlined_call_operand.vmem [shape: f32[1,96], index: 3, kind: input, shape index: {}]
  %s4 = inlined_call_operand.vmem [shape: bf16[216,64], index: 4, kind: input, shape index: {}]
  %s5 = inlined_call_operand.vmem [shape: f32[1,64], index: 5, kind: input, shape index: {}]
  %s6 = inlined_call_operand.vmem [shape: f32[1,64], index: 6, kind: input, shape index: {}]
  %s7 = inlined_call_operand.vmem [shape: bf16[400,120], index: 7, kind: input, shape index: {}]
  %s8 = inlined_call_operand.vmem [shape: f32[1,120], index: 8, kind: input, shape index: {}]
  %s9 = inlined_call_operand.vmem [shape: f32[1,120], index: 9, kind: input, shape index: {}]
  %s10 = inlined_call_operand.vmem [shape: bf16[120,84], index: 10, kind: input, shape index: {}]
  %s11 = inlined_call_operand.vmem [shape: f32[1,84], index: 11, kind: input, shape index: {}]
  %s12 = inlined_call_operand.vmem [shape: f32[1,84], index: 12, kind: input, shape index: {}]
  %s13 = inlined_call_operand.vmem [shape: bf16[84,128], index: 13, kind: input, shape index: {}]
  %s14 = inlined_call_operand.vmem [shape: f32[1,128], index: 14, kind: input, shape index: {}]
  %s15 = inlined_call_operand.vmem [shape: f32[32,128], index: 15, kind: output, shape index: {}]
  %s16 = sld [smem:[#allocation0]]
  $region134: #{lenet5_bn_forward_prepared.1} parent=0
    _
  %s18 = ssub.s32 1, %s16
  %s19 = scalar_select 0, %s18, %s16
  $region1: #{lenet5_bn_forward_prepared.1} parent=0
    #allocation4 [shape = 'u8[524288]{0}', space=vmem, size = 0x80000, scoped, tag = 'input window, operand 0']
    loop: start=0, step=1, limit=4
    $region2: #{lenet5_bn_forward_prepared.1} parent=1 // loop_pre_header
      _
    $region3: #{lenet5_bn_forward_prepared.1} parent=1 // loop_header
      %s21 = sphi 0, %s25
      %p22 = scmp.ge.s32.totalorder %s21, 4
      %s31 = sphi 0, %s33
      %s34 = sphi 0, %s31
      %s35 = sphi 0, %s34
      %s51 = sphi 0, %s35
      %s55 = sphi 0, %s55
      %s57 = sphi 0, %s55
      %s58 = sphi 0, %s57
      %s72 = sphi 0, %s58
      %s76 = sphi 0, %s76
      %s78 = sphi 0, %s76
      %s79 = sphi 0, %s78
      %s93 = sphi 0, %s79
      %s97 = sphi 0, %s97
      %s99 = sphi 0, %s97
      %s100 = sphi 0, %s99
      %s114 = sphi 0, %s100
      %s118 = sphi 0, %s118
      %s120 = sphi 0, %s118
      %s121 = sphi 0, %s120
      %s135 = sphi 0, %s121
      %s139 = sphi 0, %s139
      %s141 = sphi 0, %s139
      %s142 = sphi 0, %s141
      %s156 = sphi 0, %s142
      %s160 = sphi 0, %s160
      %s162 = sphi 0, %s160
      %s163 = sphi 0, %s162
      %s177 = sphi 0, %s163
      %s181 = sphi 0, %s181
      %s183 = sphi 0, %s181
      %s184 = sphi 0, %s183
      %s198 = sphi 0, %s184
      %s202 = sphi 0, %s202
      %s204 = sphi 0, %s202
      %s205 = sphi 0, %s204
      %s219 = sphi 0, %s205
      %s223 = sphi 0, %s223
      %s225 = sphi 0, %s223
      %s226 = sphi 0, %s225
      %s240 = sphi 0, %s226
      %s244 = sphi 0, %s244
      %s246 = sphi 0, %s244
      %s247 = sphi 0, %s246
      %s261 = sphi 0, %s247
      %s265 = sphi 0, %s265
      %s267 = sphi 0, %s265
      %s268 = sphi 0, %s267
      %s282 = sphi 0, %s268
      %s286 = sphi 0, %s286
      %s288 = sphi 0, %s286
      %s289 = sphi 0, %s288
      %s303 = sphi 0, %s289
      %s307 = sphi 0, %s307
      %s309 = sphi 0, %s307
      %s310 = sphi 0, %s309
      %s324 = sphi 0, %s310
      %s328 = sphi 0, %s328
      %s330 = sphi 0, %s328
      %s331 = sphi 0, %s330
      %s345 = sphi 0, %s331
      %s351 = sphi 0, %s353
      %s354 = sphi 0, %s351
      %s355 = sphi 0, %s354
      %s371 = sphi 0, %s355
    $region4: #{lenet5_bn_forward_prepared.1} parent=1 // loop_header_branch
      %24 = sbr.rel (%p22) target = $region8
    $region5: #{lenet5_bn_forward_prepared.1} parent=1 // loop_body
      %s26 = ssub.s32 %s21, 1
      %s27 = ssub.s32 %s21, 2
      %s28 = sadd.s32 %s21, 1
      %s29 = ssub.s32 %s21, %s28
      %p30 = scmp.eq.s32.totalorder %s29, 0
      %s32 = sadd.s32 %s31, 1
      %s33 = scalar_select %p30, %s31, %s32
      %p36 = pneg %p30
      %p37 = scmp.eq.s32.totalorder %s21, 1
      %p38 = por %p36, %p37
      %p39 = scmp.ne.s32.totalorder %s31, %s34
      %p40 = scmp.eq.s32.totalorder %s21, 0
      %p41 = por %p39, %p40
      %p42 = scmp.ne.s32.totalorder %s31, %s34
      %p43 = scmp.eq.s32.totalorder %s26, 1
      %p44 = por %p42, %p43
      %p45 = scmp.ne.s32.totalorder %s34, %s35
      %p46 = scmp.eq.s32.totalorder %s26, 0
      %p47 = por %p45, %p46
      %p48 = scmp.ne.s32.totalorder %s34, %s35
      %p49 = scmp.eq.s32.totalorder %s27, 1
      %p50 = por %p48, %p49
      %p52 = scmp.ne.s32.totalorder %s35, %s51
      %p53 = scmp.eq.s32.totalorder %s27, 0
      %p54 = por %p52, %p53
      %s56 = sadd.s32 %s55, 1
      %p59 = scmp.eq.s32.totalorder %s21, 1
      %p60 = scmp.ne.s32.totalorder %s55, %s57
      %p61 = scmp.eq.s32.totalorder %s21, 0
      %p62 = por %p60, %p61
      %p63 = scmp.ne.s32.totalorder %s55, %s57
      %p64 = scmp.eq.s32.totalorder %s26, 1
      %p65 = por %p63, %p64
      %p66 = scmp.ne.s32.totalorder %s57, %s58
      %p67 = scmp.eq.s32.totalorder %s26, 0
      %p68 = por %p66, %p67
      %p69 = scmp.ne.s32.totalorder %s57, %s58
      %p70 = scmp.eq.s32.totalorder %s27, 1
      %p71 = por %p69, %p70
      %p73 = scmp.ne.s32.totalorder %s58, %s72
      %p74 = scmp.eq.s32.totalorder %s27, 0
      %p75 = por %p73, %p74
      %s77 = sadd.s32 %s76, 1
      %p80 = scmp.eq.s32.totalorder %s21, 1
      %p81 = scmp.ne.s32.totalorder %s76, %s78
      %p82 = scmp.eq.s32.totalorder %s21, 0
      %p83 = por %p81, %p82
      %p84 = scmp.ne.s32.totalorder %s76, %s78
      %p85 = scmp.eq.s32.totalorder %s26, 1
      %p86 = por %p84, %p85
      %p87 = scmp.ne.s32.totalorder %s78, %s79
      %p88 = scmp.eq.s32.totalorder %s26, 0
      %p89 = por %p87, %p88
      %p90 = scmp.ne.s32.totalorder %s78, %s79
      %p91 = scmp.eq.s32.totalorder %s27, 1
      %p92 = por %p90, %p91
      %p94 = scmp.ne.s32.totalorder %s79, %s93
      %p95 = scmp.eq.s32.totalorder %s27, 0
      %p96 = por %p94, %p95
      %s98 = sadd.s32 %s97, 1
      %p101 = scmp.eq.s32.totalorder %s21, 1
      %p102 = scmp.ne.s32.totalorder %s97, %s99
      %p103 = scmp.eq.s32.totalorder %s21, 0
      %p104 = por %p102, %p103
      %p105 = scmp.ne.s32.totalorder %s97, %s99
      %p106 = scmp.eq.s32.totalorder %s26, 1
      %p107 = por %p105, %p106
      %p108 = scmp.ne.s32.totalorder %s99, %s100
      %p109 = scmp.eq.s32.totalorder %s26, 0
      %p110 = por %p108, %p109
      %p111 = scmp.ne.s32.totalorder %s99, %s100
      %p112 = scmp.eq.s32.totalorder %s27, 1
      %p113 = por %p111, %p112
      %p115 = scmp.ne.s32.totalorder %s100, %s114
      %p116 = scmp.eq.s32.totalorder %s27, 0
      %p117 = por %p115, %p116
      %s119 = sadd.s32 %s118, 1
      %p122 = scmp.eq.s32.totalorder %s21, 1
      %p123 = scmp.ne.s32.totalorder %s118, %s120
      %p124 = scmp.eq.s32.totalorder %s21, 0
      %p125 = por %p123, %p124
      %p126 = scmp.ne.s32.totalorder %s118, %s120
      %p127 = scmp.eq.s32.totalorder %s26, 1
      %p128 = por %p126, %p127
      %p129 = scmp.ne.s32.totalorder %s120, %s121
      %p130 = scmp.eq.s32.totalorder %s26, 0
      %p131 = por %p129, %p130
      %p132 = scmp.ne.s32.totalorder %s120, %s121
      %p133 = scmp.eq.s32.totalorder %s27, 1
      %p134 = por %p132, %p133
      %p136 = scmp.ne.s32.totalorder %s121, %s135
      %p137 = scmp.eq.s32.totalorder %s27, 0
      %p138 = por %p136, %p137
      %s140 = sadd.s32 %s139, 1
      %p143 = scmp.eq.s32.totalorder %s21, 1
      %p144 = scmp.ne.s32.totalorder %s139, %s141
      %p145 = scmp.eq.s32.totalorder %s21, 0
      %p146 = por %p144, %p145
      %p147 = scmp.ne.s32.totalorder %s139, %s141
      %p148 = scmp.eq.s32.totalorder %s26, 1
      %p149 = por %p147, %p148
      %p150 = scmp.ne.s32.totalorder %s141, %s142
      %p151 = scmp.eq.s32.totalorder %s26, 0
      %p152 = por %p150, %p151
      %p153 = scmp.ne.s32.totalorder %s141, %s142
      %p154 = scmp.eq.s32.totalorder %s27, 1
      %p155 = por %p153, %p154
      %p157 = scmp.ne.s32.totalorder %s142, %s156
      %p158 = scmp.eq.s32.totalorder %s27, 0
      %p159 = por %p157, %p158
      %s161 = sadd.s32 %s160, 1
      %p164 = scmp.eq.s32.totalorder %s21, 1
      %p165 = scmp.ne.s32.totalorder %s160, %s162
      %p166 = scmp.eq.s32.totalorder %s21, 0
      %p167 = por %p165, %p166
      %p168 = scmp.ne.s32.totalorder %s160, %s162
      %p169 = scmp.eq.s32.totalorder %s26, 1
      %p170 = por %p168, %p169
      %p171 = scmp.ne.s32.totalorder %s162, %s163
      %p172 = scmp.eq.s32.totalorder %s26, 0
      %p173 = por %p171, %p172
      %p174 = scmp.ne.s32.totalorder %s162, %s163
      %p175 = scmp.eq.s32.totalorder %s27, 1
      %p176 = por %p174, %p175
      %p178 = scmp.ne.s32.totalorder %s163, %s177
      %p179 = scmp.eq.s32.totalorder %s27, 0
      %p180 = por %p178, %p179
      %s182 = sadd.s32 %s181, 1
      %p185 = scmp.eq.s32.totalorder %s21, 1
      %p186 = scmp.ne.s32.totalorder %s181, %s183
      %p187 = scmp.eq.s32.totalorder %s21, 0
      %p188 = por %p186, %p187
      %p189 = scmp.ne.s32.totalorder %s181, %s183
      %p190 = scmp.eq.s32.totalorder %s26, 1
      %p191 = por %p189, %p190
      %p192 = scmp.ne.s32.totalorder %s183, %s184
      %p193 = scmp.eq.s32.totalorder %s26, 0
      %p194 = por %p192, %p193
      %p195 = scmp.ne.s32.totalorder %s183, %s184
      %p196 = scmp.eq.s32.totalorder %s27, 1
      %p197 = por %p195, %p196
      %p199 = scmp.ne.s32.totalorder %s184, %s198
      %p200 = scmp.eq.s32.totalorder %s27, 0
      %p201 = por %p199, %p200
      %s203 = sadd.s32 %s202, 1
      %p206 = scmp.eq.s32.totalorder %s21, 1
      %p207 = scmp.ne.s32.totalorder %s202, %s204
      %p208 = scmp.eq.s32.totalorder %s21, 0
      %p209 = por %p207, %p208
      %p210 = scmp.ne.s32.totalorder %s202, %s204
      %p211 = scmp.eq.s32.totalorder %s26, 1
      %p212 = por %p210, %p211
      %p213 = scmp.ne.s32.totalorder %s204, %s205
      %p214 = scmp.eq.s32.totalorder %s26, 0
      %p215 = por %p213, %p214
      %p216 = scmp.ne.s32.totalorder %s204, %s205
      %p217 = scmp.eq.s32.totalorder %s27, 1
      %p218 = por %p216, %p217
      %p220 = scmp.ne.s32.totalorder %s205, %s219
      %p221 = scmp.eq.s32.totalorder %s27, 0
      %p222 = por %p220, %p221
      %s224 = sadd.s32 %s223, 1
      %p227 = scmp.eq.s32.totalorder %s21, 1
      %p228 = scmp.ne.s32.totalorder %s223, %s225
      %p229 = scmp.eq.s32.totalorder %s21, 0
      %p230 = por %p228, %p229
      %p231 = scmp.ne.s32.totalorder %s223, %s225
      %p232 = scmp.eq.s32.totalorder %s26, 1
      %p233 = por %p231, %p232
      %p234 = scmp.ne.s32.totalorder %s225, %s226
      %p235 = scmp.eq.s32.totalorder %s26, 0
      %p236 = por %p234, %p235
      %p237 = scmp.ne.s32.totalorder %s225, %s226
      %p238 = scmp.eq.s32.totalorder %s27, 1
      %p239 = por %p237, %p238
      %p241 = scmp.ne.s32.totalorder %s226, %s240
      %p242 = scmp.eq.s32.totalorder %s27, 0
      %p243 = por %p241, %p242
      %s245 = sadd.s32 %s244, 1
      %p248 = scmp.eq.s32.totalorder %s21, 1
      %p249 = scmp.ne.s32.totalorder %s244, %s246
      %p250 = scmp.eq.s32.totalorder %s21, 0
      %p251 = por %p249, %p250
      %p252 = scmp.ne.s32.totalorder %s244, %s246
      %p253 = scmp.eq.s32.totalorder %s26, 1
      %p254 = por %p252, %p253
      %p255 = scmp.ne.s32.totalorder %s246, %s247
      %p256 = scmp.eq.s32.totalorder %s26, 0
      %p257 = por %p255, %p256
      %p258 = scmp.ne.s32.totalorder %s246, %s247
      %p259 = scmp.eq.s32.totalorder %s27, 1
      %p260 = por %p258, %p259
      %p262 = scmp.ne.s32.totalorder %s247, %s261
      %p263 = scmp.eq.s32.totalorder %s27, 0
      %p264 = por %p262, %p263
      %s266 = sadd.s32 %s265, 1
      %p269 = scmp.eq.s32.totalorder %s21, 1
      %p270 = scmp.ne.s32.totalorder %s265, %s267
      %p271 = scmp.eq.s32.totalorder %s21, 0
      %p272 = por %p270, %p271
      %p273 = scmp.ne.s32.totalorder %s265, %s267
      %p274 = scmp.eq.s32.totalorder %s26, 1
      %p275 = por %p273, %p274
      %p276 = scmp.ne.s32.totalorder %s267, %s268
      %p277 = scmp.eq.s32.totalorder %s26, 0
      %p278 = por %p276, %p277
      %p279 = scmp.ne.s32.totalorder %s267, %s268
      %p280 = scmp.eq.s32.totalorder %s27, 1
      %p281 = por %p279, %p280
      %p283 = scmp.ne.s32.totalorder %s268, %s282
      %p284 = scmp.eq.s32.totalorder %s27, 0
      %p285 = por %p283, %p284
      %s287 = sadd.s32 %s286, 1
      %p290 = scmp.eq.s32.totalorder %s21, 1
      %p291 = scmp.ne.s32.totalorder %s286, %s288
      %p292 = scmp.eq.s32.totalorder %s21, 0
      %p293 = por %p291, %p292
      %p294 = scmp.ne.s32.totalorder %s286, %s288
      %p295 = scmp.eq.s32.totalorder %s26, 1
      %p296 = por %p294, %p295
      %p297 = scmp.ne.s32.totalorder %s288, %s289
      %p298 = scmp.eq.s32.totalorder %s26, 0
      %p299 = por %p297, %p298
      %p300 = scmp.ne.s32.totalorder %s288, %s289
      %p301 = scmp.eq.s32.totalorder %s27, 1
      %p302 = por %p300, %p301
      %p304 = scmp.ne.s32.totalorder %s289, %s303
      %p305 = scmp.eq.s32.totalorder %s27, 0
      %p306 = por %p304, %p305
      %s308 = sadd.s32 %s307, 1
      %p311 = scmp.eq.s32.totalorder %s21, 1
      %p312 = scmp.ne.s32.totalorder %s307, %s309
      %p313 = scmp.eq.s32.totalorder %s21, 0
      %p314 = por %p312, %p313
      %p315 = scmp.ne.s32.totalorder %s307, %s309
      %p316 = scmp.eq.s32.totalorder %s26, 1
      %p317 = por %p315, %p316
      %p318 = scmp.ne.s32.totalorder %s309, %s310
      %p319 = scmp.eq.s32.totalorder %s26, 0
      %p320 = por %p318, %p319
      %p321 = scmp.ne.s32.totalorder %s309, %s310
      %p322 = scmp.eq.s32.totalorder %s27, 1
      %p323 = por %p321, %p322
      %p325 = scmp.ne.s32.totalorder %s310, %s324
      %p326 = scmp.eq.s32.totalorder %s27, 0
      %p327 = por %p325, %p326
      %s329 = sadd.s32 %s328, 1
      %p332 = scmp.eq.s32.totalorder %s21, 1
      %p333 = scmp.ne.s32.totalorder %s328, %s330
      %p334 = scmp.eq.s32.totalorder %s21, 0
      %p335 = por %p333, %p334
      %p336 = scmp.ne.s32.totalorder %s328, %s330
      %p337 = scmp.eq.s32.totalorder %s26, 1
      %p338 = por %p336, %p337
      %p339 = scmp.ne.s32.totalorder %s330, %s331
      %p340 = scmp.eq.s32.totalorder %s26, 0
      %p341 = por %p339, %p340
      %p342 = scmp.ne.s32.totalorder %s330, %s331
      %p343 = scmp.eq.s32.totalorder %s27, 1
      %p344 = por %p342, %p343
      %p346 = scmp.ne.s32.totalorder %s331, %s345
      %p347 = scmp.eq.s32.totalorder %s27, 0
      %p348 = por %p346, %p347
      %s349 = ssub.s32 %s21, %s28
      %p350 = scmp.eq.s32.totalorder %s349, 0
      %s352 = sadd.s32 %s351, 1
      %s353 = scalar_select %p350, %s351, %s352
      %p356 = pneg %p350
      %p357 = scmp.eq.s32.totalorder %s21, 1
      %p358 = por %p356, %p357
      %p359 = scmp.ne.s32.totalorder %s351, %s354
      %p360 = scmp.eq.s32.totalorder %s21, 0
      %p361 = por %p359, %p360
      %p362 = scmp.ne.s32.totalorder %s351, %s354
      %p363 = scmp.eq.s32.totalorder %s26, 1
      %p364 = por %p362, %p363
      %p365 = scmp.ne.s32.totalorder %s354, %s355
      %p366 = scmp.eq.s32.totalorder %s26, 0
      %p367 = por %p365, %p366
      %p368 = scmp.ne.s32.totalorder %s354, %s355
      %p369 = scmp.eq.s32.totalorder %s27, 1
      %p370 = por %p368, %p369
      %p372 = scmp.ne.s32.totalorder %s355, %s371
      %p373 = scmp.eq.s32.totalorder %s27, 0
      %p374 = por %p372, %p373
      %p375 = scmp.le.s32.totalorder 1, %s21
      %p376 = scmp.lt.s32.totalorder %s21, 3
      %p377 = pnand %p375, %p376
      %p378 = pneg %p377
      // Predicated region
      $region9: #{lenet5_bn_forward_prepared.1} parent=5 // pred_check
        _
      $region10: #{lenet5_bn_forward_prepared.1} parent=5 // pred_check_branch
        %380 = sbr.rel (%p377) target = $region12
      $region11: #{lenet5_bn_forward_prepared.1} parent=5 // pred_region
        %s381 = ssub.s32 %s21, 1
        // Predicated region
        $region13: #{lenet5_bn_forward_prepared.1} parent=11 // pred_check
          %p382 = pneg %p68
        $region14: #{lenet5_bn_forward_prepared.1} parent=11 // pred_check_branch
          %384 = sbr.rel (%p382) target = $region16
        $region15: #{lenet5_bn_forward_prepared.1} parent=11 // pred_region
          _
        $region16: #{lenet5_bn_forward_prepared.1} parent=11 // pred_fallthru
          _
        // Predicated region
        $region17: #{lenet5_bn_forward_prepared.1} parent=11 // pred_check
          %p385 = pneg %p89
        $region18: #{lenet5_bn_forward_prepared.1} parent=11 // pred_check_branch
          %387 = sbr.rel (%p385) target = $region20
        $region19: #{lenet5_bn_forward_prepared.1} parent=11 // pred_region
          _
        $region20: #{lenet5_bn_forward_prepared.1} parent=11 // pred_fallthru
          _
        // Predicated region
        $region21: #{lenet5_bn_forward_prepared.1} parent=11 // pred_check
          %p388 = pneg %p110
        $region22: #{lenet5_bn_forward_prepared.1} parent=11 // pred_check_branch
          %390 = sbr.rel (%p388) target = $region24
        $region23: #{lenet5_bn_forward_prepared.1} parent=11 // pred_region
          _
        $region24: #{lenet5_bn_forward_prepared.1} parent=11 // pred_fallthru
          _
        // Predicated region
        $region25: #{lenet5_bn_forward_prepared.1} parent=11 // pred_check
          %p391 = pneg %p131
        $region26: #{lenet5_bn_forward_prepared.1} parent=11 // pred_check_branch
          %393 = sbr.rel (%p391) target = $region28
        $region27: #{lenet5_bn_forward_prepared.1} parent=11 // pred_region
          _
        $region28: #{lenet5_bn_forward_prepared.1} parent=11 // pred_fallthru
          _
        // Predicated region
        $region29: #{lenet5_bn_forward_prepared.1} parent=11 // pred_check
          %p394 = pneg %p152
        $region30: #{lenet5_bn_forward_prepared.1} parent=11 // pred_check_branch
          %396 = sbr.rel (%p394) target = $region32
        $region31: #{lenet5_bn_forward_prepared.1} parent=11 // pred_region
          _
        $region32: #{lenet5_bn_forward_prepared.1} parent=11 // pred_fallthru
          _
        // Predicated region
        $region33: #{lenet5_bn_forward_prepared.1} parent=11 // pred_check
          %p397 = pneg %p173
        $region34: #{lenet5_bn_forward_prepared.1} parent=11 // pred_check_branch
          %399 = sbr.rel (%p397) target = $region36
        $region35: #{lenet5_bn_forward_prepared.1} parent=11 // pred_region
          _
        $region36: #{lenet5_bn_forward_prepared.1} parent=11 // pred_fallthru
          _
        // Predicated region
        $region37: #{lenet5_bn_forward_prepared.1} parent=11 // pred_check
          %p400 = pneg %p194
        $region38: #{lenet5_bn_forward_prepared.1} parent=11 // pred_check_branch
          %402 = sbr.rel (%p400) target = $region40
        $region39: #{lenet5_bn_forward_prepared.1} parent=11 // pred_region
          _
        $region40: #{lenet5_bn_forward_prepared.1} parent=11 // pred_fallthru
          _
        // Predicated region
        $region41: #{lenet5_bn_forward_prepared.1} parent=11 // pred_check
          %p403 = pneg %p215
        $region42: #{lenet5_bn_forward_prepared.1} parent=11 // pred_check_branch
          %405 = sbr.rel (%p403) target = $region44
        $region43: #{lenet5_bn_forward_prepared.1} parent=11 // pred_region
          _
        $region44: #{lenet5_bn_forward_prepared.1} parent=11 // pred_fallthru
          _
        // Predicated region
        $region45: #{lenet5_bn_forward_prepared.1} parent=11 // pred_check
          %p406 = pneg %p236
        $region46: #{lenet5_bn_forward_prepared.1} parent=11 // pred_check_branch
          %408 = sbr.rel (%p406) target = $region48
        $region47: #{lenet5_bn_forward_prepared.1} parent=11 // pred_region
          _
        $region48: #{lenet5_bn_forward_prepared.1} parent=11 // pred_fallthru
          _
        // Predicated region
        $region49: #{lenet5_bn_forward_prepared.1} parent=11 // pred_check
          %p409 = pneg %p257
        $region50: #{lenet5_bn_forward_prepared.1} parent=11 // pred_check_branch
          %411 = sbr.rel (%p409) target = $region52
        $region51: #{lenet5_bn_forward_prepared.1} parent=11 // pred_region
          _
        $region52: #{lenet5_bn_forward_prepared.1} parent=11 // pred_fallthru
          _
        // Predicated region
        $region53: #{lenet5_bn_forward_prepared.1} parent=11 // pred_check
          %p412 = pneg %p278
        $region54: #{lenet5_bn_forward_prepared.1} parent=11 // pred_check_branch
          %414 = sbr.rel (%p412) target = $region56
        $region55: #{lenet5_bn_forward_prepared.1} parent=11 // pred_region
          _
        $region56: #{lenet5_bn_forward_prepared.1} parent=11 // pred_fallthru
          _
        // Predicated region
        $region57: #{lenet5_bn_forward_prepared.1} parent=11 // pred_check
          %p415 = pneg %p299
        $region58: #{lenet5_bn_forward_prepared.1} parent=11 // pred_check_branch
          %417 = sbr.rel (%p415) target = $region60
        $region59: #{lenet5_bn_forward_prepared.1} parent=11 // pred_region
          _
        $region60: #{lenet5_bn_forward_prepared.1} parent=11 // pred_fallthru
          _
        // Predicated region
        $region61: #{lenet5_bn_forward_prepared.1} parent=11 // pred_check
          %p418 = pneg %p320
        $region62: #{lenet5_bn_forward_prepared.1} parent=11 // pred_check_branch
          %420 = sbr.rel (%p418) target = $region64
        $region63: #{lenet5_bn_forward_prepared.1} parent=11 // pred_region
          _
        $region64: #{lenet5_bn_forward_prepared.1} parent=11 // pred_fallthru
          _
        // Predicated region
        $region65: #{lenet5_bn_forward_prepared.1} parent=11 // pred_check
          %p421 = pneg %p341
        $region66: #{lenet5_bn_forward_prepared.1} parent=11 // pred_check_branch
          %423 = sbr.rel (%p421) target = $region68
        $region67: #{lenet5_bn_forward_prepared.1} parent=11 // pred_region
          _
        $region68: #{lenet5_bn_forward_prepared.1} parent=11 // pred_fallthru
          _
      $region12: #{lenet5_bn_forward_prepared.1} parent=5 // pred_fallthru
        _
      %p424 = scmp.lt.s32.totalorder %s21, 2
      // Predicated region
      $region69: #{lenet5_bn_forward_prepared.1} parent=5 // pred_check
        %p425 = pneg %p424
      $region70: #{lenet5_bn_forward_prepared.1} parent=5 // pred_check_branch
        %427 = sbr.rel (%p425) target = $region72
      $region71: #{lenet5_bn_forward_prepared.1} parent=5 // pred_region
        // Predicated region
        $region73: #{lenet5_bn_forward_prepared.1} parent=71 // pred_check
          %p428 = pneg %p41
        $region74: #{lenet5_bn_forward_prepared.1} parent=71 // pred_check_branch
          %430 = sbr.rel (%p428) target = $region76
        $region75: #{lenet5_bn_forward_prepared.1} parent=71 // pred_region
          %s431 = sand.u32 %s31, 1
          %s432 = sand.u32 %s31, 1
          %s433 = smul.addr %s432, 512
          %s434 = scalar_lea.vmem [#allocation4], %s433
          %s435 = smul.u32 2, %s21
          %s436 = smul.addr %s435, 4
          %s437 = scalar_lea.vmem %s0, %s436
          // Predicated region
          $region77: #{lenet5_bn_forward_prepared.1} parent=75 // pred_check
            _
          $region78: #{lenet5_bn_forward_prepared.1} parent=75 // pred_check_branch
            %439 = sbr.rel (0) target = $region80
          $region79: #{lenet5_bn_forward_prepared.1} parent=75 // pred_region
            // Predicated region
            $region81: #{lenet5_bn_forward_prepared.1} parent=79 // pred_check
              _
            $region82: #{lenet5_bn_forward_prepared.1} parent=79 // pred_check_branch
              %441 = sbr.rel target = $region84
            $region83: #{lenet5_bn_forward_prepared.1} parent=79 // pred_region
              // Predicated region
              $region96: #{lenet5_bn_forward_prepared.1} parent=83 // pred_check
                _
              $region97: #{lenet5_bn_forward_prepared.1} parent=83 // pred_check_branch
                %710 = sbr.rel (0) target = $region99
              $region98: #{lenet5_bn_forward_prepared.1} parent=83 // pred_region
                loop: start=0, step=1, limit=1
                $region100: #{lenet5_bn_forward_prepared.1} parent=98 // loop_pre_header
                  _
                $region101: #{lenet5_bn_forward_prepared.1} parent=98 // loop_header
                  %s712 = sphi 0, %s716
                  %p713 = scmp.ge.s32.totalorder %s712, 1
                  %s717 = sphi %s437, %s437
                  %s718 = sphi %s434, %s434
                $region102: #{lenet5_bn_forward_prepared.1} parent=98 // loop_header_branch
                  %715 = sbr.rel (%p713) target = $region106
                $region103: #{lenet5_bn_forward_prepared.1} parent=98 // loop_body
                  _
                $region104: #{lenet5_bn_forward_prepared.1} parent=98 // loop_footer
                  %s716 = sadd.s32 1, %s712
                $region105: #{lenet5_bn_forward_prepared.1} parent=98 // loop_footer_branch
                  %711 = sbr.rel target = $region101
                $region106: #{lenet5_bn_forward_prepared.1} parent=98 // loop_exit
                  _
                loop: start=0, step=1, limit=1
                $region107: #{lenet5_bn_forward_prepared.1} parent=98 // loop_pre_header
                  _
                $region108: #{lenet5_bn_forward_prepared.1} parent=98 // loop_header
                  %s721 = sphi 0, %s725
                  %p722 = scmp.ge.s32.totalorder %s721, 1
                  %s726 = sphi %s437, %s437
                  %s727 = sphi %s434, %s434
                $region109: #{lenet5_bn_forward_prepared.1} parent=98 // loop_header_branch
                  %724 = sbr.rel (%p722) target = $region113
                $region110: #{lenet5_bn_forward_prepared.1} parent=98 // loop_body
                  %v728 = vld [vmem:[%s726] sm:$0xf]
                  %729 = vst [vmem:[%s727] sm:$0xf] %v728
                  %v730 = vld [vmem:[%s726 + $0x4] sm:$0xf]
                  %731 = vst [vmem:[%s727 + $0x4] sm:$0xf] %v730
                  %v732 = vld [vmem:[%s726 + $0x10] sm:$0xf]
                  %733 = vst [vmem:[%s727 + $0x8] sm:$0xf] %v732
                  %v734 = vld [vmem:[%s726 + $0x14] sm:$0xf]
                  %735 = vst [vmem:[%s727 + $0xc] sm:$0xf] %v734
                  %v736 = vld [vmem:[%s726 + $0x20] sm:$0xf]
                  %737 = vst [vmem:[%s727 + $0x10] sm:$0xf] %v736
                  %v738 = vld [vmem:[%s726 + $0x24] sm:$0xf]
                  %739 = vst [vmem:[%s727 + $0x14] sm:$0xf] %v738
                  %v740 = vld [vmem:[%s726 + $0x30] sm:$0xf]
                  %741 = vst [vmem:[%s727 + $0x18] sm:$0xf] %v740
                  %v742 = vld [vmem:[%s726 + $0x34] sm:$0xf]
                  %743 = vst [vmem:[%s727 + $0x1c] sm:$0xf] %v742
                  %v744 = vld [vmem:[%s726 + $0x40] sm:$0xf]
                  %745 = vst [vmem:[%s727 + $0x20] sm:$0xf] %v744
                  %v746 = vld [vmem:[%s726 + $0x44] sm:$0xf]
                  %747 = vst [vmem:[%s727 + $0x24] sm:$0xf] %v746
                  %v748 = vld [vmem:[%s726 + $0x50] sm:$0xf]
                  %749 = vst [vmem:[%s727 + $0x28] sm:$0xf] %v748
                  %v750 = vld [vmem:[%s726 + $0x54] sm:$0xf]
                  %751 = vst [vmem:[%s727 + $0x2c] sm:$0xf] %v750
                  %v752 = vld [vmem:[%s726 + $0x60] sm:$0xf]
                  %753 = vst [vmem:[%s727 + $0x30] sm:$0xf] %v752
                  %v754 = vld [vmem:[%s726 + $0x64] sm:$0xf]
                  %755 = vst [vmem:[%s727 + $0x34] sm:$0xf] %v754
                  %v756 = vld [vmem:[%s726 + $0x70] sm:$0xf]
                  %757 = vst [vmem:[%s727 + $0x38] sm:$0xf] %v756
                  %v758 = vld [vmem:[%s726 + $0x74] sm:$0xf]
                  %759 = vst [vmem:[%s727 + $0x3c] sm:$0xf] %v758
                  %v760 = vld [vmem:[%s726 + $0x80] sm:$0xf]
                  %761 = vst [vmem:[%s727 + $0x40] sm:$0xf] %v760
                  %v762 = vld [vmem:[%s726 + $0x84] sm:$0xf]
                  %763 = vst [vmem:[%s727 + $0x44] sm:$0xf] %v762
                  %v764 = vld [vmem:[%s726 + $0x90] sm:$0xf]
                  %765 = vst [vmem:[%s727 + $0x48] sm:$0xf] %v764
                  %v766 = vld [vmem:[%s726 + $0x94] sm:$0xf]
                  %767 = vst [vmem:[%s727 + $0x4c] sm:$0xf] %v766
                  %v768 = vld [vmem:[%s726 + $0xa0] sm:$0xf]
                  %769 = vst [vmem:[%s727 + $0x50] sm:$0xf] %v768
                  %v770 = vld [vmem:[%s726 + $0xa4] sm:$0xf]
                  %771 = vst [vmem:[%s727 + $0x54] sm:$0xf] %v770
                  %v772 = vld [vmem:[%s726 + $0xb0] sm:$0xf]
                  %773 = vst [vmem:[%s727 + $0x58] sm:$0xf] %v772
                  %v774 = vld [vmem:[%s726 + $0xb4] sm:$0xf]
                  %775 = vst [vmem:[%s727 + $0x5c] sm:$0xf] %v774
                  %v776 = vld [vmem:[%s726 + $0xc0] sm:$0xf]
                  %777 = vst [vmem:[%s727 + $0x60] sm:$0xf] %v776
                  %v778 = vld [vmem:[%s726 + $0xc4] sm:$0xf]
                  %779 = vst [vmem:[%s727 + $0x64] sm:$0xf] %v778
                  %v780 = vld [vmem:[%s726 + $0xd0] sm:$0xf]
                  %781 = vst [vmem:[%s727 + $0x68] sm:$0xf] %v780
                  %v782 = vld [vmem:[%s726 + $0xd4] sm:$0xf]
                  %783 = vst [vmem:[%s727 + $0x6c] sm:$0xf] %v782
                  %v784 = vld [vmem:[%s726 + $0xe0] sm:$0xf]
                  %785 = vst [vmem:[%s727 + $0x70] sm:$0xf] %v784
                  %v786 = vld [vmem:[%s726 + $0xe4] sm:$0xf]
                  %787 = vst [vmem:[%s727 + $0x74] sm:$0xf] %v786
                  %v788 = vld [vmem:[%s726 + $0xf0] sm:$0xf]
                  %789 = vst [vmem:[%s727 + $0x78] sm:$0xf] %v788
                  %v790 = vld [vmem:[%s726 + $0xf4] sm:$0xf]
                  %791 = vst [vmem:[%s727 + $0x7c] sm:$0xf] %v790
                  %v792 = vld [vmem:[%s726 + $0x100] sm:$0xf]
                  %793 = vst [vmem:[%s727 + $0x80] sm:$0xf] %v792
                  %v794 = vld [vmem:[%s726 + $0x104] sm:$0xf]
                  %795 = vst [vmem:[%s727 + $0x84] sm:$0xf] %v794
                  %v796 = vld [vmem:[%s726 + $0x110] sm:$0xf]
                  %797 = vst [vmem:[%s727 + $0x88] sm:$0xf] %v796
                  %v798 = vld [vmem:[%s726 + $0x114] sm:$0xf]
                  %799 = vst [vmem:[%s727 + $0x8c] sm:$0xf] %v798
                  %v800 = vld [vmem:[%s726 + $0x120] sm:$0xf]
                  %801 = vst [vmem:[%s727 + $0x90] sm:$0xf] %v800
                  %v802 = vld [vmem:[%s726 + $0x124] sm:$0xf]
                  %803 = vst [vmem:[%s727 + $0x94] sm:$0xf] %v802
                  %v804 = vld [vmem:[%s726 + $0x130] sm:$0xf]
                  %805 = vst [vmem:[%s727 + $0x98] sm:$0xf] %v804
                  %v806 = vld [vmem:[%s726 + $0x134] sm:$0xf]
                  %807 = vst [vmem:[%s727 + $0x9c] sm:$0xf] %v806
                  %v808 = vld [vmem:[%s726 + $0x140] sm:$0xf]
                  %809 = vst [vmem:[%s727 + $0xa0] sm:$0xf] %v808
                  %v810 = vld [vmem:[%s726 + $0x144] sm:$0xf]
                  %811 = vst [vmem:[%s727 + $0xa4] sm:$0xf] %v810
                  %v812 = vld [vmem:[%s726 + $0x150] sm:$0xf]
                  %813 = vst [vmem:[%s727 + $0xa8] sm:$0xf] %v812
                  %v814 = vld [vmem:[%s726 + $0x154] sm:$0xf]
                  %815 = vst [vmem:[%s727 + $0xac] sm:$0xf] %v814
                  %v816 = vld [vmem:[%s726 + $0x160] sm:$0xf]
                  %817 = vst [vmem:[%s727 + $0xb0] sm:$0xf] %v816
                  %v818 = vld [vmem:[%s726 + $0x164] sm:$0xf]
                  %819 = vst [vmem:[%s727 + $0xb4] sm:$0xf] %v818
                  %v820 = vld [vmem:[%s726 + $0x170] sm:$0xf]
                  %821 = vst [vmem:[%s727 + $0xb8] sm:$0xf] %v820
                  %v822 = vld [vmem:[%s726 + $0x174] sm:$0xf]
                  %823 = vst [vmem:[%s727 + $0xbc] sm:$0xf] %v822
                  %v824 = vld [vmem:[%s726 + $0x180] sm:$0xf]
                  %825 = vst [vmem:[%s727 + $0xc0] sm:$0xf] %v824
                  %v826 = vld [vmem:[%s726 + $0x184] sm:$0xf]
                  %827 = vst [vmem:[%s727 + $0xc4] sm:$0xf] %v826
                  %v828 = vld [vmem:[%s726 + $0x190] sm:$0xf]
                  %829 = vst [vmem:[%s727 + $0xc8] sm:$0xf] %v828
                  %v830 = vld [vmem:[%s726 + $0x194] sm:$0xf]
                  %831 = vst [vmem:[%s727 + $0xcc] sm:$0xf] %v830
                  %v832 = vld [vmem:[%s726 + $0x1a0] sm:$0xf]
                  %833 = vst [vmem:[%s727 + $0xd0] sm:$0xf] %v832
                  %v834 = vld [vmem:[%s726 + $0x1a4] sm:$0xf]
                  %835 = vst [vmem:[%s727 + $0xd4] sm:$0xf] %v834
                  %v836 = vld [vmem:[%s726 + $0x1b0] sm:$0xf]
                  %837 = vst [vmem:[%s727 + $0xd8] sm:$0xf] %v836
                  %v838 = vld [vmem:[%s726 + $0x1b4] sm:$0xf]
                  %839 = vst [vmem:[%s727 + $0xdc] sm:$0xf] %v838
                  %v840 = vld [vmem:[%s726 + $0x1c0] sm:$0xf]
                  %841 = vst [vmem:[%s727 + $0xe0] sm:$0xf] %v840
                  %v842 = vld [vmem:[%s726 + $0x1c4] sm:$0xf]
                  %843 = vst [vmem:[%s727 + $0xe4] sm:$0xf] %v842
                  %v844 = vld [vmem:[%s726 + $0x1d0] sm:$0xf]
                  %845 = vst [vmem:[%s727 + $0xe8] sm:$0xf] %v844
                  %v846 = vld [vmem:[%s726 + $0x1d4] sm:$0xf]
                  %847 = vst [vmem:[%s727 + $0xec] sm:$0xf] %v846
                  %v848 = vld [vmem:[%s726 + $0x1e0] sm:$0xf]
                  %849 = vst [vmem:[%s727 + $0xf0] sm:$0xf] %v848
                  %v850 = vld [vmem:[%s726 + $0x1e4] sm:$0xf]
                  %851 = vst [vmem:[%s727 + $0xf4] sm:$0xf] %v850
                  %v852 = vld [vmem:[%s726 + $0x1f0] sm:$0xf]
                  %853 = vst [vmem:[%s727 + $0xf8] sm:$0xf] %v852
                  %v854 = vld [vmem:[%s726 + $0x1f4] sm:$0xf]
                  %855 = vst [vmem:[%s727 + $0xfc] sm:$0xf] %v854
                  %v856 = vld [vmem:[%s726 + $0x200] sm:$0xf]
                  %857 = vst [vmem:[%s727 + $0x100] sm:$0xf] %v856
                  %v858 = vld [vmem:[%s726 + $0x204] sm:$0xf]
                  %859 = vst [vmem:[%s727 + $0x104] sm:$0xf] %v858
                  %v860 = vld [vmem:[%s726 + $0x210] sm:$0xf]
                  %861 = vst [vmem:[%s727 + $0x108] sm:$0xf] %v860
                  %v862 = vld [vmem:[%s726 + $0x214] sm:$0xf]
                  %863 = vst [vmem:[%s727 + $0x10c] sm:$0xf] %v862
                  %v864 = vld [vmem:[%s726 + $0x220] sm:$0xf]
                  %865 = vst [vmem:[%s727 + $0x110] sm:$0xf] %v864
                  %v866 = vld [vmem:[%s726 + $0x224] sm:$0xf]
                  %867 = vst [vmem:[%s727 + $0x114] sm:$0xf] %v866
                  %v868 = vld [vmem:[%s726 + $0x230] sm:$0xf]
                  %869 = vst [vmem:[%s727 + $0x118] sm:$0xf] %v868
                  %v870 = vld [vmem:[%s726 + $0x234] sm:$0xf]
                  %871 = vst [vmem:[%s727 + $0x11c] sm:$0xf] %v870
                  %v872 = vld [vmem:[%s726 + $0x240] sm:$0xf]
                  %873 = vst [vmem:[%s727 + $0x120] sm:$0xf] %v872
                  %v874 = vld [vmem:[%s726 + $0x244] sm:$0xf]
                  %875 = vst [vmem:[%s727 + $0x124] sm:$0xf] %v874
                  %v876 = vld [vmem:[%s726 + $0x250] sm:$0xf]
                  %877 = vst [vmem:[%s727 + $0x128] sm:$0xf] %v876
                  %v878 = vld [vmem:[%s726 + $0x254] sm:$0xf]
                  %879 = vst [vmem:[%s727 + $0x12c] sm:$0xf] %v878
                  %v880 = vld [vmem:[%s726 + $0x260] sm:$0xf]
                  %881 = vst [vmem:[%s727 + $0x130] sm:$0xf] %v880
                  %v882 = vld [vmem:[%s726 + $0x264] sm:$0xf]
                  %883 = vst [vmem:[%s727 + $0x134] sm:$0xf] %v882
                  %v884 = vld [vmem:[%s726 + $0x270] sm:$0xf]
                  %885 = vst [vmem:[%s727 + $0x138] sm:$0xf] %v884
                  %v886 = vld [vmem:[%s726 + $0x274] sm:$0xf]
                  %887 = vst [vmem:[%s727 + $0x13c] sm:$0xf] %v886
                  %v888 = vld [vmem:[%s726 + $0x280] sm:$0xf]
                  %889 = vst [vmem:[%s727 + $0x140] sm:$0xf] %v888
                  %v890 = vld [vmem:[%s726 + $0x284] sm:$0xf]
                  %891 = vst [vmem:[%s727 + $0x144] sm:$0xf] %v890
                  %v892 = vld [vmem:[%s726 + $0x290] sm:$0xf]
                  %893 = vst [vmem:[%s727 + $0x148] sm:$0xf] %v892
                  %v894 = vld [vmem:[%s726 + $0x294] sm:$0xf]
                  %895 = vst [vmem:[%s727 + $0x14c] sm:$0xf] %v894
                  %v896 = vld [vmem:[%s726 + $0x2a0] sm:$0xf]
                  %897 = vst [vmem:[%s727 + $0x150] sm:$0xf] %v896
                  %v898 = vld [vmem:[%s726 + $0x2a4] sm:$0xf]
                  %899 = vst [vmem:[%s727 + $0x154] sm:$0xf] %v898
                  %v900 = vld [vmem:[%s726 + $0x2b0] sm:$0xf]
                  %901 = vst [vmem:[%s727 + $0x158] sm:$0xf] %v900
                  %v902 = vld [vmem:[%s726 + $0x2b4] sm:$0xf]
                  %903 = vst [vmem:[%s727 + $0x15c] sm:$0xf] %v902
                  %v904 = vld [vmem:[%s726 + $0x2c0] sm:$0xf]
                  %905 = vst [vmem:[%s727 + $0x160] sm:$0xf] %v904
                  %v906 = vld [vmem:[%s726 + $0x2c4] sm:$0xf]
                  %907 = vst [vmem:[%s727 + $0x164] sm:$0xf] %v906
                  %v908 = vld [vmem:[%s726 + $0x2d0] sm:$0xf]
                  %909 = vst [vmem:[%s727 + $0x168] sm:$0xf] %v908
                  %v910 = vld [vmem:[%s726 + $0x2d4] sm:$0xf]
                  %911 = vst [vmem:[%s727 + $0x16c] sm:$0xf] %v910
                  %v912 = vld [vmem:[%s726 + $0x2e0] sm:$0xf]
                  %913 = vst [vmem:[%s727 + $0x170] sm:$0xf] %v912
                  %v914 = vld [vmem:[%s726 + $0x2e4] sm:$0xf]
                  %915 = vst [vmem:[%s727 + $0x174] sm:$0xf] %v914
                  %v916 = vld [vmem:[%s726 + $0x2f0] sm:$0xf]
                  %917 = vst [vmem:[%s727 + $0x178] sm:$0xf] %v916
                  %v918 = vld [vmem:[%s726 + $0x2f4] sm:$0xf]
                  %919 = vst [vmem:[%s727 + $0x17c] sm:$0xf] %v918
                  %v920 = vld [vmem:[%s726 + $0x300] sm:$0xf]
                  %921 = vst [vmem:[%s727 + $0x180] sm:$0xf] %v920
                  %v922 = vld [vmem:[%s726 + $0x304] sm:$0xf]
                  %923 = vst [vmem:[%s727 + $0x184] sm:$0xf] %v922
                  %v924 = vld [vmem:[%s726 + $0x310] sm:$0xf]
                  %925 = vst [vmem:[%s727 + $0x188] sm:$0xf] %v924
                  %v926 = vld [vmem:[%s726 + $0x314] sm:$0xf]
                  %927 = vst [vmem:[%s727 + $0x18c] sm:$0xf] %v926
                  %v928 = vld [vmem:[%s726 + $0x320] sm:$0xf]
                  %929 = vst [vmem:[%s727 + $0x190] sm:$0xf] %v928
                  %v930 = vld [vmem:[%s726 + $0x324] sm:$0xf]
                  %931 = vst [vmem:[%s727 + $0x194] sm:$0xf] %v930
                  %v932 = vld [vmem:[%s726 + $0x330] sm:$0xf]
                  %933 = vst [vmem:[%s727 + $0x198] sm:$0xf] %v932
                  %v934 = vld [vmem:[%s726 + $0x334] sm:$0xf]
                  %935 = vst [vmem:[%s727 + $0x19c] sm:$0xf] %v934
                  %v936 = vld [vmem:[%s726 + $0x340] sm:$0xf]
                  %937 = vst [vmem:[%s727 + $0x1a0] sm:$0xf] %v936
                  %v938 = vld [vmem:[%s726 + $0x344] sm:$0xf]
                  %939 = vst [vmem:[%s727 + $0x1a4] sm:$0xf] %v938
                  %v940 = vld [vmem:[%s726 + $0x350] sm:$0xf]
                  %941 = vst [vmem:[%s727 + $0x1a8] sm:$0xf] %v940
                  %v942 = vld [vmem:[%s726 + $0x354] sm:$0xf]
                  %943 = vst [vmem:[%s727 + $0x1ac] sm:$0xf] %v942
                  %v944 = vld [vmem:[%s726 + $0x360] sm:$0xf]
                  %945 = vst [vmem:[%s727 + $0x1b0] sm:$0xf] %v944
                  %v946 = vld [vmem:[%s726 + $0x364] sm:$0xf]
                  %947 = vst [vmem:[%s727 + $0x1b4] sm:$0xf] %v946
                  %v948 = vld [vmem:[%s726 + $0x370] sm:$0xf]
                  %949 = vst [vmem:[%s727 + $0x1b8] sm:$0xf] %v948
                  %v950 = vld [vmem:[%s726 + $0x374] sm:$0xf]
                  %951 = vst [vmem:[%s727 + $0x1bc] sm:$0xf] %v950
                  %v952 = vld [vmem:[%s726 + $0x380] sm:$0xf]
                  %953 = vst [vmem:[%s727 + $0x1c0] sm:$0xf] %v952
                  %v954 = vld [vmem:[%s726 + $0x384] sm:$0xf]
                  %955 = vst [vmem:[%s727 + $0x1c4] sm:$0xf] %v954
                  %v956 = vld [vmem:[%s726 + $0x390] sm:$0xf]
                  %957 = vst [vmem:[%s727 + $0x1c8] sm:$0xf] %v956
                  %v958 = vld [vmem:[%s726 + $0x394] sm:$0xf]
                  %959 = vst [vmem:[%s727 + $0x1cc] sm:$0xf] %v958
                  %v960 = vld [vmem:[%s726 + $0x3a0] sm:$0xf]
                  %961 = vst [vmem:[%s727 + $0x1d0] sm:$0xf] %v960
                  %v962 = vld [vmem:[%s726 + $0x3a4] sm:$0xf]
                  %963 = vst [vmem:[%s727 + $0x1d4] sm:$0xf] %v962
                  %v964 = vld [vmem:[%s726 + $0x3b0] sm:$0xf]
                  %965 = vst [vmem:[%s727 + $0x1d8] sm:$0xf] %v964
                  %v966 = vld [vmem:[%s726 + $0x3b4] sm:$0xf]
                  %967 = vst [vmem:[%s727 + $0x1dc] sm:$0xf] %v966
                  %v968 = vld [vmem:[%s726 + $0x3c0] sm:$0xf]
                  %969 = vst [vmem:[%s727 + $0x1e0] sm:$0xf] %v968
                  %v970 = vld [vmem:[%s726 + $0x3c4] sm:$0xf]
                  %971 = vst [vmem:[%s727 + $0x1e4] sm:$0xf] %v970
                  %v972 = vld [vmem:[%s726 + $0x3d0] sm:$0xf]
                  %973 = vst [vmem:[%s727 + $0x1e8] sm:$0xf] %v972
                  %v974 = vld [vmem:[%s726 + $0x3d4] sm:$0xf]
                  %975 = vst [vmem:[%s727 + $0x1ec] sm:$0xf] %v974
                  %v976 = vld [vmem:[%s726 + $0x3e0] sm:$0xf]
                  %977 = vst [vmem:[%s727 + $0x1f0] sm:$0xf] %v976
                  %v978 = vld [vmem:[%s726 + $0x3e4] sm:$0xf]
                  %979 = vst [vmem:[%s727 + $0x1f4] sm:$0xf] %v978
                  %v980 = vld [vmem:[%s726 + $0x3f0] sm:$0xf]
                  %981 = vst [vmem:[%s727 + $0x1f8] sm:$0xf] %v980
                  %v982 = vld [vmem:[%s726 + $0x3f4] sm:$0xf]
                  %983 = vst [vmem:[%s727 + $0x1fc] sm:$0xf] %v982
                $region111: #{lenet5_bn_forward_prepared.1} parent=98 // loop_footer
                  %s725 = sadd.s32 1, %s721
                $region112: #{lenet5_bn_forward_prepared.1} parent=98 // loop_footer_branch
                  %720 = sbr.rel target = $region108
                $region113: #{lenet5_bn_forward_prepared.1} parent=98 // loop_exit
                  _
              $region99: #{lenet5_bn_forward_prepared.1} parent=83 // pred_fallthru
                _
            $region84: #{lenet5_bn_forward_prepared.1} parent=79 // pred_fallthru
              _
            // Predicated region
            $region85: #{lenet5_bn_forward_prepared.1} parent=79 // pred_check
              _
            $region86: #{lenet5_bn_forward_prepared.1} parent=79 // pred_check_branch
              %443 = sbr.rel (0) target = $region88
            $region87: #{lenet5_bn_forward_prepared.1} parent=79 // pred_region
              loop: start=0, step=1, limit=1
              $region89: #{lenet5_bn_forward_prepared.1} parent=87 // loop_pre_header
                _
              $region90: #{lenet5_bn_forward_prepared.1} parent=87 // loop_header
                %s446 = sphi 0, %s450
                %p447 = scmp.ge.s32.totalorder %s446, 1
                %s451 = sphi %s437, %s437
                %s452 = sphi %s434, %s434
              $region91: #{lenet5_bn_forward_prepared.1} parent=87 // loop_header_branch
                %449 = sbr.rel (%p447) target = $region95
              $region92: #{lenet5_bn_forward_prepared.1} parent=87 // loop_body
                %v453 = vld [vmem:[%s451] sm:$0xf]
                %454 = vst [vmem:[%s452] sm:$0xf] %v453
                %v455 = vld [vmem:[%s451 + $0x4] sm:$0xf]
                %456 = vst [vmem:[%s452 + $0x4] sm:$0xf] %v455
                %v457 = vld [vmem:[%s451 + $0x10] sm:$0xf]
                %458 = vst [vmem:[%s452 + $0x8] sm:$0xf] %v457
                %v459 = vld [vmem:[%s451 + $0x14] sm:$0xf]
                %460 = vst [vmem:[%s452 + $0xc] sm:$0xf] %v459
                %v461 = vld [vmem:[%s451 + $0x20] sm:$0xf]
                %462 = vst [vmem:[%s452 + $0x10] sm:$0xf] %v461
                %v463 = vld [vmem:[%s451 + $0x24] sm:$0xf]
                %464 = vst [vmem:[%s452 + $0x14] sm:$0xf] %v463
                %v465 = vld [vmem:[%s451 + $0x30] sm:$0xf]
                %466 = vst [vmem:[%s452 + $0x18] sm:$0xf] %v465
                %v467 = vld [vmem:[%s451 + $0x34] sm:$0xf]
                %468 = vst [vmem:[%s452 + $0x1c] sm:$0xf] %v467
                %v469 = vld [vmem:[%s451 + $0x40] sm:$0xf]
                %470 = vst [vmem:[%s452 + $0x20] sm:$0xf] %v469
                %v471 = vld [vmem:[%s451 + $0x44] sm:$0xf]
                %472 = vst [vmem:[%s452 + $0x24] sm:$0xf] %v471
                %v473 = vld [vmem:[%s451 + $0x50] sm:$0xf]
                %474 = vst [vmem:[%s452 + $0x28] sm:$0xf] %v473
                %v475 = vld [vmem:[%s451 + $0x54] sm:$0xf]
                %476 = vst [vmem:[%s452 + $0x2c] sm:$0xf] %v475
                %v477 = vld [vmem:[%s451 + $0x60] sm:$0xf]
                %478 = vst [vmem:[%s452 + $0x30] sm:$0xf] %v477
                %v479 = vld [vmem:[%s451 + $0x64] sm:$0xf]
                %480 = vst [vmem:[%s452 + $0x34] sm:$0xf] %v479
                %v481 = vld [vmem:[%s451 + $0x70] sm:$0xf]
                %482 = vst [vmem:[%s452 + $0x38] sm:$0xf] %v481
                %v483 = vld [vmem:[%s451 + $0x74] sm:$0xf]
                %484 = vst [vmem:[%s452 + $0x3c] sm:$0xf] %v483
                %v485 = vld [vmem:[%s451 + $0x80] sm:$0xf]
                %486 = vst [vmem:[%s452 + $0x40] sm:$0xf] %v485
                %v487 = vld [vmem:[%s451 + $0x84] sm:$0xf]
                %488 = vst [vmem:[%s452 + $0x44] sm:$0xf] %v487
                %v489 = vld [vmem:[%s451 + $0x90] sm:$0xf]
                %490 = vst [vmem:[%s452 + $0x48] sm:$0xf] %v489
                %v491 = vld [vmem:[%s451 + $0x94] sm:$0xf]
                %492 = vst [vmem:[%s452 + $0x4c] sm:$0xf] %v491
                %v493 = vld [vmem:[%s451 + $0xa0] sm:$0xf]
                %494 = vst [vmem:[%s452 + $0x50] sm:$0xf] %v493
                %v495 = vld [vmem:[%s451 + $0xa4] sm:$0xf]
                %496 = vst [vmem:[%s452 + $0x54] sm:$0xf] %v495
                %v497 = vld [vmem:[%s451 + $0xb0] sm:$0xf]
                %498 = vst [vmem:[%s452 + $0x58] sm:$0xf] %v497
                %v499 = vld [vmem:[%s451 + $0xb4] sm:$0xf]
                %500 = vst [vmem:[%s452 + $0x5c] sm:$0xf] %v499
                %v501 = vld [vmem:[%s451 + $0xc0] sm:$0xf]
                %502 = vst [vmem:[%s452 + $0x60] sm:$0xf] %v501
                %v503 = vld [vmem:[%s451 + $0xc4] sm:$0xf]
                %504 = vst [vmem:[%s452 + $0x64] sm:$0xf] %v503
                %v505 = vld [vmem:[%s451 + $0xd0] sm:$0xf]
                %506 = vst [vmem:[%s452 + $0x68] sm:$0xf] %v505
                %v507 = vld [vmem:[%s451 + $0xd4] sm:$0xf]
                %508 = vst [vmem:[%s452 + $0x6c] sm:$0xf] %v507
                %v509 = vld [vmem:[%s451 + $0xe0] sm:$0xf]
                %510 = vst [vmem:[%s452 + $0x70] sm:$0xf] %v509
                %v511 = vld [vmem:[%s451 + $0xe4] sm:$0xf]
                %512 = vst [vmem:[%s452 + $0x74] sm:$0xf] %v511
                %v513 = vld [vmem:[%s451 + $0xf0] sm:$0xf]
                %514 = vst [vmem:[%s452 + $0x78] sm:$0xf] %v513
                %v515 = vld [vmem:[%s451 + $0xf4] sm:$0xf]
                %516 = vst [vmem:[%s452 + $0x7c] sm:$0xf] %v515
                %v517 = vld [vmem:[%s451 + $0x100] sm:$0xf]
                %518 = vst [vmem:[%s452 + $0x80] sm:$0xf] %v517
                %v519 = vld [vmem:[%s451 + $0x104] sm:$0xf]
                %520 = vst [vmem:[%s452 + $0x84] sm:$0xf] %v519
                %v521 = vld [vmem:[%s451 + $0x110] sm:$0xf]
                %522 = vst [vmem:[%s452 + $0x88] sm:$0xf] %v521
                %v523 = vld [vmem:[%s451 + $0x114] sm:$0xf]
                %524 = vst [vmem:[%s452 + $0x8c] sm:$0xf] %v523
                %v525 = vld [vmem:[%s451 + $0x120] sm:$0xf]
                %526 = vst [vmem:[%s452 + $0x90] sm:$0xf] %v525
                %v527 = vld [vmem:[%s451 + $0x124] sm:$0xf]
                %528 = vst [vmem:[%s452 + $0x94] sm:$0xf] %v527
                %v529 = vld [vmem:[%s451 + $0x130] sm:$0xf]
                %530 = vst [vmem:[%s452 + $0x98] sm:$0xf] %v529
                %v531 = vld [vmem:[%s451 + $0x134] sm:$0xf]
                %532 = vst [vmem:[%s452 + $0x9c] sm:$0xf] %v531
                %v533 = vld [vmem:[%s451 + $0x140] sm:$0xf]
                %534 = vst [vmem:[%s452 + $0xa0] sm:$0xf] %v533
                %v535 = vld [vmem:[%s451 + $0x144] sm:$0xf]
                %536 = vst [vmem:[%s452 + $0xa4] sm:$0xf] %v535
                %v537 = vld [vmem:[%s451 + $0x150] sm:$0xf]
                %538 = vst [vmem:[%s452 + $0xa8] sm:$0xf] %v537
                %v539 = vld [vmem:[%s451 + $0x154] sm:$0xf]
                %540 = vst [vmem:[%s452 + $0xac] sm:$0xf] %v539
                %v541 = vld [vmem:[%s451 + $0x160] sm:$0xf]
                %542 = vst [vmem:[%s452 + $0xb0] sm:$0xf] %v541
                %v543 = vld [vmem:[%s451 + $0x164] sm:$0xf]
                %544 = vst [vmem:[%s452 + $0xb4] sm:$0xf] %v543
                %v545 = vld [vmem:[%s451 + $0x170] sm:$0xf]
                %546 = vst [vmem:[%s452 + $0xb8] sm:$0xf] %v545
                %v547 = vld [vmem:[%s451 + $0x174] sm:$0xf]
                %548 = vst [vmem:[%s452 + $0xbc] sm:$0xf] %v547
                %v549 = vld [vmem:[%s451 + $0x180] sm:$0xf]
                %550 = vst [vmem:[%s452 + $0xc0] sm:$0xf] %v549
                %v551 = vld [vmem:[%s451 + $0x184] sm:$0xf]
                %552 = vst [vmem:[%s452 + $0xc4] sm:$0xf] %v551
                %v553 = vld [vmem:[%s451 + $0x190] sm:$0xf]
                %554 = vst [vmem:[%s452 + $0xc8] sm:$0xf] %v553
                %v555 = vld [vmem:[%s451 + $0x194] sm:$0xf]
                %556 = vst [vmem:[%s452 + $0xcc] sm:$0xf] %v555
                %v557 = vld [vmem:[%s451 + $0x1a0] sm:$0xf]
                %558 = vst [vmem:[%s452 + $0xd0] sm:$0xf] %v557
                %v559 = vld [vmem:[%s451 + $0x1a4] sm:$0xf]
                %560 = vst [vmem:[%s452 + $0xd4] sm:$0xf] %v559
                %v561 = vld [vmem:[%s451 + $0x1b0] sm:$0xf]
                %562 = vst [vmem:[%s452 + $0xd8] sm:$0xf] %v561
                %v563 = vld [vmem:[%s451 + $0x1b4] sm:$0xf]
                %564 = vst [vmem:[%s452 + $0xdc] sm:$0xf] %v563
                %v565 = vld [vmem:[%s451 + $0x1c0] sm:$0xf]
                %566 = vst [vmem:[%s452 + $0xe0] sm:$0xf] %v565
                %v567 = vld [vmem:[%s451 + $0x1c4] sm:$0xf]
                %568 = vst [vmem:[%s452 + $0xe4] sm:$0xf] %v567
                %v569 = vld [vmem:[%s451 + $0x1d0] sm:$0xf]
                %570 = vst [vmem:[%s452 + $0xe8] sm:$0xf] %v569
                %v571 = vld [vmem:[%s451 + $0x1d4] sm:$0xf]
                %572 = vst [vmem:[%s452 + $0xec] sm:$0xf] %v571
                %v573 = vld [vmem:[%s451 + $0x1e0] sm:$0xf]
                %574 = vst [vmem:[%s452 + $0xf0] sm:$0xf] %v573
                %v575 = vld [vmem:[%s451 + $0x1e4] sm:$0xf]
                %576 = vst [vmem:[%s452 + $0xf4] sm:$0xf] %v575
                %v577 = vld [vmem:[%s451 + $0x1f0] sm:$0xf]
                %578 = vst [vmem:[%s452 + $0xf8] sm:$0xf] %v577
                %v579 = vld [vmem:[%s451 + $0x1f4] sm:$0xf]
                %580 = vst [vmem:[%s452 + $0xfc] sm:$0xf] %v579
                %v581 = vld [vmem:[%s451 + $0x200] sm:$0xf]
                %582 = vst [vmem:[%s452 + $0x100] sm:$0xf] %v581
                %v583 = vld [vmem:[%s451 + $0x204] sm:$0xf]
                %584 = vst [vmem:[%s452 + $0x104] sm:$0xf] %v583
                %v585 = vld [vmem:[%s451 + $0x210] sm:$0xf]
                %586 = vst [vmem:[%s452 + $0x108] sm:$0xf] %v585
                %v587 = vld [vmem:[%s451 + $0x214] sm:$0xf]
                %588 = vst [vmem:[%s452 + $0x10c] sm:$0xf] %v587
                %v589 = vld [vmem:[%s451 + $0x220] sm:$0xf]
                %590 = vst [vmem:[%s452 + $0x110] sm:$0xf] %v589
                %v591 = vld [vmem:[%s451 + $0x224] sm:$0xf]
                %592 = vst [vmem:[%s452 + $0x114] sm:$0xf] %v591
                %v593 = vld [vmem:[%s451 + $0x230] sm:$0xf]
                %594 = vst [vmem:[%s452 + $0x118] sm:$0xf] %v593
                %v595 = vld [vmem:[%s451 + $0x234] sm:$0xf]
                %596 = vst [vmem:[%s452 + $0x11c] sm:$0xf] %v595
                %v597 = vld [vmem:[%s451 + $0x240] sm:$0xf]
                %598 = vst [vmem:[%s452 + $0x120] sm:$0xf] %v597
                %v599 = vld [vmem:[%s451 + $0x244] sm:$0xf]
                %600 = vst [vmem:[%s452 + $0x124] sm:$0xf] %v599
                %v601 = vld [vmem:[%s451 + $0x250] sm:$0xf]
                %602 = vst [vmem:[%s452 + $0x128] sm:$0xf] %v601
                %v603 = vld [vmem:[%s451 + $0x254] sm:$0xf]
                %604 = vst [vmem:[%s452 + $0x12c] sm:$0xf] %v603
                %v605 = vld [vmem:[%s451 + $0x260] sm:$0xf]
                %606 = vst [vmem:[%s452 + $0x130] sm:$0xf] %v605
                %v607 = vld [vmem:[%s451 + $0x264] sm:$0xf]
                %608 = vst [vmem:[%s452 + $0x134] sm:$0xf] %v607
                %v609 = vld [vmem:[%s451 + $0x270] sm:$0xf]
                %610 = vst [vmem:[%s452 + $0x138] sm:$0xf] %v609
                %v611 = vld [vmem:[%s451 + $0x274] sm:$0xf]
                %612 = vst [vmem:[%s452 + $0x13c] sm:$0xf] %v611
                %v613 = vld [vmem:[%s451 + $0x280] sm:$0xf]
                %614 = vst [vmem:[%s452 + $0x140] sm:$0xf] %v613
                %v615 = vld [vmem:[%s451 + $0x284] sm:$0xf]
                %616 = vst [vmem:[%s452 + $0x144] sm:$0xf] %v615
                %v617 = vld [vmem:[%s451 + $0x290] sm:$0xf]
                %618 = vst [vmem:[%s452 + $0x148] sm:$0xf] %v617
                %v619 = vld [vmem:[%s451 + $0x294] sm:$0xf]
                %620 = vst [vmem:[%s452 + $0x14c] sm:$0xf] %v619
                %v621 = vld [vmem:[%s451 + $0x2a0] sm:$0xf]
                %622 = vst [vmem:[%s452 + $0x150] sm:$0xf] %v621
                %v623 = vld [vmem:[%s451 + $0x2a4] sm:$0xf]
                %624 = vst [vmem:[%s452 + $0x154] sm:$0xf] %v623
                %v625 = vld [vmem:[%s451 + $0x2b0] sm:$0xf]
                %626 = vst [vmem:[%s452 + $0x158] sm:$0xf] %v625
                %v627 = vld [vmem:[%s451 + $0x2b4] sm:$0xf]
                %628 = vst [vmem:[%s452 + $0x15c] sm:$0xf] %v627
                %v629 = vld [vmem:[%s451 + $0x2c0] sm:$0xf]
                %630 = vst [vmem:[%s452 + $0x160] sm:$0xf] %v629
                %v631 = vld [vmem:[%s451 + $0x2c4] sm:$0xf]
                %632 = vst [vmem:[%s452 + $0x164] sm:$0xf] %v631
                %v633 = vld [vmem:[%s451 + $0x2d0] sm:$0xf]
                %634 = vst [vmem:[%s452 + $0x168] sm:$0xf] %v633
                %v635 = vld [vmem:[%s451 + $0x2d4] sm:$0xf]
                %636 = vst [vmem:[%s452 + $0x16c] sm:$0xf] %v635
                %v637 = vld [vmem:[%s451 + $0x2e0] sm:$0xf]
                %638 = vst [vmem:[%s452 + $0x170] sm:$0xf] %v637
                %v639 = vld [vmem:[%s451 + $0x2e4] sm:$0xf]
                %640 = vst [vmem:[%s452 + $0x174] sm:$0xf] %v639
                %v641 = vld [vmem:[%s451 + $0x2f0] sm:$0xf]
                %642 = vst [vmem:[%s452 + $0x178] sm:$0xf] %v641
                %v643 = vld [vmem:[%s451 + $0x2f4] sm:$0xf]
                %644 = vst [vmem:[%s452 + $0x17c] sm:$0xf] %v643
                %v645 = vld [vmem:[%s451 + $0x300] sm:$0xf]
                %646 = vst [vmem:[%s452 + $0x180] sm:$0xf] %v645
                %v647 = vld [vmem:[%s451 + $0x304] sm:$0xf]
                %648 = vst [vmem:[%s452 + $0x184] sm:$0xf] %v647
                %v649 = vld [vmem:[%s451 + $0x310] sm:$0xf]
                %650 = vst [vmem:[%s452 + $0x188] sm:$0xf] %v649
                %v651 = vld [vmem:[%s451 + $0x314] sm:$0xf]
                %652 = vst [vmem:[%s452 + $0x18c] sm:$0xf] %v651
                %v653 = vld [vmem:[%s451 + $0x320] sm:$0xf]
                %654 = vst [vmem:[%s452 + $0x190] sm:$0xf] %v653
                %v655 = vld [vmem:[%s451 + $0x324] sm:$0xf]
                %656 = vst [vmem:[%s452 + $0x194] sm:$0xf] %v655
                %v657 = vld [vmem:[%s451 + $0x330] sm:$0xf]
                %658 = vst [vmem:[%s452 + $0x198] sm:$0xf] %v657
                %v659 = vld [vmem:[%s451 + $0x334] sm:$0xf]
                %660 = vst [vmem:[%s452 + $0x19c] sm:$0xf] %v659
                %v661 = vld [vmem:[%s451 + $0x340] sm:$0xf]
                %662 = vst [vmem:[%s452 + $0x1a0] sm:$0xf] %v661
                %v663 = vld [vmem:[%s451 + $0x344] sm:$0xf]
                %664 = vst [vmem:[%s452 + $0x1a4] sm:$0xf] %v663
                %v665 = vld [vmem:[%s451 + $0x350] sm:$0xf]
                %666 = vst [vmem:[%s452 + $0x1a8] sm:$0xf] %v665
                %v667 = vld [vmem:[%s451 + $0x354] sm:$0xf]
                %668 = vst [vmem:[%s452 + $0x1ac] sm:$0xf] %v667
                %v669 = vld [vmem:[%s451 + $0x360] sm:$0xf]
                %670 = vst [vmem:[%s452 + $0x1b0] sm:$0xf] %v669
                %v671 = vld [vmem:[%s451 + $0x364] sm:$0xf]
                %672 = vst [vmem:[%s452 + $0x1b4] sm:$0xf] %v671
                %v673 = vld [vmem:[%s451 + $0x370] sm:$0xf]
                %674 = vst [vmem:[%s452 + $0x1b8] sm:$0xf] %v673
                %v675 = vld [vmem:[%s451 + $0x374] sm:$0xf]
                %676 = vst [vmem:[%s452 + $0x1bc] sm:$0xf] %v675
                %v677 = vld [vmem:[%s451 + $0x380] sm:$0xf]
                %678 = vst [vmem:[%s452 + $0x1c0] sm:$0xf] %v677
                %v679 = vld [vmem:[%s451 + $0x384] sm:$0xf]
                %680 = vst [vmem:[%s452 + $0x1c4] sm:$0xf] %v679
                %v681 = vld [vmem:[%s451 + $0x390] sm:$0xf]
                %682 = vst [vmem:[%s452 + $0x1c8] sm:$0xf] %v681
                %v683 = vld [vmem:[%s451 + $0x394] sm:$0xf]
                %684 = vst [vmem:[%s452 + $0x1cc] sm:$0xf] %v683
                %v685 = vld [vmem:[%s451 + $0x3a0] sm:$0xf]
                %686 = vst [vmem:[%s452 + $0x1d0] sm:$0xf] %v685
                %v687 = vld [vmem:[%s451 + $0x3a4] sm:$0xf]
                %688 = vst [vmem:[%s452 + $0x1d4] sm:$0xf] %v687
                %v689 = vld [vmem:[%s451 + $0x3b0] sm:$0xf]
                %690 = vst [vmem:[%s452 + $0x1d8] sm:$0xf] %v689
                %v691 = vld [vmem:[%s451 + $0x3b4] sm:$0xf]
                %692 = vst [vmem:[%s452 + $0x1dc] sm:$0xf] %v691
                %v693 = vld [vmem:[%s451 + $0x3c0] sm:$0xf]
                %694 = vst [vmem:[%s452 + $0x1e0] sm:$0xf] %v693
                %v695 = vld [vmem:[%s451 + $0x3c4] sm:$0xf]
                %696 = vst [vmem:[%s452 + $0x1e4] sm:$0xf] %v695
                %v697 = vld [vmem:[%s451 + $0x3d0] sm:$0xf]
                %698 = vst [vmem:[%s452 + $0x1e8] sm:$0xf] %v697
                %v699 = vld [vmem:[%s451 + $0x3d4] sm:$0xf]
                %700 = vst [vmem:[%s452 + $0x1ec] sm:$0xf] %v699
                %v701 = vld [vmem:[%s451 + $0x3e0] sm:$0xf]
                %702 = vst [vmem:[%s452 + $0x1f0] sm:$0xf] %v701
                %v703 = vld [vmem:[%s451 + $0x3e4] sm:$0xf]
                %704 = vst [vmem:[%s452 + $0x1f4] sm:$0xf] %v703
                %v705 = vld [vmem:[%s451 + $0x3f0] sm:$0xf]
                %706 = vst [vmem:[%s452 + $0x1f8] sm:$0xf] %v705
                %v707 = vld [vmem:[%s451 + $0x3f4] sm:$0xf]
                %708 = vst [vmem:[%s452 + $0x1fc] sm:$0xf] %v707
              $region93: #{lenet5_bn_forward_prepared.1} parent=87 // loop_footer
                %s450 = sadd.s32 1, %s446
              $region94: #{lenet5_bn_forward_prepared.1} parent=87 // loop_footer_branch
                %445 = sbr.rel target = $region90
              $region95: #{lenet5_bn_forward_prepared.1} parent=87 // loop_exit
                _
            $region88: #{lenet5_bn_forward_prepared.1} parent=79 // pred_fallthru
              _
          $region80: #{lenet5_bn_forward_prepared.1} parent=75 // pred_fallthru
            _
          %984 = vnop
        $region76: #{lenet5_bn_forward_prepared.1} parent=71 // pred_fallthru
          _
      $region72: #{lenet5_bn_forward_prepared.1} parent=5 // pred_fallthru
        _
      %p985 = scmp.le.s32.totalorder 1, %s21
      %p986 = scmp.lt.s32.totalorder %s21, 3
      %p987 = pnand %p985, %p986
      %p988 = pneg %p987
      // Predicated region
      $region114: #{lenet5_bn_forward_prepared.1} parent=5 // pred_check
        _
      $region115: #{lenet5_bn_forward_prepared.1} parent=5 // pred_check_branch
        %990 = sbr.rel (%p987) target = $region117
      $region116: #{lenet5_bn_forward_prepared.1} parent=5 // pred_region
        %s991 = ssub.s32 %s21, 1
        %s992 = sand.u32 %s34, 1
        %s993 = sand.u32 %s34, 1
        %s994 = smul.addr %s993, 512
        %s995 = scalar_lea.vmem [#allocation4], %s994
        // Predicated region
        $region118: #{lenet5_bn_forward_prepared.1} parent=116 // pred_check
          %p996 = pneg %p47
        $region119: #{lenet5_bn_forward_prepared.1} parent=116 // pred_check_branch
          %998 = sbr.rel (%p996) target = $region121
        $region120: #{lenet5_bn_forward_prepared.1} parent=116 // pred_region
          _
        $region121: #{lenet5_bn_forward_prepared.1} parent=116 // pred_fallthru
          _
        %s999 = sand.u32 %s34, 1
        %s1000 = sand.u32 %s34, 1
        %s1001 = smul.addr %s1000, 512
        %s1002 = scalar_lea.vmem [#allocation4], %s1001
        %p1003 = pneg %p47
        %p1004 = pneg %p44
        %p1005 = pneg %p68
        %p1006 = pneg %p65
        %p1007 = pneg %p89
        %p1008 = pneg %p86
        %p1009 = pneg %p110
        %p1010 = pneg %p107
        %p1011 = pneg %p131
        %p1012 = pneg %p128
        %p1013 = pneg %p152
        %p1014 = pneg %p149
        %p1015 = pneg %p173
        %p1016 = pneg %p170
        %p1017 = pneg %p194
        %p1018 = pneg %p191
        %p1019 = pneg %p215
        %p1020 = pneg %p212
        %p1021 = pneg %p236
        %p1022 = pneg %p233
        %p1023 = pneg %p257
        %p1024 = pneg %p254
        %p1025 = pneg %p278
        %p1026 = pneg %p275
        %p1027 = pneg %p299
        %p1028 = pneg %p296
        %p1029 = pneg %p320
        %p1030 = pneg %p317
        %p1031 = pneg %p341
        %p1032 = pneg %p338
        %p1033 = pneg %p367
        %p1034 = pneg %p364
        %s1035 = smul.u32 2, %s26
        %p1036 = scmp.lt.s32.totalorder %s1035, 3
        %s1037 = scalar_select %p1036, %s1035, 3
        %s1038 = smul.addr %s1037, 8
        %s1039 = scalar_lea.vmem %s15, %s1038
        %s1040 = smul.u32 2, %s26
        %s1041 = smul.u32 2, %s26
        %p1042 = scmp.lt.s32.totalorder %s1041, 3
        %s1043 = scalar_select %p1042, %s1041, 3
        %s1044 = smul.addr %s1043, 8
        %s1045 = scalar_lea.vmem %s15, %s1044
        %s1046 = smul.u32 2, %s26
        %v1048 = vld [vmem:[%s995] sm:$0xf]
        %v1049 = vld [vmem:[%s995 + $0x4] sm:$0xf]
        %s1050 = scalar_lea.vmem %s995, 8 [#allocation4]
        %v1051 = vld [vmem:[%s1050] sm:$0xf]
        %v1052 = vld [vmem:[%s1050 + $0x4] sm:$0xf]
        %s1053 = scalar_lea.vmem %s995, 64 [#allocation4]
        %v1054 = vld [vmem:[%s1053] sm:$0xf]
        %v1055 = vld [vmem:[%s1053 + $0x4] sm:$0xf]
        %s1056 = scalar_lea.vmem %s995, 72 [#allocation4]
        %v1057 = vld [vmem:[%s1056] sm:$0xf]
        %v1058 = vld [vmem:[%s1056 + $0x4] sm:$0xf]
        %v1061 = vunpack.c.l.b16 %v1048
        %v1062 = vunpack.c.l.b16 %v1049
        %v1063 = vpack.c.b16 %v1062, %v1061
        %v1066 = vunpack.c.l.b16 %v1051
        %v1067 = vunpack.c.l.b16 %v1052
        %v1068 = vpack.c.b16 %v1067, %v1066
        %1069 = vrot.lane.b32.xlu0 %v1068, 48
        %v1070 = vpop.permute.xlu0 %1069
        %v1073 = vunpack.c.l.b16 %v1054
        %v1074 = vunpack.c.l.b16 %v1055
        %v1075 = vpack.c.b16 %v1074, %v1073
        %1076 = vrot.lane.b32.xlu0 %v1075, 96
        %v1077 = vpop.permute.xlu0 %1076
        %v1080 = vunpack.c.l.b16 %v1057
        %v1081 = vunpack.c.l.b16 %v1058
        %v1082 = vpack.c.b16 %v1081, %v1080
        %1083 = vrot.lane.b32.xlu0 %v1082, 16
        %v1084 = vpop.permute.xlu0 %1083
        %vm1085 = vcmask 392192
        %v1088 = vsel %vm1085, %v1063, %v1070
        %vm1089 = vcmask 785408
        %v1091 = vsel %vm1089, %v1088, %v1077
        %vm1093 = vcmask 130048
        %v1095 = vsel %vm1093, %v1077, %v1084
        %1097 = vst [vmem:[#allocation2] sm:$0xff] %v1091
        %vm1098 = vcmask 523264
        %1099 = vst.msk [vmem:[#allocation2 + $0x8] sm:$0xff] %vm1098, %v1095
        %v1100 = vld [vmem:[%s1050] sm:$0xf]
        %v1101 = vld [vmem:[%s1050 + $0x4] sm:$0xf]
        %s1102 = scalar_lea.vmem %s995, 16 [#allocation4]
        %v1103 = vld [vmem:[%s1102] sm:$0xf]
        %v1104 = vld [vmem:[%s1102 + $0x4] sm:$0xf]
        %v1105 = vld [vmem:[%s1056] sm:$0xf]
        %v1106 = vld [vmem:[%s1056 + $0x4] sm:$0xf]
        %s1107 = scalar_lea.vmem %s995, 80 [#allocation4]
        %v1108 = vld [vmem:[%s1107] sm:$0xf]
        %v1109 = vld [vmem:[%s1107 + $0x4] sm:$0xf]
        %v1112 = vunpack.c.l.b16 %v1100
        %v1113 = vunpack.c.l.b16 %v1101
        %v1114 = vpack.c.b16 %v1113, %v1112
        %v1117 = vunpack.c.l.b16 %v1103
        %v1118 = vunpack.c.l.b16 %v1104
        %v1119 = vpack.c.b16 %v1118, %v1117
        %1120 = vrot.lane.b32.xlu0 %v1119, 48
        %v1121 = vpop.permute.xlu0 %1120
        %v1124 = vunpack.c.l.b16 %v1105
        %v1125 = vunpack.c.l.b16 %v1106
        %v1126 = vpack.c.b16 %v1125, %v1124
        %1127 = vrot.lane.b32.xlu0 %v1126, 96
        %v1128 = vpop.permute.xlu0 %1127
        %v1131 = vunpack.c.l.b16 %v1108
        %v1132 = vunpack.c.l.b16 %v1109
        %v1133 = vpack.c.b16 %v1132, %v1131
        %1134 = vrot.lane.b32.xlu0 %v1133, 16
        %v1135 = vpop.permute.xlu0 %1134
        %v1138 = vsel %vm1085, %v1114, %v1121
        %v1140 = vsel %vm1089, %v1138, %v1128
        %v1143 = vsel %vm1093, %v1128, %v1135
        %1145 = vst [vmem:[#allocation2 + $0x10] sm:$0xff] %v1140
        %1146 = vst.msk [vmem:[#allocation2 + $0x18] sm:$0xff] %vm1098, %v1143
        %v1147 = vld [vmem:[%s1102] sm:$0xf]
        %v1148 = vld [vmem:[%s1102 + $0x4] sm:$0xf]
        %s1149 = scalar_lea.vmem %s995, 24 [#allocation4]
        %v1150 = vld [vmem:[%s1149] sm:$0xf]
        %v1151 = vld [vmem:[%s1149 + $0x4] sm:$0xf]
        %v1152 = vld [vmem:[%s1107] sm:$0xf]
        %v1153 = vld [vmem:[%s1107 + $0x4] sm:$0xf]
        %s1154 = scalar_lea.vmem %s995, 88 [#allocation4]
        %v1155 = vld [vmem:[%s1154] sm:$0xf]
        %v1156 = vld [vmem:[%s1154 + $0x4] sm:$0xf]
        %v1159 = vunpack.c.l.b16 %v1147
        %v1160 = vunpack.c.l.b16 %v1148
        %v1161 = vpack.c.b16 %v1160, %v1159
        %v1164 = vunpack.c.l.b16 %v1150
        %v1165 = vunpack.c.l.b16 %v1151
        %v1166 = vpack.c.b16 %v1165, %v1164
        %1167 = vrot.lane.b32.xlu0 %v1166, 48
        %v1168 = vpop.permute.xlu0 %1167
        %v1171 = vunpack.c.l.b16 %v1152
        %v1172 = vunpack.c.l.b16 %v1153
        %v1173 = vpack.c.b16 %v1172, %v1171
        %1174 = vrot.lane.b32.xlu0 %v1173, 96
        %v1175 = vpop.permute.xlu0 %1174
        %v1178 = vunpack.c.l.b16 %v1155
        %v1179 = vunpack.c.l.b16 %v1156
        %v1180 = vpack.c.b16 %v1179, %v1178
        %1181 = vrot.lane.b32.xlu0 %v1180, 16
        %v1182 = vpop.permute.xlu0 %1181
        %v1185 = vsel %vm1085, %v1161, %v1168
        %v1187 = vsel %vm1089, %v1185, %v1175
        %v1190 = vsel %vm1093, %v1175, %v1182
        %1192 = vst [vmem:[#allocation2 + $0x20] sm:$0xff] %v1187
        %1193 = vst.msk [vmem:[#allocation2 + $0x28] sm:$0xff] %vm1098, %v1190
        %v1194 = vld [vmem:[%s1149] sm:$0xf]
        %v1195 = vld [vmem:[%s1149 + $0x4] sm:$0xf]
        %s1196 = scalar_lea.vmem %s995, 32 [#allocation4]
        %v1197 = vld [vmem:[%s1196] sm:$0xf]
        %v1198 = vld [vmem:[%s1196 + $0x4] sm:$0xf]
        %v1199 = vld [vmem:[%s1154] sm:$0xf]
        %v1200 = vld [vmem:[%s1154 + $0x4] sm:$0xf]
        %s1201 = scalar_lea.vmem %s995, 96 [#allocation4]
        %v1202 = vld [vmem:[%s1201] sm:$0xf]
        %v1203 = vld [vmem:[%s1201 + $0x4] sm:$0xf]
        %v1206 = vunpack.c.l.b16 %v1194
        %v1207 = vunpack.c.l.b16 %v1195
        %v1208 = vpack.c.b16 %v1207, %v1206
        %v1211 = vunpack.c.l.b16 %v1197
        %v1212 = vunpack.c.l.b16 %v1198
        %v1213 = vpack.c.b16 %v1212, %v1211
        %1214 = vrot.lane.b32.xlu0 %v1213, 48
        %v1215 = vpop.permute.xlu0 %1214
        %v1218 = vunpack.c.l.b16 %v1199
        %v1219 = vunpack.c.l.b16 %v1200
        %v1220 = vpack.c.b16 %v1219, %v1218
        %1221 = vrot.lane.b32.xlu0 %v1220, 96
        %v1222 = vpop.permute.xlu0 %1221
        %v1225 = vunpack.c.l.b16 %v1202
        %v1226 = vunpack.c.l.b16 %v1203
        %v1227 = vpack.c.b16 %v1226, %v1225
        %1228 = vrot.lane.b32.xlu0 %v1227, 16
        %v1229 = vpop.permute.xlu0 %1228
        %v1232 = vsel %vm1085, %v1208, %v1215
        %v1234 = vsel %vm1089, %v1232, %v1222
        %v1237 = vsel %vm1093, %v1222, %v1229
        %1239 = vst [vmem:[#allocation2 + $0x30] sm:$0xff] %v1234
        %1240 = vst.msk [vmem:[#allocation2 + $0x38] sm:$0xff] %vm1098, %v1237
        %v1241 = vld [vmem:[%s1196] sm:$0xf]
        %v1242 = vld [vmem:[%s1196 + $0x4] sm:$0xf]
        %s1243 = scalar_lea.vmem %s995, 40 [#allocation4]
        %v1244 = vld [vmem:[%s1243] sm:$0xf]
        %v1245 = vld [vmem:[%s1243 + $0x4] sm:$0xf]
        %v1246 = vld [vmem:[%s1201] sm:$0xf]
        %v1247 = vld [vmem:[%s1201 + $0x4] sm:$0xf]
        %s1248 = scalar_lea.vmem %s995, 104 [#allocation4]
        %v1249 = vld [vmem:[%s1248] sm:$0xf]
        %v1250 = vld [vmem:[%s1248 + $0x4] sm:$0xf]
        %v1253 = vunpack.c.l.b16 %v1241
        %v1254 = vunpack.c.l.b16 %v1242
        %v1255 = vpack.c.b16 %v1254, %v1253
        %v1258 = vunpack.c.l.b16 %v1244
        %v1259 = vunpack.c.l.b16 %v1245
        %v1260 = vpack.c.b16 %v1259, %v1258
        %1261 = vrot.lane.b32.xlu0 %v1260, 48
        %v1262 = vpop.permute.xlu0 %1261
        %v1265 = vunpack.c.l.b16 %v1246
        %v1266 = vunpack.c.l.b16 %v1247
        %v1267 = vpack.c.b16 %v1266, %v1265
        %1268 = vrot.lane.b32.xlu0 %v1267, 96
        %v1269 = vpop.permute.xlu0 %1268
        %v1272 = vunpack.c.l.b16 %v1249
        %v1273 = vunpack.c.l.b16 %v1250
        %v1274 = vpack.c.b16 %v1273, %v1272
        %1275 = vrot.lane.b32.xlu0 %v1274, 16
        %v1276 = vpop.permute.xlu0 %1275
        %v1279 = vsel %vm1085, %v1255, %v1262
        %v1281 = vsel %vm1089, %v1279, %v1269
        %v1284 = vsel %vm1093, %v1269, %v1276
        %1286 = vst [vmem:[#allocation2 + $0x40] sm:$0xff] %v1281
        %1287 = vst.msk [vmem:[#allocation2 + $0x48] sm:$0xff] %vm1098, %v1284
        %v1288 = vld [vmem:[%s1243] sm:$0xf]
        %v1289 = vld [vmem:[%s1243 + $0x4] sm:$0xf]
        %s1290 = scalar_lea.vmem %s995, 48 [#allocation4]
        %v1291 = vld [vmem:[%s1290] sm:$0xf]
        %v1292 = vld [vmem:[%s1290 + $0x4] sm:$0xf]
        %v1293 = vld [vmem:[%s1248] sm:$0xf]
        %v1294 = vld [vmem:[%s1248 + $0x4] sm:$0xf]
        %s1295 = scalar_lea.vmem %s995, 112 [#allocation4]
        %v1296 = vld [vmem:[%s1295] sm:$0xf]
        %v1297 = vld [vmem:[%s1295 + $0x4] sm:$0xf]
        %v1300 = vunpack.c.l.b16 %v1288
        %v1301 = vunpack.c.l.b16 %v1289
        %v1302 = vpack.c.b16 %v1301, %v1300
        %v1305 = vunpack.c.l.b16 %v1291
        %v1306 = vunpack.c.l.b16 %v1292
        %v1307 = vpack.c.b16 %v1306, %v1305
        %1308 = vrot.lane.b32.xlu0 %v1307, 48
        %v1309 = vpop.permute.xlu0 %1308
        %v1312 = vunpack.c.l.b16 %v1293
        %v1313 = vunpack.c.l.b16 %v1294
        %v1314 = vpack.c.b16 %v1313, %v1312
        %1315 = vrot.lane.b32.xlu0 %v1314, 96
        %v1316 = vpop.permute.xlu0 %1315
        %v1319 = vunpack.c.l.b16 %v1296
        %v1320 = vunpack.c.l.b16 %v1297
        %v1321 = vpack.c.b16 %v1320, %v1319
        %1322 = vrot.lane.b32.xlu0 %v1321, 16
        %v1323 = vpop.permute.xlu0 %1322
        %v1326 = vsel %vm1085, %v1302, %v1309
        %v1328 = vsel %vm1089, %v1326, %v1316
        %v1331 = vsel %vm1093, %v1316, %v1323
        %1333 = vst [vmem:[#allocation2 + $0x50] sm:$0xff] %v1328
        %1334 = vst.msk [vmem:[#allocation2 + $0x58] sm:$0xff] %vm1098, %v1331
        %v1335 = vld [vmem:[%s1290] sm:$0xf]
        %v1336 = vld [vmem:[%s1290 + $0x4] sm:$0xf]
        %s1337 = scalar_lea.vmem %s995, 56 [#allocation4]
        %v1338 = vld [vmem:[%s1337] sm:$0xf]
        %v1339 = vld [vmem:[%s1337 + $0x4] sm:$0xf]
        %v1340 = vld [vmem:[%s1295] sm:$0xf]
        %v1341 = vld [vmem:[%s1295 + $0x4] sm:$0xf]
        %s1342 = scalar_lea.vmem %s995, 120 [#allocation4]
        %v1343 = vld [vmem:[%s1342] sm:$0xf]
        %v1344 = vld [vmem:[%s1342 + $0x4] sm:$0xf]
        %v1347 = vunpack.c.l.b16 %v1335
        %v1348 = vunpack.c.l.b16 %v1336
        %v1349 = vpack.c.b16 %v1348, %v1347
        %v1352 = vunpack.c.l.b16 %v1338
        %v1353 = vunpack.c.l.b16 %v1339
        %v1354 = vpack.c.b16 %v1353, %v1352
        %1355 = vrot.lane.b32.xlu0 %v1354, 48
        %v1356 = vpop.permute.xlu0 %1355
        %v1359 = vunpack.c.l.b16 %v1340
        %v1360 = vunpack.c.l.b16 %v1341
        %v1361 = vpack.c.b16 %v1360, %v1359
        %1362 = vrot.lane.b32.xlu0 %v1361, 96
        %v1363 = vpop.permute.xlu0 %1362
        %v1366 = vunpack.c.l.b16 %v1343
        %v1367 = vunpack.c.l.b16 %v1344
        %v1368 = vpack.c.b16 %v1367, %v1366
        %1369 = vrot.lane.b32.xlu0 %v1368, 16
        %v1370 = vpop.permute.xlu0 %1369
        %v1373 = vsel %vm1085, %v1349, %v1356
        %v1375 = vsel %vm1089, %v1373, %v1363
        %v1378 = vsel %vm1093, %v1363, %v1370
        %1380 = vst [vmem:[#allocation2 + $0x60] sm:$0xff] %v1375
        %1381 = vst.msk [vmem:[#allocation2 + $0x68] sm:$0xff] %vm1098, %v1378
        %v1382 = vld [vmem:[%s1053] sm:$0xf]
        %v1383 = vld [vmem:[%s1053 + $0x4] sm:$0xf]
        %v1384 = vld [vmem:[%s1056] sm:$0xf]
        %v1385 = vld [vmem:[%s1056 + $0x4] sm:$0xf]
        %s1386 = scalar_lea.vmem %s995, 128 [#allocation4]
        %v1387 = vld [vmem:[%s1386] sm:$0xf]
        %v1388 = vld [vmem:[%s1386 + $0x4] sm:$0xf]
        %s1389 = scalar_lea.vmem %s995, 136 [#allocation4]
        %v1390 = vld [vmem:[%s1389] sm:$0xf]
        %v1391 = vld [vmem:[%s1389 + $0x4] sm:$0xf]
        %v1394 = vunpack.c.l.b16 %v1382
        %v1395 = vunpack.c.l.b16 %v1383
        %v1396 = vpack.c.b16 %v1395, %v1394
        %v1399 = vunpack.c.l.b16 %v1384
        %v1400 = vunpack.c.l.b16 %v1385
        %v1401 = vpack.c.b16 %v1400, %v1399
        %1402 = vrot.lane.b32.xlu0 %v1401, 48
        %v1403 = vpop.permute.xlu0 %1402
        %v1406 = vunpack.c.l.b16 %v1387
        %v1407 = vunpack.c.l.b16 %v1388
        %v1408 = vpack.c.b16 %v1407, %v1406
        %1409 = vrot.lane.b32.xlu0 %v1408, 96
        %v1410 = vpop.permute.xlu0 %1409
        %v1413 = vunpack.c.l.b16 %v1390
        %v1414 = vunpack.c.l.b16 %v1391
        %v1415 = vpack.c.b16 %v1414, %v1413
        %1416 = vrot.lane.b32.xlu0 %v1415, 16
        %v1417 = vpop.permute.xlu0 %1416
        %v1420 = vsel %vm1085, %v1396, %v1403
        %v1422 = vsel %vm1089, %v1420, %v1410
        %v1425 = vsel %vm1093, %v1410, %v1417
        %1427 = vst [vmem:[#allocation2 + $0x70] sm:$0xff] %v1422
        %1428 = vst.msk [vmem:[#allocation2 + $0x78] sm:$0xff] %vm1098, %v1425
        %v1429 = vld [vmem:[%s1056] sm:$0xf]
        %v1430 = vld [vmem:[%s1056 + $0x4] sm:$0xf]
        %v1431 = vld [vmem:[%s1107] sm:$0xf]
        %v1432 = vld [vmem:[%s1107 + $0x4] sm:$0xf]
        %v1433 = vld [vmem:[%s1389] sm:$0xf]
        %v1434 = vld [vmem:[%s1389 + $0x4] sm:$0xf]
        %s1435 = scalar_lea.vmem %s995, 144 [#allocation4]
        %v1436 = vld [vmem:[%s1435] sm:$0xf]
        %v1437 = vld [vmem:[%s1435 + $0x4] sm:$0xf]
        %v1440 = vunpack.c.l.b16 %v1429
        %v1441 = vunpack.c.l.b16 %v1430
        %v1442 = vpack.c.b16 %v1441, %v1440
        %v1445 = vunpack.c.l.b16 %v1431
        %v1446 = vunpack.c.l.b16 %v1432
        %v1447 = vpack.c.b16 %v1446, %v1445
        %1448 = vrot.lane.b32.xlu0 %v1447, 48
        %v1449 = vpop.permute.xlu0 %1448
        %v1452 = vunpack.c.l.b16 %v1433
        %v1453 = vunpack.c.l.b16 %v1434
        %v1454 = vpack.c.b16 %v1453, %v1452
        %1455 = vrot.lane.b32.xlu0 %v1454, 96
        %v1456 = vpop.permute.xlu0 %1455
        %v1459 = vunpack.c.l.b16 %v1436
        %v1460 = vunpack.c.l.b16 %v1437
        %v1461 = vpack.c.b16 %v1460, %v1459
        %1462 = vrot.lane.b32.xlu0 %v1461, 16
        %v1463 = vpop.permute.xlu0 %1462
        %v1466 = vsel %vm1085, %v1442, %v1449
        %v1468 = vsel %vm1089, %v1466, %v1456
        %v1471 = vsel %vm1093, %v1456, %v1463
        %1473 = vst [vmem:[#allocation2 + $0x80] sm:$0xff] %v1468
        %1474 = vst.msk [vmem:[#allocation2 + $0x88] sm:$0xff] %vm1098, %v1471
        %v1475 = vld [vmem:[%s1107] sm:$0xf]
        %v1476 = vld [vmem:[%s1107 + $0x4] sm:$0xf]
        %v1477 = vld [vmem:[%s1154] sm:$0xf]
        %v1478 = vld [vmem:[%s1154 + $0x4] sm:$0xf]
        %v1479 = vld [vmem:[%s1435] sm:$0xf]
        %v1480 = vld [vmem:[%s1435 + $0x4] sm:$0xf]
        %s1481 = scalar_lea.vmem %s995, 152 [#allocation4]
        %v1482 = vld [vmem:[%s1481] sm:$0xf]
        %v1483 = vld [vmem:[%s1481 + $0x4] sm:$0xf]
        %v1486 = vunpack.c.l.b16 %v1475
        %v1487 = vunpack.c.l.b16 %v1476
        %v1488 = vpack.c.b16 %v1487, %v1486
        %v1491 = vunpack.c.l.b16 %v1477
        %v1492 = vunpack.c.l.b16 %v1478
        %v1493 = vpack.c.b16 %v1492, %v1491
        %1494 = vrot.lane.b32.xlu0 %v1493, 48
        %v1495 = vpop.permute.xlu0 %1494
        %v1498 = vunpack.c.l.b16 %v1479
        %v1499 = vunpack.c.l.b16 %v1480
        %v1500 = vpack.c.b16 %v1499, %v1498
        %1501 = vrot.lane.b32.xlu0 %v1500, 96
        %v1502 = vpop.permute.xlu0 %1501
        %v1505 = vunpack.c.l.b16 %v1482
        %v1506 = vunpack.c.l.b16 %v1483
        %v1507 = vpack.c.b16 %v1506, %v1505
        %1508 = vrot.lane.b32.xlu0 %v1507, 16
        %v1509 = vpop.permute.xlu0 %1508
        %v1512 = vsel %vm1085, %v1488, %v1495
        %v1514 = vsel %vm1089, %v1512, %v1502
        %v1517 = vsel %vm1093, %v1502, %v1509
        %1519 = vst [vmem:[#allocation2 + $0x90] sm:$0xff] %v1514
        %1520 = vst.msk [vmem:[#allocation2 + $0x98] sm:$0xff] %vm1098, %v1517
        %v1521 = vld [vmem:[%s1154] sm:$0xf]
        %v1522 = vld [vmem:[%s1154 + $0x4] sm:$0xf]
        %v1523 = vld [vmem:[%s1201] sm:$0xf]
        %v1524 = vld [vmem:[%s1201 + $0x4] sm:$0xf]
        %v1525 = vld [vmem:[%s1481] sm:$0xf]
        %v1526 = vld [vmem:[%s1481 + $0x4] sm:$0xf]
        %s1527 = scalar_lea.vmem %s995, 160 [#allocation4]
        %v1528 = vld [vmem:[%s1527] sm:$0xf]
        %v1529 = vld [vmem:[%s1527 + $0x4] sm:$0xf]
        %v1532 = vunpack.c.l.b16 %v1521
        %v1533 = vunpack.c.l.b16 %v1522
        %v1534 = vpack.c.b16 %v1533, %v1532
        %v1537 = vunpack.c.l.b16 %v1523
        %v1538 = vunpack.c.l.b16 %v1524
        %v1539 = vpack.c.b16 %v1538, %v1537
        %1540 = vrot.lane.b32.xlu0 %v1539, 48
        %v1541 = vpop.permute.xlu0 %1540
        %v1544 = vunpack.c.l.b16 %v1525
        %v1545 = vunpack.c.l.b16 %v1526
        %v1546 = vpack.c.b16 %v1545, %v1544
        %1547 = vrot.lane.b32.xlu0 %v1546, 96
        %v1548 = vpop.permute.xlu0 %1547
        %v1551 = vunpack.c.l.b16 %v1528
        %v1552 = vunpack.c.l.b16 %v1529
        %v1553 = vpack.c.b16 %v1552, %v1551
        %1554 = vrot.lane.b32.xlu0 %v1553, 16
        %v1555 = vpop.permute.xlu0 %1554
        %v1558 = vsel %vm1085, %v1534, %v1541
        %v1560 = vsel %vm1089, %v1558, %v1548
        %v1563 = vsel %vm1093, %v1548, %v1555
        %1565 = vst [vmem:[#allocation2 + $0xa0] sm:$0xff] %v1560
        %1566 = vst.msk [vmem:[#allocation2 + $0xa8] sm:$0xff] %vm1098, %v1563
        %v1567 = vld [vmem:[%s1201] sm:$0xf]
        %v1568 = vld [vmem:[%s1201 + $0x4] sm:$0xf]
        %v1569 = vld [vmem:[%s1248] sm:$0xf]
        %v1570 = vld [vmem:[%s1248 + $0x4] sm:$0xf]
        %v1571 = vld [vmem:[%s1527] sm:$0xf]
        %v1572 = vld [vmem:[%s1527 + $0x4] sm:$0xf]
        %s1573 = scalar_lea.vmem %s995, 168 [#allocation4]
        %v1574 = vld [vmem:[%s1573] sm:$0xf]
        %v1575 = vld [vmem:[%s1573 + $0x4] sm:$0xf]
        %v1578 = vunpack.c.l.b16 %v1567
        %v1579 = vunpack.c.l.b16 %v1568
        %v1580 = vpack.c.b16 %v1579, %v1578
        %v1583 = vunpack.c.l.b16 %v1569
        %v1584 = vunpack.c.l.b16 %v1570
        %v1585 = vpack.c.b16 %v1584, %v1583
        %1586 = vrot.lane.b32.xlu0 %v1585, 48
        %v1587 = vpop.permute.xlu0 %1586
        %v1590 = vunpack.c.l.b16 %v1571
        %v1591 = vunpack.c.l.b16 %v1572
        %v1592 = vpack.c.b16 %v1591, %v1590
        %1593 = vrot.lane.b32.xlu0 %v1592, 96
        %v1594 = vpop.permute.xlu0 %1593
        %v1597 = vunpack.c.l.b16 %v1574
        %v1598 = vunpack.c.l.b16 %v1575
        %v1599 = vpack.c.b16 %v1598, %v1597
        %1600 = vrot.lane.b32.xlu0 %v1599, 16
        %v1601 = vpop.permute.xlu0 %1600
        %v1604 = vsel %vm1085, %v1580, %v1587
        %v1606 = vsel %vm1089, %v1604, %v1594
        %v1609 = vsel %vm1093, %v1594, %v1601
        %1611 = vst [vmem:[#allocation2 + $0xb0] sm:$0xff] %v1606
        %1612 = vst.msk [vmem:[#allocation2 + $0xb8] sm:$0xff] %vm1098, %v1609
        %v1613 = vld [vmem:[%s1248] sm:$0xf]
        %v1614 = vld [vmem:[%s1248 + $0x4] sm:$0xf]
        %v1615 = vld [vmem:[%s1295] sm:$0xf]
        %v1616 = vld [vmem:[%s1295 + $0x4] sm:$0xf]
        %v1617 = vld [vmem:[%s1573] sm:$0xf]
        %v1618 = vld [vmem:[%s1573 + $0x4] sm:$0xf]
        %s1619 = scalar_lea.vmem %s995, 176 [#allocation4]
        %v1620 = vld [vmem:[%s1619] sm:$0xf]
        %v1621 = vld [vmem:[%s1619 + $0x4] sm:$0xf]
        %v1624 = vunpack.c.l.b16 %v1613
        %v1625 = vunpack.c.l.b16 %v1614
        %v1626 = vpack.c.b16 %v1625, %v1624
        %v1629 = vunpack.c.l.b16 %v1615
        %v1630 = vunpack.c.l.b16 %v1616
        %v1631 = vpack.c.b16 %v1630, %v1629
        %1632 = vrot.lane.b32.xlu0 %v1631, 48
        %v1633 = vpop.permute.xlu0 %1632
        %v1636 = vunpack.c.l.b16 %v1617
        %v1637 = vunpack.c.l.b16 %v1618
        %v1638 = vpack.c.b16 %v1637, %v1636
        %1639 = vrot.lane.b32.xlu0 %v1638, 96
        %v1640 = vpop.permute.xlu0 %1639
        %v1643 = vunpack.c.l.b16 %v1620
        %v1644 = vunpack.c.l.b16 %v1621
        %v1645 = vpack.c.b16 %v1644, %v1643
        %1646 = vrot.lane.b32.xlu0 %v1645, 16
        %v1647 = vpop.permute.xlu0 %1646
        %v1650 = vsel %vm1085, %v1626, %v1633
        %v1652 = vsel %vm1089, %v1650, %v1640
        %v1655 = vsel %vm1093, %v1640, %v1647
        %1657 = vst [vmem:[#allocation2 + $0xc0] sm:$0xff] %v1652
        %1658 = vst.msk [vmem:[#allocation2 + $0xc8] sm:$0xff] %vm1098, %v1655
        %v1659 = vld [vmem:[%s1295] sm:$0xf]
        %v1660 = vld [vmem:[%s1295 + $0x4] sm:$0xf]
        %v1661 = vld [vmem:[%s1342] sm:$0xf]
        %v1662 = vld [vmem:[%s1342 + $0x4] sm:$0xf]
        %v1663 = vld [vmem:[%s1619] sm:$0xf]
        %v1664 = vld [vmem:[%s1619 + $0x4] sm:$0xf]
        %s1665 = scalar_lea.vmem %s995, 184 [#allocation4]
        %v1666 = vld [vmem:[%s1665] sm:$0xf]
        %v1667 = vld [vmem:[%s1665 + $0x4] sm:$0xf]
        %v1670 = vunpack.c.l.b16 %v1659
        %v1671 = vunpack.c.l.b16 %v1660
        %v1672 = vpack.c.b16 %v1671, %v1670
        %v1675 = vunpack.c.l.b16 %v1661
        %v1676 = vunpack.c.l.b16 %v1662
        %v1677 = vpack.c.b16 %v1676, %v1675
        %1678 = vrot.lane.b32.xlu0 %v1677, 48
        %v1679 = vpop.permute.xlu0 %1678
        %v1682 = vunpack.c.l.b16 %v1663
        %v1683 = vunpack.c.l.b16 %v1664
        %v1684 = vpack.c.b16 %v1683, %v1682
        %1685 = vrot.lane.b32.xlu0 %v1684, 96
        %v1686 = vpop.permute.xlu0 %1685
        %v1689 = vunpack.c.l.b16 %v1666
        %v1690 = vunpack.c.l.b16 %v1667
        %v1691 = vpack.c.b16 %v1690, %v1689
        %1692 = vrot.lane.b32.xlu0 %v1691, 16
        %v1693 = vpop.permute.xlu0 %1692
        %v1696 = vsel %vm1085, %v1672, %v1679
        %v1698 = vsel %vm1089, %v1696, %v1686
        %v1701 = vsel %vm1093, %v1686, %v1693
        %1703 = vst [vmem:[#allocation2 + $0xd0] sm:$0xff] %v1698
        %1704 = vst.msk [vmem:[#allocation2 + $0xd8] sm:$0xff] %vm1098, %v1701
        %v1705 = vld [vmem:[%s1386] sm:$0xf]
        %v1706 = vld [vmem:[%s1386 + $0x4] sm:$0xf]
        %v1707 = vld [vmem:[%s1389] sm:$0xf]
        %v1708 = vld [vmem:[%s1389 + $0x4] sm:$0xf]
        %s1709 = scalar_lea.vmem %s995, 192 [#allocation4]
        %v1710 = vld [vmem:[%s1709] sm:$0xf]
        %v1711 = vld [vmem:[%s1709 + $0x4] sm:$0xf]
        %s1712 = scalar_lea.vmem %s995, 200 [#allocation4]
        %v1713 = vld [vmem:[%s1712] sm:$0xf]
        %v1714 = vld [vmem:[%s1712 + $0x4] sm:$0xf]
        %v1717 = vunpack.c.l.b16 %v1705
        %v1718 = vunpack.c.l.b16 %v1706
        %v1719 = vpack.c.b16 %v1718, %v1717
        %v1722 = vunpack.c.l.b16 %v1707
        %v1723 = vunpack.c.l.b16 %v1708
        %v1724 = vpack.c.b16 %v1723, %v1722
        %1725 = vrot.lane.b32.xlu0 %v1724, 48
        %v1726 = vpop.permute.xlu0 %1725
        %v1729 = vunpack.c.l.b16 %v1710
        %v1730 = vunpack.c.l.b16 %v1711
        %v1731 = vpack.c.b16 %v1730, %v1729
        %1732 = vrot.lane.b32.xlu0 %v1731, 96
        %v1733 = vpop.permute.xlu0 %1732
        %v1736 = vunpack.c.l.b16 %v1713
        %v1737 = vunpack.c.l.b16 %v1714
        %v1738 = vpack.c.b16 %v1737, %v1736
        %1739 = vrot.lane.b32.xlu0 %v1738, 16
        %v1740 = vpop.permute.xlu0 %1739
        %v1743 = vsel %vm1085, %v1719, %v1726
        %v1745 = vsel %vm1089, %v1743, %v1733
        %v1748 = vsel %vm1093, %v1733, %v1740
        %1750 = vst [vmem:[#allocation2 + $0xe0] sm:$0xff] %v1745
        %1751 = vst.msk [vmem:[#allocation2 + $0xe8] sm:$0xff] %vm1098, %v1748
        %v1752 = vld [vmem:[%s1389] sm:$0xf]
        %v1753 = vld [vmem:[%s1389 + $0x4] sm:$0xf]
        %v1754 = vld [vmem:[%s1435] sm:$0xf]
        %v1755 = vld [vmem:[%s1435 + $0x4] sm:$0xf]
        %v1756 = vld [vmem:[%s1712] sm:$0xf]
        %v1757 = vld [vmem:[%s1712 + $0x4] sm:$0xf]
        %s1758 = scalar_lea.vmem %s995, 208 [#allocation4]
        %v1759 = vld [vmem:[%s1758] sm:$0xf]
        %v1760 = vld [vmem:[%s1758 + $0x4] sm:$0xf]
        %v1763 = vunpack.c.l.b16 %v1752
        %v1764 = vunpack.c.l.b16 %v1753
        %v1765 = vpack.c.b16 %v1764, %v1763
        %v1768 = vunpack.c.l.b16 %v1754
        %v1769 = vunpack.c.l.b16 %v1755
        %v1770 = vpack.c.b16 %v1769, %v1768
        %1771 = vrot.lane.b32.xlu0 %v1770, 48
        %v1772 = vpop.permute.xlu0 %1771
        %v1775 = vunpack.c.l.b16 %v1756
        %v1776 = vunpack.c.l.b16 %v1757
        %v1777 = vpack.c.b16 %v1776, %v1775
        %1778 = vrot.lane.b32.xlu0 %v1777, 96
        %v1779 = vpop.permute.xlu0 %1778
        %v1782 = vunpack.c.l.b16 %v1759
        %v1783 = vunpack.c.l.b16 %v1760
        %v1784 = vpack.c.b16 %v1783, %v1782
        %1785 = vrot.lane.b32.xlu0 %v1784, 16
        %v1786 = vpop.permute.xlu0 %1785
        %v1789 = vsel %vm1085, %v1765, %v1772
        %v1791 = vsel %vm1089, %v1789, %v1779
        %v1794 = vsel %vm1093, %v1779, %v1786
        %1796 = vst [vmem:[#allocation2 + $0xf0] sm:$0xff] %v1791
        %1797 = vst.msk [vmem:[#allocation2 + $0xf8] sm:$0xff] %vm1098, %v1794
        %v1798 = vld [vmem:[%s1435] sm:$0xf]
        %v1799 = vld [vmem:[%s1435 + $0x4] sm:$0xf]
        %v1800 = vld [vmem:[%s1481] sm:$0xf]
        %v1801 = vld [vmem:[%s1481 + $0x4] sm:$0xf]
        %v1802 = vld [vmem:[%s1758] sm:$0xf]
        %v1803 = vld [vmem:[%s1758 + $0x4] sm:$0xf]
        %s1804 = scalar_lea.vmem %s995, 216 [#allocation4]
        %v1805 = vld [vmem:[%s1804] sm:$0xf]
        %v1806 = vld [vmem:[%s1804 + $0x4] sm:$0xf]
        %v1809 = vunpack.c.l.b16 %v1798
        %v1810 = vunpack.c.l.b16 %v1799
        %v1811 = vpack.c.b16 %v1810, %v1809
        %v1814 = vunpack.c.l.b16 %v1800
        %v1815 = vunpack.c.l.b16 %v1801
        %v1816 = vpack.c.b16 %v1815, %v1814
        %1817 = vrot.lane.b32.xlu0 %v1816, 48
        %v1818 = vpop.permute.xlu0 %1817
        %v1821 = vunpack.c.l.b16 %v1802
        %v1822 = vunpack.c.l.b16 %v1803
        %v1823 = vpack.c.b16 %v1822, %v1821
        %1824 = vrot.lane.b32.xlu0 %v1823, 96
        %v1825 = vpop.permute.xlu0 %1824
        %v1828 = vunpack.c.l.b16 %v1805
        %v1829 = vunpack.c.l.b16 %v1806
        %v1830 = vpack.c.b16 %v1829, %v1828
        %1831 = vrot.lane.b32.xlu0 %v1830, 16
        %v1832 = vpop.permute.xlu0 %1831
        %v1835 = vsel %vm1085, %v1811, %v1818
        %v1837 = vsel %vm1089, %v1835, %v1825
        %v1840 = vsel %vm1093, %v1825, %v1832
        %1842 = vst [vmem:[#allocation2 + $0x100] sm:$0xff] %v1837
        %1843 = vst.msk [vmem:[#allocation2 + $0x108] sm:$0xff] %vm1098, %v1840
        %v1844 = vld [vmem:[%s1481] sm:$0xf]
        %v1845 = vld [vmem:[%s1481 + $0x4] sm:$0xf]
        %v1846 = vld [vmem:[%s1527] sm:$0xf]
        %v1847 = vld [vmem:[%s1527 + $0x4] sm:$0xf]
        %v1848 = vld [vmem:[%s1804] sm:$0xf]
        %v1849 = vld [vmem:[%s1804 + $0x4] sm:$0xf]
        %s1850 = scalar_lea.vmem %s995, 224 [#allocation4]
        %v1851 = vld [vmem:[%s1850] sm:$0xf]
        %v1852 = vld [vmem:[%s1850 + $0x4] sm:$0xf]
        %v1855 = vunpack.c.l.b16 %v1844
        %v1856 = vunpack.c.l.b16 %v1845
        %v1857 = vpack.c.b16 %v1856, %v1855
        %v1860 = vunpack.c.l.b16 %v1846
        %v1861 = vunpack.c.l.b16 %v1847
        %v1862 = vpack.c.b16 %v1861, %v1860
        %1863 = vrot.lane.b32.xlu0 %v1862, 48
        %v1864 = vpop.permute.xlu0 %1863
        %v1867 = vunpack.c.l.b16 %v1848
        %v1868 = vunpack.c.l.b16 %v1849
        %v1869 = vpack.c.b16 %v1868, %v1867
        %1870 = vrot.lane.b32.xlu0 %v1869, 96
        %v1871 = vpop.permute.xlu0 %1870
        %v1874 = vunpack.c.l.b16 %v1851
        %v1875 = vunpack.c.l.b16 %v1852
        %v1876 = vpack.c.b16 %v1875, %v1874
        %1877 = vrot.lane.b32.xlu0 %v1876, 16
        %v1878 = vpop.permute.xlu0 %1877
        %v1881 = vsel %vm1085, %v1857, %v1864
        %v1883 = vsel %vm1089, %v1881, %v1871
        %v1886 = vsel %vm1093, %v1871, %v1878
        %1888 = vst [vmem:[#allocation2 + $0x110] sm:$0xff] %v1883
        %1889 = vst.msk [vmem:[#allocation2 + $0x118] sm:$0xff] %vm1098, %v1886
        %v1890 = vld [vmem:[%s1527] sm:$0xf]
        %v1891 = vld [vmem:[%s1527 + $0x4] sm:$0xf]
        %v1892 = vld [vmem:[%s1573] sm:$0xf]
        %v1893 = vld [vmem:[%s1573 + $0x4] sm:$0xf]
        %v1894 = vld [vmem:[%s1850] sm:$0xf]
        %v1895 = vld [vmem:[%s1850 + $0x4] sm:$0xf]
        %s1896 = scalar_lea.vmem %s995, 232 [#allocation4]
        %v1897 = vld [vmem:[%s1896] sm:$0xf]
        %v1898 = vld [vmem:[%s1896 + $0x4] sm:$0xf]
        %v1901 = vunpack.c.l.b16 %v1890
        %v1902 = vunpack.c.l.b16 %v1891
        %v1903 = vpack.c.b16 %v1902, %v1901
        %v1906 = vunpack.c.l.b16 %v1892
        %v1907 = vunpack.c.l.b16 %v1893
        %v1908 = vpack.c.b16 %v1907, %v1906
        %1909 = vrot.lane.b32.xlu0 %v1908, 48
        %v1910 = vpop.permute.xlu0 %1909
        %v1913 = vunpack.c.l.b16 %v1894
        %v1914 = vunpack.c.l.b16 %v1895
        %v1915 = vpack.c.b16 %v1914, %v1913
        %1916 = vrot.lane.b32.xlu0 %v1915, 96
        %v1917 = vpop.permute.xlu0 %1916
        %v1920 = vunpack.c.l.b16 %v1897
        %v1921 = vunpack.c.l.b16 %v1898
        %v1922 = vpack.c.b16 %v1921, %v1920
        %1923 = vrot.lane.b32.xlu0 %v1922, 16
        %v1924 = vpop.permute.xlu0 %1923
        %v1927 = vsel %vm1085, %v1903, %v1910
        %v1929 = vsel %vm1089, %v1927, %v1917
        %v1932 = vsel %vm1093, %v1917, %v1924
        %1934 = vst [vmem:[#allocation2 + $0x120] sm:$0xff] %v1929
        %1935 = vst.msk [vmem:[#allocation2 + $0x128] sm:$0xff] %vm1098, %v1932
        %v1936 = vld [vmem:[%s1573] sm:$0xf]
        %v1937 = vld [vmem:[%s1573 + $0x4] sm:$0xf]
        %v1938 = vld [vmem:[%s1619] sm:$0xf]
        %v1939 = vld [vmem:[%s1619 + $0x4] sm:$0xf]
        %v1940 = vld [vmem:[%s1896] sm:$0xf]
        %v1941 = vld [vmem:[%s1896 + $0x4] sm:$0xf]
        %s1942 = scalar_lea.vmem %s995, 240 [#allocation4]
        %v1943 = vld [vmem:[%s1942] sm:$0xf]
        %v1944 = vld [vmem:[%s1942 + $0x4] sm:$0xf]
        %v1947 = vunpack.c.l.b16 %v1936
        %v1948 = vunpack.c.l.b16 %v1937
        %v1949 = vpack.c.b16 %v1948, %v1947
        %v1952 = vunpack.c.l.b16 %v1938
        %v1953 = vunpack.c.l.b16 %v1939
        %v1954 = vpack.c.b16 %v1953, %v1952
        %1955 = vrot.lane.b32.xlu0 %v1954, 48
        %v1956 = vpop.permute.xlu0 %1955
        %v1959 = vunpack.c.l.b16 %v1940
        %v1960 = vunpack.c.l.b16 %v1941
        %v1961 = vpack.c.b16 %v1960, %v1959
        %1962 = vrot.lane.b32.xlu0 %v1961, 96
        %v1963 = vpop.permute.xlu0 %1962
        %v1966 = vunpack.c.l.b16 %v1943
        %v1967 = vunpack.c.l.b16 %v1944
        %v1968 = vpack.c.b16 %v1967, %v1966
        %1969 = vrot.lane.b32.xlu0 %v1968, 16
        %v1970 = vpop.permute.xlu0 %1969
        %v1973 = vsel %vm1085, %v1949, %v1956
        %v1975 = vsel %vm1089, %v1973, %v1963
        %v1978 = vsel %vm1093, %v1963, %v1970
        %1980 = vst [vmem:[#allocation2 + $0x130] sm:$0xff] %v1975
        %1981 = vst.msk [vmem:[#allocation2 + $0x138] sm:$0xff] %vm1098, %v1978
        %v1982 = vld [vmem:[%s1619] sm:$0xf]
        %v1983 = vld [vmem:[%s1619 + $0x4] sm:$0xf]
        %v1984 = vld [vmem:[%s1665] sm:$0xf]
        %v1985 = vld [vmem:[%s1665 + $0x4] sm:$0xf]
        %v1986 = vld [vmem:[%s1942] sm:$0xf]
        %v1987 = vld [vmem:[%s1942 + $0x4] sm:$0xf]
        %s1988 = scalar_lea.vmem %s995, 248 [#allocation4]
        %v1989 = vld [vmem:[%s1988] sm:$0xf]
        %v1990 = vld [vmem:[%s1988 + $0x4] sm:$0xf]
        %v1993 = vunpack.c.l.b16 %v1982
        %v1994 = vunpack.c.l.b16 %v1983
        %v1995 = vpack.c.b16 %v1994, %v1993
        %v1998 = vunpack.c.l.b16 %v1984
        %v1999 = vunpack.c.l.b16 %v1985
        %v2000 = vpack.c.b16 %v1999, %v1998
        %2001 = vrot.lane.b32.xlu0 %v2000, 48
        %v2002 = vpop.permute.xlu0 %2001
        %v2005 = vunpack.c.l.b16 %v1986
        %v2006 = vunpack.c.l.b16 %v1987
        %v2007 = vpack.c.b16 %v2006, %v2005
        %2008 = vrot.lane.b32.xlu0 %v2007, 96
        %v2009 = vpop.permute.xlu0 %2008
        %v2012 = vunpack.c.l.b16 %v1989
        %v2013 = vunpack.c.l.b16 %v1990
        %v2014 = vpack.c.b16 %v2013, %v2012
        %2015 = vrot.lane.b32.xlu0 %v2014, 16
        %v2016 = vpop.permute.xlu0 %2015
        %v2019 = vsel %vm1085, %v1995, %v2002
        %v2021 = vsel %vm1089, %v2019, %v2009
        %v2024 = vsel %vm1093, %v2009, %v2016
        %2026 = vst [vmem:[#allocation2 + $0x140] sm:$0xff] %v2021
        %2027 = vst.msk [vmem:[#allocation2 + $0x148] sm:$0xff] %vm1098, %v2024
        %v2028 = vld [vmem:[%s1709] sm:$0xf]
        %v2029 = vld [vmem:[%s1709 + $0x4] sm:$0xf]
        %v2030 = vld [vmem:[%s1712] sm:$0xf]
        %v2031 = vld [vmem:[%s1712 + $0x4] sm:$0xf]
        %s2032 = scalar_lea.vmem %s995, 256 [#allocation4]
        %v2033 = vld [vmem:[%s2032] sm:$0xf]
        %v2034 = vld [vmem:[%s2032 + $0x4] sm:$0xf]
        %s2035 = scalar_lea.vmem %s995, 264 [#allocation4]
        %v2036 = vld [vmem:[%s2035] sm:$0xf]
        %v2037 = vld [vmem:[%s2035 + $0x4] sm:$0xf]
        %v2040 = vunpack.c.l.b16 %v2028
        %v2041 = vunpack.c.l.b16 %v2029
        %v2042 = vpack.c.b16 %v2041, %v2040
        %v2045 = vunpack.c.l.b16 %v2030
        %v2046 = vunpack.c.l.b16 %v2031
        %v2047 = vpack.c.b16 %v2046, %v2045
        %2048 = vrot.lane.b32.xlu0 %v2047, 48
        %v2049 = vpop.permute.xlu0 %2048
        %v2052 = vunpack.c.l.b16 %v2033
        %v2053 = vunpack.c.l.b16 %v2034
        %v2054 = vpack.c.b16 %v2053, %v2052
        %2055 = vrot.lane.b32.xlu0 %v2054, 96
        %v2056 = vpop.permute.xlu0 %2055
        %v2059 = vunpack.c.l.b16 %v2036
        %v2060 = vunpack.c.l.b16 %v2037
        %v2061 = vpack.c.b16 %v2060, %v2059
        %2062 = vrot.lane.b32.xlu0 %v2061, 16
        %v2063 = vpop.permute.xlu0 %2062
        %v2066 = vsel %vm1085, %v2042, %v2049
        %v2068 = vsel %vm1089, %v2066, %v2056
        %v2071 = vsel %vm1093, %v2056, %v2063
        %2073 = vst [vmem:[#allocation2 + $0x150] sm:$0xff] %v2068
        %2074 = vst.msk [vmem:[#allocation2 + $0x158] sm:$0xff] %vm1098, %v2071
        %v2075 = vld [vmem:[%s1712] sm:$0xf]
        %v2076 = vld [vmem:[%s1712 + $0x4] sm:$0xf]
        %v2077 = vld [vmem:[%s1758] sm:$0xf]
        %v2078 = vld [vmem:[%s1758 + $0x4] sm:$0xf]
        %v2079 = vld [vmem:[%s2035] sm:$0xf]
        %v2080 = vld [vmem:[%s2035 + $0x4] sm:$0xf]
        %s2081 = scalar_lea.vmem %s995, 272 [#allocation4]
        %v2082 = vld [vmem:[%s2081] sm:$0xf]
        %v2083 = vld [vmem:[%s2081 + $0x4] sm:$0xf]
        %v2086 = vunpack.c.l.b16 %v2075
        %v2087 = vunpack.c.l.b16 %v2076
        %v2088 = vpack.c.b16 %v2087, %v2086
        %v2091 = vunpack.c.l.b16 %v2077
        %v2092 = vunpack.c.l.b16 %v2078
        %v2093 = vpack.c.b16 %v2092, %v2091
        %2094 = vrot.lane.b32.xlu0 %v2093, 48
        %v2095 = vpop.permute.xlu0 %2094
        %v2098 = vunpack.c.l.b16 %v2079
        %v2099 = vunpack.c.l.b16 %v2080
        %v2100 = vpack.c.b16 %v2099, %v2098
        %2101 = vrot.lane.b32.xlu0 %v2100, 96
        %v2102 = vpop.permute.xlu0 %2101
        %v2105 = vunpack.c.l.b16 %v2082
        %v2106 = vunpack.c.l.b16 %v2083
        %v2107 = vpack.c.b16 %v2106, %v2105
        %2108 = vrot.lane.b32.xlu0 %v2107, 16
        %v2109 = vpop.permute.xlu0 %2108
        %v2112 = vsel %vm1085, %v2088, %v2095
        %v2114 = vsel %vm1089, %v2112, %v2102
        %v2117 = vsel %vm1093, %v2102, %v2109
        %2119 = vst [vmem:[#allocation2 + $0x160] sm:$0xff] %v2114
        %2120 = vst.msk [vmem:[#allocation2 + $0x168] sm:$0xff] %vm1098, %v2117
        %v2121 = vld [vmem:[%s1758] sm:$0xf]
        %v2122 = vld [vmem:[%s1758 + $0x4] sm:$0xf]
        %v2123 = vld [vmem:[%s1804] sm:$0xf]
        %v2124 = vld [vmem:[%s1804 + $0x4] sm:$0xf]
        %v2125 = vld [vmem:[%s2081] sm:$0xf]
        %v2126 = vld [vmem:[%s2081 + $0x4] sm:$0xf]
        %s2127 = scalar_lea.vmem %s995, 280 [#allocation4]
        %v2128 = vld [vmem:[%s2127] sm:$0xf]
        %v2129 = vld [vmem:[%s2127 + $0x4] sm:$0xf]
        %v2132 = vunpack.c.l.b16 %v2121
        %v2133 = vunpack.c.l.b16 %v2122
        %v2134 = vpack.c.b16 %v2133, %v2132
        %v2137 = vunpack.c.l.b16 %v2123
        %v2138 = vunpack.c.l.b16 %v2124
        %v2139 = vpack.c.b16 %v2138, %v2137
        %2140 = vrot.lane.b32.xlu0 %v2139, 48
        %v2141 = vpop.permute.xlu0 %2140
        %v2144 = vunpack.c.l.b16 %v2125
        %v2145 = vunpack.c.l.b16 %v2126
        %v2146 = vpack.c.b16 %v2145, %v2144
        %2147 = vrot.lane.b32.xlu0 %v2146, 96
        %v2148 = vpop.permute.xlu0 %2147
        %v2151 = vunpack.c.l.b16 %v2128
        %v2152 = vunpack.c.l.b16 %v2129
        %v2153 = vpack.c.b16 %v2152, %v2151
        %2154 = vrot.lane.b32.xlu0 %v2153, 16
        %v2155 = vpop.permute.xlu0 %2154
        %v2158 = vsel %vm1085, %v2134, %v2141
        %v2160 = vsel %vm1089, %v2158, %v2148
        %v2163 = vsel %vm1093, %v2148, %v2155
        %2165 = vst [vmem:[#allocation2 + $0x170] sm:$0xff] %v2160
        %2166 = vst.msk [vmem:[#allocation2 + $0x178] sm:$0xff] %vm1098, %v2163
        %v2167 = vld [vmem:[%s1804] sm:$0xf]
        %v2168 = vld [vmem:[%s1804 + $0x4] sm:$0xf]
        %v2169 = vld [vmem:[%s1850] sm:$0xf]
        %v2170 = vld [vmem:[%s1850 + $0x4] sm:$0xf]
        %v2171 = vld [vmem:[%s2127] sm:$0xf]
        %v2172 = vld [vmem:[%s2127 + $0x4] sm:$0xf]
        %s2173 = scalar_lea.vmem %s995, 288 [#allocation4]
        %v2174 = vld [vmem:[%s2173] sm:$0xf]
        %v2175 = vld [vmem:[%s2173 + $0x4] sm:$0xf]
        %v2178 = vunpack.c.l.b16 %v2167
        %v2179 = vunpack.c.l.b16 %v2168
        %v2180 = vpack.c.b16 %v2179, %v2178
        %v2183 = vunpack.c.l.b16 %v2169
        %v2184 = vunpack.c.l.b16 %v2170
        %v2185 = vpack.c.b16 %v2184, %v2183
        %2186 = vrot.lane.b32.xlu0 %v2185, 48
        %v2187 = vpop.permute.xlu0 %2186
        %v2190 = vunpack.c.l.b16 %v2171
        %v2191 = vunpack.c.l.b16 %v2172
        %v2192 = vpack.c.b16 %v2191, %v2190
        %2193 = vrot.lane.b32.xlu0 %v2192, 96
        %v2194 = vpop.permute.xlu0 %2193
        %v2197 = vunpack.c.l.b16 %v2174
        %v2198 = vunpack.c.l.b16 %v2175
        %v2199 = vpack.c.b16 %v2198, %v2197
        %2200 = vrot.lane.b32.xlu0 %v2199, 16
        %v2201 = vpop.permute.xlu0 %2200
        %v2204 = vsel %vm1085, %v2180, %v2187
        %v2206 = vsel %vm1089, %v2204, %v2194
        %v2209 = vsel %vm1093, %v2194, %v2201
        %2211 = vst [vmem:[#allocation2 + $0x180] sm:$0xff] %v2206
        %2212 = vst.msk [vmem:[#allocation2 + $0x188] sm:$0xff] %vm1098, %v2209
        %v2213 = vld [vmem:[%s1850] sm:$0xf]
        %v2214 = vld [vmem:[%s1850 + $0x4] sm:$0xf]
        %v2215 = vld [vmem:[%s1896] sm:$0xf]
        %v2216 = vld [vmem:[%s1896 + $0x4] sm:$0xf]
        %v2217 = vld [vmem:[%s2173] sm:$0xf]
        %v2218 = vld [vmem:[%s2173 + $0x4] sm:$0xf]
        %s2219 = scalar_lea.vmem %s995, 296 [#allocation4]
        %v2220 = vld [vmem:[%s2219] sm:$0xf]
        %v2221 = vld [vmem:[%s2219 + $0x4] sm:$0xf]
        %v2224 = vunpack.c.l.b16 %v2213
        %v2225 = vunpack.c.l.b16 %v2214
        %v2226 = vpack.c.b16 %v2225, %v2224
        %v2229 = vunpack.c.l.b16 %v2215
        %v2230 = vunpack.c.l.b16 %v2216
        %v2231 = vpack.c.b16 %v2230, %v2229
        %2232 = vrot.lane.b32.xlu0 %v2231, 48
        %v2233 = vpop.permute.xlu0 %2232
        %v2236 = vunpack.c.l.b16 %v2217
        %v2237 = vunpack.c.l.b16 %v2218
        %v2238 = vpack.c.b16 %v2237, %v2236
        %2239 = vrot.lane.b32.xlu0 %v2238, 96
        %v2240 = vpop.permute.xlu0 %2239
        %v2243 = vunpack.c.l.b16 %v2220
        %v2244 = vunpack.c.l.b16 %v2221
        %v2245 = vpack.c.b16 %v2244, %v2243
        %2246 = vrot.lane.b32.xlu0 %v2245, 16
        %v2247 = vpop.permute.xlu0 %2246
        %v2250 = vsel %vm1085, %v2226, %v2233
        %v2252 = vsel %vm1089, %v2250, %v2240
        %v2255 = vsel %vm1093, %v2240, %v2247
        %2257 = vst [vmem:[#allocation2 + $0x190] sm:$0xff] %v2252
        %2258 = vst.msk [vmem:[#allocation2 + $0x198] sm:$0xff] %vm1098, %v2255
        %v2259 = vld [vmem:[%s1896] sm:$0xf]
        %v2260 = vld [vmem:[%s1896 + $0x4] sm:$0xf]
        %v2261 = vld [vmem:[%s1942] sm:$0xf]
        %v2262 = vld [vmem:[%s1942 + $0x4] sm:$0xf]
        %v2263 = vld [vmem:[%s2219] sm:$0xf]
        %v2264 = vld [vmem:[%s2219 + $0x4] sm:$0xf]
        %s2265 = scalar_lea.vmem %s995, 304 [#allocation4]
        %v2266 = vld [vmem:[%s2265] sm:$0xf]
        %v2267 = vld [vmem:[%s2265 + $0x4] sm:$0xf]
        %v2270 = vunpack.c.l.b16 %v2259
        %v2271 = vunpack.c.l.b16 %v2260
        %v2272 = vpack.c.b16 %v2271, %v2270
        %v2275 = vunpack.c.l.b16 %v2261
        %v2276 = vunpack.c.l.b16 %v2262
        %v2277 = vpack.c.b16 %v2276, %v2275
        %2278 = vrot.lane.b32.xlu0 %v2277, 48
        %v2279 = vpop.permute.xlu0 %2278
        %v2282 = vunpack.c.l.b16 %v2263
        %v2283 = vunpack.c.l.b16 %v2264
        %v2284 = vpack.c.b16 %v2283, %v2282
        %2285 = vrot.lane.b32.xlu0 %v2284, 96
        %v2286 = vpop.permute.xlu0 %2285
        %v2289 = vunpack.c.l.b16 %v2266
        %v2290 = vunpack.c.l.b16 %v2267
        %v2291 = vpack.c.b16 %v2290, %v2289
        %2292 = vrot.lane.b32.xlu0 %v2291, 16
        %v2293 = vpop.permute.xlu0 %2292
        %v2296 = vsel %vm1085, %v2272, %v2279
        %v2298 = vsel %vm1089, %v2296, %v2286
        %v2301 = vsel %vm1093, %v2286, %v2293
        %2303 = vst [vmem:[#allocation2 + $0x1a0] sm:$0xff] %v2298
        %2304 = vst.msk [vmem:[#allocation2 + $0x1a8] sm:$0xff] %vm1098, %v2301
        %v2305 = vld [vmem:[%s1942] sm:$0xf]
        %v2306 = vld [vmem:[%s1942 + $0x4] sm:$0xf]
        %v2307 = vld [vmem:[%s1988] sm:$0xf]
        %v2308 = vld [vmem:[%s1988 + $0x4] sm:$0xf]
        %v2309 = vld [vmem:[%s2265] sm:$0xf]
        %v2310 = vld [vmem:[%s2265 + $0x4] sm:$0xf]
        %s2311 = scalar_lea.vmem %s995, 312 [#allocation4]
        %v2312 = vld [vmem:[%s2311] sm:$0xf]
        %v2313 = vld [vmem:[%s2311 + $0x4] sm:$0xf]
        %v2316 = vunpack.c.l.b16 %v2305
        %v2317 = vunpack.c.l.b16 %v2306
        %v2318 = vpack.c.b16 %v2317, %v2316
        %v2321 = vunpack.c.l.b16 %v2307
        %v2322 = vunpack.c.l.b16 %v2308
        %v2323 = vpack.c.b16 %v2322, %v2321
        %2324 = vrot.lane.b32.xlu0 %v2323, 48
        %v2325 = vpop.permute.xlu0 %2324
        %v2328 = vunpack.c.l.b16 %v2309
        %v2329 = vunpack.c.l.b16 %v2310
        %v2330 = vpack.c.b16 %v2329, %v2328
        %2331 = vrot.lane.b32.xlu0 %v2330, 96
        %v2332 = vpop.permute.xlu0 %2331
        %v2335 = vunpack.c.l.b16 %v2312
        %v2336 = vunpack.c.l.b16 %v2313
        %v2337 = vpack.c.b16 %v2336, %v2335
        %2338 = vrot.lane.b32.xlu0 %v2337, 16
        %v2339 = vpop.permute.xlu0 %2338
        %v2342 = vsel %vm1085, %v2318, %v2325
        %v2344 = vsel %vm1089, %v2342, %v2332
        %v2347 = vsel %vm1093, %v2332, %v2339
        %2349 = vst [vmem:[#allocation2 + $0x1b0] sm:$0xff] %v2344
        %2350 = vst.msk [vmem:[#allocation2 + $0x1b8] sm:$0xff] %vm1098, %v2347
        %v2351 = vld [vmem:[%s2032] sm:$0xf]
        %v2352 = vld [vmem:[%s2032 + $0x4] sm:$0xf]
        %v2353 = vld [vmem:[%s2035] sm:$0xf]
        %v2354 = vld [vmem:[%s2035 + $0x4] sm:$0xf]
        %s2355 = scalar_lea.vmem %s995, 320 [#allocation4]
        %v2356 = vld [vmem:[%s2355] sm:$0xf]
        %v2357 = vld [vmem:[%s2355 + $0x4] sm:$0xf]
        %s2358 = scalar_lea.vmem %s995, 328 [#allocation4]
        %v2359 = vld [vmem:[%s2358] sm:$0xf]
        %v2360 = vld [vmem:[%s2358 + $0x4] sm:$0xf]
        %v2363 = vunpack.c.l.b16 %v2351
        %v2364 = vunpack.c.l.b16 %v2352
        %v2365 = vpack.c.b16 %v2364, %v2363
        %v2368 = vunpack.c.l.b16 %v2353
        %v2369 = vunpack.c.l.b16 %v2354
        %v2370 = vpack.c.b16 %v2369, %v2368
        %2371 = vrot.lane.b32.xlu0 %v2370, 48
        %v2372 = vpop.permute.xlu0 %2371
        %v2375 = vunpack.c.l.b16 %v2356
        %v2376 = vunpack.c.l.b16 %v2357
        %v2377 = vpack.c.b16 %v2376, %v2375
        %2378 = vrot.lane.b32.xlu0 %v2377, 96
        %v2379 = vpop.permute.xlu0 %2378
        %v2382 = vunpack.c.l.b16 %v2359
        %v2383 = vunpack.c.l.b16 %v2360
        %v2384 = vpack.c.b16 %v2383, %v2382
        %2385 = vrot.lane.b32.xlu0 %v2384, 16
        %v2386 = vpop.permute.xlu0 %2385
        %v2389 = vsel %vm1085, %v2365, %v2372
        %v2391 = vsel %vm1089, %v2389, %v2379
        %v2394 = vsel %vm1093, %v2379, %v2386
        %2396 = vst [vmem:[#allocation2 + $0x1c0] sm:$0xff] %v2391
        %2397 = vst.msk [vmem:[#allocation2 + $0x1c8] sm:$0xff] %vm1098, %v2394
        %v2398 = vld [vmem:[%s2035] sm:$0xf]
        %v2399 = vld [vmem:[%s2035 + $0x4] sm:$0xf]
        %v2400 = vld [vmem:[%s2081] sm:$0xf]
        %v2401 = vld [vmem:[%s2081 + $0x4] sm:$0xf]
        %v2402 = vld [vmem:[%s2358] sm:$0xf]
        %v2403 = vld [vmem:[%s2358 + $0x4] sm:$0xf]
        %s2404 = scalar_lea.vmem %s995, 336 [#allocation4]
        %v2405 = vld [vmem:[%s2404] sm:$0xf]
        %v2406 = vld [vmem:[%s2404 + $0x4] sm:$0xf]
        %v2409 = vunpack.c.l.b16 %v2398
        %v2410 = vunpack.c.l.b16 %v2399
        %v2411 = vpack.c.b16 %v2410, %v2409
        %v2414 = vunpack.c.l.b16 %v2400
        %v2415 = vunpack.c.l.b16 %v2401
        %v2416 = vpack.c.b16 %v2415, %v2414
        %2417 = vrot.lane.b32.xlu0 %v2416, 48
        %v2418 = vpop.permute.xlu0 %2417
        %v2421 = vunpack.c.l.b16 %v2402
        %v2422 = vunpack.c.l.b16 %v2403
        %v2423 = vpack.c.b16 %v2422, %v2421
        %2424 = vrot.lane.b32.xlu0 %v2423, 96
        %v2425 = vpop.permute.xlu0 %2424
        %v2428 = vunpack.c.l.b16 %v2405
        %v2429 = vunpack.c.l.b16 %v2406
        %v2430 = vpack.c.b16 %v2429, %v2428
        %2431 = vrot.lane.b32.xlu0 %v2430, 16
        %v2432 = vpop.permute.xlu0 %2431
        %v2435 = vsel %vm1085, %v2411, %v2418
        %v2437 = vsel %vm1089, %v2435, %v2425
        %v2440 = vsel %vm1093, %v2425, %v2432
        %2442 = vst [vmem:[#allocation2 + $0x1d0] sm:$0xff] %v2437
        %2443 = vst.msk [vmem:[#allocation2 + $0x1d8] sm:$0xff] %vm1098, %v2440
        %v2444 = vld [vmem:[%s2081] sm:$0xf]
        %v2445 = vld [vmem:[%s2081 + $0x4] sm:$0xf]
        %v2446 = vld [vmem:[%s2127] sm:$0xf]
        %v2447 = vld [vmem:[%s2127 + $0x4] sm:$0xf]
        %v2448 = vld [vmem:[%s2404] sm:$0xf]
        %v2449 = vld [vmem:[%s2404 + $0x4] sm:$0xf]
        %s2450 = scalar_lea.vmem %s995, 344 [#allocation4]
        %v2451 = vld [vmem:[%s2450] sm:$0xf]
        %v2452 = vld [vmem:[%s2450 + $0x4] sm:$0xf]
        %v2455 = vunpack.c.l.b16 %v2444
        %v2456 = vunpack.c.l.b16 %v2445
        %v2457 = vpack.c.b16 %v2456, %v2455
        %v2460 = vunpack.c.l.b16 %v2446
        %v2461 = vunpack.c.l.b16 %v2447
        %v2462 = vpack.c.b16 %v2461, %v2460
        %2463 = vrot.lane.b32.xlu0 %v2462, 48
        %v2464 = vpop.permute.xlu0 %2463
        %v2467 = vunpack.c.l.b16 %v2448
        %v2468 = vunpack.c.l.b16 %v2449
        %v2469 = vpack.c.b16 %v2468, %v2467
        %2470 = vrot.lane.b32.xlu0 %v2469, 96
        %v2471 = vpop.permute.xlu0 %2470
        %v2474 = vunpack.c.l.b16 %v2451
        %v2475 = vunpack.c.l.b16 %v2452
        %v2476 = vpack.c.b16 %v2475, %v2474
        %2477 = vrot.lane.b32.xlu0 %v2476, 16
        %v2478 = vpop.permute.xlu0 %2477
        %v2481 = vsel %vm1085, %v2457, %v2464
        %v2483 = vsel %vm1089, %v2481, %v2471
        %v2486 = vsel %vm1093, %v2471, %v2478
        %2488 = vst [vmem:[#allocation2 + $0x1e0] sm:$0xff] %v2483
        %2489 = vst.msk [vmem:[#allocation2 + $0x1e8] sm:$0xff] %vm1098, %v2486
        %v2490 = vld [vmem:[%s2127] sm:$0xf]
        %v2491 = vld [vmem:[%s2127 + $0x4] sm:$0xf]
        %v2492 = vld [vmem:[%s2173] sm:$0xf]
        %v2493 = vld [vmem:[%s2173 + $0x4] sm:$0xf]
        %v2494 = vld [vmem:[%s2450] sm:$0xf]
        %v2495 = vld [vmem:[%s2450 + $0x4] sm:$0xf]
        %s2496 = scalar_lea.vmem %s995, 352 [#allocation4]
        %v2497 = vld [vmem:[%s2496] sm:$0xf]
        %v2498 = vld [vmem:[%s2496 + $0x4] sm:$0xf]
        %v2501 = vunpack.c.l.b16 %v2490
        %v2502 = vunpack.c.l.b16 %v2491
        %v2503 = vpack.c.b16 %v2502, %v2501
        %v2506 = vunpack.c.l.b16 %v2492
        %v2507 = vunpack.c.l.b16 %v2493
        %v2508 = vpack.c.b16 %v2507, %v2506
        %2509 = vrot.lane.b32.xlu0 %v2508, 48
        %v2510 = vpop.permute.xlu0 %2509
        %v2513 = vunpack.c.l.b16 %v2494
        %v2514 = vunpack.c.l.b16 %v2495
        %v2515 = vpack.c.b16 %v2514, %v2513
        %2516 = vrot.lane.b32.xlu0 %v2515, 96
        %v2517 = vpop.permute.xlu0 %2516
        %v2520 = vunpack.c.l.b16 %v2497
        %v2521 = vunpack.c.l.b16 %v2498
        %v2522 = vpack.c.b16 %v2521, %v2520
        %2523 = vrot.lane.b32.xlu0 %v2522, 16
        %v2524 = vpop.permute.xlu0 %2523
        %v2527 = vsel %vm1085, %v2503, %v2510
        %v2529 = vsel %vm1089, %v2527, %v2517
        %v2532 = vsel %vm1093, %v2517, %v2524
        %2534 = vst [vmem:[#allocation2 + $0x1f0] sm:$0xff] %v2529
        %2535 = vst.msk [vmem:[#allocation2 + $0x1f8] sm:$0xff] %vm1098, %v2532
        %v2536 = vld [vmem:[%s2173] sm:$0xf]
        %v2537 = vld [vmem:[%s2173 + $0x4] sm:$0xf]
        %v2538 = vld [vmem:[%s2219] sm:$0xf]
        %v2539 = vld [vmem:[%s2219 + $0x4] sm:$0xf]
        %v2540 = vld [vmem:[%s2496] sm:$0xf]
        %v2541 = vld [vmem:[%s2496 + $0x4] sm:$0xf]
        %s2542 = scalar_lea.vmem %s995, 360 [#allocation4]
        %v2543 = vld [vmem:[%s2542] sm:$0xf]
        %v2544 = vld [vmem:[%s2542 + $0x4] sm:$0xf]
        %v2547 = vunpack.c.l.b16 %v2536
        %v2548 = vunpack.c.l.b16 %v2537
        %v2549 = vpack.c.b16 %v2548, %v2547
        %v2552 = vunpack.c.l.b16 %v2538
        %v2553 = vunpack.c.l.b16 %v2539
        %v2554 = vpack.c.b16 %v2553, %v2552
        %2555 = vrot.lane.b32.xlu0 %v2554, 48
        %v2556 = vpop.permute.xlu0 %2555
        %v2559 = vunpack.c.l.b16 %v2540
        %v2560 = vunpack.c.l.b16 %v2541
        %v2561 = vpack.c.b16 %v2560, %v2559
        %2562 = vrot.lane.b32.xlu0 %v2561, 96
        %v2563 = vpop.permute.xlu0 %2562
        %v2566 = vunpack.c.l.b16 %v2543
        %v2567 = vunpack.c.l.b16 %v2544
        %v2568 = vpack.c.b16 %v2567, %v2566
        %2569 = vrot.lane.b32.xlu0 %v2568, 16
        %v2570 = vpop.permute.xlu0 %2569
        %v2573 = vsel %vm1085, %v2549, %v2556
        %v2575 = vsel %vm1089, %v2573, %v2563
        %v2578 = vsel %vm1093, %v2563, %v2570
        %2580 = vst [vmem:[#allocation2 + $0x200] sm:$0xff] %v2575
        %2581 = vst.msk [vmem:[#allocation2 + $0x208] sm:$0xff] %vm1098, %v2578
        %v2582 = vld [vmem:[%s2219] sm:$0xf]
        %v2583 = vld [vmem:[%s2219 + $0x4] sm:$0xf]
        %v2584 = vld [vmem:[%s2265] sm:$0xf]
        %v2585 = vld [vmem:[%s2265 + $0x4] sm:$0xf]
        %v2586 = vld [vmem:[%s2542] sm:$0xf]
        %v2587 = vld [vmem:[%s2542 + $0x4] sm:$0xf]
        %s2588 = scalar_lea.vmem %s995, 368 [#allocation4]
        %v2589 = vld [vmem:[%s2588] sm:$0xf]
        %v2590 = vld [vmem:[%s2588 + $0x4] sm:$0xf]
        %v2593 = vunpack.c.l.b16 %v2582
        %v2594 = vunpack.c.l.b16 %v2583
        %v2595 = vpack.c.b16 %v2594, %v2593
        %v2598 = vunpack.c.l.b16 %v2584
        %v2599 = vunpack.c.l.b16 %v2585
        %v2600 = vpack.c.b16 %v2599, %v2598
        %2601 = vrot.lane.b32.xlu0 %v2600, 48
        %v2602 = vpop.permute.xlu0 %2601
        %v2605 = vunpack.c.l.b16 %v2586
        %v2606 = vunpack.c.l.b16 %v2587
        %v2607 = vpack.c.b16 %v2606, %v2605
        %2608 = vrot.lane.b32.xlu0 %v2607, 96
        %v2609 = vpop.permute.xlu0 %2608
        %v2612 = vunpack.c.l.b16 %v2589
        %v2613 = vunpack.c.l.b16 %v2590
        %v2614 = vpack.c.b16 %v2613, %v2612
        %2615 = vrot.lane.b32.xlu0 %v2614, 16
        %v2616 = vpop.permute.xlu0 %2615
        %v2619 = vsel %vm1085, %v2595, %v2602
        %v2621 = vsel %vm1089, %v2619, %v2609
        %v2624 = vsel %vm1093, %v2609, %v2616
        %2626 = vst [vmem:[#allocation2 + $0x210] sm:$0xff] %v2621
        %2627 = vst.msk [vmem:[#allocation2 + $0x218] sm:$0xff] %vm1098, %v2624
        %v2628 = vld [vmem:[%s2265] sm:$0xf]
        %v2629 = vld [vmem:[%s2265 + $0x4] sm:$0xf]
        %v2630 = vld [vmem:[%s2311] sm:$0xf]
        %v2631 = vld [vmem:[%s2311 + $0x4] sm:$0xf]
        %v2632 = vld [vmem:[%s2588] sm:$0xf]
        %v2633 = vld [vmem:[%s2588 + $0x4] sm:$0xf]
        %s2634 = scalar_lea.vmem %s995, 376 [#allocation4]
        %v2635 = vld [vmem:[%s2634] sm:$0xf]
        %v2636 = vld [vmem:[%s2634 + $0x4] sm:$0xf]
        %v2639 = vunpack.c.l.b16 %v2628
        %v2640 = vunpack.c.l.b16 %v2629
        %v2641 = vpack.c.b16 %v2640, %v2639
        %v2644 = vunpack.c.l.b16 %v2630
        %v2645 = vunpack.c.l.b16 %v2631
        %v2646 = vpack.c.b16 %v2645, %v2644
        %2647 = vrot.lane.b32.xlu0 %v2646, 48
        %v2648 = vpop.permute.xlu0 %2647
        %v2651 = vunpack.c.l.b16 %v2632
        %v2652 = vunpack.c.l.b16 %v2633
        %v2653 = vpack.c.b16 %v2652, %v2651
        %2654 = vrot.lane.b32.xlu0 %v2653, 96
        %v2655 = vpop.permute.xlu0 %2654
        %v2658 = vunpack.c.l.b16 %v2635
        %v2659 = vunpack.c.l.b16 %v2636
        %v2660 = vpack.c.b16 %v2659, %v2658
        %2661 = vrot.lane.b32.xlu0 %v2660, 16
        %v2662 = vpop.permute.xlu0 %2661
        %v2665 = vsel %vm1085, %v2641, %v2648
        %v2667 = vsel %vm1089, %v2665, %v2655
        %v2670 = vsel %vm1093, %v2655, %v2662
        %2672 = vst [vmem:[#allocation2 + $0x220] sm:$0xff] %v2667
        %2673 = vst.msk [vmem:[#allocation2 + $0x228] sm:$0xff] %vm1098, %v2670
        %v2674 = vld [vmem:[%s2355] sm:$0xf]
        %v2675 = vld [vmem:[%s2355 + $0x4] sm:$0xf]
        %v2676 = vld [vmem:[%s2358] sm:$0xf]
        %v2677 = vld [vmem:[%s2358 + $0x4] sm:$0xf]
        %s2678 = scalar_lea.vmem %s995, 384 [#allocation4]
        %v2679 = vld [vmem:[%s2678] sm:$0xf]
        %v2680 = vld [vmem:[%s2678 + $0x4] sm:$0xf]
        %s2681 = scalar_lea.vmem %s995, 392 [#allocation4]
        %v2682 = vld [vmem:[%s2681] sm:$0xf]
        %v2683 = vld [vmem:[%s2681 + $0x4] sm:$0xf]
        %v2686 = vunpack.c.l.b16 %v2674
        %v2687 = vunpack.c.l.b16 %v2675
        %v2688 = vpack.c.b16 %v2687, %v2686
        %v2691 = vunpack.c.l.b16 %v2676
        %v2692 = vunpack.c.l.b16 %v2677
        %v2693 = vpack.c.b16 %v2692, %v2691
        %2694 = vrot.lane.b32.xlu0 %v2693, 48
        %v2695 = vpop.permute.xlu0 %2694
        %v2698 = vunpack.c.l.b16 %v2679
        %v2699 = vunpack.c.l.b16 %v2680
        %v2700 = vpack.c.b16 %v2699, %v2698
        %2701 = vrot.lane.b32.xlu0 %v2700, 96
        %v2702 = vpop.permute.xlu0 %2701
        %v2705 = vunpack.c.l.b16 %v2682
        %v2706 = vunpack.c.l.b16 %v2683
        %v2707 = vpack.c.b16 %v2706, %v2705
        %2708 = vrot.lane.b32.xlu0 %v2707, 16
        %v2709 = vpop.permute.xlu0 %2708
        %v2712 = vsel %vm1085, %v2688, %v2695
        %v2714 = vsel %vm1089, %v2712, %v2702
        %v2717 = vsel %vm1093, %v2702, %v2709
        %2719 = vst [vmem:[#allocation2 + $0x230] sm:$0xff] %v2714
        %2720 = vst.msk [vmem:[#allocation2 + $0x238] sm:$0xff] %vm1098, %v2717
        %v2721 = vld [vmem:[%s2358] sm:$0xf]
        %v2722 = vld [vmem:[%s2358 + $0x4] sm:$0xf]
        %v2723 = vld [vmem:[%s2404] sm:$0xf]
        %v2724 = vld [vmem:[%s2404 + $0x4] sm:$0xf]
        %v2725 = vld [vmem:[%s2681] sm:$0xf]
        %v2726 = vld [vmem:[%s2681 + $0x4] sm:$0xf]
        %s2727 = scalar_lea.vmem %s995, 400 [#allocation4]
        %v2728 = vld [vmem:[%s2727] sm:$0xf]
        %v2729 = vld [vmem:[%s2727 + $0x4] sm:$0xf]
        %v2732 = vunpack.c.l.b16 %v2721
        %v2733 = vunpack.c.l.b16 %v2722
        %v2734 = vpack.c.b16 %v2733, %v2732
        %v2737 = vunpack.c.l.b16 %v2723
        %v2738 = vunpack.c.l.b16 %v2724
        %v2739 = vpack.c.b16 %v2738, %v2737
        %2740 = vrot.lane.b32.xlu0 %v2739, 48
        %v2741 = vpop.permute.xlu0 %2740
        %v2744 = vunpack.c.l.b16 %v2725
        %v2745 = vunpack.c.l.b16 %v2726
        %v2746 = vpack.c.b16 %v2745, %v2744
        %2747 = vrot.lane.b32.xlu0 %v2746, 96
        %v2748 = vpop.permute.xlu0 %2747
        %v2751 = vunpack.c.l.b16 %v2728
        %v2752 = vunpack.c.l.b16 %v2729
        %v2753 = vpack.c.b16 %v2752, %v2751
        %2754 = vrot.lane.b32.xlu0 %v2753, 16
        %v2755 = vpop.permute.xlu0 %2754
        %v2758 = vsel %vm1085, %v2734, %v2741
        %v2760 = vsel %vm1089, %v2758, %v2748
        %v2763 = vsel %vm1093, %v2748, %v2755
        %2765 = vst [vmem:[#allocation2 + $0x240] sm:$0xff] %v2760
        %2766 = vst.msk [vmem:[#allocation2 + $0x248] sm:$0xff] %vm1098, %v2763
        %v2767 = vld [vmem:[%s2404] sm:$0xf]
        %v2768 = vld [vmem:[%s2404 + $0x4] sm:$0xf]
        %v2769 = vld [vmem:[%s2450] sm:$0xf]
        %v2770 = vld [vmem:[%s2450 + $0x4] sm:$0xf]
        %v2771 = vld [vmem:[%s2727] sm:$0xf]
        %v2772 = vld [vmem:[%s2727 + $0x4] sm:$0xf]
        %s2773 = scalar_lea.vmem %s995, 408 [#allocation4]
        %v2774 = vld [vmem:[%s2773] sm:$0xf]
        %v2775 = vld [vmem:[%s2773 + $0x4] sm:$0xf]
        %v2778 = vunpack.c.l.b16 %v2767
        %v2779 = vunpack.c.l.b16 %v2768
        %v2780 = vpack.c.b16 %v2779, %v2778
        %v2783 = vunpack.c.l.b16 %v2769
        %v2784 = vunpack.c.l.b16 %v2770
        %v2785 = vpack.c.b16 %v2784, %v2783
        %2786 = vrot.lane.b32.xlu0 %v2785, 48
        %v2787 = vpop.permute.xlu0 %2786
        %v2790 = vunpack.c.l.b16 %v2771
        %v2791 = vunpack.c.l.b16 %v2772
        %v2792 = vpack.c.b16 %v2791, %v2790
        %2793 = vrot.lane.b32.xlu0 %v2792, 96
        %v2794 = vpop.permute.xlu0 %2793
        %v2797 = vunpack.c.l.b16 %v2774
        %v2798 = vunpack.c.l.b16 %v2775
        %v2799 = vpack.c.b16 %v2798, %v2797
        %2800 = vrot.lane.b32.xlu0 %v2799, 16
        %v2801 = vpop.permute.xlu0 %2800
        %v2804 = vsel %vm1085, %v2780, %v2787
        %v2806 = vsel %vm1089, %v2804, %v2794
        %v2809 = vsel %vm1093, %v2794, %v2801
        %2811 = vst [vmem:[#allocation2 + $0x250] sm:$0xff] %v2806
        %2812 = vst.msk [vmem:[#allocation2 + $0x258] sm:$0xff] %vm1098, %v2809
        %v2813 = vld [vmem:[%s2450] sm:$0xf]
        %v2814 = vld [vmem:[%s2450 + $0x4] sm:$0xf]
        %v2815 = vld [vmem:[%s2496] sm:$0xf]
        %v2816 = vld [vmem:[%s2496 + $0x4] sm:$0xf]
        %v2817 = vld [vmem:[%s2773] sm:$0xf]
        %v2818 = vld [vmem:[%s2773 + $0x4] sm:$0xf]
        %s2819 = scalar_lea.vmem %s995, 416 [#allocation4]
        %v2820 = vld [vmem:[%s2819] sm:$0xf]
        %v2821 = vld [vmem:[%s2819 + $0x4] sm:$0xf]
        %v2824 = vunpack.c.l.b16 %v2813
        %v2825 = vunpack.c.l.b16 %v2814
        %v2826 = vpack.c.b16 %v2825, %v2824
        %v2829 = vunpack.c.l.b16 %v2815
        %v2830 = vunpack.c.l.b16 %v2816
        %v2831 = vpack.c.b16 %v2830, %v2829
        %2832 = vrot.lane.b32.xlu0 %v2831, 48
        %v2833 = vpop.permute.xlu0 %2832
        %v2836 = vunpack.c.l.b16 %v2817
        %v2837 = vunpack.c.l.b16 %v2818
        %v2838 = vpack.c.b16 %v2837, %v2836
        %2839 = vrot.lane.b32.xlu0 %v2838, 96
        %v2840 = vpop.permute.xlu0 %2839
        %v2843 = vunpack.c.l.b16 %v2820
        %v2844 = vunpack.c.l.b16 %v2821
        %v2845 = vpack.c.b16 %v2844, %v2843
        %2846 = vrot.lane.b32.xlu0 %v2845, 16
        %v2847 = vpop.permute.xlu0 %2846
        %v2850 = vsel %vm1085, %v2826, %v2833
        %v2852 = vsel %vm1089, %v2850, %v2840
        %v2855 = vsel %vm1093, %v2840, %v2847
        %2857 = vst [vmem:[#allocation2 + $0x260] sm:$0xff] %v2852
        %2858 = vst.msk [vmem:[#allocation2 + $0x268] sm:$0xff] %vm1098, %v2855
        %v2859 = vld [vmem:[%s2496] sm:$0xf]
        %v2860 = vld [vmem:[%s2496 + $0x4] sm:$0xf]
        %v2861 = vld [vmem:[%s2542] sm:$0xf]
        %v2862 = vld [vmem:[%s2542 + $0x4] sm:$0xf]
        %v2863 = vld [vmem:[%s2819] sm:$0xf]
        %v2864 = vld [vmem:[%s2819 + $0x4] sm:$0xf]
        %s2865 = scalar_lea.vmem %s995, 424 [#allocation4]
        %v2866 = vld [vmem:[%s2865] sm:$0xf]
        %v2867 = vld [vmem:[%s2865 + $0x4] sm:$0xf]
        %v2870 = vunpack.c.l.b16 %v2859
        %v2871 = vunpack.c.l.b16 %v2860
        %v2872 = vpack.c.b16 %v2871, %v2870
        %v2875 = vunpack.c.l.b16 %v2861
        %v2876 = vunpack.c.l.b16 %v2862
        %v2877 = vpack.c.b16 %v2876, %v2875
        %2878 = vrot.lane.b32.xlu0 %v2877, 48
        %v2879 = vpop.permute.xlu0 %2878
        %v2882 = vunpack.c.l.b16 %v2863
        %v2883 = vunpack.c.l.b16 %v2864
        %v2884 = vpack.c.b16 %v2883, %v2882
        %2885 = vrot.lane.b32.xlu0 %v2884, 96
        %v2886 = vpop.permute.xlu0 %2885
        %v2889 = vunpack.c.l.b16 %v2866
        %v2890 = vunpack.c.l.b16 %v2867
        %v2891 = vpack.c.b16 %v2890, %v2889
        %2892 = vrot.lane.b32.xlu0 %v2891, 16
        %v2893 = vpop.permute.xlu0 %2892
        %v2896 = vsel %vm1085, %v2872, %v2879
        %v2898 = vsel %vm1089, %v2896, %v2886
        %v2901 = vsel %vm1093, %v2886, %v2893
        %2903 = vst [vmem:[#allocation2 + $0x270] sm:$0xff] %v2898
        %2904 = vst.msk [vmem:[#allocation2 + $0x278] sm:$0xff] %vm1098, %v2901
        %v2905 = vld [vmem:[%s2542] sm:$0xf]
        %v2906 = vld [vmem:[%s2542 + $0x4] sm:$0xf]
        %v2907 = vld [vmem:[%s2588] sm:$0xf]
        %v2908 = vld [vmem:[%s2588 + $0x4] sm:$0xf]
        %v2909 = vld [vmem:[%s2865] sm:$0xf]
        %v2910 = vld [vmem:[%s2865 + $0x4] sm:$0xf]
        %s2911 = scalar_lea.vmem %s995, 432 [#allocation4]
        %v2912 = vld [vmem:[%s2911] sm:$0xf]
        %v2913 = vld [vmem:[%s2911 + $0x4] sm:$0xf]
        %v2916 = vunpack.c.l.b16 %v2905
        %v2917 = vunpack.c.l.b16 %v2906
        %v2918 = vpack.c.b16 %v2917, %v2916
        %v2921 = vunpack.c.l.b16 %v2907
        %v2922 = vunpack.c.l.b16 %v2908
        %v2923 = vpack.c.b16 %v2922, %v2921
        %2924 = vrot.lane.b32.xlu0 %v2923, 48
        %v2925 = vpop.permute.xlu0 %2924
        %v2928 = vunpack.c.l.b16 %v2909
        %v2929 = vunpack.c.l.b16 %v2910
        %v2930 = vpack.c.b16 %v2929, %v2928
        %2931 = vrot.lane.b32.xlu0 %v2930, 96
        %v2932 = vpop.permute.xlu0 %2931
        %v2935 = vunpack.c.l.b16 %v2912
        %v2936 = vunpack.c.l.b16 %v2913
        %v2937 = vpack.c.b16 %v2936, %v2935
        %2938 = vrot.lane.b32.xlu0 %v2937, 16
        %v2939 = vpop.permute.xlu0 %2938
        %v2942 = vsel %vm1085, %v2918, %v2925
        %v2944 = vsel %vm1089, %v2942, %v2932
        %v2947 = vsel %vm1093, %v2932, %v2939
        %2949 = vst [vmem:[#allocation2 + $0x280] sm:$0xff] %v2944
        %2950 = vst.msk [vmem:[#allocation2 + $0x288] sm:$0xff] %vm1098, %v2947
        %v2951 = vld [vmem:[%s2588] sm:$0xf]
        %v2952 = vld [vmem:[%s2588 + $0x4] sm:$0xf]
        %v2953 = vld [vmem:[%s2634] sm:$0xf]
        %v2954 = vld [vmem:[%s2634 + $0x4] sm:$0xf]
        %v2955 = vld [vmem:[%s2911] sm:$0xf]
        %v2956 = vld [vmem:[%s2911 + $0x4] sm:$0xf]
        %s2957 = scalar_lea.vmem %s995, 440 [#allocation4]
        %v2958 = vld [vmem:[%s2957] sm:$0xf]
        %v2959 = vld [vmem:[%s2957 + $0x4] sm:$0xf]
        %v2962 = vunpack.c.l.b16 %v2951
        %v2963 = vunpack.c.l.b16 %v2952
        %v2964 = vpack.c.b16 %v2963, %v2962
        %v2967 = vunpack.c.l.b16 %v2953
        %v2968 = vunpack.c.l.b16 %v2954
        %v2969 = vpack.c.b16 %v2968, %v2967
        %2970 = vrot.lane.b32.xlu0 %v2969, 48
        %v2971 = vpop.permute.xlu0 %2970
        %v2974 = vunpack.c.l.b16 %v2955
        %v2975 = vunpack.c.l.b16 %v2956
        %v2976 = vpack.c.b16 %v2975, %v2974
        %2977 = vrot.lane.b32.xlu0 %v2976, 96
        %v2978 = vpop.permute.xlu0 %2977
        %v2981 = vunpack.c.l.b16 %v2958
        %v2982 = vunpack.c.l.b16 %v2959
        %v2983 = vpack.c.b16 %v2982, %v2981
        %2984 = vrot.lane.b32.xlu0 %v2983, 16
        %v2985 = vpop.permute.xlu0 %2984
        %v2988 = vsel %vm1085, %v2964, %v2971
        %v2990 = vsel %vm1089, %v2988, %v2978
        %v2993 = vsel %vm1093, %v2978, %v2985
        %2995 = vst [vmem:[#allocation2 + $0x290] sm:$0xff] %v2990
        %2996 = vst.msk [vmem:[#allocation2 + $0x298] sm:$0xff] %vm1098, %v2993
        %v2997 = vld [vmem:[%s2678] sm:$0xf]
        %v2998 = vld [vmem:[%s2678 + $0x4] sm:$0xf]
        %v2999 = vld [vmem:[%s2681] sm:$0xf]
        %v3000 = vld [vmem:[%s2681 + $0x4] sm:$0xf]
        %s3001 = scalar_lea.vmem %s995, 448 [#allocation4]
        %v3002 = vld [vmem:[%s3001] sm:$0xf]
        %v3003 = vld [vmem:[%s3001 + $0x4] sm:$0xf]
        %s3004 = scalar_lea.vmem %s995, 456 [#allocation4]
        %v3005 = vld [vmem:[%s3004] sm:$0xf]
        %v3006 = vld [vmem:[%s3004 + $0x4] sm:$0xf]
        %v3009 = vunpack.c.l.b16 %v2997
        %v3010 = vunpack.c.l.b16 %v2998
        %v3011 = vpack.c.b16 %v3010, %v3009
        %v3014 = vunpack.c.l.b16 %v2999
        %v3015 = vunpack.c.l.b16 %v3000
        %v3016 = vpack.c.b16 %v3015, %v3014
        %3017 = vrot.lane.b32.xlu0 %v3016, 48
        %v3018 = vpop.permute.xlu0 %3017
        %v3021 = vunpack.c.l.b16 %v3002
        %v3022 = vunpack.c.l.b16 %v3003
        %v3023 = vpack.c.b16 %v3022, %v3021
        %3024 = vrot.lane.b32.xlu0 %v3023, 96
        %v3025 = vpop.permute.xlu0 %3024
        %v3028 = vunpack.c.l.b16 %v3005
        %v3029 = vunpack.c.l.b16 %v3006
        %v3030 = vpack.c.b16 %v3029, %v3028
        %3031 = vrot.lane.b32.xlu0 %v3030, 16
        %v3032 = vpop.permute.xlu0 %3031
        %v3035 = vsel %vm1085, %v3011, %v3018
        %v3037 = vsel %vm1089, %v3035, %v3025
        %v3040 = vsel %vm1093, %v3025, %v3032
        %3042 = vst [vmem:[#allocation2 + $0x2a0] sm:$0xff] %v3037
        %3043 = vst.msk [vmem:[#allocation2 + $0x2a8] sm:$0xff] %vm1098, %v3040
        %v3044 = vld [vmem:[%s2681] sm:$0xf]
        %v3045 = vld [vmem:[%s2681 + $0x4] sm:$0xf]
        %v3046 = vld [vmem:[%s2727] sm:$0xf]
        %v3047 = vld [vmem:[%s2727 + $0x4] sm:$0xf]
        %v3048 = vld [vmem:[%s3004] sm:$0xf]
        %v3049 = vld [vmem:[%s3004 + $0x4] sm:$0xf]
        %s3050 = scalar_lea.vmem %s995, 464 [#allocation4]
        %v3051 = vld [vmem:[%s3050] sm:$0xf]
        %v3052 = vld [vmem:[%s3050 + $0x4] sm:$0xf]
        %v3055 = vunpack.c.l.b16 %v3044
        %v3056 = vunpack.c.l.b16 %v3045
        %v3057 = vpack.c.b16 %v3056, %v3055
        %v3060 = vunpack.c.l.b16 %v3046
        %v3061 = vunpack.c.l.b16 %v3047
        %v3062 = vpack.c.b16 %v3061, %v3060
        %3063 = vrot.lane.b32.xlu0 %v3062, 48
        %v3064 = vpop.permute.xlu0 %3063
        %v3067 = vunpack.c.l.b16 %v3048
        %v3068 = vunpack.c.l.b16 %v3049
        %v3069 = vpack.c.b16 %v3068, %v3067
        %3070 = vrot.lane.b32.xlu0 %v3069, 96
        %v3071 = vpop.permute.xlu0 %3070
        %v3074 = vunpack.c.l.b16 %v3051
        %v3075 = vunpack.c.l.b16 %v3052
        %v3076 = vpack.c.b16 %v3075, %v3074
        %3077 = vrot.lane.b32.xlu0 %v3076, 16
        %v3078 = vpop.permute.xlu0 %3077
        %v3081 = vsel %vm1085, %v3057, %v3064
        %v3083 = vsel %vm1089, %v3081, %v3071
        %v3086 = vsel %vm1093, %v3071, %v3078
        %3088 = vst [vmem:[#allocation2 + $0x2b0] sm:$0xff] %v3083
        %3089 = vst.msk [vmem:[#allocation2 + $0x2b8] sm:$0xff] %vm1098, %v3086
        %v3090 = vld [vmem:[%s2727] sm:$0xf]
        %v3091 = vld [vmem:[%s2727 + $0x4] sm:$0xf]
        %v3092 = vld [vmem:[%s2773] sm:$0xf]
        %v3093 = vld [vmem:[%s2773 + $0x4] sm:$0xf]
        %v3094 = vld [vmem:[%s3050] sm:$0xf]
        %v3095 = vld [vmem:[%s3050 + $0x4] sm:$0xf]
        %s3096 = scalar_lea.vmem %s995, 472 [#allocation4]
        %v3097 = vld [vmem:[%s3096] sm:$0xf]
        %v3098 = vld [vmem:[%s3096 + $0x4] sm:$0xf]
        %v3101 = vunpack.c.l.b16 %v3090
        %v3102 = vunpack.c.l.b16 %v3091
        %v3103 = vpack.c.b16 %v3102, %v3101
        %v3106 = vunpack.c.l.b16 %v3092
        %v3107 = vunpack.c.l.b16 %v3093
        %v3108 = vpack.c.b16 %v3107, %v3106
        %3109 = vrot.lane.b32.xlu0 %v3108, 48
        %v3110 = vpop.permute.xlu0 %3109
        %v3113 = vunpack.c.l.b16 %v3094
        %v3114 = vunpack.c.l.b16 %v3095
        %v3115 = vpack.c.b16 %v3114, %v3113
        %3116 = vrot.lane.b32.xlu0 %v3115, 96
        %v3117 = vpop.permute.xlu0 %3116
        %v3120 = vunpack.c.l.b16 %v3097
        %v3121 = vunpack.c.l.b16 %v3098
        %v3122 = vpack.c.b16 %v3121, %v3120
        %3123 = vrot.lane.b32.xlu0 %v3122, 16
        %v3124 = vpop.permute.xlu0 %3123
        %v3127 = vsel %vm1085, %v3103, %v3110
        %v3129 = vsel %vm1089, %v3127, %v3117
        %v3132 = vsel %vm1093, %v3117, %v3124
        %3134 = vst [vmem:[#allocation2 + $0x2c0] sm:$0xff] %v3129
        %3135 = vst.msk [vmem:[#allocation2 + $0x2c8] sm:$0xff] %vm1098, %v3132
        %v3136 = vld [vmem:[%s2773] sm:$0xf]
        %v3137 = vld [vmem:[%s2773 + $0x4] sm:$0xf]
        %v3138 = vld [vmem:[%s2819] sm:$0xf]
        %v3139 = vld [vmem:[%s2819 + $0x4] sm:$0xf]
        %v3140 = vld [vmem:[%s3096] sm:$0xf]
        %v3141 = vld [vmem:[%s3096 + $0x4] sm:$0xf]
        %s3142 = scalar_lea.vmem %s995, 480 [#allocation4]
        %v3143 = vld [vmem:[%s3142] sm:$0xf]
        %v3144 = vld [vmem:[%s3142 + $0x4] sm:$0xf]
        %v3147 = vunpack.c.l.b16 %v3136
        %v3148 = vunpack.c.l.b16 %v3137
        %v3149 = vpack.c.b16 %v3148, %v3147
        %v3152 = vunpack.c.l.b16 %v3138
        %v3153 = vunpack.c.l.b16 %v3139
        %v3154 = vpack.c.b16 %v3153, %v3152
        %3155 = vrot.lane.b32.xlu0 %v3154, 48
        %v3156 = vpop.permute.xlu0 %3155
        %v3159 = vunpack.c.l.b16 %v3140
        %v3160 = vunpack.c.l.b16 %v3141
        %v3161 = vpack.c.b16 %v3160, %v3159
        %3162 = vrot.lane.b32.xlu0 %v3161, 96
        %v3163 = vpop.permute.xlu0 %3162
        %v3166 = vunpack.c.l.b16 %v3143
        %v3167 = vunpack.c.l.b16 %v3144
        %v3168 = vpack.c.b16 %v3167, %v3166
        %3169 = vrot.lane.b32.xlu0 %v3168, 16
        %v3170 = vpop.permute.xlu0 %3169
        %v3173 = vsel %vm1085, %v3149, %v3156
        %v3175 = vsel %vm1089, %v3173, %v3163
        %v3178 = vsel %vm1093, %v3163, %v3170
        %3180 = vst [vmem:[#allocation2 + $0x2d0] sm:$0xff] %v3175
        %3181 = vst.msk [vmem:[#allocation2 + $0x2d8] sm:$0xff] %vm1098, %v3178
        %v3182 = vld [vmem:[%s2819] sm:$0xf]
        %v3183 = vld [vmem:[%s2819 + $0x4] sm:$0xf]
        %v3184 = vld [vmem:[%s2865] sm:$0xf]
        %v3185 = vld [vmem:[%s2865 + $0x4] sm:$0xf]
        %v3186 = vld [vmem:[%s3142] sm:$0xf]
        %v3187 = vld [vmem:[%s3142 + $0x4] sm:$0xf]
        %s3188 = scalar_lea.vmem %s995, 488 [#allocation4]
        %v3189 = vld [vmem:[%s3188] sm:$0xf]
        %v3190 = vld [vmem:[%s3188 + $0x4] sm:$0xf]
        %v3193 = vunpack.c.l.b16 %v3182
        %v3194 = vunpack.c.l.b16 %v3183
        %v3195 = vpack.c.b16 %v3194, %v3193
        %v3198 = vunpack.c.l.b16 %v3184
        %v3199 = vunpack.c.l.b16 %v3185
        %v3200 = vpack.c.b16 %v3199, %v3198
        %3201 = vrot.lane.b32.xlu0 %v3200, 48
        %v3202 = vpop.permute.xlu0 %3201
        %v3205 = vunpack.c.l.b16 %v3186
        %v3206 = vunpack.c.l.b16 %v3187
        %v3207 = vpack.c.b16 %v3206, %v3205
        %3208 = vrot.lane.b32.xlu0 %v3207, 96
        %v3209 = vpop.permute.xlu0 %3208
        %v3212 = vunpack.c.l.b16 %v3189
        %v3213 = vunpack.c.l.b16 %v3190
        %v3214 = vpack.c.b16 %v3213, %v3212
        %3215 = vrot.lane.b32.xlu0 %v3214, 16
        %v3216 = vpop.permute.xlu0 %3215
        %v3219 = vsel %vm1085, %v3195, %v3202
        %v3221 = vsel %vm1089, %v3219, %v3209
        %v3224 = vsel %vm1093, %v3209, %v3216
        %3226 = vst [vmem:[#allocation2 + $0x2e0] sm:$0xff] %v3221
        %3227 = vst.msk [vmem:[#allocation2 + $0x2e8] sm:$0xff] %vm1098, %v3224
        %v3228 = vld [vmem:[%s2865] sm:$0xf]
        %v3229 = vld [vmem:[%s2865 + $0x4] sm:$0xf]
        %v3230 = vld [vmem:[%s2911] sm:$0xf]
        %v3231 = vld [vmem:[%s2911 + $0x4] sm:$0xf]
        %v3232 = vld [vmem:[%s3188] sm:$0xf]
        %v3233 = vld [vmem:[%s3188 + $0x4] sm:$0xf]
        %s3234 = scalar_lea.vmem %s995, 496 [#allocation4]
        %v3235 = vld [vmem:[%s3234] sm:$0xf]
        %v3236 = vld [vmem:[%s3234 + $0x4] sm:$0xf]
        %v3239 = vunpack.c.l.b16 %v3228
        %v3240 = vunpack.c.l.b16 %v3229
        %v3241 = vpack.c.b16 %v3240, %v3239
        %v3244 = vunpack.c.l.b16 %v3230
        %v3245 = vunpack.c.l.b16 %v3231
        %v3246 = vpack.c.b16 %v3245, %v3244
        %3247 = vrot.lane.b32.xlu0 %v3246, 48
        %v3248 = vpop.permute.xlu0 %3247
        %v3251 = vunpack.c.l.b16 %v3232
        %v3252 = vunpack.c.l.b16 %v3233
        %v3253 = vpack.c.b16 %v3252, %v3251
        %3254 = vrot.lane.b32.xlu0 %v3253, 96
        %v3255 = vpop.permute.xlu0 %3254
        %v3258 = vunpack.c.l.b16 %v3235
        %v3259 = vunpack.c.l.b16 %v3236
        %v3260 = vpack.c.b16 %v3259, %v3258
        %3261 = vrot.lane.b32.xlu0 %v3260, 16
        %v3262 = vpop.permute.xlu0 %3261
        %v3265 = vsel %vm1085, %v3241, %v3248
        %v3267 = vsel %vm1089, %v3265, %v3255
        %v3270 = vsel %vm1093, %v3255, %v3262
        %3272 = vst [vmem:[#allocation2 + $0x2f0] sm:$0xff] %v3267
        %3273 = vst.msk [vmem:[#allocation2 + $0x2f8] sm:$0xff] %vm1098, %v3270
        %v3274 = vld [vmem:[%s2911] sm:$0xf]
        %v3275 = vld [vmem:[%s2911 + $0x4] sm:$0xf]
        %v3276 = vld [vmem:[%s2957] sm:$0xf]
        %v3277 = vld [vmem:[%s2957 + $0x4] sm:$0xf]
        %v3278 = vld [vmem:[%s3234] sm:$0xf]
        %v3279 = vld [vmem:[%s3234 + $0x4] sm:$0xf]
        %s3280 = scalar_lea.vmem %s995, 504 [#allocation4]
        %v3281 = vld [vmem:[%s3280] sm:$0xf]
        %v3282 = vld [vmem:[%s3280 + $0x4] sm:$0xf]
        %v3285 = vunpack.c.l.b16 %v3274
        %v3286 = vunpack.c.l.b16 %v3275
        %v3287 = vpack.c.b16 %v3286, %v3285
        %v3290 = vunpack.c.l.b16 %v3276
        %v3291 = vunpack.c.l.b16 %v3277
        %v3292 = vpack.c.b16 %v3291, %v3290
        %3293 = vrot.lane.b32.xlu0 %v3292, 48
        %v3294 = vpop.permute.xlu0 %3293
        %v3297 = vunpack.c.l.b16 %v3278
        %v3298 = vunpack.c.l.b16 %v3279
        %v3299 = vpack.c.b16 %v3298, %v3297
        %3300 = vrot.lane.b32.xlu0 %v3299, 96
        %v3301 = vpop.permute.xlu0 %3300
        %v3304 = vunpack.c.l.b16 %v3281
        %v3305 = vunpack.c.l.b16 %v3282
        %v3306 = vpack.c.b16 %v3305, %v3304
        %3307 = vrot.lane.b32.xlu0 %v3306, 16
        %v3308 = vpop.permute.xlu0 %3307
        %v3311 = vsel %vm1085, %v3287, %v3294
        %v3313 = vsel %vm1089, %v3311, %v3301
        %v3316 = vsel %vm1093, %v3301, %v3308
        %3318 = vst [vmem:[#allocation2 + $0x300] sm:$0xff] %v3313
        %3319 = vst.msk [vmem:[#allocation2 + $0x308] sm:$0xff] %vm1098, %v3316
        %v3320 = vld [vmem:[#allocation2] sm:$0xff]
        %v3321 = vld [vmem:[#allocation2 + $0x8] sm:$0xff]
        %v3322 = vld [vmem:[#allocation2 + $0x10] sm:$0xff]
        %v3323 = vld [vmem:[#allocation2 + $0x18] sm:$0xff]
        %v3324 = vld [vmem:[#allocation2 + $0x20] sm:$0xff]
        %v3325 = vld [vmem:[#allocation2 + $0x28] sm:$0xff]
        %v3326 = vld [vmem:[#allocation2 + $0x30] sm:$0xff]
        %v3327 = vld [vmem:[#allocation2 + $0x38] sm:$0xff]
        %v3328 = vld [vmem:[#allocation2 + $0x40] sm:$0xff]
        %v3329 = vld [vmem:[#allocation2 + $0x48] sm:$0xff]
        %v3330 = vld [vmem:[#allocation2 + $0x50] sm:$0xff]
        %v3331 = vld [vmem:[#allocation2 + $0x58] sm:$0xff]
        %v3332 = vld [vmem:[#allocation2 + $0x60] sm:$0xff]
        %v3333 = vld [vmem:[#allocation2 + $0x68] sm:$0xff]
        %v3334 = vld [vmem:[#allocation2 + $0x70] sm:$0xff]
        %v3335 = vld [vmem:[#allocation2 + $0x78] sm:$0xff]
        %v3336 = vld [vmem:[#allocation2 + $0x80] sm:$0xff]
        %v3337 = vld [vmem:[#allocation2 + $0x88] sm:$0xff]
        %v3338 = vld [vmem:[#allocation2 + $0x90] sm:$0xff]
        %v3339 = vld [vmem:[#allocation2 + $0x98] sm:$0xff]
        %v3340 = vld [vmem:[#allocation2 + $0xa0] sm:$0xff]
        %v3341 = vld [vmem:[#allocation2 + $0xa8] sm:$0xff]
        %v3342 = vld [vmem:[#allocation2 + $0xb0] sm:$0xff]
        %v3343 = vld [vmem:[#allocation2 + $0xb8] sm:$0xff]
        %v3344 = vld [vmem:[#allocation2 + $0xc0] sm:$0xff]
        %v3345 = vld [vmem:[#allocation2 + $0xc8] sm:$0xff]
        %v3346 = vld [vmem:[#allocation2 + $0xd0] sm:$0xff]
        %v3347 = vld [vmem:[#allocation2 + $0xd8] sm:$0xff]
        %v3348 = vld [vmem:[#allocation2 + $0xe0] sm:$0xff]
        %v3349 = vld [vmem:[#allocation2 + $0xe8] sm:$0xff]
        %v3350 = vld [vmem:[#allocation2 + $0xf0] sm:$0xff]
        %v3351 = vld [vmem:[#allocation2 + $0xf8] sm:$0xff]
        %v3352 = vld [vmem:[#allocation2 + $0x100] sm:$0xff]
        %v3353 = vld [vmem:[#allocation2 + $0x108] sm:$0xff]
        %v3354 = vld [vmem:[#allocation2 + $0x110] sm:$0xff]
        %v3355 = vld [vmem:[#allocation2 + $0x118] sm:$0xff]
        %v3356 = vld [vmem:[#allocation2 + $0x120] sm:$0xff]
        %v3357 = vld [vmem:[#allocation2 + $0x128] sm:$0xff]
        %v3358 = vld [vmem:[#allocation2 + $0x130] sm:$0xff]
        %v3359 = vld [vmem:[#allocation2 + $0x138] sm:$0xff]
        %v3360 = vld [vmem:[#allocation2 + $0x140] sm:$0xff]
        %v3361 = vld [vmem:[#allocation2 + $0x148] sm:$0xff]
        %v3362 = vld [vmem:[#allocation2 + $0x150] sm:$0xff]
        %v3363 = vld [vmem:[#allocation2 + $0x158] sm:$0xff]
        %v3364 = vld [vmem:[#allocation2 + $0x160] sm:$0xff]
        %v3365 = vld [vmem:[#allocation2 + $0x168] sm:$0xff]
        %v3366 = vld [vmem:[#allocation2 + $0x170] sm:$0xff]
        %v3367 = vld [vmem:[#allocation2 + $0x178] sm:$0xff]
        %v3368 = vld [vmem:[#allocation2 + $0x180] sm:$0xff]
        %v3369 = vld [vmem:[#allocation2 + $0x188] sm:$0xff]
        %v3370 = vld [vmem:[#allocation2 + $0x190] sm:$0xff]
        %v3371 = vld [vmem:[#allocation2 + $0x198] sm:$0xff]
        %v3372 = vld [vmem:[#allocation2 + $0x1a0] sm:$0xff]
        %v3373 = vld [vmem:[#allocation2 + $0x1a8] sm:$0xff]
        %v3374 = vld [vmem:[#allocation2 + $0x1b0] sm:$0xff]
        %v3375 = vld [vmem:[#allocation2 + $0x1b8] sm:$0xff]
        %v3376 = vld [vmem:[#allocation2 + $0x1c0] sm:$0xff]
        %v3377 = vld [vmem:[#allocation2 + $0x1c8] sm:$0xff]
        %v3378 = vld [vmem:[#allocation2 + $0x1d0] sm:$0xff]
        %v3379 = vld [vmem:[#allocation2 + $0x1d8] sm:$0xff]
        %v3380 = vld [vmem:[#allocation2 + $0x1e0] sm:$0xff]
        %v3381 = vld [vmem:[#allocation2 + $0x1e8] sm:$0xff]
        %v3382 = vld [vmem:[#allocation2 + $0x1f0] sm:$0xff]
        %v3383 = vld [vmem:[#allocation2 + $0x1f8] sm:$0xff]
        %v3384 = vld [vmem:[#allocation2 + $0x200] sm:$0xff]
        %v3385 = vld [vmem:[#allocation2 + $0x208] sm:$0xff]
        %v3386 = vld [vmem:[#allocation2 + $0x210] sm:$0xff]
        %v3387 = vld [vmem:[#allocation2 + $0x218] sm:$0xff]
        %v3388 = vld [vmem:[#allocation2 + $0x220] sm:$0xff]
        %v3389 = vld [vmem:[#allocation2 + $0x228] sm:$0xff]
        %v3390 = vld [vmem:[#allocation2 + $0x230] sm:$0xff]
        %v3391 = vld [vmem:[#allocation2 + $0x238] sm:$0xff]
        %v3392 = vld [vmem:[#allocation2 + $0x240] sm:$0xff]
        %v3393 = vld [vmem:[#allocation2 + $0x248] sm:$0xff]
        %v3394 = vld [vmem:[#allocation2 + $0x250] sm:$0xff]
        %v3395 = vld [vmem:[#allocation2 + $0x258] sm:$0xff]
        %v3396 = vld [vmem:[#allocation2 + $0x260] sm:$0xff]
        %v3397 = vld [vmem:[#allocation2 + $0x268] sm:$0xff]
        %v3398 = vld [vmem:[#allocation2 + $0x270] sm:$0xff]
        %v3399 = vld [vmem:[#allocation2 + $0x278] sm:$0xff]
        %v3400 = vld [vmem:[#allocation2 + $0x280] sm:$0xff]
        %v3401 = vld [vmem:[#allocation2 + $0x288] sm:$0xff]
        %v3402 = vld [vmem:[#allocation2 + $0x290] sm:$0xff]
        %v3403 = vld [vmem:[#allocation2 + $0x298] sm:$0xff]
        %v3404 = vld [vmem:[#allocation2 + $0x2a0] sm:$0xff]
        %v3405 = vld [vmem:[#allocation2 + $0x2a8] sm:$0xff]
        %v3406 = vld [vmem:[#allocation2 + $0x2b0] sm:$0xff]
        %v3407 = vld [vmem:[#allocation2 + $0x2b8] sm:$0xff]
        %v3408 = vld [vmem:[#allocation2 + $0x2c0] sm:$0xff]
        %v3409 = vld [vmem:[#allocation2 + $0x2c8] sm:$0xff]
        %v3410 = vld [vmem:[#allocation2 + $0x2d0] sm:$0xff]
        %v3411 = vld [vmem:[#allocation2 + $0x2d8] sm:$0xff]
        %v3412 = vld [vmem:[#allocation2 + $0x2e0] sm:$0xff]
        %v3413 = vld [vmem:[#allocation2 + $0x2e8] sm:$0xff]
        %v3414 = vld [vmem:[#allocation2 + $0x2f0] sm:$0xff]
        %v3415 = vld [vmem:[#allocation2 + $0x2f8] sm:$0xff]
        %v3416 = vld [vmem:[#allocation2 + $0x300] sm:$0xff]
        %v3417 = vld [vmem:[#allocation2 + $0x308] sm:$0xff]
        %v3418 = vld [vmem:[%s1] sm:$0xf]
        %v3419 = vld [vmem:[%s1 + $0x4] sm:$0xf]
        %v3420 = vld [vmem:[%s1 + $0x8] sm:$0xf]
        %v3421 = vld [vmem:[%s1 + $0xc] sm:$0xf]
        %v3422 = vld [vmem:[%s1 + $0x10] sm:$0xf]
        %v3423 = vld [vmem:[%s1 + $0x14] sm:$0xf]
        %v3424 = vld [vmem:[%s1 + $0x18] sm:$0xf]
        %v3425 = vld [vmem:[%s1 + $0x1c] sm:$0xf]
        %v3426 = vld [vmem:[%s1 + $0x20] sm:$0xf]
        %v3427 = vld [vmem:[%s1 + $0x24] sm:$0xf]
        %v3428 = vld [vmem:[%s1 + $0x28] sm:$0xf]
        %v3429 = vld [vmem:[%s1 + $0x2c] sm:$0xf]
        %v3430 = vld [vmem:[%s1 + $0x30] sm:$0xf]
        %v3431 = vld [vmem:[%s1 + $0x34] sm:$0xf]
        %v3432 = vld [vmem:[%s1 + $0x38] sm:$0xf]
        %v3433 = vld [vmem:[%s1 + $0x3c] sm:$0xf]
        %v3434 = vld [vmem:[%s1 + $0x40] sm:$0xf]
        %v3435 = vld [vmem:[%s1 + $0x44] sm:$0xf]
        %v3436 = vld [vmem:[%s1 + $0x48] sm:$0xf]
        %v3437 = vld [vmem:[%s1 + $0x4c] sm:$0xf]
        %v3438 = vld [vmem:[%s1 + $0x50] sm:$0xf]
        %v3439 = vld [vmem:[%s1 + $0x54] sm:$0xf]
        %v3440 = vld [vmem:[%s1 + $0x58] sm:$0xf]
        %v3441 = vld [vmem:[%s1 + $0x5c] sm:$0xf]
        %v3466 = vunpack.c.l.b16 %v3418
        %v3467 = vunpack.c.l.b16 %v3419
        %v3468 = vunpack.c.l.b16 %v3420
        %v3469 = vunpack.c.l.b16 %v3421
        %v3470 = vunpack.c.l.b16 %v3422
        %v3471 = vunpack.c.l.b16 %v3423
        %v3472 = vunpack.c.l.b16 %v3424
        %v3473 = vunpack.c.l.b16 %v3425
        %v3474 = vunpack.c.l.b16 %v3426
        %v3475 = vunpack.c.l.b16 %v3427
        %v3476 = vunpack.c.l.b16 %v3428
        %v3477 = vunpack.c.l.b16 %v3429
        %v3478 = vunpack.c.l.b16 %v3430
        %v3479 = vunpack.c.l.b16 %v3431
        %v3480 = vunpack.c.l.b16 %v3432
        %v3481 = vunpack.c.l.b16 %v3433
        %v3482 = vunpack.c.l.b16 %v3434
        %v3483 = vunpack.c.l.b16 %v3435
        %v3484 = vunpack.c.l.b16 %v3436
        %v3485 = vunpack.c.l.b16 %v3437
        %v3486 = vunpack.c.l.b16 %v3438
        %v3487 = vunpack.c.l.b16 %v3439
        %v3488 = vunpack.c.l.b16 %v3440
        %v3489 = vunpack.c.l.b16 %v3441
        %v3490 = vpack.c.b16 %v3467, %v3466
        %v3491 = vpack.c.b16 %v3469, %v3468
        %v3492 = vpack.c.b16 %v3471, %v3470
        %v3493 = vpack.c.b16 %v3473, %v3472
        %v3494 = vpack.c.b16 %v3475, %v3474
        %v3495 = vpack.c.b16 %v3477, %v3476
        %v3496 = vpack.c.b16 %v3479, %v3478
        %v3497 = vpack.c.b16 %v3481, %v3480
        %v3498 = vpack.c.b16 %v3483, %v3482
        %v3499 = vpack.c.b16 %v3485, %v3484
        %v3500 = vpack.c.b16 %v3487, %v3486
        %v3501 = vpack.c.b16 %v3489, %v3488
        %v3515 = vsel %vm1098, %v3321, 0
        %v3518 = vsel %vm1098, %v3323, 0
        %v3521 = vsel %vm1098, %v3325, 0
        %v3524 = vsel %vm1098, %v3327, 0
        %v3527 = vsel %vm1098, %v3329, 0
        %v3530 = vsel %vm1098, %v3331, 0
        %v3533 = vsel %vm1098, %v3333, 0
        %v3536 = vsel %vm1098, %v3335, 0
        %v3539 = vsel %vm1098, %v3337, 0
        %v3542 = vsel %vm1098, %v3339, 0
        %v3545 = vsel %vm1098, %v3341, 0
        %v3548 = vsel %vm1098, %v3343, 0
        %v3551 = vsel %vm1098, %v3345, 0
        %v3554 = vsel %vm1098, %v3347, 0
        %v3557 = vsel %vm1098, %v3349, 0
        %v3560 = vsel %vm1098, %v3351, 0
        %v3563 = vsel %vm1098, %v3353, 0
        %v3566 = vsel %vm1098, %v3355, 0
        %v3569 = vsel %vm1098, %v3357, 0
        %v3572 = vsel %vm1098, %v3359, 0
        %v3575 = vsel %vm1098, %v3361, 0
        %v3578 = vsel %vm1098, %v3363, 0
        %v3581 = vsel %vm1098, %v3365, 0
        %v3584 = vsel %vm1098, %v3367, 0
        %v3587 = vsel %vm1098, %v3369, 0
        %v3590 = vsel %vm1098, %v3371, 0
        %v3593 = vsel %vm1098, %v3373, 0
        %v3596 = vsel %vm1098, %v3375, 0
        %v3599 = vsel %vm1098, %v3377, 0
        %v3602 = vsel %vm1098, %v3379, 0
        %v3605 = vsel %vm1098, %v3381, 0
        %v3608 = vsel %vm1098, %v3383, 0
        %v3611 = vsel %vm1098, %v3385, 0
        %v3614 = vsel %vm1098, %v3387, 0
        %v3617 = vsel %vm1098, %v3389, 0
        %v3620 = vsel %vm1098, %v3391, 0
        %v3623 = vsel %vm1098, %v3393, 0
        %v3626 = vsel %vm1098, %v3395, 0
        %v3629 = vsel %vm1098, %v3397, 0
        %v3632 = vsel %vm1098, %v3399, 0
        %v3635 = vsel %vm1098, %v3401, 0
        %v3638 = vsel %vm1098, %v3403, 0
        %v3641 = vsel %vm1098, %v3405, 0
        %v3644 = vsel %vm1098, %v3407, 0
        %v3647 = vsel %vm1098, %v3409, 0
        %v3650 = vsel %vm1098, %v3411, 0
        %v3653 = vsel %vm1098, %v3413, 0
        %v3656 = vsel %vm1098, %v3415, 0
        %v3659 = vsel %vm1098, %v3417, 0
        %3661 = vmatprep.subr.bf16.mxu0 0
        %3662 = vmatpush1.bf16.msra.mxu0 %v3490
        %3663 = vmatprep.subr.bf16.mxu0 0
        %3664 = vmatpush1.bf16.msra.mxu0 %v3491
        %3665 = vmatprep.subr.bf16.mxu0 0
        %3666 = vmatpush1.bf16.msra.mxu0 %v3492
        %3667 = vmatprep.subr.bf16.mxu0 0
        %3668 = vmatpush1.bf16.msra.mxu0 %v3493
        %3669 = vmatprep.subr.bf16.mxu0 0
        %3670 = vmatpush1.bf16.msra.mxu0 %v3494
        %3671 = vmatprep.subr.bf16.mxu0 0
        %3672 = vmatpush1.bf16.msra.mxu0 %v3495
        %3673 = vmatprep.subr.bf16.mxu0 0
        %3674 = vmatpush1.bf16.msra.mxu0 %v3496
        %3675 = vmatprep.subr.bf16.mxu0 0
        %3676 = vmatpush1.bf16.msra.mxu0 %v3497
        %3677 = vmatprep.subr.bf16.mxu0 0
        %3678 = vmatpush1.bf16.msra.mxu0 %v3498
        %3679 = vmatprep.subr.bf16.mxu0 0
        %3680 = vmatpush1.bf16.msra.mxu0 %v3499
        %3681 = vmatprep.subr.bf16.mxu0 0
        %3682 = vmatpush1.bf16.msra.mxu0 %v3500
        %3683 = vmatprep.subr.bf16.mxu0 0
        %3684 = vmatpush1.bf16.msra.mxu0 %v3501
        %3685 = vmatprep.subr.bf16.mxu0 0
        %3686 = vmatpush1.bf16.msra.mxu0 0
        %3687 = vmatprep.subr.bf16.mxu0 0
        %3688 = vmatpush1.bf16.msra.mxu0 0
        %3689 = vmatprep.subr.bf16.mxu0 0
        %3690 = vmatpush1.bf16.msra.mxu0 0
        %3691 = vmatprep.subr.bf16.mxu0 0
        %3692 = vmatpush1.bf16.msra.mxu0 0
        %3693 = vmatprep.mubr.bf16.mxu0 %v3515
        %3694 = vmatmul.mubr.bf16.gmra.mrb[0].mxu0 %v3320
        %v3695 = vpop.f32.mrb[0].mxu0
        %v3696 = vadd.f32 0.0, %v3695
        %v3697 = vpop.f32.mrb[0].mxu0
        %v3698 = vpop.f32.mrb[0].mxu0
        %v3699 = vadd.f32 0.0, %v3698
        %v3700 = vpop.f32.mrb[0].mxu0
        %3701 = vmatprep.mubr.bf16.mxu0 %v3518
        %3702 = vmatmul.mubr.bf16.gmra.mrb[0].mxu0 %v3322
        %v3703 = vpop.f32.mrb[0].mxu0
        %v3704 = vadd.f32 0.0, %v3703
        %v3705 = vpop.f32.mrb[0].mxu0
        %v3706 = vpop.f32.mrb[0].mxu0
        %v3707 = vadd.f32 0.0, %v3706
        %v3708 = vpop.f32.mrb[0].mxu0
        %3709 = vmatprep.mubr.bf16.mxu0 %v3521
        %3710 = vmatmul.mubr.bf16.gmra.mrb[0].mxu0 %v3324
        %v3711 = vpop.f32.mrb[0].mxu0
        %v3712 = vadd.f32 0.0, %v3711
        %v3713 = vpop.f32.mrb[0].mxu0
        %v3714 = vpop.f32.mrb[0].mxu0
        %v3715 = vadd.f32 0.0, %v3714
        %v3716 = vpop.f32.mrb[0].mxu0
        %3717 = vmatprep.mubr.bf16.mxu0 %v3524
        %3718 = vmatmul.mubr.bf16.gmra.mrb[0].mxu0 %v3326
        %v3719 = vpop.f32.mrb[0].mxu0
        %v3720 = vadd.f32 0.0, %v3719
        %v3721 = vpop.f32.mrb[0].mxu0
        %v3722 = vpop.f32.mrb[0].mxu0
        %v3723 = vadd.f32 0.0, %v3722
        %v3724 = vpop.f32.mrb[0].mxu0
        %3725 = vmatprep.mubr.bf16.mxu0 %v3527
        %3726 = vmatmul.mubr.bf16.gmra.mrb[0].mxu0 %v3328
        %v3727 = vpop.f32.mrb[0].mxu0
        %v3728 = vadd.f32 0.0, %v3727
        %v3729 = vpop.f32.mrb[0].mxu0
        %v3730 = vpop.f32.mrb[0].mxu0
        %v3731 = vadd.f32 0.0, %v3730
        %v3732 = vpop.f32.mrb[0].mxu0
        %3733 = vmatprep.mubr.bf16.mxu0 %v3530
        %3734 = vmatmul.mubr.bf16.gmra.mrb[0].mxu0 %v3330
        %v3735 = vpop.f32.mrb[0].mxu0
        %v3736 = vadd.f32 0.0, %v3735
        %v3737 = vpop.f32.mrb[0].mxu0
        %v3738 = vpop.f32.mrb[0].mxu0
        %v3739 = vadd.f32 0.0, %v3738
        %v3740 = vpop.f32.mrb[0].mxu0
        %3741 = vmatprep.mubr.bf16.mxu0 %v3533
        %3742 = vmatmul.mubr.bf16.gmra.mrb[0].mxu0 %v3332
        %v3743 = vpop.f32.mrb[0].mxu0
        %v3744 = vadd.f32 0.0, %v3743
        %v3745 = vpop.f32.mrb[0].mxu0
        %v3746 = vpop.f32.mrb[0].mxu0
        %v3747 = vadd.f32 0.0, %v3746
        %v3748 = vpop.f32.mrb[0].mxu0
        %3749 = vmatprep.mubr.bf16.mxu0 %v3536
        %3750 = vmatmul.mubr.bf16.gmra.mrb[0].mxu0 %v3334
        %v3751 = vpop.f32.mrb[0].mxu0
        %v3752 = vadd.f32 0.0, %v3751
        %v3753 = vpop.f32.mrb[0].mxu0
        %v3754 = vpop.f32.mrb[0].mxu0
        %v3755 = vadd.f32 0.0, %v3754
        %v3756 = vpop.f32.mrb[0].mxu0
        %3757 = vmatprep.mubr.bf16.mxu0 %v3539
        %3758 = vmatmul.mubr.bf16.gmra.mrb[0].mxu0 %v3336
        %v3759 = vpop.f32.mrb[0].mxu0
        %v3760 = vadd.f32 0.0, %v3759
        %v3761 = vpop.f32.mrb[0].mxu0
        %v3762 = vpop.f32.mrb[0].mxu0
        %v3763 = vadd.f32 0.0, %v3762
        %v3764 = vpop.f32.mrb[0].mxu0
        %3765 = vmatprep.mubr.bf16.mxu0 %v3542
        %3766 = vmatmul.mubr.bf16.gmra.mrb[0].mxu0 %v3338
        %v3767 = vpop.f32.mrb[0].mxu0
        %v3768 = vadd.f32 0.0, %v3767
        %v3769 = vpop.f32.mrb[0].mxu0
        %v3770 = vpop.f32.mrb[0].mxu0
        %v3771 = vadd.f32 0.0, %v3770
        %v3772 = vpop.f32.mrb[0].mxu0
        %3773 = vmatprep.mubr.bf16.mxu0 %v3545
        %3774 = vmatmul.mubr.bf16.gmra.mrb[0].mxu0 %v3340
        %v3775 = vpop.f32.mrb[0].mxu0
        %v3776 = vadd.f32 0.0, %v3775
        %v3777 = vpop.f32.mrb[0].mxu0
        %v3778 = vpop.f32.mrb[0].mxu0
        %v3779 = vadd.f32 0.0, %v3778
        %v3780 = vpop.f32.mrb[0].mxu0
        %3781 = vmatprep.mubr.bf16.mxu0 %v3548
        %3782 = vmatmul.mubr.bf16.gmra.mrb[0].mxu0 %v3342
        %v3783 = vpop.f32.mrb[0].mxu0
        %v3784 = vadd.f32 0.0, %v3783
        %v3785 = vpop.f32.mrb[0].mxu0
        %v3786 = vpop.f32.mrb[0].mxu0
        %v3787 = vadd.f32 0.0, %v3786
        %v3788 = vpop.f32.mrb[0].mxu0
        %3789 = vmatprep.mubr.bf16.mxu0 %v3551
        %3790 = vmatmul.mubr.bf16.gmra.mrb[0].mxu0 %v3344
        %v3791 = vpop.f32.mrb[0].mxu0
        %v3792 = vadd.f32 0.0, %v3791
        %v3793 = vpop.f32.mrb[0].mxu0
        %v3794 = vpop.f32.mrb[0].mxu0
        %v3795 = vadd.f32 0.0, %v3794
        %v3796 = vpop.f32.mrb[0].mxu0
        %3797 = vmatprep.mubr.bf16.mxu0 %v3554
        %3798 = vmatmul.mubr.bf16.gmra.mrb[0].mxu0 %v3346
        %v3799 = vpop.f32.mrb[0].mxu0
        %v3800 = vadd.f32 0.0, %v3799
        %v3801 = vpop.f32.mrb[0].mxu0
        %v3802 = vpop.f32.mrb[0].mxu0
        %v3803 = vadd.f32 0.0, %v3802
        %v3804 = vpop.f32.mrb[0].mxu0
        %3805 = vmatprep.mubr.bf16.mxu0 %v3557
        %3806 = vmatmul.mubr.bf16.gmra.mrb[0].mxu0 %v3348
        %v3807 = vpop.f32.mrb[0].mxu0
        %v3808 = vadd.f32 0.0, %v3807
        %v3809 = vpop.f32.mrb[0].mxu0
        %v3810 = vpop.f32.mrb[0].mxu0
        %v3811 = vadd.f32 0.0, %v3810
        %v3812 = vpop.f32.mrb[0].mxu0
        %3813 = vmatprep.mubr.bf16.mxu0 %v3560
        %3814 = vmatmul.mubr.bf16.gmra.mrb[0].mxu0 %v3350
        %v3815 = vpop.f32.mrb[0].mxu0
        %v3816 = vadd.f32 0.0, %v3815
        %v3817 = vpop.f32.mrb[0].mxu0
        %v3818 = vpop.f32.mrb[0].mxu0
        %v3819 = vadd.f32 0.0, %v3818
        %v3820 = vpop.f32.mrb[0].mxu0
        %3821 = vmatprep.mubr.bf16.mxu0 %v3563
        %3822 = vmatmul.mubr.bf16.gmra.mrb[0].mxu0 %v3352
        %v3823 = vpop.f32.mrb[0].mxu0
        %v3824 = vadd.f32 0.0, %v3823
        %v3825 = vpop.f32.mrb[0].mxu0
        %v3826 = vpop.f32.mrb[0].mxu0
        %v3827 = vadd.f32 0.0, %v3826
        %v3828 = vpop.f32.mrb[0].mxu0
        %3829 = vmatprep.mubr.bf16.mxu0 %v3566
        %3830 = vmatmul.mubr.bf16.gmra.mrb[0].mxu0 %v3354
        %v3831 = vpop.f32.mrb[0].mxu0
        %v3832 = vadd.f32 0.0, %v3831
        %v3833 = vpop.f32.mrb[0].mxu0
        %v3834 = vpop.f32.mrb[0].mxu0
        %v3835 = vadd.f32 0.0, %v3834
        %v3836 = vpop.f32.mrb[0].mxu0
        %3837 = vmatprep.mubr.bf16.mxu0 %v3569
        %3838 = vmatmul.mubr.bf16.gmra.mrb[0].mxu0 %v3356
        %v3839 = vpop.f32.mrb[0].mxu0
        %v3840 = vadd.f32 0.0, %v3839
        %v3841 = vpop.f32.mrb[0].mxu0
        %v3842 = vpop.f32.mrb[0].mxu0
        %v3843 = vadd.f32 0.0, %v3842
        %v3844 = vpop.f32.mrb[0].mxu0
        %3845 = vmatprep.mubr.bf16.mxu0 %v3572
        %3846 = vmatmul.mubr.bf16.gmra.mrb[0].mxu0 %v3358
        %v3847 = vpop.f32.mrb[0].mxu0
        %v3848 = vadd.f32 0.0, %v3847
        %v3849 = vpop.f32.mrb[0].mxu0
        %v3850 = vpop.f32.mrb[0].mxu0
        %v3851 = vadd.f32 0.0, %v3850
        %v3852 = vpop.f32.mrb[0].mxu0
        %3853 = vmatprep.mubr.bf16.mxu0 %v3575
        %3854 = vmatmul.mubr.bf16.gmra.mrb[0].mxu0 %v3360
        %v3855 = vpop.f32.mrb[0].mxu0
        %v3856 = vadd.f32 0.0, %v3855
        %v3857 = vpop.f32.mrb[0].mxu0
        %v3858 = vpop.f32.mrb[0].mxu0
        %v3859 = vadd.f32 0.0, %v3858
        %v3860 = vpop.f32.mrb[0].mxu0
        %3861 = vmatprep.mubr.bf16.mxu0 %v3578
        %3862 = vmatmul.mubr.bf16.gmra.mrb[0].mxu0 %v3362
        %v3863 = vpop.f32.mrb[0].mxu0
        %v3864 = vadd.f32 0.0, %v3863
        %v3865 = vpop.f32.mrb[0].mxu0
        %v3866 = vpop.f32.mrb[0].mxu0
        %v3867 = vadd.f32 0.0, %v3866
        %v3868 = vpop.f32.mrb[0].mxu0
        %3869 = vmatprep.mubr.bf16.mxu0 %v3581
        %3870 = vmatmul.mubr.bf16.gmra.mrb[0].mxu0 %v3364
        %v3871 = vpop.f32.mrb[0].mxu0
        %v3872 = vadd.f32 0.0, %v3871
        %v3873 = vpop.f32.mrb[0].mxu0
        %v3874 = vpop.f32.mrb[0].mxu0
        %v3875 = vadd.f32 0.0, %v3874
        %v3876 = vpop.f32.mrb[0].mxu0
        %3877 = vmatprep.mubr.bf16.mxu0 %v3584
        %3878 = vmatmul.mubr.bf16.gmra.mrb[0].mxu0 %v3366
        %v3879 = vpop.f32.mrb[0].mxu0
        %v3880 = vadd.f32 0.0, %v3879
        %v3881 = vpop.f32.mrb[0].mxu0
        %v3882 = vpop.f32.mrb[0].mxu0
        %v3883 = vadd.f32 0.0, %v3882
        %v3884 = vpop.f32.mrb[0].mxu0
        %3885 = vmatprep.mubr.bf16.mxu0 %v3587
        %3886 = vmatmul.mubr.bf16.gmra.mrb[0].mxu0 %v3368
        %v3887 = vpop.f32.mrb[0].mxu0
        %v3888 = vadd.f32 0.0, %v3887
        %v3889 = vpop.f32.mrb[0].mxu0
        %v3890 = vpop.f32.mrb[0].mxu0
        %v3891 = vadd.f32 0.0, %v3890
        %v3892 = vpop.f32.mrb[0].mxu0
        %3893 = vmatprep.mubr.bf16.mxu0 %v3590
        %3894 = vmatmul.mubr.bf16.gmra.mrb[0].mxu0 %v3370
        %v3895 = vpop.f32.mrb[0].mxu0
        %v3896 = vadd.f32 0.0, %v3895
        %v3897 = vpop.f32.mrb[0].mxu0
        %v3898 = vpop.f32.mrb[0].mxu0
        %v3899 = vadd.f32 0.0, %v3898
        %v3900 = vpop.f32.mrb[0].mxu0
        %3901 = vmatprep.mubr.bf16.mxu0 %v3593
        %3902 = vmatmul.mubr.bf16.gmra.mrb[0].mxu0 %v3372
        %v3903 = vpop.f32.mrb[0].mxu0
        %v3904 = vadd.f32 0.0, %v3903
        %v3905 = vpop.f32.mrb[0].mxu0
        %v3906 = vpop.f32.mrb[0].mxu0
        %v3907 = vadd.f32 0.0, %v3906
        %v3908 = vpop.f32.mrb[0].mxu0
        %3909 = vmatprep.mubr.bf16.mxu0 %v3596
        %3910 = vmatmul.mubr.bf16.gmra.mrb[0].mxu0 %v3374
        %v3911 = vpop.f32.mrb[0].mxu0
        %v3912 = vadd.f32 0.0, %v3911
        %v3913 = vpop.f32.mrb[0].mxu0
        %v3914 = vpop.f32.mrb[0].mxu0
        %v3915 = vadd.f32 0.0, %v3914
        %v3916 = vpop.f32.mrb[0].mxu0
        %3917 = vmatprep.mubr.bf16.mxu0 %v3599
        %3918 = vmatmul.mubr.bf16.gmra.mrb[0].mxu0 %v3376
        %v3919 = vpop.f32.mrb[0].mxu0
        %v3920 = vadd.f32 0.0, %v3919
        %v3921 = vpop.f32.mrb[0].mxu0
        %v3922 = vpop.f32.mrb[0].mxu0
        %v3923 = vadd.f32 0.0, %v3922
        %v3924 = vpop.f32.mrb[0].mxu0
        %3925 = vmatprep.mubr.bf16.mxu0 %v3602
        %3926 = vmatmul.mubr.bf16.gmra.mrb[0].mxu0 %v3378
        %v3927 = vpop.f32.mrb[0].mxu0
        %v3928 = vadd.f32 0.0, %v3927
        %v3929 = vpop.f32.mrb[0].mxu0
        %v3930 = vpop.f32.mrb[0].mxu0
        %v3931 = vadd.f32 0.0, %v3930
        %v3932 = vpop.f32.mrb[0].mxu0
        %3933 = vmatprep.mubr.bf16.mxu0 %v3605
        %3934 = vmatmul.mubr.bf16.gmra.mrb[0].mxu0 %v3380
        %v3935 = vpop.f32.mrb[0].mxu0
        %v3936 = vadd.f32 0.0, %v3935
        %v3937 = vpop.f32.mrb[0].mxu0
        %v3938 = vpop.f32.mrb[0].mxu0
        %v3939 = vadd.f32 0.0, %v3938
        %v3940 = vpop.f32.mrb[0].mxu0
        %3941 = vmatprep.mubr.bf16.mxu0 %v3608
        %3942 = vmatmul.mubr.bf16.gmra.mrb[0].mxu0 %v3382
        %v3943 = vpop.f32.mrb[0].mxu0
        %v3944 = vadd.f32 0.0, %v3943
        %v3945 = vpop.f32.mrb[0].mxu0
        %v3946 = vpop.f32.mrb[0].mxu0
        %v3947 = vadd.f32 0.0, %v3946
        %v3948 = vpop.f32.mrb[0].mxu0
        %3949 = vmatprep.mubr.bf16.mxu0 %v3611
        %3950 = vmatmul.mubr.bf16.gmra.mrb[0].mxu0 %v3384
        %v3951 = vpop.f32.mrb[0].mxu0
        %v3952 = vadd.f32 0.0, %v3951
        %v3953 = vpop.f32.mrb[0].mxu0
        %v3954 = vpop.f32.mrb[0].mxu0
        %v3955 = vadd.f32 0.0, %v3954
        %v3956 = vpop.f32.mrb[0].mxu0
        %3957 = vmatprep.mubr.bf16.mxu0 %v3614
        %3958 = vmatmul.mubr.bf16.gmra.mrb[0].mxu0 %v3386
        %v3959 = vpop.f32.mrb[0].mxu0
        %v3960 = vadd.f32 0.0, %v3959
        %v3961 = vpop.f32.mrb[0].mxu0
        %v3962 = vpop.f32.mrb[0].mxu0
        %v3963 = vadd.f32 0.0, %v3962
        %v3964 = vpop.f32.mrb[0].mxu0
        %3965 = vmatprep.mubr.bf16.mxu0 %v3617
        %3966 = vmatmul.mubr.bf16.gmra.mrb[0].mxu0 %v3388
        %v3967 = vpop.f32.mrb[0].mxu0
        %v3968 = vadd.f32 0.0, %v3967
        %v3969 = vpop.f32.mrb[0].mxu0
        %v3970 = vpop.f32.mrb[0].mxu0
        %v3971 = vadd.f32 0.0, %v3970
        %v3972 = vpop.f32.mrb[0].mxu0
        %3973 = vmatprep.mubr.bf16.mxu0 %v3620
        %3974 = vmatmul.mubr.bf16.gmra.mrb[0].mxu0 %v3390
        %v3975 = vpop.f32.mrb[0].mxu0
        %v3976 = vadd.f32 0.0, %v3975
        %v3977 = vpop.f32.mrb[0].mxu0
        %v3978 = vpop.f32.mrb[0].mxu0
        %v3979 = vadd.f32 0.0, %v3978
        %v3980 = vpop.f32.mrb[0].mxu0
        %3981 = vmatprep.mubr.bf16.mxu0 %v3623
        %3982 = vmatmul.mubr.bf16.gmra.mrb[0].mxu0 %v3392
        %v3983 = vpop.f32.mrb[0].mxu0
        %v3984 = vadd.f32 0.0, %v3983
        %v3985 = vpop.f32.mrb[0].mxu0
        %v3986 = vpop.f32.mrb[0].mxu0
        %v3987 = vadd.f32 0.0, %v3986
        %v3988 = vpop.f32.mrb[0].mxu0
        %3989 = vmatprep.mubr.bf16.mxu0 %v3626
        %3990 = vmatmul.mubr.bf16.gmra.mrb[0].mxu0 %v3394
        %v3991 = vpop.f32.mrb[0].mxu0
        %v3992 = vadd.f32 0.0, %v3991
        %v3993 = vpop.f32.mrb[0].mxu0
        %v3994 = vpop.f32.mrb[0].mxu0
        %v3995 = vadd.f32 0.0, %v3994
        %v3996 = vpop.f32.mrb[0].mxu0
        %3997 = vmatprep.mubr.bf16.mxu0 %v3629
        %3998 = vmatmul.mubr.bf16.gmra.mrb[0].mxu0 %v3396
        %v3999 = vpop.f32.mrb[0].mxu0
        %v4000 = vadd.f32 0.0, %v3999
        %v4001 = vpop.f32.mrb[0].mxu0
        %v4002 = vpop.f32.mrb[0].mxu0
        %v4003 = vadd.f32 0.0, %v4002
        %v4004 = vpop.f32.mrb[0].mxu0
        %4005 = vmatprep.mubr.bf16.mxu0 %v3632
        %4006 = vmatmul.mubr.bf16.gmra.mrb[0].mxu0 %v3398
        %v4007 = vpop.f32.mrb[0].mxu0
        %v4008 = vadd.f32 0.0, %v4007
        %v4009 = vpop.f32.mrb[0].mxu0
        %v4010 = vpop.f32.mrb[0].mxu0
        %v4011 = vadd.f32 0.0, %v4010
        %v4012 = vpop.f32.mrb[0].mxu0
        %4013 = vmatprep.mubr.bf16.mxu0 %v3635
        %4014 = vmatmul.mubr.bf16.gmra.mrb[0].mxu0 %v3400
        %v4015 = vpop.f32.mrb[0].mxu0
        %v4016 = vadd.f32 0.0, %v4015
        %v4017 = vpop.f32.mrb[0].mxu0
        %v4018 = vpop.f32.mrb[0].mxu0
        %v4019 = vadd.f32 0.0, %v4018
        %v4020 = vpop.f32.mrb[0].mxu0
        %4021 = vmatprep.mubr.bf16.mxu0 %v3638
        %4022 = vmatmul.mubr.bf16.gmra.mrb[0].mxu0 %v3402
        %v4023 = vpop.f32.mrb[0].mxu0
        %v4024 = vadd.f32 0.0, %v4023
        %v4025 = vpop.f32.mrb[0].mxu0
        %v4026 = vpop.f32.mrb[0].mxu0
        %v4027 = vadd.f32 0.0, %v4026
        %v4028 = vpop.f32.mrb[0].mxu0
        %4029 = vmatprep.mubr.bf16.mxu0 %v3641
        %4030 = vmatmul.mubr.bf16.gmra.mrb[0].mxu0 %v3404
        %v4031 = vpop.f32.mrb[0].mxu0
        %v4032 = vadd.f32 0.0, %v4031
        %v4033 = vpop.f32.mrb[0].mxu0
        %v4034 = vpop.f32.mrb[0].mxu0
        %v4035 = vadd.f32 0.0, %v4034
        %v4036 = vpop.f32.mrb[0].mxu0
        %4037 = vmatprep.mubr.bf16.mxu0 %v3644
        %4038 = vmatmul.mubr.bf16.gmra.mrb[0].mxu0 %v3406
        %v4039 = vpop.f32.mrb[0].mxu0
        %v4040 = vadd.f32 0.0, %v4039
        %v4041 = vpop.f32.mrb[0].mxu0
        %v4042 = vpop.f32.mrb[0].mxu0
        %v4043 = vadd.f32 0.0, %v4042
        %v4044 = vpop.f32.mrb[0].mxu0
        %4045 = vmatprep.mubr.bf16.mxu0 %v3647
        %4046 = vmatmul.mubr.bf16.gmra.mrb[0].mxu0 %v3408
        %v4047 = vpop.f32.mrb[0].mxu0
        %v4048 = vadd.f32 0.0, %v4047
        %v4049 = vpop.f32.mrb[0].mxu0
        %v4050 = vpop.f32.mrb[0].mxu0
        %v4051 = vadd.f32 0.0, %v4050
        %v4052 = vpop.f32.mrb[0].mxu0
        %4053 = vmatprep.mubr.bf16.mxu0 %v3650
        %4054 = vmatmul.mubr.bf16.gmra.mrb[0].mxu0 %v3410
        %v4055 = vpop.f32.mrb[0].mxu0
        %v4056 = vadd.f32 0.0, %v4055
        %v4057 = vpop.f32.mrb[0].mxu0
        %v4058 = vpop.f32.mrb[0].mxu0
        %v4059 = vadd.f32 0.0, %v4058
        %v4060 = vpop.f32.mrb[0].mxu0
        %4061 = vmatprep.mubr.bf16.mxu0 %v3653
        %4062 = vmatmul.mubr.bf16.gmra.mrb[0].mxu0 %v3412
        %v4063 = vpop.f32.mrb[0].mxu0
        %v4064 = vadd.f32 0.0, %v4063
        %v4065 = vpop.f32.mrb[0].mxu0
        %v4066 = vpop.f32.mrb[0].mxu0
        %v4067 = vadd.f32 0.0, %v4066
        %v4068 = vpop.f32.mrb[0].mxu0
        %4069 = vmatprep.mubr.bf16.mxu0 %v3656
        %4070 = vmatmul.mubr.bf16.gmra.mrb[0].mxu0 %v3414
        %v4071 = vpop.f32.mrb[0].mxu0
        %v4072 = vadd.f32 0.0, %v4071
        %v4073 = vpop.f32.mrb[0].mxu0
        %v4074 = vpop.f32.mrb[0].mxu0
        %v4075 = vadd.f32 0.0, %v4074
        %v4076 = vpop.f32.mrb[0].mxu0
        %4077 = vmatprep.mubr.bf16.mxu0 %v3659
        %4078 = vmatmul.mubr.bf16.gmra.mrb[0].mxu0 %v3416
        %v4079 = vpop.f32.mrb[0].mxu0
        %v4080 = vadd.f32 0.0, %v4079
        %v4081 = vpop.f32.mrb[0].mxu0
        %v4082 = vpop.f32.mrb[0].mxu0
        %v4083 = vadd.f32 0.0, %v4082
        %v4084 = vpop.f32.mrb[0].mxu0
        %4085 = vdwg.mxu0
        %v4086 = vld [vmem:[%s2] sm:$0x1]
        %v4088 = vlaneseq
        %v4089 = vshrl.u32 %v4088, 7
        %v4090 = vsub.s32 0, %v4089
        %v4091 = vrot.slane %v4086, %v4090
        %v4093 = vmul.f32 %v3696, %v4091
        %v4094 = vmul.f32 %v3699, %v4091
        %v4095 = vmul.f32 %v3704, %v4091
        %v4096 = vmul.f32 %v3707, %v4091
        %v4097 = vmul.f32 %v3712, %v4091
        %v4098 = vmul.f32 %v3715, %v4091
        %v4099 = vmul.f32 %v3720, %v4091
        %v4100 = vmul.f32 %v3723, %v4091
        %v4101 = vmul.f32 %v3728, %v4091
        %v4102 = vmul.f32 %v3731, %v4091
        %v4103 = vmul.f32 %v3736, %v4091
        %v4104 = vmul.f32 %v3739, %v4091
        %v4105 = vmul.f32 %v3744, %v4091
        %v4106 = vmul.f32 %v3747, %v4091
        %v4107 = vmul.f32 %v3752, %v4091
        %v4108 = vmul.f32 %v3755, %v4091
        %v4109 = vmul.f32 %v3760, %v4091
        %v4110 = vmul.f32 %v3763, %v4091
        %v4111 = vmul.f32 %v3768, %v4091
        %v4112 = vmul.f32 %v3771, %v4091
        %v4113 = vmul.f32 %v3776, %v4091
        %v4114 = vmul.f32 %v3779, %v4091
        %v4115 = vmul.f32 %v3784, %v4091
        %v4116 = vmul.f32 %v3787, %v4091
        %v4117 = vmul.f32 %v3792, %v4091
        %v4118 = vmul.f32 %v3795, %v4091
        %v4119 = vmul.f32 %v3800, %v4091
        %v4120 = vmul.f32 %v3803, %v4091
        %v4121 = vmul.f32 %v3808, %v4091
        %v4122 = vmul.f32 %v3811, %v4091
        %v4123 = vmul.f32 %v3816, %v4091
        %v4124 = vmul.f32 %v3819, %v4091
        %v4125 = vmul.f32 %v3824, %v4091
        %v4126 = vmul.f32 %v3827, %v4091
        %v4127 = vmul.f32 %v3832, %v4091
        %v4128 = vmul.f32 %v3835, %v4091
        %v4129 = vmul.f32 %v3840, %v4091
        %v4130 = vmul.f32 %v3843, %v4091
        %v4131 = vmul.f32 %v3848, %v4091
        %v4132 = vmul.f32 %v3851, %v4091
        %v4133 = vmul.f32 %v3856, %v4091
        %v4134 = vmul.f32 %v3859, %v4091
        %v4135 = vmul.f32 %v3864, %v4091
        %v4136 = vmul.f32 %v3867, %v4091
        %v4137 = vmul.f32 %v3872, %v4091
        %v4138 = vmul.f32 %v3875, %v4091
        %v4139 = vmul.f32 %v3880, %v4091
        %v4140 = vmul.f32 %v3883, %v4091
        %v4141 = vmul.f32 %v3888, %v4091
        %v4142 = vmul.f32 %v3891, %v4091
        %v4143 = vmul.f32 %v3896, %v4091
        %v4144 = vmul.f32 %v3899, %v4091
        %v4145 = vmul.f32 %v3904, %v4091
        %v4146 = vmul.f32 %v3907, %v4091
        %v4147 = vmul.f32 %v3912, %v4091
        %v4148 = vmul.f32 %v3915, %v4091
        %v4149 = vmul.f32 %v3920, %v4091
        %v4150 = vmul.f32 %v3923, %v4091
        %v4151 = vmul.f32 %v3928, %v4091
        %v4152 = vmul.f32 %v3931, %v4091
        %v4153 = vmul.f32 %v3936, %v4091
        %v4154 = vmul.f32 %v3939, %v4091
        %v4155 = vmul.f32 %v3944, %v4091
        %v4156 = vmul.f32 %v3947, %v4091
        %v4157 = vmul.f32 %v3952, %v4091
        %v4158 = vmul.f32 %v3955, %v4091
        %v4159 = vmul.f32 %v3960, %v4091
        %v4160 = vmul.f32 %v3963, %v4091
        %v4161 = vmul.f32 %v3968, %v4091
        %v4162 = vmul.f32 %v3971, %v4091
        %v4163 = vmul.f32 %v3976, %v4091
        %v4164 = vmul.f32 %v3979, %v4091
        %v4165 = vmul.f32 %v3984, %v4091
        %v4166 = vmul.f32 %v3987, %v4091
        %v4167 = vmul.f32 %v3992, %v4091
        %v4168 = vmul.f32 %v3995, %v4091
        %v4169 = vmul.f32 %v4000, %v4091
        %v4170 = vmul.f32 %v4003, %v4091
        %v4171 = vmul.f32 %v4008, %v4091
        %v4172 = vmul.f32 %v4011, %v4091
        %v4173 = vmul.f32 %v4016, %v4091
        %v4174 = vmul.f32 %v4019, %v4091
        %v4175 = vmul.f32 %v4024, %v4091
        %v4176 = vmul.f32 %v4027, %v4091
        %v4177 = vmul.f32 %v4032, %v4091
        %v4178 = vmul.f32 %v4035, %v4091
        %v4179 = vmul.f32 %v4040, %v4091
        %v4180 = vmul.f32 %v4043, %v4091
        %v4181 = vmul.f32 %v4048, %v4091
        %v4182 = vmul.f32 %v4051, %v4091
        %v4183 = vmul.f32 %v4056, %v4091
        %v4184 = vmul.f32 %v4059, %v4091
        %v4185 = vmul.f32 %v4064, %v4091
        %v4186 = vmul.f32 %v4067, %v4091
        %v4187 = vmul.f32 %v4072, %v4091
        %v4188 = vmul.f32 %v4075, %v4091
        %v4189 = vmul.f32 %v4080, %v4091
        %v4190 = vmul.f32 %v4083, %v4091
        %v4191 = vld [vmem:[%s3] sm:$0x1]
        %v4193 = vlaneseq
        %v4194 = vshrl.u32 %v4193, 7
        %v4195 = vsub.s32 0, %v4194
        %v4196 = vrot.slane %v4191, %v4195
        %v4198 = vadd.f32 %v4093, %v4196
        %v4199 = vadd.f32 %v4094, %v4196
        %v4200 = vadd.f32 %v4095, %v4196
        %v4201 = vadd.f32 %v4096, %v4196
        %v4202 = vadd.f32 %v4097, %v4196
        %v4203 = vadd.f32 %v4098, %v4196
        %v4204 = vadd.f32 %v4099, %v4196
        %v4205 = vadd.f32 %v4100, %v4196
        %v4206 = vadd.f32 %v4101, %v4196
        %v4207 = vadd.f32 %v4102, %v4196
        %v4208 = vadd.f32 %v4103, %v4196
        %v4209 = vadd.f32 %v4104, %v4196
        %v4210 = vadd.f32 %v4105, %v4196
        %v4211 = vadd.f32 %v4106, %v4196
        %v4212 = vadd.f32 %v4107, %v4196
        %v4213 = vadd.f32 %v4108, %v4196
        %v4214 = vadd.f32 %v4109, %v4196
        %v4215 = vadd.f32 %v4110, %v4196
        %v4216 = vadd.f32 %v4111, %v4196
        %v4217 = vadd.f32 %v4112, %v4196
        %v4218 = vadd.f32 %v4113, %v4196
        %v4219 = vadd.f32 %v4114, %v4196
        %v4220 = vadd.f32 %v4115, %v4196
        %v4221 = vadd.f32 %v4116, %v4196
        %v4222 = vadd.f32 %v4117, %v4196
        %v4223 = vadd.f32 %v4118, %v4196
        %v4224 = vadd.f32 %v4119, %v4196
        %v4225 = vadd.f32 %v4120, %v4196
        %v4226 = vadd.f32 %v4121, %v4196
        %v4227 = vadd.f32 %v4122, %v4196
        %v4228 = vadd.f32 %v4123, %v4196
        %v4229 = vadd.f32 %v4124, %v4196
        %v4230 = vadd.f32 %v4125, %v4196
        %v4231 = vadd.f32 %v4126, %v4196
        %v4232 = vadd.f32 %v4127, %v4196
        %v4233 = vadd.f32 %v4128, %v4196
        %v4234 = vadd.f32 %v4129, %v4196
        %v4235 = vadd.f32 %v4130, %v4196
        %v4236 = vadd.f32 %v4131, %v4196
        %v4237 = vadd.f32 %v4132, %v4196
        %v4238 = vadd.f32 %v4133, %v4196
        %v4239 = vadd.f32 %v4134, %v4196
        %v4240 = vadd.f32 %v4135, %v4196
        %v4241 = vadd.f32 %v4136, %v4196
        %v4242 = vadd.f32 %v4137, %v4196
        %v4243 = vadd.f32 %v4138, %v4196
        %v4244 = vadd.f32 %v4139, %v4196
        %v4245 = vadd.f32 %v4140, %v4196
        %v4246 = vadd.f32 %v4141, %v4196
        %v4247 = vadd.f32 %v4142, %v4196
        %v4248 = vadd.f32 %v4143, %v4196
        %v4249 = vadd.f32 %v4144, %v4196
        %v4250 = vadd.f32 %v4145, %v4196
        %v4251 = vadd.f32 %v4146, %v4196
        %v4252 = vadd.f32 %v4147, %v4196
        %v4253 = vadd.f32 %v4148, %v4196
        %v4254 = vadd.f32 %v4149, %v4196
        %v4255 = vadd.f32 %v4150, %v4196
        %v4256 = vadd.f32 %v4151, %v4196
        %v4257 = vadd.f32 %v4152, %v4196
        %v4258 = vadd.f32 %v4153, %v4196
        %v4259 = vadd.f32 %v4154, %v4196
        %v4260 = vadd.f32 %v4155, %v4196
        %v4261 = vadd.f32 %v4156, %v4196
        %v4262 = vadd.f32 %v4157, %v4196
        %v4263 = vadd.f32 %v4158, %v4196
        %v4264 = vadd.f32 %v4159, %v4196
        %v4265 = vadd.f32 %v4160, %v4196
        %v4266 = vadd.f32 %v4161, %v4196
        %v4267 = vadd.f32 %v4162, %v4196
        %v4268 = vadd.f32 %v4163, %v4196
        %v4269 = vadd.f32 %v4164, %v4196
        %v4270 = vadd.f32 %v4165, %v4196
        %v4271 = vadd.f32 %v4166, %v4196
        %v4272 = vadd.f32 %v4167, %v4196
        %v4273 = vadd.f32 %v4168, %v4196
        %v4274 = vadd.f32 %v4169, %v4196
        %v4275 = vadd.f32 %v4170, %v4196
        %v4276 = vadd.f32 %v4171, %v4196
        %v4277 = vadd.f32 %v4172, %v4196
        %v4278 = vadd.f32 %v4173, %v4196
        %v4279 = vadd.f32 %v4174, %v4196
        %v4280 = vadd.f32 %v4175, %v4196
        %v4281 = vadd.f32 %v4176, %v4196
        %v4282 = vadd.f32 %v4177, %v4196
        %v4283 = vadd.f32 %v4178, %v4196
        %v4284 = vadd.f32 %v4179, %v4196
        %v4285 = vadd.f32 %v4180, %v4196
        %v4286 = vadd.f32 %v4181, %v4196
        %v4287 = vadd.f32 %v4182, %v4196
        %v4288 = vadd.f32 %v4183, %v4196
        %v4289 = vadd.f32 %v4184, %v4196
        %v4290 = vadd.f32 %v4185, %v4196
        %v4291 = vadd.f32 %v4186, %v4196
        %v4292 = vadd.f32 %v4187, %v4196
        %v4293 = vadd.f32 %v4188, %v4196
        %v4294 = vadd.f32 %v4189, %v4196
        %v4295 = vadd.f32 %v4190, %v4196
        %v4296 = vmax.f32 %v4198, 0.0
        %v4297 = vmax.f32 %v4199, 0.0
        %v4298 = vmax.f32 %v4200, 0.0
        %v4299 = vmax.f32 %v4201, 0.0
        %v4300 = vmax.f32 %v4202, 0.0
        %v4301 = vmax.f32 %v4203, 0.0
        %v4302 = vmax.f32 %v4204, 0.0
        %v4303 = vmax.f32 %v4205, 0.0
        %v4304 = vmax.f32 %v4206, 0.0
        %v4305 = vmax.f32 %v4207, 0.0
        %v4306 = vmax.f32 %v4208, 0.0
        %v4307 = vmax.f32 %v4209, 0.0
        %v4308 = vmax.f32 %v4210, 0.0
        %v4309 = vmax.f32 %v4211, 0.0
        %v4310 = vmax.f32 %v4212, 0.0
        %v4311 = vmax.f32 %v4213, 0.0
        %v4312 = vmax.f32 %v4214, 0.0
        %v4313 = vmax.f32 %v4215, 0.0
        %v4314 = vmax.f32 %v4216, 0.0
        %v4315 = vmax.f32 %v4217, 0.0
        %v4316 = vmax.f32 %v4218, 0.0
        %v4317 = vmax.f32 %v4219, 0.0
        %v4318 = vmax.f32 %v4220, 0.0
        %v4319 = vmax.f32 %v4221, 0.0
        %v4320 = vmax.f32 %v4222, 0.0
        %v4321 = vmax.f32 %v4223, 0.0
        %v4322 = vmax.f32 %v4224, 0.0
        %v4323 = vmax.f32 %v4225, 0.0
        %v4324 = vmax.f32 %v4226, 0.0
        %v4325 = vmax.f32 %v4227, 0.0
        %v4326 = vmax.f32 %v4228, 0.0
        %v4327 = vmax.f32 %v4229, 0.0
        %v4328 = vmax.f32 %v4230, 0.0
        %v4329 = vmax.f32 %v4231, 0.0
        %v4330 = vmax.f32 %v4232, 0.0
        %v4331 = vmax.f32 %v4233, 0.0
        %v4332 = vmax.f32 %v4234, 0.0
        %v4333 = vmax.f32 %v4235, 0.0
        %v4334 = vmax.f32 %v4236, 0.0
        %v4335 = vmax.f32 %v4237, 0.0
        %v4336 = vmax.f32 %v4238, 0.0
        %v4337 = vmax.f32 %v4239, 0.0
        %v4338 = vmax.f32 %v4240, 0.0
        %v4339 = vmax.f32 %v4241, 0.0
        %v4340 = vmax.f32 %v4242, 0.0
        %v4341 = vmax.f32 %v4243, 0.0
        %v4342 = vmax.f32 %v4244, 0.0
        %v4343 = vmax.f32 %v4245, 0.0
        %v4344 = vmax.f32 %v4246, 0.0
        %v4345 = vmax.f32 %v4247, 0.0
        %v4346 = vmax.f32 %v4248, 0.0
        %v4347 = vmax.f32 %v4249, 0.0
        %v4348 = vmax.f32 %v4250, 0.0
        %v4349 = vmax.f32 %v4251, 0.0
        %v4350 = vmax.f32 %v4252, 0.0
        %v4351 = vmax.f32 %v4253, 0.0
        %v4352 = vmax.f32 %v4254, 0.0
        %v4353 = vmax.f32 %v4255, 0.0
        %v4354 = vmax.f32 %v4256, 0.0
        %v4355 = vmax.f32 %v4257, 0.0
        %v4356 = vmax.f32 %v4258, 0.0
        %v4357 = vmax.f32 %v4259, 0.0
        %v4358 = vmax.f32 %v4260, 0.0
        %v4359 = vmax.f32 %v4261, 0.0
        %v4360 = vmax.f32 %v4262, 0.0
        %v4361 = vmax.f32 %v4263, 0.0
        %v4362 = vmax.f32 %v4264, 0.0
        %v4363 = vmax.f32 %v4265, 0.0
        %v4364 = vmax.f32 %v4266, 0.0
        %v4365 = vmax.f32 %v4267, 0.0
        %v4366 = vmax.f32 %v4268, 0.0
        %v4367 = vmax.f32 %v4269, 0.0
        %v4368 = vmax.f32 %v4270, 0.0
        %v4369 = vmax.f32 %v4271, 0.0
        %v4370 = vmax.f32 %v4272, 0.0
        %v4371 = vmax.f32 %v4273, 0.0
        %v4372 = vmax.f32 %v4274, 0.0
        %v4373 = vmax.f32 %v4275, 0.0
        %v4374 = vmax.f32 %v4276, 0.0
        %v4375 = vmax.f32 %v4277, 0.0
        %v4376 = vmax.f32 %v4278, 0.0
        %v4377 = vmax.f32 %v4279, 0.0
        %v4378 = vmax.f32 %v4280, 0.0
        %v4379 = vmax.f32 %v4281, 0.0
        %v4380 = vmax.f32 %v4282, 0.0
        %v4381 = vmax.f32 %v4283, 0.0
        %v4382 = vmax.f32 %v4284, 0.0
        %v4383 = vmax.f32 %v4285, 0.0
        %v4384 = vmax.f32 %v4286, 0.0
        %v4385 = vmax.f32 %v4287, 0.0
        %v4386 = vmax.f32 %v4288, 0.0
        %v4387 = vmax.f32 %v4289, 0.0
        %v4388 = vmax.f32 %v4290, 0.0
        %v4389 = vmax.f32 %v4291, 0.0
        %v4390 = vmax.f32 %v4292, 0.0
        %v4391 = vmax.f32 %v4293, 0.0
        %v4392 = vmax.f32 %v4294, 0.0
        %v4393 = vmax.f32 %v4295, 0.0
        %4492 = vrot.lane.b32.xlu0 %v4296, 104
        %v4493 = vpop.permute.xlu0 %4492
        %4494 = vrot.lane.b32.xlu0 %v4297, 104
        %v4495 = vpop.permute.xlu0 %4494
        %4496 = vrot.lane.b32.xlu0 %v4298, 104
        %v4497 = vpop.permute.xlu0 %4496
        %4498 = vrot.lane.b32.xlu0 %v4299, 104
        %v4499 = vpop.permute.xlu0 %4498
        %4500 = vrot.lane.b32.xlu0 %v4300, 104
        %v4501 = vpop.permute.xlu0 %4500
        %4502 = vrot.lane.b32.xlu0 %v4301, 104
        %v4503 = vpop.permute.xlu0 %4502
        %4504 = vrot.lane.b32.xlu0 %v4302, 104
        %v4505 = vpop.permute.xlu0 %4504
        %4506 = vrot.lane.b32.xlu0 %v4303, 104
        %v4507 = vpop.permute.xlu0 %4506
        %4508 = vrot.lane.b32.xlu0 %v4304, 104
        %v4509 = vpop.permute.xlu0 %4508
        %4510 = vrot.lane.b32.xlu0 %v4305, 104
        %v4511 = vpop.permute.xlu0 %4510
        %4512 = vrot.lane.b32.xlu0 %v4306, 104
        %v4513 = vpop.permute.xlu0 %4512
        %4514 = vrot.lane.b32.xlu0 %v4307, 104
        %v4515 = vpop.permute.xlu0 %4514
        %4516 = vrot.lane.b32.xlu0 %v4308, 104
        %v4517 = vpop.permute.xlu0 %4516
        %4518 = vrot.lane.b32.xlu0 %v4309, 104
        %v4519 = vpop.permute.xlu0 %4518
        %4520 = vrot.lane.b32.xlu0 %v4310, 104
        %v4521 = vpop.permute.xlu0 %4520
        %4522 = vrot.lane.b32.xlu0 %v4311, 104
        %v4523 = vpop.permute.xlu0 %4522
        %4524 = vrot.lane.b32.xlu0 %v4312, 104
        %v4525 = vpop.permute.xlu0 %4524
        %4526 = vrot.lane.b32.xlu0 %v4313, 104
        %v4527 = vpop.permute.xlu0 %4526
        %4528 = vrot.lane.b32.xlu0 %v4314, 104
        %v4529 = vpop.permute.xlu0 %4528
        %4530 = vrot.lane.b32.xlu0 %v4315, 104
        %v4531 = vpop.permute.xlu0 %4530
        %4532 = vrot.lane.b32.xlu0 %v4316, 104
        %v4533 = vpop.permute.xlu0 %4532
        %4534 = vrot.lane.b32.xlu0 %v4317, 104
        %v4535 = vpop.permute.xlu0 %4534
        %4536 = vrot.lane.b32.xlu0 %v4318, 104
        %v4537 = vpop.permute.xlu0 %4536
        %4538 = vrot.lane.b32.xlu0 %v4319, 104
        %v4539 = vpop.permute.xlu0 %4538
        %4540 = vrot.lane.b32.xlu0 %v4320, 104
        %v4541 = vpop.permute.xlu0 %4540
        %4542 = vrot.lane.b32.xlu0 %v4321, 104
        %v4543 = vpop.permute.xlu0 %4542
        %4544 = vrot.lane.b32.xlu0 %v4322, 104
        %v4545 = vpop.permute.xlu0 %4544
        %4546 = vrot.lane.b32.xlu0 %v4323, 104
        %v4547 = vpop.permute.xlu0 %4546
        %4548 = vrot.lane.b32.xlu0 %v4324, 104
        %v4549 = vpop.permute.xlu0 %4548
        %4550 = vrot.lane.b32.xlu0 %v4325, 104
        %v4551 = vpop.permute.xlu0 %4550
        %4552 = vrot.lane.b32.xlu0 %v4326, 104
        %v4553 = vpop.permute.xlu0 %4552
        %4554 = vrot.lane.b32.xlu0 %v4327, 104
        %v4555 = vpop.permute.xlu0 %4554
        %4556 = vrot.lane.b32.xlu0 %v4328, 104
        %v4557 = vpop.permute.xlu0 %4556
        %4558 = vrot.lane.b32.xlu0 %v4329, 104
        %v4559 = vpop.permute.xlu0 %4558
        %4560 = vrot.lane.b32.xlu0 %v4330, 104
        %v4561 = vpop.permute.xlu0 %4560
        %4562 = vrot.lane.b32.xlu0 %v4331, 104
        %v4563 = vpop.permute.xlu0 %4562
        %4564 = vrot.lane.b32.xlu0 %v4332, 104
        %v4565 = vpop.permute.xlu0 %4564
        %4566 = vrot.lane.b32.xlu0 %v4333, 104
        %v4567 = vpop.permute.xlu0 %4566
        %4568 = vrot.lane.b32.xlu0 %v4334, 104
        %v4569 = vpop.permute.xlu0 %4568
        %4570 = vrot.lane.b32.xlu0 %v4335, 104
        %v4571 = vpop.permute.xlu0 %4570
        %4572 = vrot.lane.b32.xlu0 %v4336, 104
        %v4573 = vpop.permute.xlu0 %4572
        %4574 = vrot.lane.b32.xlu0 %v4337, 104
        %v4575 = vpop.permute.xlu0 %4574
        %4576 = vrot.lane.b32.xlu0 %v4338, 104
        %v4577 = vpop.permute.xlu0 %4576
        %4578 = vrot.lane.b32.xlu0 %v4339, 104
        %v4579 = vpop.permute.xlu0 %4578
        %4580 = vrot.lane.b32.xlu0 %v4340, 104
        %v4581 = vpop.permute.xlu0 %4580
        %4582 = vrot.lane.b32.xlu0 %v4341, 104
        %v4583 = vpop.permute.xlu0 %4582
        %4584 = vrot.lane.b32.xlu0 %v4342, 104
        %v4585 = vpop.permute.xlu0 %4584
        %4586 = vrot.lane.b32.xlu0 %v4343, 104
        %v4587 = vpop.permute.xlu0 %4586
        %4588 = vrot.lane.b32.xlu0 %v4344, 104
        %v4589 = vpop.permute.xlu0 %4588
        %4590 = vrot.lane.b32.xlu0 %v4345, 104
        %v4591 = vpop.permute.xlu0 %4590
        %4592 = vrot.lane.b32.xlu0 %v4346, 104
        %v4593 = vpop.permute.xlu0 %4592
        %4594 = vrot.lane.b32.xlu0 %v4347, 104
        %v4595 = vpop.permute.xlu0 %4594
        %4596 = vrot.lane.b32.xlu0 %v4348, 104
        %v4597 = vpop.permute.xlu0 %4596
        %4598 = vrot.lane.b32.xlu0 %v4349, 104
        %v4599 = vpop.permute.xlu0 %4598
        %4600 = vrot.lane.b32.xlu0 %v4350, 104
        %v4601 = vpop.permute.xlu0 %4600
        %4602 = vrot.lane.b32.xlu0 %v4351, 104
        %v4603 = vpop.permute.xlu0 %4602
        %4604 = vrot.lane.b32.xlu0 %v4352, 104
        %v4605 = vpop.permute.xlu0 %4604
        %4606 = vrot.lane.b32.xlu0 %v4353, 104
        %v4607 = vpop.permute.xlu0 %4606
        %4608 = vrot.lane.b32.xlu0 %v4354, 104
        %v4609 = vpop.permute.xlu0 %4608
        %4610 = vrot.lane.b32.xlu0 %v4355, 104
        %v4611 = vpop.permute.xlu0 %4610
        %4612 = vrot.lane.b32.xlu0 %v4356, 104
        %v4613 = vpop.permute.xlu0 %4612
        %4614 = vrot.lane.b32.xlu0 %v4357, 104
        %v4615 = vpop.permute.xlu0 %4614
        %4616 = vrot.lane.b32.xlu0 %v4358, 104
        %v4617 = vpop.permute.xlu0 %4616
        %4618 = vrot.lane.b32.xlu0 %v4359, 104
        %v4619 = vpop.permute.xlu0 %4618
        %4620 = vrot.lane.b32.xlu0 %v4360, 104
        %v4621 = vpop.permute.xlu0 %4620
        %4622 = vrot.lane.b32.xlu0 %v4361, 104
        %v4623 = vpop.permute.xlu0 %4622
        %4624 = vrot.lane.b32.xlu0 %v4362, 104
        %v4625 = vpop.permute.xlu0 %4624
        %4626 = vrot.lane.b32.xlu0 %v4363, 104
        %v4627 = vpop.permute.xlu0 %4626
        %4628 = vrot.lane.b32.xlu0 %v4364, 104
        %v4629 = vpop.permute.xlu0 %4628
        %4630 = vrot.lane.b32.xlu0 %v4365, 104
        %v4631 = vpop.permute.xlu0 %4630
        %4632 = vrot.lane.b32.xlu0 %v4366, 104
        %v4633 = vpop.permute.xlu0 %4632
        %4634 = vrot.lane.b32.xlu0 %v4367, 104
        %v4635 = vpop.permute.xlu0 %4634
        %4636 = vrot.lane.b32.xlu0 %v4368, 104
        %v4637 = vpop.permute.xlu0 %4636
        %4638 = vrot.lane.b32.xlu0 %v4369, 104
        %v4639 = vpop.permute.xlu0 %4638
        %4640 = vrot.lane.b32.xlu0 %v4370, 104
        %v4641 = vpop.permute.xlu0 %4640
        %4642 = vrot.lane.b32.xlu0 %v4371, 104
        %v4643 = vpop.permute.xlu0 %4642
        %4644 = vrot.lane.b32.xlu0 %v4372, 104
        %v4645 = vpop.permute.xlu0 %4644
        %4646 = vrot.lane.b32.xlu0 %v4373, 104
        %v4647 = vpop.permute.xlu0 %4646
        %4648 = vrot.lane.b32.xlu0 %v4374, 104
        %v4649 = vpop.permute.xlu0 %4648
        %4650 = vrot.lane.b32.xlu0 %v4375, 104
        %v4651 = vpop.permute.xlu0 %4650
        %4652 = vrot.lane.b32.xlu0 %v4376, 104
        %v4653 = vpop.permute.xlu0 %4652
        %4654 = vrot.lane.b32.xlu0 %v4377, 104
        %v4655 = vpop.permute.xlu0 %4654
        %4656 = vrot.lane.b32.xlu0 %v4378, 104
        %v4657 = vpop.permute.xlu0 %4656
        %4658 = vrot.lane.b32.xlu0 %v4379, 104
        %v4659 = vpop.permute.xlu0 %4658
        %4660 = vrot.lane.b32.xlu0 %v4380, 104
        %v4661 = vpop.permute.xlu0 %4660
        %4662 = vrot.lane.b32.xlu0 %v4381, 104
        %v4663 = vpop.permute.xlu0 %4662
        %4664 = vrot.lane.b32.xlu0 %v4382, 104
        %v4665 = vpop.permute.xlu0 %4664
        %4666 = vrot.lane.b32.xlu0 %v4383, 104
        %v4667 = vpop.permute.xlu0 %4666
        %4668 = vrot.lane.b32.xlu0 %v4384, 104
        %v4669 = vpop.permute.xlu0 %4668
        %4670 = vrot.lane.b32.xlu0 %v4385, 104
        %v4671 = vpop.permute.xlu0 %4670
        %4672 = vrot.lane.b32.xlu0 %v4386, 104
        %v4673 = vpop.permute.xlu0 %4672
        %4674 = vrot.lane.b32.xlu0 %v4387, 104
        %v4675 = vpop.permute.xlu0 %4674
        %4676 = vrot.lane.b32.xlu0 %v4388, 104
        %v4677 = vpop.permute.xlu0 %4676
        %4678 = vrot.lane.b32.xlu0 %v4389, 104
        %v4679 = vpop.permute.xlu0 %4678
        %4680 = vrot.lane.b32.xlu0 %v4390, 104
        %v4681 = vpop.permute.xlu0 %4680
        %4682 = vrot.lane.b32.xlu0 %v4391, 104
        %v4683 = vpop.permute.xlu0 %4682
        %4684 = vrot.lane.b32.xlu0 %v4392, 104
        %v4685 = vpop.permute.xlu0 %4684
        %4686 = vrot.lane.b32.xlu0 %v4393, 104
        %v4687 = vpop.permute.xlu0 %4686
        %v4786 = vmax.f32 %v4296, %v4493
        %v4787 = vmax.f32 %v4297, %v4495
        %v4788 = vmax.f32 %v4298, %v4497
        %v4789 = vmax.f32 %v4299, %v4499
        %v4790 = vmax.f32 %v4300, %v4501
        %v4791 = vmax.f32 %v4301, %v4503
        %v4792 = vmax.f32 %v4302, %v4505
        %v4793 = vmax.f32 %v4303, %v4507
        %v4794 = vmax.f32 %v4304, %v4509
        %v4795 = vmax.f32 %v4305, %v4511
        %v4796 = vmax.f32 %v4306, %v4513
        %v4797 = vmax.f32 %v4307, %v4515
        %v4798 = vmax.f32 %v4308, %v4517
        %v4799 = vmax.f32 %v4309, %v4519
        %v4800 = vmax.f32 %v4310, %v4521
        %v4801 = vmax.f32 %v4311, %v4523
        %v4802 = vmax.f32 %v4312, %v4525
        %v4803 = vmax.f32 %v4313, %v4527
        %v4804 = vmax.f32 %v4314, %v4529
        %v4805 = vmax.f32 %v4315, %v4531
        %v4806 = vmax.f32 %v4316, %v4533
        %v4807 = vmax.f32 %v4317, %v4535
        %v4808 = vmax.f32 %v4318, %v4537
        %v4809 = vmax.f32 %v4319, %v4539
        %v4810 = vmax.f32 %v4320, %v4541
        %v4811 = vmax.f32 %v4321, %v4543
        %v4812 = vmax.f32 %v4322, %v4545
        %v4813 = vmax.f32 %v4323, %v4547
        %v4814 = vmax.f32 %v4324, %v4549
        %v4815 = vmax.f32 %v4325, %v4551
        %v4816 = vmax.f32 %v4326, %v4553
        %v4817 = vmax.f32 %v4327, %v4555
        %v4818 = vmax.f32 %v4328, %v4557
        %v4819 = vmax.f32 %v4329, %v4559
        %v4820 = vmax.f32 %v4330, %v4561
        %v4821 = vmax.f32 %v4331, %v4563
        %v4822 = vmax.f32 %v4332, %v4565
        %v4823 = vmax.f32 %v4333, %v4567
        %v4824 = vmax.f32 %v4334, %v4569
        %v4825 = vmax.f32 %v4335, %v4571
        %v4826 = vmax.f32 %v4336, %v4573
        %v4827 = vmax.f32 %v4337, %v4575
        %v4828 = vmax.f32 %v4338, %v4577
        %v4829 = vmax.f32 %v4339, %v4579
        %v4830 = vmax.f32 %v4340, %v4581
        %v4831 = vmax.f32 %v4341, %v4583
        %v4832 = vmax.f32 %v4342, %v4585
        %v4833 = vmax.f32 %v4343, %v4587
        %v4834 = vmax.f32 %v4344, %v4589
        %v4835 = vmax.f32 %v4345, %v4591
        %v4836 = vmax.f32 %v4346, %v4593
        %v4837 = vmax.f32 %v4347, %v4595
        %v4838 = vmax.f32 %v4348, %v4597
        %v4839 = vmax.f32 %v4349, %v4599
        %v4840 = vmax.f32 %v4350, %v4601
        %v4841 = vmax.f32 %v4351, %v4603
        %v4842 = vmax.f32 %v4352, %v4605
        %v4843 = vmax.f32 %v4353, %v4607
        %v4844 = vmax.f32 %v4354, %v4609
        %v4845 = vmax.f32 %v4355, %v4611
        %v4846 = vmax.f32 %v4356, %v4613
        %v4847 = vmax.f32 %v4357, %v4615
        %v4848 = vmax.f32 %v4358, %v4617
        %v4849 = vmax.f32 %v4359, %v4619
        %v4850 = vmax.f32 %v4360, %v4621
        %v4851 = vmax.f32 %v4361, %v4623
        %v4852 = vmax.f32 %v4362, %v4625
        %v4853 = vmax.f32 %v4363, %v4627
        %v4854 = vmax.f32 %v4364, %v4629
        %v4855 = vmax.f32 %v4365, %v4631
        %v4856 = vmax.f32 %v4366, %v4633
        %v4857 = vmax.f32 %v4367, %v4635
        %v4858 = vmax.f32 %v4368, %v4637
        %v4859 = vmax.f32 %v4369, %v4639
        %v4860 = vmax.f32 %v4370, %v4641
        %v4861 = vmax.f32 %v4371, %v4643
        %v4862 = vmax.f32 %v4372, %v4645
        %v4863 = vmax.f32 %v4373, %v4647
        %v4864 = vmax.f32 %v4374, %v4649
        %v4865 = vmax.f32 %v4375, %v4651
        %v4866 = vmax.f32 %v4376, %v4653
        %v4867 = vmax.f32 %v4377, %v4655
        %v4868 = vmax.f32 %v4378, %v4657
        %v4869 = vmax.f32 %v4379, %v4659
        %v4870 = vmax.f32 %v4380, %v4661
        %v4871 = vmax.f32 %v4381, %v4663
        %v4872 = vmax.f32 %v4382, %v4665
        %v4873 = vmax.f32 %v4383, %v4667
        %v4874 = vmax.f32 %v4384, %v4669
        %v4875 = vmax.f32 %v4385, %v4671
        %v4876 = vmax.f32 %v4386, %v4673
        %v4877 = vmax.f32 %v4387, %v4675
        %v4878 = vmax.f32 %v4388, %v4677
        %v4879 = vmax.f32 %v4389, %v4679
        %v4880 = vmax.f32 %v4390, %v4681
        %v4881 = vmax.f32 %v4391, %v4683
        %v4882 = vmax.f32 %v4392, %v4685
        %v4883 = vmax.f32 %v4393, %v4687
        %4982 = vrot.lane.b32.xlu0 %v4786, 80
        %v4983 = vpop.permute.xlu0 %4982
        %4984 = vrot.lane.b32.xlu0 %v4787, 80
        %v4985 = vpop.permute.xlu0 %4984
        %4986 = vrot.lane.b32.xlu0 %v4788, 80
        %v4987 = vpop.permute.xlu0 %4986
        %4988 = vrot.lane.b32.xlu0 %v4789, 80
        %v4989 = vpop.permute.xlu0 %4988
        %4990 = vrot.lane.b32.xlu0 %v4790, 80
        %v4991 = vpop.permute.xlu0 %4990
        %4992 = vrot.lane.b32.xlu0 %v4791, 80
        %v4993 = vpop.permute.xlu0 %4992
        %4994 = vrot.lane.b32.xlu0 %v4792, 80
        %v4995 = vpop.permute.xlu0 %4994
        %4996 = vrot.lane.b32.xlu0 %v4793, 80
        %v4997 = vpop.permute.xlu0 %4996
        %4998 = vrot.lane.b32.xlu0 %v4794, 80
        %v4999 = vpop.permute.xlu0 %4998
        %5000 = vrot.lane.b32.xlu0 %v4795, 80
        %v5001 = vpop.permute.xlu0 %5000
        %5002 = vrot.lane.b32.xlu0 %v4796, 80
        %v5003 = vpop.permute.xlu0 %5002
        %5004 = vrot.lane.b32.xlu0 %v4797, 80
        %v5005 = vpop.permute.xlu0 %5004
        %5006 = vrot.lane.b32.xlu0 %v4798, 80
        %v5007 = vpop.permute.xlu0 %5006
        %5008 = vrot.lane.b32.xlu0 %v4799, 80
        %v5009 = vpop.permute.xlu0 %5008
        %5010 = vrot.lane.b32.xlu0 %v4800, 80
        %v5011 = vpop.permute.xlu0 %5010
        %5012 = vrot.lane.b32.xlu0 %v4801, 80
        %v5013 = vpop.permute.xlu0 %5012
        %5014 = vrot.lane.b32.xlu0 %v4802, 80
        %v5015 = vpop.permute.xlu0 %5014
        %5016 = vrot.lane.b32.xlu0 %v4803, 80
        %v5017 = vpop.permute.xlu0 %5016
        %5018 = vrot.lane.b32.xlu0 %v4804, 80
        %v5019 = vpop.permute.xlu0 %5018
        %5020 = vrot.lane.b32.xlu0 %v4805, 80
        %v5021 = vpop.permute.xlu0 %5020
        %5022 = vrot.lane.b32.xlu0 %v4806, 80
        %v5023 = vpop.permute.xlu0 %5022
        %5024 = vrot.lane.b32.xlu0 %v4807, 80
        %v5025 = vpop.permute.xlu0 %5024
        %5026 = vrot.lane.b32.xlu0 %v4808, 80
        %v5027 = vpop.permute.xlu0 %5026
        %5028 = vrot.lane.b32.xlu0 %v4809, 80
        %v5029 = vpop.permute.xlu0 %5028
        %5030 = vrot.lane.b32.xlu0 %v4810, 80
        %v5031 = vpop.permute.xlu0 %5030
        %5032 = vrot.lane.b32.xlu0 %v4811, 80
        %v5033 = vpop.permute.xlu0 %5032
        %5034 = vrot.lane.b32.xlu0 %v4812, 80
        %v5035 = vpop.permute.xlu0 %5034
        %5036 = vrot.lane.b32.xlu0 %v4813, 80
        %v5037 = vpop.permute.xlu0 %5036
        %5038 = vrot.lane.b32.xlu0 %v4814, 80
        %v5039 = vpop.permute.xlu0 %5038
        %5040 = vrot.lane.b32.xlu0 %v4815, 80
        %v5041 = vpop.permute.xlu0 %5040
        %5042 = vrot.lane.b32.xlu0 %v4816, 80
        %v5043 = vpop.permute.xlu0 %5042
        %5044 = vrot.lane.b32.xlu0 %v4817, 80
        %v5045 = vpop.permute.xlu0 %5044
        %5046 = vrot.lane.b32.xlu0 %v4818, 80
        %v5047 = vpop.permute.xlu0 %5046
        %5048 = vrot.lane.b32.xlu0 %v4819, 80
        %v5049 = vpop.permute.xlu0 %5048
        %5050 = vrot.lane.b32.xlu0 %v4820, 80
        %v5051 = vpop.permute.xlu0 %5050
        %5052 = vrot.lane.b32.xlu0 %v4821, 80
        %v5053 = vpop.permute.xlu0 %5052
        %5054 = vrot.lane.b32.xlu0 %v4822, 80
        %v5055 = vpop.permute.xlu0 %5054
        %5056 = vrot.lane.b32.xlu0 %v4823, 80
        %v5057 = vpop.permute.xlu0 %5056
        %5058 = vrot.lane.b32.xlu0 %v4824, 80
        %v5059 = vpop.permute.xlu0 %5058
        %5060 = vrot.lane.b32.xlu0 %v4825, 80
        %v5061 = vpop.permute.xlu0 %5060
        %5062 = vrot.lane.b32.xlu0 %v4826, 80
        %v5063 = vpop.permute.xlu0 %5062
        %5064 = vrot.lane.b32.xlu0 %v4827, 80
        %v5065 = vpop.permute.xlu0 %5064
        %5066 = vrot.lane.b32.xlu0 %v4828, 80
        %v5067 = vpop.permute.xlu0 %5066
        %5068 = vrot.lane.b32.xlu0 %v4829, 80
        %v5069 = vpop.permute.xlu0 %5068
        %5070 = vrot.lane.b32.xlu0 %v4830, 80
        %v5071 = vpop.permute.xlu0 %5070
        %5072 = vrot.lane.b32.xlu0 %v4831, 80
        %v5073 = vpop.permute.xlu0 %5072
        %5074 = vrot.lane.b32.xlu0 %v4832, 80
        %v5075 = vpop.permute.xlu0 %5074
        %5076 = vrot.lane.b32.xlu0 %v4833, 80
        %v5077 = vpop.permute.xlu0 %5076
        %5078 = vrot.lane.b32.xlu0 %v4834, 80
        %v5079 = vpop.permute.xlu0 %5078
        %5080 = vrot.lane.b32.xlu0 %v4835, 80
        %v5081 = vpop.permute.xlu0 %5080
        %5082 = vrot.lane.b32.xlu0 %v4836, 80
        %v5083 = vpop.permute.xlu0 %5082
        %5084 = vrot.lane.b32.xlu0 %v4837, 80
        %v5085 = vpop.permute.xlu0 %5084
        %5086 = vrot.lane.b32.xlu0 %v4838, 80
        %v5087 = vpop.permute.xlu0 %5086
        %5088 = vrot.lane.b32.xlu0 %v4839, 80
        %v5089 = vpop.permute.xlu0 %5088
        %5090 = vrot.lane.b32.xlu0 %v4840, 80
        %v5091 = vpop.permute.xlu0 %5090
        %5092 = vrot.lane.b32.xlu0 %v4841, 80
        %v5093 = vpop.permute.xlu0 %5092
        %5094 = vrot.lane.b32.xlu0 %v4842, 80
        %v5095 = vpop.permute.xlu0 %5094
        %5096 = vrot.lane.b32.xlu0 %v4843, 80
        %v5097 = vpop.permute.xlu0 %5096
        %5098 = vrot.lane.b32.xlu0 %v4844, 80
        %v5099 = vpop.permute.xlu0 %5098
        %5100 = vrot.lane.b32.xlu0 %v4845, 80
        %v5101 = vpop.permute.xlu0 %5100
        %5102 = vrot.lane.b32.xlu0 %v4846, 80
        %v5103 = vpop.permute.xlu0 %5102
        %5104 = vrot.lane.b32.xlu0 %v4847, 80
        %v5105 = vpop.permute.xlu0 %5104
        %5106 = vrot.lane.b32.xlu0 %v4848, 80
        %v5107 = vpop.permute.xlu0 %5106
        %5108 = vrot.lane.b32.xlu0 %v4849, 80
        %v5109 = vpop.permute.xlu0 %5108
        %5110 = vrot.lane.b32.xlu0 %v4850, 80
        %v5111 = vpop.permute.xlu0 %5110
        %5112 = vrot.lane.b32.xlu0 %v4851, 80
        %v5113 = vpop.permute.xlu0 %5112
        %5114 = vrot.lane.b32.xlu0 %v4852, 80
        %v5115 = vpop.permute.xlu0 %5114
        %5116 = vrot.lane.b32.xlu0 %v4853, 80
        %v5117 = vpop.permute.xlu0 %5116
        %5118 = vrot.lane.b32.xlu0 %v4854, 80
        %v5119 = vpop.permute.xlu0 %5118
        %5120 = vrot.lane.b32.xlu0 %v4855, 80
        %v5121 = vpop.permute.xlu0 %5120
        %5122 = vrot.lane.b32.xlu0 %v4856, 80
        %v5123 = vpop.permute.xlu0 %5122
        %5124 = vrot.lane.b32.xlu0 %v4857, 80
        %v5125 = vpop.permute.xlu0 %5124
        %5126 = vrot.lane.b32.xlu0 %v4858, 80
        %v5127 = vpop.permute.xlu0 %5126
        %5128 = vrot.lane.b32.xlu0 %v4859, 80
        %v5129 = vpop.permute.xlu0 %5128
        %5130 = vrot.lane.b32.xlu0 %v4860, 80
        %v5131 = vpop.permute.xlu0 %5130
        %5132 = vrot.lane.b32.xlu0 %v4861, 80
        %v5133 = vpop.permute.xlu0 %5132
        %5134 = vrot.lane.b32.xlu0 %v4862, 80
        %v5135 = vpop.permute.xlu0 %5134
        %5136 = vrot.lane.b32.xlu0 %v4863, 80
        %v5137 = vpop.permute.xlu0 %5136
        %5138 = vrot.lane.b32.xlu0 %v4864, 80
        %v5139 = vpop.permute.xlu0 %5138
        %5140 = vrot.lane.b32.xlu0 %v4865, 80
        %v5141 = vpop.permute.xlu0 %5140
        %5142 = vrot.lane.b32.xlu0 %v4866, 80
        %v5143 = vpop.permute.xlu0 %5142
        %5144 = vrot.lane.b32.xlu0 %v4867, 80
        %v5145 = vpop.permute.xlu0 %5144
        %5146 = vrot.lane.b32.xlu0 %v4868, 80
        %v5147 = vpop.permute.xlu0 %5146
        %5148 = vrot.lane.b32.xlu0 %v4869, 80
        %v5149 = vpop.permute.xlu0 %5148
        %5150 = vrot.lane.b32.xlu0 %v4870, 80
        %v5151 = vpop.permute.xlu0 %5150
        %5152 = vrot.lane.b32.xlu0 %v4871, 80
        %v5153 = vpop.permute.xlu0 %5152
        %5154 = vrot.lane.b32.xlu0 %v4872, 80
        %v5155 = vpop.permute.xlu0 %5154
        %5156 = vrot.lane.b32.xlu0 %v4873, 80
        %v5157 = vpop.permute.xlu0 %5156
        %5158 = vrot.lane.b32.xlu0 %v4874, 80
        %v5159 = vpop.permute.xlu0 %5158
        %5160 = vrot.lane.b32.xlu0 %v4875, 80
        %v5161 = vpop.permute.xlu0 %5160
        %5162 = vrot.lane.b32.xlu0 %v4876, 80
        %v5163 = vpop.permute.xlu0 %5162
        %5164 = vrot.lane.b32.xlu0 %v4877, 80
        %v5165 = vpop.permute.xlu0 %5164
        %5166 = vrot.lane.b32.xlu0 %v4878, 80
        %v5167 = vpop.permute.xlu0 %5166
        %5168 = vrot.lane.b32.xlu0 %v4879, 80
        %v5169 = vpop.permute.xlu0 %5168
        %5170 = vrot.lane.b32.xlu0 %v4880, 80
        %v5171 = vpop.permute.xlu0 %5170
        %5172 = vrot.lane.b32.xlu0 %v4881, 80
        %v5173 = vpop.permute.xlu0 %5172
        %5174 = vrot.lane.b32.xlu0 %v4882, 80
        %v5175 = vpop.permute.xlu0 %5174
        %5176 = vrot.lane.b32.xlu0 %v4883, 80
        %v5177 = vpop.permute.xlu0 %5176
        %v5276 = vmax.f32 %v4786, %v4983
        %v5277 = vmax.f32 %v4787, %v4985
        %v5278 = vmax.f32 %v4788, %v4987
        %v5279 = vmax.f32 %v4789, %v4989
        %v5280 = vmax.f32 %v4790, %v4991
        %v5281 = vmax.f32 %v4791, %v4993
        %v5282 = vmax.f32 %v4792, %v4995
        %v5283 = vmax.f32 %v4793, %v4997
        %v5284 = vmax.f32 %v4794, %v4999
        %v5285 = vmax.f32 %v4795, %v5001
        %v5286 = vmax.f32 %v4796, %v5003
        %v5287 = vmax.f32 %v4797, %v5005
        %v5288 = vmax.f32 %v4798, %v5007
        %v5289 = vmax.f32 %v4799, %v5009
        %v5290 = vmax.f32 %v4800, %v5011
        %v5291 = vmax.f32 %v4801, %v5013
        %v5292 = vmax.f32 %v4802, %v5015
        %v5293 = vmax.f32 %v4803, %v5017
        %v5294 = vmax.f32 %v4804, %v5019
        %v5295 = vmax.f32 %v4805, %v5021
        %v5296 = vmax.f32 %v4806, %v5023
        %v5297 = vmax.f32 %v4807, %v5025
        %v5298 = vmax.f32 %v4808, %v5027
        %v5299 = vmax.f32 %v4809, %v5029
        %v5300 = vmax.f32 %v4810, %v5031
        %v5301 = vmax.f32 %v4811, %v5033
        %v5302 = vmax.f32 %v4812, %v5035
        %v5303 = vmax.f32 %v4813, %v5037
        %v5304 = vmax.f32 %v4814, %v5039
        %v5305 = vmax.f32 %v4815, %v5041
        %v5306 = vmax.f32 %v4816, %v5043
        %v5307 = vmax.f32 %v4817, %v5045
        %v5308 = vmax.f32 %v4818, %v5047
        %v5309 = vmax.f32 %v4819, %v5049
        %v5310 = vmax.f32 %v4820, %v5051
        %v5311 = vmax.f32 %v4821, %v5053
        %v5312 = vmax.f32 %v4822, %v5055
        %v5313 = vmax.f32 %v4823, %v5057
        %v5314 = vmax.f32 %v4824, %v5059
        %v5315 = vmax.f32 %v4825, %v5061
        %v5316 = vmax.f32 %v4826, %v5063
        %v5317 = vmax.f32 %v4827, %v5065
        %v5318 = vmax.f32 %v4828, %v5067
        %v5319 = vmax.f32 %v4829, %v5069
        %v5320 = vmax.f32 %v4830, %v5071
        %v5321 = vmax.f32 %v4831, %v5073
        %v5322 = vmax.f32 %v4832, %v5075
        %v5323 = vmax.f32 %v4833, %v5077
        %v5324 = vmax.f32 %v4834, %v5079
        %v5325 = vmax.f32 %v4835, %v5081
        %v5326 = vmax.f32 %v4836, %v5083
        %v5327 = vmax.f32 %v4837, %v5085
        %v5328 = vmax.f32 %v4838, %v5087
        %v5329 = vmax.f32 %v4839, %v5089
        %v5330 = vmax.f32 %v4840, %v5091
        %v5331 = vmax.f32 %v4841, %v5093
        %v5332 = vmax.f32 %v4842, %v5095
        %v5333 = vmax.f32 %v4843, %v5097
        %v5334 = vmax.f32 %v4844, %v5099
        %v5335 = vmax.f32 %v4845, %v5101
        %v5336 = vmax.f32 %v4846, %v5103
        %v5337 = vmax.f32 %v4847, %v5105
        %v5338 = vmax.f32 %v4848, %v5107
        %v5339 = vmax.f32 %v4849, %v5109
        %v5340 = vmax.f32 %v4850, %v5111
        %v5341 = vmax.f32 %v4851, %v5113
        %v5342 = vmax.f32 %v4852, %v5115
        %v5343 = vmax.f32 %v4853, %v5117
        %v5344 = vmax.f32 %v4854, %v5119
        %v5345 = vmax.f32 %v4855, %v5121
        %v5346 = vmax.f32 %v4856, %v5123
        %v5347 = vmax.f32 %v4857, %v5125
        %v5348 = vmax.f32 %v4858, %v5127
        %v5349 = vmax.f32 %v4859, %v5129
        %v5350 = vmax.f32 %v4860, %v5131
        %v5351 = vmax.f32 %v4861, %v5133
        %v5352 = vmax.f32 %v4862, %v5135
        %v5353 = vmax.f32 %v4863, %v5137
        %v5354 = vmax.f32 %v4864, %v5139
        %v5355 = vmax.f32 %v4865, %v5141
        %v5356 = vmax.f32 %v4866, %v5143
        %v5357 = vmax.f32 %v4867, %v5145
        %v5358 = vmax.f32 %v4868, %v5147
        %v5359 = vmax.f32 %v4869, %v5149
        %v5360 = vmax.f32 %v4870, %v5151
        %v5361 = vmax.f32 %v4871, %v5153
        %v5362 = vmax.f32 %v4872, %v5155
        %v5363 = vmax.f32 %v4873, %v5157
        %v5364 = vmax.f32 %v4874, %v5159
        %v5365 = vmax.f32 %v4875, %v5161
        %v5366 = vmax.f32 %v4876, %v5163
        %v5367 = vmax.f32 %v4877, %v5165
        %v5368 = vmax.f32 %v4878, %v5167
        %v5369 = vmax.f32 %v4879, %v5169
        %v5370 = vmax.f32 %v4880, %v5171
        %v5371 = vmax.f32 %v4881, %v5173
        %v5372 = vmax.f32 %v4882, %v5175
        %v5373 = vmax.f32 %v4883, %v5177
        %v5374 = vpack.c.bf16 %v5277, %v5276
        %v5375 = vpack.c.bf16 %v5279, %v5278
        %v5376 = vpack.c.bf16 %v5281, %v5280
        %v5377 = vpack.c.bf16 %v5283, %v5282
        %v5378 = vpack.c.bf16 %v5285, %v5284
        %v5379 = vpack.c.bf16 %v5287, %v5286
        %v5380 = vpack.c.bf16 %v5289, %v5288
        %v5381 = vpack.c.bf16 %v5291, %v5290
        %v5382 = vpack.c.bf16 %v5293, %v5292
        %v5383 = vpack.c.bf16 %v5295, %v5294
        %v5384 = vpack.c.bf16 %v5297, %v5296
        %v5385 = vpack.c.bf16 %v5299, %v5298
        %v5386 = vpack.c.bf16 %v5301, %v5300
        %v5387 = vpack.c.bf16 %v5303, %v5302
        %v5388 = vpack.c.bf16 %v5305, %v5304
        %v5389 = vpack.c.bf16 %v5307, %v5306
        %v5390 = vpack.c.bf16 %v5309, %v5308
        %v5391 = vpack.c.bf16 %v5311, %v5310
        %v5392 = vpack.c.bf16 %v5313, %v5312
        %v5393 = vpack.c.bf16 %v5315, %v5314
        %v5394 = vpack.c.bf16 %v5317, %v5316
        %v5395 = vpack.c.bf16 %v5319, %v5318
        %v5396 = vpack.c.bf16 %v5321, %v5320
        %v5397 = vpack.c.bf16 %v5323, %v5322
        %v5398 = vpack.c.bf16 %v5325, %v5324
        %v5399 = vpack.c.bf16 %v5327, %v5326
        %v5400 = vpack.c.bf16 %v5329, %v5328
        %v5401 = vpack.c.bf16 %v5331, %v5330
        %v5402 = vpack.c.bf16 %v5333, %v5332
        %v5403 = vpack.c.bf16 %v5335, %v5334
        %v5404 = vpack.c.bf16 %v5337, %v5336
        %v5405 = vpack.c.bf16 %v5339, %v5338
        %v5406 = vpack.c.bf16 %v5341, %v5340
        %v5407 = vpack.c.bf16 %v5343, %v5342
        %v5408 = vpack.c.bf16 %v5345, %v5344
        %v5409 = vpack.c.bf16 %v5347, %v5346
        %v5410 = vpack.c.bf16 %v5349, %v5348
        %v5411 = vpack.c.bf16 %v5351, %v5350
        %v5412 = vpack.c.bf16 %v5353, %v5352
        %v5413 = vpack.c.bf16 %v5355, %v5354
        %v5414 = vpack.c.bf16 %v5357, %v5356
        %v5415 = vpack.c.bf16 %v5359, %v5358
        %v5416 = vpack.c.bf16 %v5361, %v5360
        %v5417 = vpack.c.bf16 %v5363, %v5362
        %v5418 = vpack.c.bf16 %v5365, %v5364
        %v5419 = vpack.c.bf16 %v5367, %v5366
        %v5420 = vpack.c.bf16 %v5369, %v5368
        %v5421 = vpack.c.bf16 %v5371, %v5370
        %v5422 = vpack.c.bf16 %v5373, %v5372
        %5424 = vrot.lane.b32.xlu0 %v5375, 24
        %v5425 = vpop.permute.xlu0 %5424
        %5427 = vrot.lane.b32.xlu0 %v5376, 48
        %v5428 = vpop.permute.xlu0 %5427
        %5430 = vrot.lane.b32.xlu0 %v5381, 72
        %v5431 = vpop.permute.xlu0 %5430
        %5433 = vrot.lane.b32.xlu0 %v5382, 96
        %v5434 = vpop.permute.xlu0 %5433
        %5436 = vrot.lane.b32.xlu0 %v5383, 120
        %v5437 = vpop.permute.xlu0 %5436
        %5439 = vrot.lane.b32.xlu0 %v5388, 16
        %v5440 = vpop.permute.xlu0 %5439
        %5442 = vrot.lane.b32.xlu0 %v5389, 40
        %v5443 = vpop.permute.xlu0 %5442
        %5445 = vrot.lane.b32.xlu0 %v5390, 64
        %v5446 = vpop.permute.xlu0 %5445
        %vm5447 = vcmask 195584
        %v5450 = vsel %vm5447, %v5374, %v5425
        %v5452 = vsel %vm1085, %v5450, %v5428
        %vm5453 = vcmask 588800
        %v5455 = vsel %vm5453, %v5452, %v5431
        %v5457 = vsel %vm1089, %v5455, %v5434
        %vm5458 = vcmask 982016
        %v5460 = vsel %vm5458, %v5457, %v5437
        %v5463 = vsel %vm1093, %v5437, %v5440
        %vm5464 = vcmask 326656
        %v5466 = vsel %vm5464, %v5463, %v5443
        %v5468 = vsel %vm1098, %v5466, %v5446
        %5470 = vst [vmem:[#allocation3] sm:$0xff] %v5460
        %vm5471 = vcmask 719872
        %5472 = vst.msk [vmem:[#allocation3 + $0x8] sm:$0xff] %vm5471, %v5468
        %5473 = vrot.lane.b32.xlu0 %v5376, 24
        %v5474 = vpop.permute.xlu0 %5473
        %5476 = vrot.lane.b32.xlu0 %v5377, 48
        %v5477 = vpop.permute.xlu0 %5476
        %5478 = vrot.lane.b32.xlu0 %v5382, 72
        %v5479 = vpop.permute.xlu0 %5478
        %5480 = vrot.lane.b32.xlu0 %v5383, 96
        %v5481 = vpop.permute.xlu0 %5480
        %5483 = vrot.lane.b32.xlu0 %v5384, 120
        %v5484 = vpop.permute.xlu0 %5483
        %5485 = vrot.lane.b32.xlu0 %v5389, 16
        %v5486 = vpop.permute.xlu0 %5485
        %5487 = vrot.lane.b32.xlu0 %v5390, 40
        %v5488 = vpop.permute.xlu0 %5487
        %5490 = vrot.lane.b32.xlu0 %v5391, 64
        %v5491 = vpop.permute.xlu0 %5490
        %v5494 = vsel %vm5447, %v5375, %v5474
        %v5496 = vsel %vm1085, %v5494, %v5477
        %v5498 = vsel %vm5453, %v5496, %v5479
        %v5500 = vsel %vm1089, %v5498, %v5481
        %v5502 = vsel %vm5458, %v5500, %v5484
        %v5505 = vsel %vm1093, %v5484, %v5486
        %v5507 = vsel %vm5464, %v5505, %v5488
        %v5509 = vsel %vm1098, %v5507, %v5491
        %5511 = vst [vmem:[#allocation3 + $0x10] sm:$0xff] %v5502
        %5512 = vst.msk [vmem:[#allocation3 + $0x18] sm:$0xff] %vm5471, %v5509
        %5513 = vrot.lane.b32.xlu0 %v5377, 24
        %v5514 = vpop.permute.xlu0 %5513
        %5516 = vrot.lane.b32.xlu0 %v5378, 48
        %v5517 = vpop.permute.xlu0 %5516
        %5518 = vrot.lane.b32.xlu0 %v5383, 72
        %v5519 = vpop.permute.xlu0 %5518
        %5520 = vrot.lane.b32.xlu0 %v5384, 96
        %v5521 = vpop.permute.xlu0 %5520
        %5523 = vrot.lane.b32.xlu0 %v5385, 120
        %v5524 = vpop.permute.xlu0 %5523
        %5525 = vrot.lane.b32.xlu0 %v5390, 16
        %v5526 = vpop.permute.xlu0 %5525
        %5527 = vrot.lane.b32.xlu0 %v5391, 40
        %v5528 = vpop.permute.xlu0 %5527
        %5530 = vrot.lane.b32.xlu0 %v5392, 64
        %v5531 = vpop.permute.xlu0 %5530
        %v5534 = vsel %vm5447, %v5376, %v5514
        %v5536 = vsel %vm1085, %v5534, %v5517
        %v5538 = vsel %vm5453, %v5536, %v5519
        %v5540 = vsel %vm1089, %v5538, %v5521
        %v5542 = vsel %vm5458, %v5540, %v5524
        %v5545 = vsel %vm1093, %v5524, %v5526
        %v5547 = vsel %vm5464, %v5545, %v5528
        %v5549 = vsel %vm1098, %v5547, %v5531
        %5551 = vst [vmem:[#allocation3 + $0x20] sm:$0xff] %v5542
        %5552 = vst.msk [vmem:[#allocation3 + $0x28] sm:$0xff] %vm5471, %v5549
        %5553 = vrot.lane.b32.xlu0 %v5378, 24
        %v5554 = vpop.permute.xlu0 %5553
        %5556 = vrot.lane.b32.xlu0 %v5379, 48
        %v5557 = vpop.permute.xlu0 %5556
        %5558 = vrot.lane.b32.xlu0 %v5384, 72
        %v5559 = vpop.permute.xlu0 %5558
        %5560 = vrot.lane.b32.xlu0 %v5385, 96
        %v5561 = vpop.permute.xlu0 %5560
        %5563 = vrot.lane.b32.xlu0 %v5386, 120
        %v5564 = vpop.permute.xlu0 %5563
        %5565 = vrot.lane.b32.xlu0 %v5391, 16
        %v5566 = vpop.permute.xlu0 %5565
        %5567 = vrot.lane.b32.xlu0 %v5392, 40
        %v5568 = vpop.permute.xlu0 %5567
        %5570 = vrot.lane.b32.xlu0 %v5393, 64
        %v5571 = vpop.permute.xlu0 %5570
        %v5574 = vsel %vm5447, %v5377, %v5554
        %v5576 = vsel %vm1085, %v5574, %v5557
        %v5578 = vsel %vm5453, %v5576, %v5559
        %v5580 = vsel %vm1089, %v5578, %v5561
        %v5582 = vsel %vm5458, %v5580, %v5564
        %v5585 = vsel %vm1093, %v5564, %v5566
        %v5587 = vsel %vm5464, %v5585, %v5568
        %v5589 = vsel %vm1098, %v5587, %v5571
        %5591 = vst [vmem:[#allocation3 + $0x30] sm:$0xff] %v5582
        %5592 = vst.msk [vmem:[#allocation3 + $0x38] sm:$0xff] %vm5471, %v5589
        %5593 = vrot.lane.b32.xlu0 %v5379, 24
        %v5594 = vpop.permute.xlu0 %5593
        %5596 = vrot.lane.b32.xlu0 %v5380, 48
        %v5597 = vpop.permute.xlu0 %5596
        %5598 = vrot.lane.b32.xlu0 %v5385, 72
        %v5599 = vpop.permute.xlu0 %5598
        %5600 = vrot.lane.b32.xlu0 %v5386, 96
        %v5601 = vpop.permute.xlu0 %5600
        %5603 = vrot.lane.b32.xlu0 %v5387, 120
        %v5604 = vpop.permute.xlu0 %5603
        %5605 = vrot.lane.b32.xlu0 %v5392, 16
        %v5606 = vpop.permute.xlu0 %5605
        %5607 = vrot.lane.b32.xlu0 %v5393, 40
        %v5608 = vpop.permute.xlu0 %5607
        %5610 = vrot.lane.b32.xlu0 %v5394, 64
        %v5611 = vpop.permute.xlu0 %5610
        %v5614 = vsel %vm5447, %v5378, %v5594
        %v5616 = vsel %vm1085, %v5614, %v5597
        %v5618 = vsel %vm5453, %v5616, %v5599
        %v5620 = vsel %vm1089, %v5618, %v5601
        %v5622 = vsel %vm5458, %v5620, %v5604
        %v5625 = vsel %vm1093, %v5604, %v5606
        %v5627 = vsel %vm5464, %v5625, %v5608
        %v5629 = vsel %vm1098, %v5627, %v5611
        %5631 = vst [vmem:[#allocation3 + $0x40] sm:$0xff] %v5622
        %5632 = vst.msk [vmem:[#allocation3 + $0x48] sm:$0xff] %vm5471, %v5629
        %5633 = vrot.lane.b32.xlu0 %v5382, 24
        %v5634 = vpop.permute.xlu0 %5633
        %5635 = vrot.lane.b32.xlu0 %v5383, 48
        %v5636 = vpop.permute.xlu0 %5635
        %5637 = vrot.lane.b32.xlu0 %v5388, 72
        %v5638 = vpop.permute.xlu0 %5637
        %5639 = vrot.lane.b32.xlu0 %v5389, 96
        %v5640 = vpop.permute.xlu0 %5639
        %5641 = vrot.lane.b32.xlu0 %v5390, 120
        %v5642 = vpop.permute.xlu0 %5641
        %5644 = vrot.lane.b32.xlu0 %v5395, 16
        %v5645 = vpop.permute.xlu0 %5644
        %5647 = vrot.lane.b32.xlu0 %v5396, 40
        %v5648 = vpop.permute.xlu0 %5647
        %5650 = vrot.lane.b32.xlu0 %v5397, 64
        %v5651 = vpop.permute.xlu0 %5650
        %v5654 = vsel %vm5447, %v5381, %v5634
        %v5656 = vsel %vm1085, %v5654, %v5636
        %v5658 = vsel %vm5453, %v5656, %v5638
        %v5660 = vsel %vm1089, %v5658, %v5640
        %v5662 = vsel %vm5458, %v5660, %v5642
        %v5665 = vsel %vm1093, %v5642, %v5645
        %v5667 = vsel %vm5464, %v5665, %v5648
        %v5669 = vsel %vm1098, %v5667, %v5651
        %5671 = vst [vmem:[#allocation3 + $0x50] sm:$0xff] %v5662
        %5672 = vst.msk [vmem:[#allocation3 + $0x58] sm:$0xff] %vm5471, %v5669
        %5673 = vrot.lane.b32.xlu0 %v5383, 24
        %v5674 = vpop.permute.xlu0 %5673
        %5675 = vrot.lane.b32.xlu0 %v5384, 48
        %v5676 = vpop.permute.xlu0 %5675
        %5677 = vrot.lane.b32.xlu0 %v5389, 72
        %v5678 = vpop.permute.xlu0 %5677
        %5679 = vrot.lane.b32.xlu0 %v5390, 96
        %v5680 = vpop.permute.xlu0 %5679
        %5681 = vrot.lane.b32.xlu0 %v5391, 120
        %v5682 = vpop.permute.xlu0 %5681
        %5683 = vrot.lane.b32.xlu0 %v5396, 16
        %v5684 = vpop.permute.xlu0 %5683
        %5685 = vrot.lane.b32.xlu0 %v5397, 40
        %v5686 = vpop.permute.xlu0 %5685
        %5688 = vrot.lane.b32.xlu0 %v5398, 64
        %v5689 = vpop.permute.xlu0 %5688
        %v5692 = vsel %vm5447, %v5382, %v5674
        %v5694 = vsel %vm1085, %v5692, %v5676
        %v5696 = vsel %vm5453, %v5694, %v5678
        %v5698 = vsel %vm1089, %v5696, %v5680
        %v5700 = vsel %vm5458, %v5698, %v5682
        %v5703 = vsel %vm1093, %v5682, %v5684
        %v5705 = vsel %vm5464, %v5703, %v5686
        %v5707 = vsel %vm1098, %v5705, %v5689
        %5709 = vst [vmem:[#allocation3 + $0x60] sm:$0xff] %v5700
        %5710 = vst.msk [vmem:[#allocation3 + $0x68] sm:$0xff] %vm5471, %v5707
        %5711 = vrot.lane.b32.xlu0 %v5384, 24
        %v5712 = vpop.permute.xlu0 %5711
        %5713 = vrot.lane.b32.xlu0 %v5385, 48
        %v5714 = vpop.permute.xlu0 %5713
        %5715 = vrot.lane.b32.xlu0 %v5390, 72
        %v5716 = vpop.permute.xlu0 %5715
        %5717 = vrot.lane.b32.xlu0 %v5391, 96
        %v5718 = vpop.permute.xlu0 %5717
        %5719 = vrot.lane.b32.xlu0 %v5392, 120
        %v5720 = vpop.permute.xlu0 %5719
        %5721 = vrot.lane.b32.xlu0 %v5397, 16
        %v5722 = vpop.permute.xlu0 %5721
        %5723 = vrot.lane.b32.xlu0 %v5398, 40
        %v5724 = vpop.permute.xlu0 %5723
        %5726 = vrot.lane.b32.xlu0 %v5399, 64
        %v5727 = vpop.permute.xlu0 %5726
        %v5730 = vsel %vm5447, %v5383, %v5712
        %v5732 = vsel %vm1085, %v5730, %v5714
        %v5734 = vsel %vm5453, %v5732, %v5716
        %v5736 = vsel %vm1089, %v5734, %v5718
        %v5738 = vsel %vm5458, %v5736, %v5720
        %v5741 = vsel %vm1093, %v5720, %v5722
        %v5743 = vsel %vm5464, %v5741, %v5724
        %v5745 = vsel %vm1098, %v5743, %v5727
        %5747 = vst [vmem:[#allocation3 + $0x70] sm:$0xff] %v5738
        %5748 = vst.msk [vmem:[#allocation3 + $0x78] sm:$0xff] %vm5471, %v5745
        %5749 = vrot.lane.b32.xlu0 %v5385, 24
        %v5750 = vpop.permute.xlu0 %5749
        %5751 = vrot.lane.b32.xlu0 %v5386, 48
        %v5752 = vpop.permute.xlu0 %5751
        %5753 = vrot.lane.b32.xlu0 %v5391, 72
        %v5754 = vpop.permute.xlu0 %5753
        %5755 = vrot.lane.b32.xlu0 %v5392, 96
        %v5756 = vpop.permute.xlu0 %5755
        %5757 = vrot.lane.b32.xlu0 %v5393, 120
        %v5758 = vpop.permute.xlu0 %5757
        %5759 = vrot.lane.b32.xlu0 %v5398, 16
        %v5760 = vpop.permute.xlu0 %5759
        %5761 = vrot.lane.b32.xlu0 %v5399, 40
        %v5762 = vpop.permute.xlu0 %5761
        %5764 = vrot.lane.b32.xlu0 %v5400, 64
        %v5765 = vpop.permute.xlu0 %5764
        %v5768 = vsel %vm5447, %v5384, %v5750
        %v5770 = vsel %vm1085, %v5768, %v5752
        %v5772 = vsel %vm5453, %v5770, %v5754
        %v5774 = vsel %vm1089, %v5772, %v5756
        %v5776 = vsel %vm5458, %v5774, %v5758
        %v5779 = vsel %vm1093, %v5758, %v5760
        %v5781 = vsel %vm5464, %v5779, %v5762
        %v5783 = vsel %vm1098, %v5781, %v5765
        %5785 = vst [vmem:[#allocation3 + $0x80] sm:$0xff] %v5776
        %5786 = vst.msk [vmem:[#allocation3 + $0x88] sm:$0xff] %vm5471, %v5783
        %5787 = vrot.lane.b32.xlu0 %v5386, 24
        %v5788 = vpop.permute.xlu0 %5787
        %5789 = vrot.lane.b32.xlu0 %v5387, 48
        %v5790 = vpop.permute.xlu0 %5789
        %5791 = vrot.lane.b32.xlu0 %v5392, 72
        %v5792 = vpop.permute.xlu0 %5791
        %5793 = vrot.lane.b32.xlu0 %v5393, 96
        %v5794 = vpop.permute.xlu0 %5793
        %5795 = vrot.lane.b32.xlu0 %v5394, 120
        %v5796 = vpop.permute.xlu0 %5795
        %5797 = vrot.lane.b32.xlu0 %v5399, 16
        %v5798 = vpop.permute.xlu0 %5797
        %5799 = vrot.lane.b32.xlu0 %v5400, 40
        %v5800 = vpop.permute.xlu0 %5799
        %5802 = vrot.lane.b32.xlu0 %v5401, 64
        %v5803 = vpop.permute.xlu0 %5802
        %v5806 = vsel %vm5447, %v5385, %v5788
        %v5808 = vsel %vm1085, %v5806, %v5790
        %v5810 = vsel %vm5453, %v5808, %v5792
        %v5812 = vsel %vm1089, %v5810, %v5794
        %v5814 = vsel %vm5458, %v5812, %v5796
        %v5817 = vsel %vm1093, %v5796, %v5798
        %v5819 = vsel %vm5464, %v5817, %v5800
        %v5821 = vsel %vm1098, %v5819, %v5803
        %5823 = vst [vmem:[#allocation3 + $0x90] sm:$0xff] %v5814
        %5824 = vst.msk [vmem:[#allocation3 + $0x98] sm:$0xff] %vm5471, %v5821
        %5825 = vrot.lane.b32.xlu0 %v5389, 24
        %v5826 = vpop.permute.xlu0 %5825
        %5827 = vrot.lane.b32.xlu0 %v5390, 48
        %v5828 = vpop.permute.xlu0 %5827
        %5829 = vrot.lane.b32.xlu0 %v5395, 72
        %v5830 = vpop.permute.xlu0 %5829
        %5831 = vrot.lane.b32.xlu0 %v5396, 96
        %v5832 = vpop.permute.xlu0 %5831
        %5833 = vrot.lane.b32.xlu0 %v5397, 120
        %v5834 = vpop.permute.xlu0 %5833
        %5836 = vrot.lane.b32.xlu0 %v5402, 16
        %v5837 = vpop.permute.xlu0 %5836
        %5839 = vrot.lane.b32.xlu0 %v5403, 40
        %v5840 = vpop.permute.xlu0 %5839
        %5842 = vrot.lane.b32.xlu0 %v5404, 64
        %v5843 = vpop.permute.xlu0 %5842
        %v5846 = vsel %vm5447, %v5388, %v5826
        %v5848 = vsel %vm1085, %v5846, %v5828
        %v5850 = vsel %vm5453, %v5848, %v5830
        %v5852 = vsel %vm1089, %v5850, %v5832
        %v5854 = vsel %vm5458, %v5852, %v5834
        %v5857 = vsel %vm1093, %v5834, %v5837
        %v5859 = vsel %vm5464, %v5857, %v5840
        %v5861 = vsel %vm1098, %v5859, %v5843
        %5863 = vst [vmem:[#allocation3 + $0xa0] sm:$0xff] %v5854
        %5864 = vst.msk [vmem:[#allocation3 + $0xa8] sm:$0xff] %vm5471, %v5861
        %5865 = vrot.lane.b32.xlu0 %v5390, 24
        %v5866 = vpop.permute.xlu0 %5865
        %5867 = vrot.lane.b32.xlu0 %v5391, 48
        %v5868 = vpop.permute.xlu0 %5867
        %5869 = vrot.lane.b32.xlu0 %v5396, 72
        %v5870 = vpop.permute.xlu0 %5869
        %5871 = vrot.lane.b32.xlu0 %v5397, 96
        %v5872 = vpop.permute.xlu0 %5871
        %5873 = vrot.lane.b32.xlu0 %v5398, 120
        %v5874 = vpop.permute.xlu0 %5873
        %5875 = vrot.lane.b32.xlu0 %v5403, 16
        %v5876 = vpop.permute.xlu0 %5875
        %5877 = vrot.lane.b32.xlu0 %v5404, 40
        %v5878 = vpop.permute.xlu0 %5877
        %5880 = vrot.lane.b32.xlu0 %v5405, 64
        %v5881 = vpop.permute.xlu0 %5880
        %v5884 = vsel %vm5447, %v5389, %v5866
        %v5886 = vsel %vm1085, %v5884, %v5868
        %v5888 = vsel %vm5453, %v5886, %v5870
        %v5890 = vsel %vm1089, %v5888, %v5872
        %v5892 = vsel %vm5458, %v5890, %v5874
        %v5895 = vsel %vm1093, %v5874, %v5876
        %v5897 = vsel %vm5464, %v5895, %v5878
        %v5899 = vsel %vm1098, %v5897, %v5881
        %5901 = vst [vmem:[#allocation3 + $0xb0] sm:$0xff] %v5892
        %5902 = vst.msk [vmem:[#allocation3 + $0xb8] sm:$0xff] %vm5471, %v5899
        %5903 = vrot.lane.b32.xlu0 %v5391, 24
        %v5904 = vpop.permute.xlu0 %5903
        %5905 = vrot.lane.b32.xlu0 %v5392, 48
        %v5906 = vpop.permute.xlu0 %5905
        %5907 = vrot.lane.b32.xlu0 %v5397, 72
        %v5908 = vpop.permute.xlu0 %5907
        %5909 = vrot.lane.b32.xlu0 %v5398, 96
        %v5910 = vpop.permute.xlu0 %5909
        %5911 = vrot.lane.b32.xlu0 %v5399, 120
        %v5912 = vpop.permute.xlu0 %5911
        %5913 = vrot.lane.b32.xlu0 %v5404, 16
        %v5914 = vpop.permute.xlu0 %5913
        %5915 = vrot.lane.b32.xlu0 %v5405, 40
        %v5916 = vpop.permute.xlu0 %5915
        %5918 = vrot.lane.b32.xlu0 %v5406, 64
        %v5919 = vpop.permute.xlu0 %5918
        %v5922 = vsel %vm5447, %v5390, %v5904
        %v5924 = vsel %vm1085, %v5922, %v5906
        %v5926 = vsel %vm5453, %v5924, %v5908
        %v5928 = vsel %vm1089, %v5926, %v5910
        %v5930 = vsel %vm5458, %v5928, %v5912
        %v5933 = vsel %vm1093, %v5912, %v5914
        %v5935 = vsel %vm5464, %v5933, %v5916
        %v5937 = vsel %vm1098, %v5935, %v5919
        %5939 = vst [vmem:[#allocation3 + $0xc0] sm:$0xff] %v5930
        %5940 = vst.msk [vmem:[#allocation3 + $0xc8] sm:$0xff] %vm5471, %v5937
        %5941 = vrot.lane.b32.xlu0 %v5392, 24
        %v5942 = vpop.permute.xlu0 %5941
        %5943 = vrot.lane.b32.xlu0 %v5393, 48
        %v5944 = vpop.permute.xlu0 %5943
        %5945 = vrot.lane.b32.xlu0 %v5398, 72
        %v5946 = vpop.permute.xlu0 %5945
        %5947 = vrot.lane.b32.xlu0 %v5399, 96
        %v5948 = vpop.permute.xlu0 %5947
        %5949 = vrot.lane.b32.xlu0 %v5400, 120
        %v5950 = vpop.permute.xlu0 %5949
        %5951 = vrot.lane.b32.xlu0 %v5405, 16
        %v5952 = vpop.permute.xlu0 %5951
        %5953 = vrot.lane.b32.xlu0 %v5406, 40
        %v5954 = vpop.permute.xlu0 %5953
        %5956 = vrot.lane.b32.xlu0 %v5407, 64
        %v5957 = vpop.permute.xlu0 %5956
        %v5960 = vsel %vm5447, %v5391, %v5942
        %v5962 = vsel %vm1085, %v5960, %v5944
        %v5964 = vsel %vm5453, %v5962, %v5946
        %v5966 = vsel %vm1089, %v5964, %v5948
        %v5968 = vsel %vm5458, %v5966, %v5950
        %v5971 = vsel %vm1093, %v5950, %v5952
        %v5973 = vsel %vm5464, %v5971, %v5954
        %v5975 = vsel %vm1098, %v5973, %v5957
        %5977 = vst [vmem:[#allocation3 + $0xd0] sm:$0xff] %v5968
        %5978 = vst.msk [vmem:[#allocation3 + $0xd8] sm:$0xff] %vm5471, %v5975
        %5979 = vrot.lane.b32.xlu0 %v5393, 24
        %v5980 = vpop.permute.xlu0 %5979
        %5981 = vrot.lane.b32.xlu0 %v5394, 48
        %v5982 = vpop.permute.xlu0 %5981
        %5983 = vrot.lane.b32.xlu0 %v5399, 72
        %v5984 = vpop.permute.xlu0 %5983
        %5985 = vrot.lane.b32.xlu0 %v5400, 96
        %v5986 = vpop.permute.xlu0 %5985
        %5987 = vrot.lane.b32.xlu0 %v5401, 120
        %v5988 = vpop.permute.xlu0 %5987
        %5989 = vrot.lane.b32.xlu0 %v5406, 16
        %v5990 = vpop.permute.xlu0 %5989
        %5991 = vrot.lane.b32.xlu0 %v5407, 40
        %v5992 = vpop.permute.xlu0 %5991
        %5994 = vrot.lane.b32.xlu0 %v5408, 64
        %v5995 = vpop.permute.xlu0 %5994
        %v5998 = vsel %vm5447, %v5392, %v5980
        %v6000 = vsel %vm1085, %v5998, %v5982
        %v6002 = vsel %vm5453, %v6000, %v5984
        %v6004 = vsel %vm1089, %v6002, %v5986
        %v6006 = vsel %vm5458, %v6004, %v5988
        %v6009 = vsel %vm1093, %v5988, %v5990
        %v6011 = vsel %vm5464, %v6009, %v5992
        %v6013 = vsel %vm1098, %v6011, %v5995
        %6015 = vst [vmem:[#allocation3 + $0xe0] sm:$0xff] %v6006
        %6016 = vst.msk [vmem:[#allocation3 + $0xe8] sm:$0xff] %vm5471, %v6013
        %6017 = vrot.lane.b32.xlu0 %v5396, 24
        %v6018 = vpop.permute.xlu0 %6017
        %6019 = vrot.lane.b32.xlu0 %v5397, 48
        %v6020 = vpop.permute.xlu0 %6019
        %6021 = vrot.lane.b32.xlu0 %v5402, 72
        %v6022 = vpop.permute.xlu0 %6021
        %6023 = vrot.lane.b32.xlu0 %v5403, 96
        %v6024 = vpop.permute.xlu0 %6023
        %6025 = vrot.lane.b32.xlu0 %v5404, 120
        %v6026 = vpop.permute.xlu0 %6025
        %6028 = vrot.lane.b32.xlu0 %v5409, 16
        %v6029 = vpop.permute.xlu0 %6028
        %6031 = vrot.lane.b32.xlu0 %v5410, 40
        %v6032 = vpop.permute.xlu0 %6031
        %6034 = vrot.lane.b32.xlu0 %v5411, 64
        %v6035 = vpop.permute.xlu0 %6034
        %v6038 = vsel %vm5447, %v5395, %v6018
        %v6040 = vsel %vm1085, %v6038, %v6020
        %v6042 = vsel %vm5453, %v6040, %v6022
        %v6044 = vsel %vm1089, %v6042, %v6024
        %v6046 = vsel %vm5458, %v6044, %v6026
        %v6049 = vsel %vm1093, %v6026, %v6029
        %v6051 = vsel %vm5464, %v6049, %v6032
        %v6053 = vsel %vm1098, %v6051, %v6035
        %6055 = vst [vmem:[#allocation3 + $0xf0] sm:$0xff] %v6046
        %6056 = vst.msk [vmem:[#allocation3 + $0xf8] sm:$0xff] %vm5471, %v6053
        %6057 = vrot.lane.b32.xlu0 %v5397, 24
        %v6058 = vpop.permute.xlu0 %6057
        %6059 = vrot.lane.b32.xlu0 %v5398, 48
        %v6060 = vpop.permute.xlu0 %6059
        %6061 = vrot.lane.b32.xlu0 %v5403, 72
        %v6062 = vpop.permute.xlu0 %6061
        %6063 = vrot.lane.b32.xlu0 %v5404, 96
        %v6064 = vpop.permute.xlu0 %6063
        %6065 = vrot.lane.b32.xlu0 %v5405, 120
        %v6066 = vpop.permute.xlu0 %6065
        %6067 = vrot.lane.b32.xlu0 %v5410, 16
        %v6068 = vpop.permute.xlu0 %6067
        %6069 = vrot.lane.b32.xlu0 %v5411, 40
        %v6070 = vpop.permute.xlu0 %6069
        %6072 = vrot.lane.b32.xlu0 %v5412, 64
        %v6073 = vpop.permute.xlu0 %6072
        %v6076 = vsel %vm5447, %v5396, %v6058
        %v6078 = vsel %vm1085, %v6076, %v6060
        %v6080 = vsel %vm5453, %v6078, %v6062
        %v6082 = vsel %vm1089, %v6080, %v6064
        %v6084 = vsel %vm5458, %v6082, %v6066
        %v6087 = vsel %vm1093, %v6066, %v6068
        %v6089 = vsel %vm5464, %v6087, %v6070
        %v6091 = vsel %vm1098, %v6089, %v6073
        %6093 = vst [vmem:[#allocation3 + $0x100] sm:$0xff] %v6084
        %6094 = vst.msk [vmem:[#allocation3 + $0x108] sm:$0xff] %vm5471, %v6091
        %6095 = vrot.lane.b32.xlu0 %v5398, 24
        %v6096 = vpop.permute.xlu0 %6095
        %6097 = vrot.lane.b32.xlu0 %v5399, 48
        %v6098 = vpop.permute.xlu0 %6097
        %6099 = vrot.lane.b32.xlu0 %v5404, 72
        %v6100 = vpop.permute.xlu0 %6099
        %6101 = vrot.lane.b32.xlu0 %v5405, 96
        %v6102 = vpop.permute.xlu0 %6101
        %6103 = vrot.lane.b32.xlu0 %v5406, 120
        %v6104 = vpop.permute.xlu0 %6103
        %6105 = vrot.lane.b32.xlu0 %v5411, 16
        %v6106 = vpop.permute.xlu0 %6105
        %6107 = vrot.lane.b32.xlu0 %v5412, 40
        %v6108 = vpop.permute.xlu0 %6107
        %6110 = vrot.lane.b32.xlu0 %v5413, 64
        %v6111 = vpop.permute.xlu0 %6110
        %v6114 = vsel %vm5447, %v5397, %v6096
        %v6116 = vsel %vm1085, %v6114, %v6098
        %v6118 = vsel %vm5453, %v6116, %v6100
        %v6120 = vsel %vm1089, %v6118, %v6102
        %v6122 = vsel %vm5458, %v6120, %v6104
        %v6125 = vsel %vm1093, %v6104, %v6106
        %v6127 = vsel %vm5464, %v6125, %v6108
        %v6129 = vsel %vm1098, %v6127, %v6111
        %6131 = vst [vmem:[#allocation3 + $0x110] sm:$0xff] %v6122
        %6132 = vst.msk [vmem:[#allocation3 + $0x118] sm:$0xff] %vm5471, %v6129
        %6133 = vrot.lane.b32.xlu0 %v5399, 24
        %v6134 = vpop.permute.xlu0 %6133
        %6135 = vrot.lane.b32.xlu0 %v5400, 48
        %v6136 = vpop.permute.xlu0 %6135
        %6137 = vrot.lane.b32.xlu0 %v5405, 72
        %v6138 = vpop.permute.xlu0 %6137
        %6139 = vrot.lane.b32.xlu0 %v5406, 96
        %v6140 = vpop.permute.xlu0 %6139
        %6141 = vrot.lane.b32.xlu0 %v5407, 120
        %v6142 = vpop.permute.xlu0 %6141
        %6143 = vrot.lane.b32.xlu0 %v5412, 16
        %v6144 = vpop.permute.xlu0 %6143
        %6145 = vrot.lane.b32.xlu0 %v5413, 40
        %v6146 = vpop.permute.xlu0 %6145
        %6148 = vrot.lane.b32.xlu0 %v5414, 64
        %v6149 = vpop.permute.xlu0 %6148
        %v6152 = vsel %vm5447, %v5398, %v6134
        %v6154 = vsel %vm1085, %v6152, %v6136
        %v6156 = vsel %vm5453, %v6154, %v6138
        %v6158 = vsel %vm1089, %v6156, %v6140
        %v6160 = vsel %vm5458, %v6158, %v6142
        %v6163 = vsel %vm1093, %v6142, %v6144
        %v6165 = vsel %vm5464, %v6163, %v6146
        %v6167 = vsel %vm1098, %v6165, %v6149
        %6169 = vst [vmem:[#allocation3 + $0x120] sm:$0xff] %v6160
        %6170 = vst.msk [vmem:[#allocation3 + $0x128] sm:$0xff] %vm5471, %v6167
        %6171 = vrot.lane.b32.xlu0 %v5400, 24
        %v6172 = vpop.permute.xlu0 %6171
        %6173 = vrot.lane.b32.xlu0 %v5401, 48
        %v6174 = vpop.permute.xlu0 %6173
        %6175 = vrot.lane.b32.xlu0 %v5406, 72
        %v6176 = vpop.permute.xlu0 %6175
        %6177 = vrot.lane.b32.xlu0 %v5407, 96
        %v6178 = vpop.permute.xlu0 %6177
        %6179 = vrot.lane.b32.xlu0 %v5408, 120
        %v6180 = vpop.permute.xlu0 %6179
        %6181 = vrot.lane.b32.xlu0 %v5413, 16
        %v6182 = vpop.permute.xlu0 %6181
        %6183 = vrot.lane.b32.xlu0 %v5414, 40
        %v6184 = vpop.permute.xlu0 %6183
        %6186 = vrot.lane.b32.xlu0 %v5415, 64
        %v6187 = vpop.permute.xlu0 %6186
        %v6190 = vsel %vm5447, %v5399, %v6172
        %v6192 = vsel %vm1085, %v6190, %v6174
        %v6194 = vsel %vm5453, %v6192, %v6176
        %v6196 = vsel %vm1089, %v6194, %v6178
        %v6198 = vsel %vm5458, %v6196, %v6180
        %v6201 = vsel %vm1093, %v6180, %v6182
        %v6203 = vsel %vm5464, %v6201, %v6184
        %v6205 = vsel %vm1098, %v6203, %v6187
        %6207 = vst [vmem:[#allocation3 + $0x130] sm:$0xff] %v6198
        %6208 = vst.msk [vmem:[#allocation3 + $0x138] sm:$0xff] %vm5471, %v6205
        %6209 = vrot.lane.b32.xlu0 %v5403, 24
        %v6210 = vpop.permute.xlu0 %6209
        %6211 = vrot.lane.b32.xlu0 %v5404, 48
        %v6212 = vpop.permute.xlu0 %6211
        %6213 = vrot.lane.b32.xlu0 %v5409, 72
        %v6214 = vpop.permute.xlu0 %6213
        %6215 = vrot.lane.b32.xlu0 %v5410, 96
        %v6216 = vpop.permute.xlu0 %6215
        %6217 = vrot.lane.b32.xlu0 %v5411, 120
        %v6218 = vpop.permute.xlu0 %6217
        %6220 = vrot.lane.b32.xlu0 %v5416, 16
        %v6221 = vpop.permute.xlu0 %6220
        %6223 = vrot.lane.b32.xlu0 %v5417, 40
        %v6224 = vpop.permute.xlu0 %6223
        %6226 = vrot.lane.b32.xlu0 %v5418, 64
        %v6227 = vpop.permute.xlu0 %6226
        %v6230 = vsel %vm5447, %v5402, %v6210
        %v6232 = vsel %vm1085, %v6230, %v6212
        %v6234 = vsel %vm5453, %v6232, %v6214
        %v6236 = vsel %vm1089, %v6234, %v6216
        %v6238 = vsel %vm5458, %v6236, %v6218
        %v6241 = vsel %vm1093, %v6218, %v6221
        %v6243 = vsel %vm5464, %v6241, %v6224
        %v6245 = vsel %vm1098, %v6243, %v6227
        %6247 = vst [vmem:[#allocation3 + $0x140] sm:$0xff] %v6238
        %6248 = vst.msk [vmem:[#allocation3 + $0x148] sm:$0xff] %vm5471, %v6245
        %6249 = vrot.lane.b32.xlu0 %v5404, 24
        %v6250 = vpop.permute.xlu0 %6249
        %6251 = vrot.lane.b32.xlu0 %v5405, 48
        %v6252 = vpop.permute.xlu0 %6251
        %6253 = vrot.lane.b32.xlu0 %v5410, 72
        %v6254 = vpop.permute.xlu0 %6253
        %6255 = vrot.lane.b32.xlu0 %v5411, 96
        %v6256 = vpop.permute.xlu0 %6255
        %6257 = vrot.lane.b32.xlu0 %v5412, 120
        %v6258 = vpop.permute.xlu0 %6257
        %6259 = vrot.lane.b32.xlu0 %v5417, 16
        %v6260 = vpop.permute.xlu0 %6259
        %6261 = vrot.lane.b32.xlu0 %v5418, 40
        %v6262 = vpop.permute.xlu0 %6261
        %6264 = vrot.lane.b32.xlu0 %v5419, 64
        %v6265 = vpop.permute.xlu0 %6264
        %v6268 = vsel %vm5447, %v5403, %v6250
        %v6270 = vsel %vm1085, %v6268, %v6252
        %v6272 = vsel %vm5453, %v6270, %v6254
        %v6274 = vsel %vm1089, %v6272, %v6256
        %v6276 = vsel %vm5458, %v6274, %v6258
        %v6279 = vsel %vm1093, %v6258, %v6260
        %v6281 = vsel %vm5464, %v6279, %v6262
        %v6283 = vsel %vm1098, %v6281, %v6265
        %6285 = vst [vmem:[#allocation3 + $0x150] sm:$0xff] %v6276
        %6286 = vst.msk [vmem:[#allocation3 + $0x158] sm:$0xff] %vm5471, %v6283
        %6287 = vrot.lane.b32.xlu0 %v5405, 24
        %v6288 = vpop.permute.xlu0 %6287
        %6289 = vrot.lane.b32.xlu0 %v5406, 48
        %v6290 = vpop.permute.xlu0 %6289
        %6291 = vrot.lane.b32.xlu0 %v5411, 72
        %v6292 = vpop.permute.xlu0 %6291
        %6293 = vrot.lane.b32.xlu0 %v5412, 96
        %v6294 = vpop.permute.xlu0 %6293
        %6295 = vrot.lane.b32.xlu0 %v5413, 120
        %v6296 = vpop.permute.xlu0 %6295
        %6297 = vrot.lane.b32.xlu0 %v5418, 16
        %v6298 = vpop.permute.xlu0 %6297
        %6299 = vrot.lane.b32.xlu0 %v5419, 40
        %v6300 = vpop.permute.xlu0 %6299
        %6302 = vrot.lane.b32.xlu0 %v5420, 64
        %v6303 = vpop.permute.xlu0 %6302
        %v6306 = vsel %vm5447, %v5404, %v6288
        %v6308 = vsel %vm1085, %v6306, %v6290
        %v6310 = vsel %vm5453, %v6308, %v6292
        %v6312 = vsel %vm1089, %v6310, %v6294
        %v6314 = vsel %vm5458, %v6312, %v6296
        %v6317 = vsel %vm1093, %v6296, %v6298
        %v6319 = vsel %vm5464, %v6317, %v6300
        %v6321 = vsel %vm1098, %v6319, %v6303
        %6323 = vst [vmem:[#allocation3 + $0x160] sm:$0xff] %v6314
        %6324 = vst.msk [vmem:[#allocation3 + $0x168] sm:$0xff] %vm5471, %v6321
        %6325 = vrot.lane.b32.xlu0 %v5406, 24
        %v6326 = vpop.permute.xlu0 %6325
        %6327 = vrot.lane.b32.xlu0 %v5407, 48
        %v6328 = vpop.permute.xlu0 %6327
        %6329 = vrot.lane.b32.xlu0 %v5412, 72
        %v6330 = vpop.permute.xlu0 %6329
        %6331 = vrot.lane.b32.xlu0 %v5413, 96
        %v6332 = vpop.permute.xlu0 %6331
        %6333 = vrot.lane.b32.xlu0 %v5414, 120
        %v6334 = vpop.permute.xlu0 %6333
        %6335 = vrot.lane.b32.xlu0 %v5419, 16
        %v6336 = vpop.permute.xlu0 %6335
        %6337 = vrot.lane.b32.xlu0 %v5420, 40
        %v6338 = vpop.permute.xlu0 %6337
        %6340 = vrot.lane.b32.xlu0 %v5421, 64
        %v6341 = vpop.permute.xlu0 %6340
        %v6344 = vsel %vm5447, %v5405, %v6326
        %v6346 = vsel %vm1085, %v6344, %v6328
        %v6348 = vsel %vm5453, %v6346, %v6330
        %v6350 = vsel %vm1089, %v6348, %v6332
        %v6352 = vsel %vm5458, %v6350, %v6334
        %v6355 = vsel %vm1093, %v6334, %v6336
        %v6357 = vsel %vm5464, %v6355, %v6338
        %v6359 = vsel %vm1098, %v6357, %v6341
        %6361 = vst [vmem:[#allocation3 + $0x170] sm:$0xff] %v6352
        %6362 = vst.msk [vmem:[#allocation3 + $0x178] sm:$0xff] %vm5471, %v6359
        %6363 = vrot.lane.b32.xlu0 %v5407, 24
        %v6364 = vpop.permute.xlu0 %6363
        %6365 = vrot.lane.b32.xlu0 %v5408, 48
        %v6366 = vpop.permute.xlu0 %6365
        %6367 = vrot.lane.b32.xlu0 %v5413, 72
        %v6368 = vpop.permute.xlu0 %6367
        %6369 = vrot.lane.b32.xlu0 %v5414, 96
        %v6370 = vpop.permute.xlu0 %6369
        %6371 = vrot.lane.b32.xlu0 %v5415, 120
        %v6372 = vpop.permute.xlu0 %6371
        %6373 = vrot.lane.b32.xlu0 %v5420, 16
        %v6374 = vpop.permute.xlu0 %6373
        %6375 = vrot.lane.b32.xlu0 %v5421, 40
        %v6376 = vpop.permute.xlu0 %6375
        %6378 = vrot.lane.b32.xlu0 %v5422, 64
        %v6379 = vpop.permute.xlu0 %6378
        %v6382 = vsel %vm5447, %v5406, %v6364
        %v6384 = vsel %vm1085, %v6382, %v6366
        %v6386 = vsel %vm5453, %v6384, %v6368
        %v6388 = vsel %vm1089, %v6386, %v6370
        %v6390 = vsel %vm5458, %v6388, %v6372
        %v6393 = vsel %vm1093, %v6372, %v6374
        %v6395 = vsel %vm5464, %v6393, %v6376
        %v6397 = vsel %vm1098, %v6395, %v6379
        %6399 = vst [vmem:[#allocation3 + $0x180] sm:$0xff] %v6390
        %6400 = vst.msk [vmem:[#allocation3 + $0x188] sm:$0xff] %vm5471, %v6397
        %v6401 = vld [vmem:[#allocation3] sm:$0xff]
        %v6402 = vld [vmem:[#allocation3 + $0x8] sm:$0xff]
        %v6403 = vld [vmem:[#allocation3 + $0x10] sm:$0xff]
        %v6404 = vld [vmem:[#allocation3 + $0x18] sm:$0xff]
        %v6405 = vld [vmem:[#allocation3 + $0x20] sm:$0xff]
        %v6406 = vld [vmem:[#allocation3 + $0x28] sm:$0xff]
        %v6407 = vld [vmem:[#allocation3 + $0x30] sm:$0xff]
        %v6408 = vld [vmem:[#allocation3 + $0x38] sm:$0xff]
        %v6409 = vld [vmem:[#allocation3 + $0x40] sm:$0xff]
        %v6410 = vld [vmem:[#allocation3 + $0x48] sm:$0xff]
        %v6411 = vld [vmem:[#allocation3 + $0x50] sm:$0xff]
        %v6412 = vld [vmem:[#allocation3 + $0x58] sm:$0xff]
        %v6413 = vld [vmem:[#allocation3 + $0x60] sm:$0xff]
        %v6414 = vld [vmem:[#allocation3 + $0x68] sm:$0xff]
        %v6415 = vld [vmem:[#allocation3 + $0x70] sm:$0xff]
        %v6416 = vld [vmem:[#allocation3 + $0x78] sm:$0xff]
        %v6417 = vld [vmem:[#allocation3 + $0x80] sm:$0xff]
        %v6418 = vld [vmem:[#allocation3 + $0x88] sm:$0xff]
        %v6419 = vld [vmem:[#allocation3 + $0x90] sm:$0xff]
        %v6420 = vld [vmem:[#allocation3 + $0x98] sm:$0xff]
        %v6421 = vld [vmem:[#allocation3 + $0xa0] sm:$0xff]
        %v6422 = vld [vmem:[#allocation3 + $0xa8] sm:$0xff]
        %v6423 = vld [vmem:[#allocation3 + $0xb0] sm:$0xff]
        %v6424 = vld [vmem:[#allocation3 + $0xb8] sm:$0xff]
        %v6425 = vld [vmem:[#allocation3 + $0xc0] sm:$0xff]
        %v6426 = vld [vmem:[#allocation3 + $0xc8] sm:$0xff]
        %v6427 = vld [vmem:[#allocation3 + $0xd0] sm:$0xff]
        %v6428 = vld [vmem:[#allocation3 + $0xd8] sm:$0xff]
        %v6429 = vld [vmem:[#allocation3 + $0xe0] sm:$0xff]
        %v6430 = vld [vmem:[#allocation3 + $0xe8] sm:$0xff]
        %v6431 = vld [vmem:[#allocation3 + $0xf0] sm:$0xff]
        %v6432 = vld [vmem:[#allocation3 + $0xf8] sm:$0xff]
        %v6433 = vld [vmem:[#allocation3 + $0x100] sm:$0xff]
        %v6434 = vld [vmem:[#allocation3 + $0x108] sm:$0xff]
        %v6435 = vld [vmem:[#allocation3 + $0x110] sm:$0xff]
        %v6436 = vld [vmem:[#allocation3 + $0x118] sm:$0xff]
        %v6437 = vld [vmem:[#allocation3 + $0x120] sm:$0xff]
        %v6438 = vld [vmem:[#allocation3 + $0x128] sm:$0xff]
        %v6439 = vld [vmem:[#allocation3 + $0x130] sm:$0xff]
        %v6440 = vld [vmem:[#allocation3 + $0x138] sm:$0xff]
        %v6441 = vld [vmem:[#allocation3 + $0x140] sm:$0xff]
        %v6442 = vld [vmem:[#allocation3 + $0x148] sm:$0xff]
        %v6443 = vld [vmem:[#allocation3 + $0x150] sm:$0xff]
        %v6444 = vld [vmem:[#allocation3 + $0x158] sm:$0xff]
        %v6445 = vld [vmem:[#allocation3 + $0x160] sm:$0xff]
        %v6446 = vld [vmem:[#allocation3 + $0x168] sm:$0xff]
        %v6447 = vld [vmem:[#allocation3 + $0x170] sm:$0xff]
        %v6448 = vld [vmem:[#allocation3 + $0x178] sm:$0xff]
        %v6449 = vld [vmem:[#allocation3 + $0x180] sm:$0xff]
        %v6450 = vld [vmem:[#allocation3 + $0x188] sm:$0xff]
        %v6451 = vld [vmem:[%s4] sm:$0xf]
        %v6452 = vld [vmem:[%s4 + $0x4] sm:$0xf]
        %v6453 = vld [vmem:[%s4 + $0x8] sm:$0xf]
        %v6454 = vld [vmem:[%s4 + $0xc] sm:$0xf]
        %v6455 = vld [vmem:[%s4 + $0x10] sm:$0xf]
        %v6456 = vld [vmem:[%s4 + $0x14] sm:$0xf]
        %v6457 = vld [vmem:[%s4 + $0x18] sm:$0xf]
        %v6458 = vld [vmem:[%s4 + $0x1c] sm:$0xf]
        %v6459 = vld [vmem:[%s4 + $0x20] sm:$0xf]
        %v6460 = vld [vmem:[%s4 + $0x24] sm:$0xf]
        %v6461 = vld [vmem:[%s4 + $0x28] sm:$0xf]
        %v6462 = vld [vmem:[%s4 + $0x2c] sm:$0xf]
        %v6463 = vld [vmem:[%s4 + $0x30] sm:$0xf]
        %v6464 = vld [vmem:[%s4 + $0x34] sm:$0xf]
        %v6465 = vld [vmem:[%s4 + $0x38] sm:$0xf]
        %v6466 = vld [vmem:[%s4 + $0x3c] sm:$0xf]
        %v6467 = vld [vmem:[%s4 + $0x40] sm:$0xf]
        %v6468 = vld [vmem:[%s4 + $0x44] sm:$0xf]
        %v6469 = vld [vmem:[%s4 + $0x48] sm:$0xf]
        %v6470 = vld [vmem:[%s4 + $0x4c] sm:$0xf]
        %v6471 = vld [vmem:[%s4 + $0x50] sm:$0xf]
        %v6472 = vld [vmem:[%s4 + $0x54] sm:$0xf]
        %v6473 = vld [vmem:[%s4 + $0x58] sm:$0xf]
        %v6474 = vld [vmem:[%s4 + $0x5c] sm:$0xf]
        %v6475 = vld [vmem:[%s4 + $0x60] sm:$0xf]
        %v6476 = vld [vmem:[%s4 + $0x64] sm:$0xf]
        %v6477 = vld [vmem:[%s4 + $0x68] sm:$0xf]
        %v6505 = vunpack.c.l.b16 %v6451
        %v6506 = vunpack.c.l.b16 %v6452
        %v6507 = vunpack.c.l.b16 %v6453
        %v6508 = vunpack.c.l.b16 %v6454
        %v6509 = vunpack.c.l.b16 %v6455
        %v6510 = vunpack.c.l.b16 %v6456
        %v6511 = vunpack.c.l.b16 %v6457
        %v6512 = vunpack.c.l.b16 %v6458
        %v6513 = vunpack.c.l.b16 %v6459
        %v6514 = vunpack.c.l.b16 %v6460
        %v6515 = vunpack.c.l.b16 %v6461
        %v6516 = vunpack.c.l.b16 %v6462
        %v6517 = vunpack.c.l.b16 %v6463
        %v6518 = vunpack.c.l.b16 %v6464
        %v6519 = vunpack.c.l.b16 %v6465
        %v6520 = vunpack.c.l.b16 %v6466
        %v6521 = vunpack.c.l.b16 %v6467
        %v6522 = vunpack.c.l.b16 %v6468
        %v6523 = vunpack.c.l.b16 %v6469
        %v6524 = vunpack.c.l.b16 %v6470
        %v6525 = vunpack.c.l.b16 %v6471
        %v6526 = vunpack.c.l.b16 %v6472
        %v6527 = vunpack.c.l.b16 %v6473
        %v6528 = vunpack.c.l.b16 %v6474
        %v6529 = vunpack.c.l.b16 %v6475
        %v6530 = vunpack.c.l.b16 %v6476
        %v6531 = vunpack.c.l.b16 %v6477
        %v6532 = vpack.c.b16 %v6506, %v6505
        %v6533 = vpack.c.b16 %v6508, %v6507
        %v6534 = vpack.c.b16 %v6510, %v6509
        %v6535 = vpack.c.b16 %v6512, %v6511
        %v6536 = vpack.c.b16 %v6514, %v6513
        %v6537 = vpack.c.b16 %v6516, %v6515
        %v6538 = vpack.c.b16 %v6518, %v6517
        %v6539 = vpack.c.b16 %v6520, %v6519
        %v6540 = vpack.c.b16 %v6522, %v6521
        %v6541 = vpack.c.b16 %v6524, %v6523
        %v6542 = vpack.c.b16 %v6526, %v6525
        %v6543 = vpack.c.b16 %v6528, %v6527
        %v6544 = vpack.c.b16 %v6530, %v6529
        %v6545 = vpack.c.b16 %v6531, %v6531
        %v6560 = vsel %vm5471, %v6402, 0
        %v6563 = vsel %vm5471, %v6404, 0
        %v6566 = vsel %vm5471, %v6406, 0
        %v6569 = vsel %vm5471, %v6408, 0
        %v6572 = vsel %vm5471, %v6410, 0
        %v6575 = vsel %vm5471, %v6412, 0
        %v6578 = vsel %vm5471, %v6414, 0
        %v6581 = vsel %vm5471, %v6416, 0
        %v6584 = vsel %vm5471, %v6418, 0
        %v6587 = vsel %vm5471, %v6420, 0
        %v6590 = vsel %vm5471, %v6422, 0
        %v6593 = vsel %vm5471, %v6424, 0
        %v6596 = vsel %vm5471, %v6426, 0
        %v6599 = vsel %vm5471, %v6428, 0
        %v6602 = vsel %vm5471, %v6430, 0
        %v6605 = vsel %vm5471, %v6432, 0
        %v6608 = vsel %vm5471, %v6434, 0
        %v6611 = vsel %vm5471, %v6436, 0
        %v6614 = vsel %vm5471, %v6438, 0
        %v6617 = vsel %vm5471, %v6440, 0
        %v6620 = vsel %vm5471, %v6442, 0
        %v6623 = vsel %vm5471, %v6444, 0
        %v6626 = vsel %vm5471, %v6446, 0
        %v6629 = vsel %vm5471, %v6448, 0
        %v6632 = vsel %vm5471, %v6450, 0
        %vm6634 = vcmask 1043456
        %v6636 = vsel %vm6634, %v6545, 0
        %6638 = vmatprep.subr.bf16.mxu0 0
        %6639 = vmatpush1.bf16.msra.mxu0 %v6532
        %6640 = vmatprep.subr.bf16.mxu0 0
        %6641 = vmatpush1.bf16.msra.mxu0 %v6533
        %6642 = vmatprep.subr.bf16.mxu0 0
        %6643 = vmatpush1.bf16.msra.mxu0 %v6534
        %6644 = vmatprep.subr.bf16.mxu0 0
        %6645 = vmatpush1.bf16.msra.mxu0 %v6535
        %6646 = vmatprep.subr.bf16.mxu0 0
        %6647 = vmatpush1.bf16.msra.mxu0 %v6536
        %6648 = vmatprep.subr.bf16.mxu0 0
        %6649 = vmatpush1.bf16.msra.mxu0 %v6537
        %6650 = vmatprep.subr.bf16.mxu0 0
        %6651 = vmatpush1.bf16.msra.mxu0 %v6538
        %6652 = vmatprep.subr.bf16.mxu0 0
        %6653 = vmatpush1.bf16.msra.mxu0 %v6539
        %6654 = vmatprep.subr.bf16.mxu0 0
        %6655 = vmatpush1.bf16.msra.mxu0 %v6540
        %6656 = vmatprep.subr.bf16.mxu0 0
        %6657 = vmatpush1.bf16.msra.mxu0 %v6541
        %6658 = vmatprep.subr.bf16.mxu0 0
        %6659 = vmatpush1.bf16.msra.mxu0 %v6542
        %6660 = vmatprep.subr.bf16.mxu0 0
        %6661 = vmatpush1.bf16.msra.mxu0 %v6543
        %6662 = vmatprep.subr.bf16.mxu0 0
        %6663 = vmatpush1.bf16.msra.mxu0 %v6544
        %6664 = vmatprep.subr.bf16.mxu0 0
        %6665 = vmatpush1.bf16.msra.mxu0 %v6636
        %6666 = vmatprep.subr.bf16.mxu0 0
        %6667 = vmatpush1.bf16.msra.mxu0 0
        %6668 = vmatprep.subr.bf16.mxu0 0
        %6669 = vmatpush1.bf16.msra.mxu0 0
        %6670 = vmatprep.mubr.bf16.mxu0 %v6560
        %6671 = vmatmul.mubr.bf16.gmra.mrb[0].mxu0 %v6401
        %v6672 = vpop.f32.mrb[0].mxu0
        %v6673 = vadd.f32 0.0, %v6672
        %v6674 = vpop.f32.mrb[0].mxu0
        %v6675 = vpop.f32.mrb[0].mxu0
        %v6676 = vadd.f32 0.0, %v6675
        %v6677 = vpop.f32.mrb[0].mxu0
        %6678 = vmatprep.mubr.bf16.mxu0 %v6563
        %6679 = vmatmul.mubr.bf16.gmra.mrb[0].mxu0 %v6403
        %v6680 = vpop.f32.mrb[0].mxu0
        %v6681 = vadd.f32 0.0, %v6680
        %v6682 = vpop.f32.mrb[0].mxu0
        %v6683 = vpop.f32.mrb[0].mxu0
        %v6684 = vadd.f32 0.0, %v6683
        %v6685 = vpop.f32.mrb[0].mxu0
        %6686 = vmatprep.mubr.bf16.mxu0 %v6566
        %6687 = vmatmul.mubr.bf16.gmra.mrb[0].mxu0 %v6405
        %v6688 = vpop.f32.mrb[0].mxu0
        %v6689 = vadd.f32 0.0, %v6688
        %v6690 = vpop.f32.mrb[0].mxu0
        %v6691 = vpop.f32.mrb[0].mxu0
        %v6692 = vadd.f32 0.0, %v6691
        %v6693 = vpop.f32.mrb[0].mxu0
        %6694 = vmatprep.mubr.bf16.mxu0 %v6569
        %6695 = vmatmul.mubr.bf16.gmra.mrb[0].mxu0 %v6407
        %v6696 = vpop.f32.mrb[0].mxu0
        %v6697 = vadd.f32 0.0, %v6696
        %v6698 = vpop.f32.mrb[0].mxu0
        %v6699 = vpop.f32.mrb[0].mxu0
        %v6700 = vadd.f32 0.0, %v6699
        %v6701 = vpop.f32.mrb[0].mxu0
        %6702 = vmatprep.mubr.bf16.mxu0 %v6572
        %6703 = vmatmul.mubr.bf16.gmra.mrb[0].mxu0 %v6409
        %v6704 = vpop.f32.mrb[0].mxu0
        %v6705 = vadd.f32 0.0, %v6704
        %v6706 = vpop.f32.mrb[0].mxu0
        %v6707 = vpop.f32.mrb[0].mxu0
        %v6708 = vadd.f32 0.0, %v6707
        %v6709 = vpop.f32.mrb[0].mxu0
        %6710 = vmatprep.mubr.bf16.mxu0 %v6575
        %6711 = vmatmul.mubr.bf16.gmra.mrb[0].mxu0 %v6411
        %v6712 = vpop.f32.mrb[0].mxu0
        %v6713 = vadd.f32 0.0, %v6712
        %v6714 = vpop.f32.mrb[0].mxu0
        %v6715 = vpop.f32.mrb[0].mxu0
        %v6716 = vadd.f32 0.0, %v6715
        %v6717 = vpop.f32.mrb[0].mxu0
        %6718 = vmatprep.mubr.bf16.mxu0 %v6578
        %6719 = vmatmul.mubr.bf16.gmra.mrb[0].mxu0 %v6413
        %v6720 = vpop.f32.mrb[0].mxu0
        %v6721 = vadd.f32 0.0, %v6720
        %v6722 = vpop.f32.mrb[0].mxu0
        %v6723 = vpop.f32.mrb[0].mxu0
        %v6724 = vadd.f32 0.0, %v6723
        %v6725 = vpop.f32.mrb[0].mxu0
        %6726 = vmatprep.mubr.bf16.mxu0 %v6581
        %6727 = vmatmul.mubr.bf16.gmra.mrb[0].mxu0 %v6415
        %v6728 = vpop.f32.mrb[0].mxu0
        %v6729 = vadd.f32 0.0, %v6728
        %v6730 = vpop.f32.mrb[0].mxu0
        %v6731 = vpop.f32.mrb[0].mxu0
        %v6732 = vadd.f32 0.0, %v6731
        %v6733 = vpop.f32.mrb[0].mxu0
        %6734 = vmatprep.mubr.bf16.mxu0 %v6584
        %6735 = vmatmul.mubr.bf16.gmra.mrb[0].mxu0 %v6417
        %v6736 = vpop.f32.mrb[0].mxu0
        %v6737 = vadd.f32 0.0, %v6736
        %v6738 = vpop.f32.mrb[0].mxu0
        %v6739 = vpop.f32.mrb[0].mxu0
        %v6740 = vadd.f32 0.0, %v6739
        %v6741 = vpop.f32.mrb[0].mxu0
        %6742 = vmatprep.mubr.bf16.mxu0 %v6587
        %6743 = vmatmul.mubr.bf16.gmra.mrb[0].mxu0 %v6419
        %v6744 = vpop.f32.mrb[0].mxu0
        %v6745 = vadd.f32 0.0, %v6744
        %v6746 = vpop.f32.mrb[0].mxu0
        %v6747 = vpop.f32.mrb[0].mxu0
        %v6748 = vadd.f32 0.0, %v6747
        %v6749 = vpop.f32.mrb[0].mxu0
        %6750 = vmatprep.mubr.bf16.mxu0 %v6590
        %6751 = vmatmul.mubr.bf16.gmra.mrb[0].mxu0 %v6421
        %v6752 = vpop.f32.mrb[0].mxu0
        %v6753 = vadd.f32 0.0, %v6752
        %v6754 = vpop.f32.mrb[0].mxu0
        %v6755 = vpop.f32.mrb[0].mxu0
        %v6756 = vadd.f32 0.0, %v6755
        %v6757 = vpop.f32.mrb[0].mxu0
        %6758 = vmatprep.mubr.bf16.mxu0 %v6593
        %6759 = vmatmul.mubr.bf16.gmra.mrb[0].mxu0 %v6423
        %v6760 = vpop.f32.mrb[0].mxu0
        %v6761 = vadd.f32 0.0, %v6760
        %v6762 = vpop.f32.mrb[0].mxu0
        %v6763 = vpop.f32.mrb[0].mxu0
        %v6764 = vadd.f32 0.0, %v6763
        %v6765 = vpop.f32.mrb[0].mxu0
        %6766 = vmatprep.mubr.bf16.mxu0 %v6596
        %6767 = vmatmul.mubr.bf16.gmra.mrb[0].mxu0 %v6425
        %v6768 = vpop.f32.mrb[0].mxu0
        %v6769 = vadd.f32 0.0, %v6768
        %v6770 = vpop.f32.mrb[0].mxu0
        %v6771 = vpop.f32.mrb[0].mxu0
        %v6772 = vadd.f32 0.0, %v6771
        %v6773 = vpop.f32.mrb[0].mxu0
        %6774 = vmatprep.mubr.bf16.mxu0 %v6599
        %6775 = vmatmul.mubr.bf16.gmra.mrb[0].mxu0 %v6427
        %v6776 = vpop.f32.mrb[0].mxu0
        %v6777 = vadd.f32 0.0, %v6776
        %v6778 = vpop.f32.mrb[0].mxu0
        %v6779 = vpop.f32.mrb[0].mxu0
        %v6780 = vadd.f32 0.0, %v6779
        %v6781 = vpop.f32.mrb[0].mxu0
        %6782 = vmatprep.mubr.bf16.mxu0 %v6602
        %6783 = vmatmul.mubr.bf16.gmra.mrb[0].mxu0 %v6429
        %v6784 = vpop.f32.mrb[0].mxu0
        %v6785 = vadd.f32 0.0, %v6784
        %v6786 = vpop.f32.mrb[0].mxu0
        %v6787 = vpop.f32.mrb[0].mxu0
        %v6788 = vadd.f32 0.0, %v6787
        %v6789 = vpop.f32.mrb[0].mxu0
        %6790 = vmatprep.mubr.bf16.mxu0 %v6605
        %6791 = vmatmul.mubr.bf16.gmra.mrb[0].mxu0 %v6431
        %v6792 = vpop.f32.mrb[0].mxu0
        %v6793 = vadd.f32 0.0, %v6792
        %v6794 = vpop.f32.mrb[0].mxu0
        %v6795 = vpop.f32.mrb[0].mxu0
        %v6796 = vadd.f32 0.0, %v6795
        %v6797 = vpop.f32.mrb[0].mxu0
        %6798 = vmatprep.mubr.bf16.mxu0 %v6608
        %6799 = vmatmul.mubr.bf16.gmra.mrb[0].mxu0 %v6433
        %v6800 = vpop.f32.mrb[0].mxu0
        %v6801 = vadd.f32 0.0, %v6800
        %v6802 = vpop.f32.mrb[0].mxu0
        %v6803 = vpop.f32.mrb[0].mxu0
        %v6804 = vadd.f32 0.0, %v6803
        %v6805 = vpop.f32.mrb[0].mxu0
        %6806 = vmatprep.mubr.bf16.mxu0 %v6611
        %6807 = vmatmul.mubr.bf16.gmra.mrb[0].mxu0 %v6435
        %v6808 = vpop.f32.mrb[0].mxu0
        %v6809 = vadd.f32 0.0, %v6808
        %v6810 = vpop.f32.mrb[0].mxu0
        %v6811 = vpop.f32.mrb[0].mxu0
        %v6812 = vadd.f32 0.0, %v6811
        %v6813 = vpop.f32.mrb[0].mxu0
        %6814 = vmatprep.mubr.bf16.mxu0 %v6614
        %6815 = vmatmul.mubr.bf16.gmra.mrb[0].mxu0 %v6437
        %v6816 = vpop.f32.mrb[0].mxu0
        %v6817 = vadd.f32 0.0, %v6816
        %v6818 = vpop.f32.mrb[0].mxu0
        %v6819 = vpop.f32.mrb[0].mxu0
        %v6820 = vadd.f32 0.0, %v6819
        %v6821 = vpop.f32.mrb[0].mxu0
        %6822 = vmatprep.mubr.bf16.mxu0 %v6617
        %6823 = vmatmul.mubr.bf16.gmra.mrb[0].mxu0 %v6439
        %v6824 = vpop.f32.mrb[0].mxu0
        %v6825 = vadd.f32 0.0, %v6824
        %v6826 = vpop.f32.mrb[0].mxu0
        %v6827 = vpop.f32.mrb[0].mxu0
        %v6828 = vadd.f32 0.0, %v6827
        %v6829 = vpop.f32.mrb[0].mxu0
        %6830 = vmatprep.mubr.bf16.mxu0 %v6620
        %6831 = vmatmul.mubr.bf16.gmra.mrb[0].mxu0 %v6441
        %v6832 = vpop.f32.mrb[0].mxu0
        %v6833 = vadd.f32 0.0, %v6832
        %v6834 = vpop.f32.mrb[0].mxu0
        %v6835 = vpop.f32.mrb[0].mxu0
        %v6836 = vadd.f32 0.0, %v6835
        %v6837 = vpop.f32.mrb[0].mxu0
        %6838 = vmatprep.mubr.bf16.mxu0 %v6623
        %6839 = vmatmul.mubr.bf16.gmra.mrb[0].mxu0 %v6443
        %v6840 = vpop.f32.mrb[0].mxu0
        %v6841 = vadd.f32 0.0, %v6840
        %v6842 = vpop.f32.mrb[0].mxu0
        %v6843 = vpop.f32.mrb[0].mxu0
        %v6844 = vadd.f32 0.0, %v6843
        %v6845 = vpop.f32.mrb[0].mxu0
        %6846 = vmatprep.mubr.bf16.mxu0 %v6626
        %6847 = vmatmul.mubr.bf16.gmra.mrb[0].mxu0 %v6445
        %v6848 = vpop.f32.mrb[0].mxu0
        %v6849 = vadd.f32 0.0, %v6848
        %v6850 = vpop.f32.mrb[0].mxu0
        %v6851 = vpop.f32.mrb[0].mxu0
        %v6852 = vadd.f32 0.0, %v6851
        %v6853 = vpop.f32.mrb[0].mxu0
        %6854 = vmatprep.mubr.bf16.mxu0 %v6629
        %6855 = vmatmul.mubr.bf16.gmra.mrb[0].mxu0 %v6447
        %v6856 = vpop.f32.mrb[0].mxu0
        %v6857 = vadd.f32 0.0, %v6856
        %v6858 = vpop.f32.mrb[0].mxu0
        %v6859 = vpop.f32.mrb[0].mxu0
        %v6860 = vadd.f32 0.0, %v6859
        %v6861 = vpop.f32.mrb[0].mxu0
        %6862 = vmatprep.mubr.bf16.mxu0 %v6632
        %6863 = vmatmul.mubr.bf16.gmra.mrb[0].mxu0 %v6449
        %v6864 = vpop.f32.mrb[0].mxu0
        %v6865 = vadd.f32 0.0, %v6864
        %v6866 = vpop.f32.mrb[0].mxu0
        %v6867 = vpop.f32.mrb[0].mxu0
        %v6868 = vadd.f32 0.0, %v6867
        %v6869 = vpop.f32.mrb[0].mxu0
        %6870 = vdwg.mxu0
        %v6871 = vld [vmem:[%s5] sm:$0x1]
        %v6873 = vlaneseq
        %v6874 = vshrl.u32 %v6873, 7
        %v6875 = vsub.s32 0, %v6874
        %v6876 = vrot.slane %v6871, %v6875
        %v6878 = vmul.f32 %v6673, %v6876
        %v6879 = vmul.f32 %v6676, %v6876
        %v6880 = vmul.f32 %v6681, %v6876
        %v6881 = vmul.f32 %v6684, %v6876
        %v6882 = vmul.f32 %v6689, %v6876
        %v6883 = vmul.f32 %v6692, %v6876
        %v6884 = vmul.f32 %v6697, %v6876
        %v6885 = vmul.f32 %v6700, %v6876
        %v6886 = vmul.f32 %v6705, %v6876
        %v6887 = vmul.f32 %v6708, %v6876
        %v6888 = vmul.f32 %v6713, %v6876
        %v6889 = vmul.f32 %v6716, %v6876
        %v6890 = vmul.f32 %v6721, %v6876
        %v6891 = vmul.f32 %v6724, %v6876
        %v6892 = vmul.f32 %v6729, %v6876
        %v6893 = vmul.f32 %v6732, %v6876
        %v6894 = vmul.f32 %v6737, %v6876
        %v6895 = vmul.f32 %v6740, %v6876
        %v6896 = vmul.f32 %v6745, %v6876
        %v6897 = vmul.f32 %v6748, %v6876
        %v6898 = vmul.f32 %v6753, %v6876
        %v6899 = vmul.f32 %v6756, %v6876
        %v6900 = vmul.f32 %v6761, %v6876
        %v6901 = vmul.f32 %v6764, %v6876
        %v6902 = vmul.f32 %v6769, %v6876
        %v6903 = vmul.f32 %v6772, %v6876
        %v6904 = vmul.f32 %v6777, %v6876
        %v6905 = vmul.f32 %v6780, %v6876
        %v6906 = vmul.f32 %v6785, %v6876
        %v6907 = vmul.f32 %v6788, %v6876
        %v6908 = vmul.f32 %v6793, %v6876
        %v6909 = vmul.f32 %v6796, %v6876
        %v6910 = vmul.f32 %v6801, %v6876
        %v6911 = vmul.f32 %v6804, %v6876
        %v6912 = vmul.f32 %v6809, %v6876
        %v6913 = vmul.f32 %v6812, %v6876
        %v6914 = vmul.f32 %v6817, %v6876
        %v6915 = vmul.f32 %v6820, %v6876
        %v6916 = vmul.f32 %v6825, %v6876
        %v6917 = vmul.f32 %v6828, %v6876
        %v6918 = vmul.f32 %v6833, %v6876
        %v6919 = vmul.f32 %v6836, %v6876
        %v6920 = vmul.f32 %v6841, %v6876
        %v6921 = vmul.f32 %v6844, %v6876
        %v6922 = vmul.f32 %v6849, %v6876
        %v6923 = vmul.f32 %v6852, %v6876
        %v6924 = vmul.f32 %v6857, %v6876
        %v6925 = vmul.f32 %v6860, %v6876
        %v6926 = vmul.f32 %v6865, %v6876
        %v6927 = vmul.f32 %v6868, %v6876
        %v6928 = vld [vmem:[%s6] sm:$0x1]
        %v6930 = vlaneseq
        %v6931 = vshrl.u32 %v6930, 7
        %v6932 = vsub.s32 0, %v6931
        %v6933 = vrot.slane %v6928, %v6932
        %v6935 = vadd.f32 %v6878, %v6933
        %v6936 = vadd.f32 %v6879, %v6933
        %v6937 = vadd.f32 %v6880, %v6933
        %v6938 = vadd.f32 %v6881, %v6933
        %v6939 = vadd.f32 %v6882, %v6933
        %v6940 = vadd.f32 %v6883, %v6933
        %v6941 = vadd.f32 %v6884, %v6933
        %v6942 = vadd.f32 %v6885, %v6933
        %v6943 = vadd.f32 %v6886, %v6933
        %v6944 = vadd.f32 %v6887, %v6933
        %v6945 = vadd.f32 %v6888, %v6933
        %v6946 = vadd.f32 %v6889, %v6933
        %v6947 = vadd.f32 %v6890, %v6933
        %v6948 = vadd.f32 %v6891, %v6933
        %v6949 = vadd.f32 %v6892, %v6933
        %v6950 = vadd.f32 %v6893, %v6933
        %v6951 = vadd.f32 %v6894, %v6933
        %v6952 = vadd.f32 %v6895, %v6933
        %v6953 = vadd.f32 %v6896, %v6933
        %v6954 = vadd.f32 %v6897, %v6933
        %v6955 = vadd.f32 %v6898, %v6933
        %v6956 = vadd.f32 %v6899, %v6933
        %v6957 = vadd.f32 %v6900, %v6933
        %v6958 = vadd.f32 %v6901, %v6933
        %v6959 = vadd.f32 %v6902, %v6933
        %v6960 = vadd.f32 %v6903, %v6933
        %v6961 = vadd.f32 %v6904, %v6933
        %v6962 = vadd.f32 %v6905, %v6933
        %v6963 = vadd.f32 %v6906, %v6933
        %v6964 = vadd.f32 %v6907, %v6933
        %v6965 = vadd.f32 %v6908, %v6933
        %v6966 = vadd.f32 %v6909, %v6933
        %v6967 = vadd.f32 %v6910, %v6933
        %v6968 = vadd.f32 %v6911, %v6933
        %v6969 = vadd.f32 %v6912, %v6933
        %v6970 = vadd.f32 %v6913, %v6933
        %v6971 = vadd.f32 %v6914, %v6933
        %v6972 = vadd.f32 %v6915, %v6933
        %v6973 = vadd.f32 %v6916, %v6933
        %v6974 = vadd.f32 %v6917, %v6933
        %v6975 = vadd.f32 %v6918, %v6933
        %v6976 = vadd.f32 %v6919, %v6933
        %v6977 = vadd.f32 %v6920, %v6933
        %v6978 = vadd.f32 %v6921, %v6933
        %v6979 = vadd.f32 %v6922, %v6933
        %v6980 = vadd.f32 %v6923, %v6933
        %v6981 = vadd.f32 %v6924, %v6933
        %v6982 = vadd.f32 %v6925, %v6933
        %v6983 = vadd.f32 %v6926, %v6933
        %v6984 = vadd.f32 %v6927, %v6933
        %v6985 = vmax.f32 %v6935, 0.0
        %v6986 = vmax.f32 %v6936, 0.0
        %v6987 = vmax.f32 %v6937, 0.0
        %v6988 = vmax.f32 %v6938, 0.0
        %v6989 = vmax.f32 %v6939, 0.0
        %v6990 = vmax.f32 %v6940, 0.0
        %v6991 = vmax.f32 %v6941, 0.0
        %v6992 = vmax.f32 %v6942, 0.0
        %v6993 = vmax.f32 %v6943, 0.0
        %v6994 = vmax.f32 %v6944, 0.0
        %v6995 = vmax.f32 %v6945, 0.0
        %v6996 = vmax.f32 %v6946, 0.0
        %v6997 = vmax.f32 %v6947, 0.0
        %v6998 = vmax.f32 %v6948, 0.0
        %v6999 = vmax.f32 %v6949, 0.0
        %v7000 = vmax.f32 %v6950, 0.0
        %v7001 = vmax.f32 %v6951, 0.0
        %v7002 = vmax.f32 %v6952, 0.0
        %v7003 = vmax.f32 %v6953, 0.0
        %v7004 = vmax.f32 %v6954, 0.0
        %v7005 = vmax.f32 %v6955, 0.0
        %v7006 = vmax.f32 %v6956, 0.0
        %v7007 = vmax.f32 %v6957, 0.0
        %v7008 = vmax.f32 %v6958, 0.0
        %v7009 = vmax.f32 %v6959, 0.0
        %v7010 = vmax.f32 %v6960, 0.0
        %v7011 = vmax.f32 %v6961, 0.0
        %v7012 = vmax.f32 %v6962, 0.0
        %v7013 = vmax.f32 %v6963, 0.0
        %v7014 = vmax.f32 %v6964, 0.0
        %v7015 = vmax.f32 %v6965, 0.0
        %v7016 = vmax.f32 %v6966, 0.0
        %v7017 = vmax.f32 %v6967, 0.0
        %v7018 = vmax.f32 %v6968, 0.0
        %v7019 = vmax.f32 %v6969, 0.0
        %v7020 = vmax.f32 %v6970, 0.0
        %v7021 = vmax.f32 %v6971, 0.0
        %v7022 = vmax.f32 %v6972, 0.0
        %v7023 = vmax.f32 %v6973, 0.0
        %v7024 = vmax.f32 %v6974, 0.0
        %v7025 = vmax.f32 %v6975, 0.0
        %v7026 = vmax.f32 %v6976, 0.0
        %v7027 = vmax.f32 %v6977, 0.0
        %v7028 = vmax.f32 %v6978, 0.0
        %v7029 = vmax.f32 %v6979, 0.0
        %v7030 = vmax.f32 %v6980, 0.0
        %v7031 = vmax.f32 %v6981, 0.0
        %v7032 = vmax.f32 %v6982, 0.0
        %v7033 = vmax.f32 %v6983, 0.0
        %v7034 = vmax.f32 %v6984, 0.0
        %7085 = vrot.lane.b32.xlu0 %v6985, 112
        %v7086 = vpop.permute.xlu0 %7085
        %7087 = vrot.lane.b32.xlu0 %v6986, 112
        %v7088 = vpop.permute.xlu0 %7087
        %7089 = vrot.lane.b32.xlu0 %v6987, 112
        %v7090 = vpop.permute.xlu0 %7089
        %7091 = vrot.lane.b32.xlu0 %v6988, 112
        %v7092 = vpop.permute.xlu0 %7091
        %7093 = vrot.lane.b32.xlu0 %v6989, 112
        %v7094 = vpop.permute.xlu0 %7093
        %7095 = vrot.lane.b32.xlu0 %v6990, 112
        %v7096 = vpop.permute.xlu0 %7095
        %7097 = vrot.lane.b32.xlu0 %v6991, 112
        %v7098 = vpop.permute.xlu0 %7097
        %7099 = vrot.lane.b32.xlu0 %v6992, 112
        %v7100 = vpop.permute.xlu0 %7099
        %7101 = vrot.lane.b32.xlu0 %v6993, 112
        %v7102 = vpop.permute.xlu0 %7101
        %7103 = vrot.lane.b32.xlu0 %v6994, 112
        %v7104 = vpop.permute.xlu0 %7103
        %7105 = vrot.lane.b32.xlu0 %v6995, 112
        %v7106 = vpop.permute.xlu0 %7105
        %7107 = vrot.lane.b32.xlu0 %v6996, 112
        %v7108 = vpop.permute.xlu0 %7107
        %7109 = vrot.lane.b32.xlu0 %v6997, 112
        %v7110 = vpop.permute.xlu0 %7109
        %7111 = vrot.lane.b32.xlu0 %v6998, 112
        %v7112 = vpop.permute.xlu0 %7111
        %7113 = vrot.lane.b32.xlu0 %v6999, 112
        %v7114 = vpop.permute.xlu0 %7113
        %7115 = vrot.lane.b32.xlu0 %v7000, 112
        %v7116 = vpop.permute.xlu0 %7115
        %7117 = vrot.lane.b32.xlu0 %v7001, 112
        %v7118 = vpop.permute.xlu0 %7117
        %7119 = vrot.lane.b32.xlu0 %v7002, 112
        %v7120 = vpop.permute.xlu0 %7119
        %7121 = vrot.lane.b32.xlu0 %v7003, 112
        %v7122 = vpop.permute.xlu0 %7121
        %7123 = vrot.lane.b32.xlu0 %v7004, 112
        %v7124 = vpop.permute.xlu0 %7123
        %7125 = vrot.lane.b32.xlu0 %v7005, 112
        %v7126 = vpop.permute.xlu0 %7125
        %7127 = vrot.lane.b32.xlu0 %v7006, 112
        %v7128 = vpop.permute.xlu0 %7127
        %7129 = vrot.lane.b32.xlu0 %v7007, 112
        %v7130 = vpop.permute.xlu0 %7129
        %7131 = vrot.lane.b32.xlu0 %v7008, 112
        %v7132 = vpop.permute.xlu0 %7131
        %7133 = vrot.lane.b32.xlu0 %v7009, 112
        %v7134 = vpop.permute.xlu0 %7133
        %7135 = vrot.lane.b32.xlu0 %v7010, 112
        %v7136 = vpop.permute.xlu0 %7135
        %7137 = vrot.lane.b32.xlu0 %v7011, 112
        %v7138 = vpop.permute.xlu0 %7137
        %7139 = vrot.lane.b32.xlu0 %v7012, 112
        %v7140 = vpop.permute.xlu0 %7139
        %7141 = vrot.lane.b32.xlu0 %v7013, 112
        %v7142 = vpop.permute.xlu0 %7141
        %7143 = vrot.lane.b32.xlu0 %v7014, 112
        %v7144 = vpop.permute.xlu0 %7143
        %7145 = vrot.lane.b32.xlu0 %v7015, 112
        %v7146 = vpop.permute.xlu0 %7145
        %7147 = vrot.lane.b32.xlu0 %v7016, 112
        %v7148 = vpop.permute.xlu0 %7147
        %7149 = vrot.lane.b32.xlu0 %v7017, 112
        %v7150 = vpop.permute.xlu0 %7149
        %7151 = vrot.lane.b32.xlu0 %v7018, 112
        %v7152 = vpop.permute.xlu0 %7151
        %7153 = vrot.lane.b32.xlu0 %v7019, 112
        %v7154 = vpop.permute.xlu0 %7153
        %7155 = vrot.lane.b32.xlu0 %v7020, 112
        %v7156 = vpop.permute.xlu0 %7155
        %7157 = vrot.lane.b32.xlu0 %v7021, 112
        %v7158 = vpop.permute.xlu0 %7157
        %7159 = vrot.lane.b32.xlu0 %v7022, 112
        %v7160 = vpop.permute.xlu0 %7159
        %7161 = vrot.lane.b32.xlu0 %v7023, 112
        %v7162 = vpop.permute.xlu0 %7161
        %7163 = vrot.lane.b32.xlu0 %v7024, 112
        %v7164 = vpop.permute.xlu0 %7163
        %7165 = vrot.lane.b32.xlu0 %v7025, 112
        %v7166 = vpop.permute.xlu0 %7165
        %7167 = vrot.lane.b32.xlu0 %v7026, 112
        %v7168 = vpop.permute.xlu0 %7167
        %7169 = vrot.lane.b32.xlu0 %v7027, 112
        %v7170 = vpop.permute.xlu0 %7169
        %7171 = vrot.lane.b32.xlu0 %v7028, 112
        %v7172 = vpop.permute.xlu0 %7171
        %7173 = vrot.lane.b32.xlu0 %v7029, 112
        %v7174 = vpop.permute.xlu0 %7173
        %7175 = vrot.lane.b32.xlu0 %v7030, 112
        %v7176 = vpop.permute.xlu0 %7175
        %7177 = vrot.lane.b32.xlu0 %v7031, 112
        %v7178 = vpop.permute.xlu0 %7177
        %7179 = vrot.lane.b32.xlu0 %v7032, 112
        %v7180 = vpop.permute.xlu0 %7179
        %7181 = vrot.lane.b32.xlu0 %v7033, 112
        %v7182 = vpop.permute.xlu0 %7181
        %7183 = vrot.lane.b32.xlu0 %v7034, 112
        %v7184 = vpop.permute.xlu0 %7183
        %v7235 = vmax.f32 %v6985, %v7086
        %v7236 = vmax.f32 %v6986, %v7088
        %v7237 = vmax.f32 %v6987, %v7090
        %v7238 = vmax.f32 %v6988, %v7092
        %v7239 = vmax.f32 %v6989, %v7094
        %v7240 = vmax.f32 %v6990, %v7096
        %v7241 = vmax.f32 %v6991, %v7098
        %v7242 = vmax.f32 %v6992, %v7100
        %v7243 = vmax.f32 %v6993, %v7102
        %v7244 = vmax.f32 %v6994, %v7104
        %v7245 = vmax.f32 %v6995, %v7106
        %v7246 = vmax.f32 %v6996, %v7108
        %v7247 = vmax.f32 %v6997, %v7110
        %v7248 = vmax.f32 %v6998, %v7112
        %v7249 = vmax.f32 %v6999, %v7114
        %v7250 = vmax.f32 %v7000, %v7116
        %v7251 = vmax.f32 %v7001, %v7118
        %v7252 = vmax.f32 %v7002, %v7120
        %v7253 = vmax.f32 %v7003, %v7122
        %v7254 = vmax.f32 %v7004, %v7124
        %v7255 = vmax.f32 %v7005, %v7126
        %v7256 = vmax.f32 %v7006, %v7128
        %v7257 = vmax.f32 %v7007, %v7130
        %v7258 = vmax.f32 %v7008, %v7132
        %v7259 = vmax.f32 %v7009, %v7134
        %v7260 = vmax.f32 %v7010, %v7136
        %v7261 = vmax.f32 %v7011, %v7138
        %v7262 = vmax.f32 %v7012, %v7140
        %v7263 = vmax.f32 %v7013, %v7142
        %v7264 = vmax.f32 %v7014, %v7144
        %v7265 = vmax.f32 %v7015, %v7146
        %v7266 = vmax.f32 %v7016, %v7148
        %v7267 = vmax.f32 %v7017, %v7150
        %v7268 = vmax.f32 %v7018, %v7152
        %v7269 = vmax.f32 %v7019, %v7154
        %v7270 = vmax.f32 %v7020, %v7156
        %v7271 = vmax.f32 %v7021, %v7158
        %v7272 = vmax.f32 %v7022, %v7160
        %v7273 = vmax.f32 %v7023, %v7162
        %v7274 = vmax.f32 %v7024, %v7164
        %v7275 = vmax.f32 %v7025, %v7166
        %v7276 = vmax.f32 %v7026, %v7168
        %v7277 = vmax.f32 %v7027, %v7170
        %v7278 = vmax.f32 %v7028, %v7172
        %v7279 = vmax.f32 %v7029, %v7174
        %v7280 = vmax.f32 %v7030, %v7176
        %v7281 = vmax.f32 %v7031, %v7178
        %v7282 = vmax.f32 %v7032, %v7180
        %v7283 = vmax.f32 %v7033, %v7182
        %v7284 = vmax.f32 %v7034, %v7184
        %7335 = vrot.lane.b32.xlu0 %v7235, 96
        %v7336 = vpop.permute.xlu0 %7335
        %7337 = vrot.lane.b32.xlu0 %v7236, 96
        %v7338 = vpop.permute.xlu0 %7337
        %7339 = vrot.lane.b32.xlu0 %v7237, 96
        %v7340 = vpop.permute.xlu0 %7339
        %7341 = vrot.lane.b32.xlu0 %v7238, 96
        %v7342 = vpop.permute.xlu0 %7341
        %7343 = vrot.lane.b32.xlu0 %v7239, 96
        %v7344 = vpop.permute.xlu0 %7343
        %7345 = vrot.lane.b32.xlu0 %v7240, 96
        %v7346 = vpop.permute.xlu0 %7345
        %7347 = vrot.lane.b32.xlu0 %v7241, 96
        %v7348 = vpop.permute.xlu0 %7347
        %7349 = vrot.lane.b32.xlu0 %v7242, 96
        %v7350 = vpop.permute.xlu0 %7349
        %7351 = vrot.lane.b32.xlu0 %v7243, 96
        %v7352 = vpop.permute.xlu0 %7351
        %7353 = vrot.lane.b32.xlu0 %v7244, 96
        %v7354 = vpop.permute.xlu0 %7353
        %7355 = vrot.lane.b32.xlu0 %v7245, 96
        %v7356 = vpop.permute.xlu0 %7355
        %7357 = vrot.lane.b32.xlu0 %v7246, 96
        %v7358 = vpop.permute.xlu0 %7357
        %7359 = vrot.lane.b32.xlu0 %v7247, 96
        %v7360 = vpop.permute.xlu0 %7359
        %7361 = vrot.lane.b32.xlu0 %v7248, 96
        %v7362 = vpop.permute.xlu0 %7361
        %7363 = vrot.lane.b32.xlu0 %v7249, 96
        %v7364 = vpop.permute.xlu0 %7363
        %7365 = vrot.lane.b32.xlu0 %v7250, 96
        %v7366 = vpop.permute.xlu0 %7365
        %7367 = vrot.lane.b32.xlu0 %v7251, 96
        %v7368 = vpop.permute.xlu0 %7367
        %7369 = vrot.lane.b32.xlu0 %v7252, 96
        %v7370 = vpop.permute.xlu0 %7369
        %7371 = vrot.lane.b32.xlu0 %v7253, 96
        %v7372 = vpop.permute.xlu0 %7371
        %7373 = vrot.lane.b32.xlu0 %v7254, 96
        %v7374 = vpop.permute.xlu0 %7373
        %7375 = vrot.lane.b32.xlu0 %v7255, 96
        %v7376 = vpop.permute.xlu0 %7375
        %7377 = vrot.lane.b32.xlu0 %v7256, 96
        %v7378 = vpop.permute.xlu0 %7377
        %7379 = vrot.lane.b32.xlu0 %v7257, 96
        %v7380 = vpop.permute.xlu0 %7379
        %7381 = vrot.lane.b32.xlu0 %v7258, 96
        %v7382 = vpop.permute.xlu0 %7381
        %7383 = vrot.lane.b32.xlu0 %v7259, 96
        %v7384 = vpop.permute.xlu0 %7383
        %7385 = vrot.lane.b32.xlu0 %v7260, 96
        %v7386 = vpop.permute.xlu0 %7385
        %7387 = vrot.lane.b32.xlu0 %v7261, 96
        %v7388 = vpop.permute.xlu0 %7387
        %7389 = vrot.lane.b32.xlu0 %v7262, 96
        %v7390 = vpop.permute.xlu0 %7389
        %7391 = vrot.lane.b32.xlu0 %v7263, 96
        %v7392 = vpop.permute.xlu0 %7391
        %7393 = vrot.lane.b32.xlu0 %v7264, 96
        %v7394 = vpop.permute.xlu0 %7393
        %7395 = vrot.lane.b32.xlu0 %v7265, 96
        %v7396 = vpop.permute.xlu0 %7395
        %7397 = vrot.lane.b32.xlu0 %v7266, 96
        %v7398 = vpop.permute.xlu0 %7397
        %7399 = vrot.lane.b32.xlu0 %v7267, 96
        %v7400 = vpop.permute.xlu0 %7399
        %7401 = vrot.lane.b32.xlu0 %v7268, 96
        %v7402 = vpop.permute.xlu0 %7401
        %7403 = vrot.lane.b32.xlu0 %v7269, 96
        %v7404 = vpop.permute.xlu0 %7403
        %7405 = vrot.lane.b32.xlu0 %v7270, 96
        %v7406 = vpop.permute.xlu0 %7405
        %7407 = vrot.lane.b32.xlu0 %v7271, 96
        %v7408 = vpop.permute.xlu0 %7407
        %7409 = vrot.lane.b32.xlu0 %v7272, 96
        %v7410 = vpop.permute.xlu0 %7409
        %7411 = vrot.lane.b32.xlu0 %v7273, 96
        %v7412 = vpop.permute.xlu0 %7411
        %7413 = vrot.lane.b32.xlu0 %v7274, 96
        %v7414 = vpop.permute.xlu0 %7413
        %7415 = vrot.lane.b32.xlu0 %v7275, 96
        %v7416 = vpop.permute.xlu0 %7415
        %7417 = vrot.lane.b32.xlu0 %v7276, 96
        %v7418 = vpop.permute.xlu0 %7417
        %7419 = vrot.lane.b32.xlu0 %v7277, 96
        %v7420 = vpop.permute.xlu0 %7419
        %7421 = vrot.lane.b32.xlu0 %v7278, 96
        %v7422 = vpop.permute.xlu0 %7421
        %7423 = vrot.lane.b32.xlu0 %v7279, 96
        %v7424 = vpop.permute.xlu0 %7423
        %7425 = vrot.lane.b32.xlu0 %v7280, 96
        %v7426 = vpop.permute.xlu0 %7425
        %7427 = vrot.lane.b32.xlu0 %v7281, 96
        %v7428 = vpop.permute.xlu0 %7427
        %7429 = vrot.lane.b32.xlu0 %v7282, 96
        %v7430 = vpop.permute.xlu0 %7429
        %7431 = vrot.lane.b32.xlu0 %v7283, 96
        %v7432 = vpop.permute.xlu0 %7431
        %7433 = vrot.lane.b32.xlu0 %v7284, 96
        %v7434 = vpop.permute.xlu0 %7433
        %v7485 = vmax.f32 %v7235, %v7336
        %v7486 = vmax.f32 %v7236, %v7338
        %v7487 = vmax.f32 %v7237, %v7340
        %v7488 = vmax.f32 %v7238, %v7342
        %v7489 = vmax.f32 %v7239, %v7344
        %v7490 = vmax.f32 %v7240, %v7346
        %v7491 = vmax.f32 %v7241, %v7348
        %v7492 = vmax.f32 %v7242, %v7350
        %v7493 = vmax.f32 %v7243, %v7352
        %v7494 = vmax.f32 %v7244, %v7354
        %v7495 = vmax.f32 %v7245, %v7356
        %v7496 = vmax.f32 %v7246, %v7358
        %v7497 = vmax.f32 %v7247, %v7360
        %v7498 = vmax.f32 %v7248, %v7362
        %v7499 = vmax.f32 %v7249, %v7364
        %v7500 = vmax.f32 %v7250, %v7366
        %v7501 = vmax.f32 %v7251, %v7368
        %v7502 = vmax.f32 %v7252, %v7370
        %v7503 = vmax.f32 %v7253, %v7372
        %v7504 = vmax.f32 %v7254, %v7374
        %v7505 = vmax.f32 %v7255, %v7376
        %v7506 = vmax.f32 %v7256, %v7378
        %v7507 = vmax.f32 %v7257, %v7380
        %v7508 = vmax.f32 %v7258, %v7382
        %v7509 = vmax.f32 %v7259, %v7384
        %v7510 = vmax.f32 %v7260, %v7386
        %v7511 = vmax.f32 %v7261, %v7388
        %v7512 = vmax.f32 %v7262, %v7390
        %v7513 = vmax.f32 %v7263, %v7392
        %v7514 = vmax.f32 %v7264, %v7394
        %v7515 = vmax.f32 %v7265, %v7396
        %v7516 = vmax.f32 %v7266, %v7398
        %v7517 = vmax.f32 %v7267, %v7400
        %v7518 = vmax.f32 %v7268, %v7402
        %v7519 = vmax.f32 %v7269, %v7404
        %v7520 = vmax.f32 %v7270, %v7406
        %v7521 = vmax.f32 %v7271, %v7408
        %v7522 = vmax.f32 %v7272, %v7410
        %v7523 = vmax.f32 %v7273, %v7412
        %v7524 = vmax.f32 %v7274, %v7414
        %v7525 = vmax.f32 %v7275, %v7416
        %v7526 = vmax.f32 %v7276, %v7418
        %v7527 = vmax.f32 %v7277, %v7420
        %v7528 = vmax.f32 %v7278, %v7422
        %v7529 = vmax.f32 %v7279, %v7424
        %v7530 = vmax.f32 %v7280, %v7426
        %v7531 = vmax.f32 %v7281, %v7428
        %v7532 = vmax.f32 %v7282, %v7430
        %v7533 = vmax.f32 %v7283, %v7432
        %v7534 = vmax.f32 %v7284, %v7434
        %v7535 = vpack.c.bf16 %v7486, %v7485
        %v7536 = vpack.c.bf16 %v7488, %v7487
        %v7537 = vpack.c.bf16 %v7490, %v7489
        %v7538 = vpack.c.bf16 %v7492, %v7491
        %v7539 = vpack.c.bf16 %v7494, %v7493
        %v7540 = vpack.c.bf16 %v7496, %v7495
        %v7541 = vpack.c.bf16 %v7498, %v7497
        %v7542 = vpack.c.bf16 %v7500, %v7499
        %v7543 = vpack.c.bf16 %v7502, %v7501
        %v7544 = vpack.c.bf16 %v7504, %v7503
        %v7545 = vpack.c.bf16 %v7506, %v7505
        %v7546 = vpack.c.bf16 %v7508, %v7507
        %v7547 = vpack.c.bf16 %v7510, %v7509
        %v7548 = vpack.c.bf16 %v7512, %v7511
        %v7549 = vpack.c.bf16 %v7514, %v7513
        %v7550 = vpack.c.bf16 %v7516, %v7515
        %v7551 = vpack.c.bf16 %v7518, %v7517
        %v7552 = vpack.c.bf16 %v7520, %v7519
        %v7553 = vpack.c.bf16 %v7522, %v7521
        %v7554 = vpack.c.bf16 %v7524, %v7523
        %v7555 = vpack.c.bf16 %v7526, %v7525
        %v7556 = vpack.c.bf16 %v7528, %v7527
        %v7557 = vpack.c.bf16 %v7530, %v7529
        %v7558 = vpack.c.bf16 %v7532, %v7531
        %v7559 = vpack.c.bf16 %v7534, %v7533
        %7561 = vrot.lane.b32.xlu0 %v7536, 16
        %v7562 = vpop.permute.xlu0 %7561
        %7564 = vrot.lane.b32.xlu0 %v7537, 32
        %v7565 = vpop.permute.xlu0 %7564
        %7567 = vrot.lane.b32.xlu0 %v7538, 48
        %v7568 = vpop.permute.xlu0 %7567
        %7570 = vrot.lane.b32.xlu0 %v7539, 64
        %v7571 = vpop.permute.xlu0 %7570
        %7573 = vrot.lane.b32.xlu0 %v7540, 80
        %v7574 = vpop.permute.xlu0 %7573
        %7576 = vrot.lane.b32.xlu0 %v7541, 96
        %v7577 = vpop.permute.xlu0 %7576
        %7579 = vrot.lane.b32.xlu0 %v7542, 112
        %v7580 = vpop.permute.xlu0 %7579
        %7582 = vrot.lane.b32.xlu0 %v7544, 16
        %v7583 = vpop.permute.xlu0 %7582
        %7585 = vrot.lane.b32.xlu0 %v7545, 32
        %v7586 = vpop.permute.xlu0 %7585
        %7588 = vrot.lane.b32.xlu0 %v7546, 48
        %v7589 = vpop.permute.xlu0 %7588
        %7591 = vrot.lane.b32.xlu0 %v7547, 64
        %v7592 = vpop.permute.xlu0 %7591
        %7594 = vrot.lane.b32.xlu0 %v7548, 80
        %v7595 = vpop.permute.xlu0 %7594
        %7597 = vrot.lane.b32.xlu0 %v7549, 96
        %v7598 = vpop.permute.xlu0 %7597
        %7600 = vrot.lane.b32.xlu0 %v7550, 112
        %v7601 = vpop.permute.xlu0 %7600
        %v7604 = vsel %vm1093, %v7535, %v7562
        %vm7605 = vcmask 261120
        %v7607 = vsel %vm7605, %v7604, %v7565
        %v7609 = vsel %vm1085, %v7607, %v7568
        %v7611 = vsel %vm1098, %v7609, %v7571
        %vm7612 = vcmask 654336
        %v7614 = vsel %vm7612, %v7611, %v7574
        %v7616 = vsel %vm1089, %v7614, %v7577
        %vm7617 = vcmask 916480
        %v7619 = vsel %vm7617, %v7616, %v7580
        %v7623 = vsel %vm1093, %v7543, %v7583
        %v7625 = vsel %vm7605, %v7623, %v7586
        %v7627 = vsel %vm1085, %v7625, %v7589
        %v7629 = vsel %vm1098, %v7627, %v7592
        %v7631 = vsel %vm7612, %v7629, %v7595
        %v7633 = vsel %vm1089, %v7631, %v7598
        %v7635 = vsel %vm7617, %v7633, %v7601
        %7638 = vrot.lane.b32.xlu0 %v7552, 16
        %v7639 = vpop.permute.xlu0 %7638
        %7641 = vrot.lane.b32.xlu0 %v7553, 32
        %v7642 = vpop.permute.xlu0 %7641
        %7644 = vrot.lane.b32.xlu0 %v7554, 48
        %v7645 = vpop.permute.xlu0 %7644
        %7647 = vrot.lane.b32.xlu0 %v7555, 64
        %v7648 = vpop.permute.xlu0 %7647
        %7650 = vrot.lane.b32.xlu0 %v7556, 80
        %v7651 = vpop.permute.xlu0 %7650
        %7653 = vrot.lane.b32.xlu0 %v7557, 96
        %v7654 = vpop.permute.xlu0 %7653
        %7656 = vrot.lane.b32.xlu0 %v7558, 112
        %v7657 = vpop.permute.xlu0 %7656
        %v7660 = vsel %vm1093, %v7551, %v7639
        %v7662 = vsel %vm7605, %v7660, %v7642
        %v7664 = vsel %vm1085, %v7662, %v7645
        %v7666 = vsel %vm1098, %v7664, %v7648
        %v7668 = vsel %vm7612, %v7666, %v7651
        %v7670 = vsel %vm1089, %v7668, %v7654
        %v7672 = vsel %vm7617, %v7670, %v7657
        %v7674 = vld [vmem:[%s7] sm:$0xf]
        %v7675 = vld [vmem:[%s7 + $0x4] sm:$0xf]
        %v7676 = vld [vmem:[%s7 + $0x8] sm:$0xf]
        %v7677 = vld [vmem:[%s7 + $0xc] sm:$0xf]
        %v7678 = vld [vmem:[%s7 + $0x10] sm:$0xf]
        %v7679 = vld [vmem:[%s7 + $0x14] sm:$0xf]
        %v7680 = vld [vmem:[%s7 + $0x18] sm:$0xf]
        %v7681 = vld [vmem:[%s7 + $0x1c] sm:$0xf]
        %v7682 = vld [vmem:[%s7 + $0x20] sm:$0xf]
        %v7683 = vld [vmem:[%s7 + $0x24] sm:$0xf]
        %v7684 = vld [vmem:[%s7 + $0x28] sm:$0xf]
        %v7685 = vld [vmem:[%s7 + $0x2c] sm:$0xf]
        %v7686 = vld [vmem:[%s7 + $0x30] sm:$0xf]
        %v7687 = vld [vmem:[%s7 + $0x34] sm:$0xf]
        %v7688 = vld [vmem:[%s7 + $0x38] sm:$0xf]
        %v7689 = vld [vmem:[%s7 + $0x3c] sm:$0xf]
        %v7690 = vld [vmem:[%s7 + $0x40] sm:$0xf]
        %v7691 = vld [vmem:[%s7 + $0x44] sm:$0xf]
        %v7692 = vld [vmem:[%s7 + $0x48] sm:$0xf]
        %v7693 = vld [vmem:[%s7 + $0x4c] sm:$0xf]
        %v7694 = vld [vmem:[%s7 + $0x50] sm:$0xf]
        %v7695 = vld [vmem:[%s7 + $0x54] sm:$0xf]
        %v7696 = vld [vmem:[%s7 + $0x58] sm:$0xf]
        %v7697 = vld [vmem:[%s7 + $0x5c] sm:$0xf]
        %v7698 = vld [vmem:[%s7 + $0x60] sm:$0xf]
        %v7699 = vld [vmem:[%s7 + $0x64] sm:$0xf]
        %v7700 = vld [vmem:[%s7 + $0x68] sm:$0xf]
        %v7701 = vld [vmem:[%s7 + $0x6c] sm:$0xf]
        %v7702 = vld [vmem:[%s7 + $0x70] sm:$0xf]
        %v7703 = vld [vmem:[%s7 + $0x74] sm:$0xf]
        %v7704 = vld [vmem:[%s7 + $0x78] sm:$0xf]
        %v7705 = vld [vmem:[%s7 + $0x7c] sm:$0xf]
        %v7706 = vld [vmem:[%s7 + $0x80] sm:$0xf]
        %v7707 = vld [vmem:[%s7 + $0x84] sm:$0xf]
        %v7708 = vld [vmem:[%s7 + $0x88] sm:$0xf]
        %v7709 = vld [vmem:[%s7 + $0x8c] sm:$0xf]
        %v7710 = vld [vmem:[%s7 + $0x90] sm:$0xf]
        %v7711 = vld [vmem:[%s7 + $0x94] sm:$0xf]
        %v7712 = vld [vmem:[%s7 + $0x98] sm:$0xf]
        %v7713 = vld [vmem:[%s7 + $0x9c] sm:$0xf]
        %v7714 = vld [vmem:[%s7 + $0xa0] sm:$0xf]
        %v7715 = vld [vmem:[%s7 + $0xa4] sm:$0xf]
        %v7716 = vld [vmem:[%s7 + $0xa8] sm:$0xf]
        %v7717 = vld [vmem:[%s7 + $0xac] sm:$0xf]
        %v7718 = vld [vmem:[%s7 + $0xb0] sm:$0xf]
        %v7719 = vld [vmem:[%s7 + $0xb4] sm:$0xf]
        %v7720 = vld [vmem:[%s7 + $0xb8] sm:$0xf]
        %v7721 = vld [vmem:[%s7 + $0xbc] sm:$0xf]
        %v7722 = vld [vmem:[%s7 + $0xc0] sm:$0xf]
        %v7723 = vld [vmem:[%s7 + $0xc4] sm:$0xf]
        %v7774 = vunpack.c.l.b16 %v7674
        %v7775 = vunpack.c.l.b16 %v7675
        %v7776 = vunpack.c.l.b16 %v7676
        %v7777 = vunpack.c.l.b16 %v7677
        %v7778 = vunpack.c.l.b16 %v7678
        %v7779 = vunpack.c.l.b16 %v7679
        %v7780 = vunpack.c.l.b16 %v7680
        %v7781 = vunpack.c.l.b16 %v7681
        %v7782 = vunpack.c.l.b16 %v7682
        %v7783 = vunpack.c.l.b16 %v7683
        %v7784 = vunpack.c.l.b16 %v7684
        %v7785 = vunpack.c.l.b16 %v7685
        %v7786 = vunpack.c.l.b16 %v7686
        %v7787 = vunpack.c.l.b16 %v7687
        %v7788 = vunpack.c.l.b16 %v7688
        %v7789 = vunpack.c.l.b16 %v7689
        %v7790 = vunpack.c.l.b16 %v7690
        %v7791 = vunpack.c.l.b16 %v7691
        %v7792 = vunpack.c.l.b16 %v7692
        %v7793 = vunpack.c.l.b16 %v7693
        %v7794 = vunpack.c.l.b16 %v7694
        %v7795 = vunpack.c.l.b16 %v7695
        %v7796 = vunpack.c.l.b16 %v7696
        %v7797 = vunpack.c.l.b16 %v7697
        %v7798 = vunpack.c.l.b16 %v7698
        %v7799 = vunpack.c.l.b16 %v7699
        %v7800 = vunpack.c.l.b16 %v7700
        %v7801 = vunpack.c.l.b16 %v7701
        %v7802 = vunpack.c.l.b16 %v7702
        %v7803 = vunpack.c.l.b16 %v7703
        %v7804 = vunpack.c.l.b16 %v7704
        %v7805 = vunpack.c.l.b16 %v7705
        %v7806 = vunpack.c.l.b16 %v7706
        %v7807 = vunpack.c.l.b16 %v7707
        %v7808 = vunpack.c.l.b16 %v7708
        %v7809 = vunpack.c.l.b16 %v7709
        %v7810 = vunpack.c.l.b16 %v7710
        %v7811 = vunpack.c.l.b16 %v7711
        %v7812 = vunpack.c.l.b16 %v7712
        %v7813 = vunpack.c.l.b16 %v7713
        %v7814 = vunpack.c.l.b16 %v7714
        %v7815 = vunpack.c.l.b16 %v7715
        %v7816 = vunpack.c.l.b16 %v7716
        %v7817 = vunpack.c.l.b16 %v7717
        %v7818 = vunpack.c.l.b16 %v7718
        %v7819 = vunpack.c.l.b16 %v7719
        %v7820 = vunpack.c.l.b16 %v7720
        %v7821 = vunpack.c.l.b16 %v7721
        %v7822 = vunpack.c.l.b16 %v7722
        %v7823 = vunpack.c.l.b16 %v7723
        %v7824 = vpack.c.b16 %v7775, %v7774
        %v7825 = vpack.c.b16 %v7777, %v7776
        %v7826 = vpack.c.b16 %v7779, %v7778
        %v7827 = vpack.c.b16 %v7781, %v7780
        %v7828 = vpack.c.b16 %v7783, %v7782
        %v7829 = vpack.c.b16 %v7785, %v7784
        %v7830 = vpack.c.b16 %v7787, %v7786
        %v7831 = vpack.c.b16 %v7789, %v7788
        %v7832 = vpack.c.b16 %v7791, %v7790
        %v7833 = vpack.c.b16 %v7793, %v7792
        %v7834 = vpack.c.b16 %v7795, %v7794
        %v7835 = vpack.c.b16 %v7797, %v7796
        %v7836 = vpack.c.b16 %v7799, %v7798
        %v7837 = vpack.c.b16 %v7801, %v7800
        %v7838 = vpack.c.b16 %v7803, %v7802
        %v7839 = vpack.c.b16 %v7805, %v7804
        %v7840 = vpack.c.b16 %v7807, %v7806
        %v7841 = vpack.c.b16 %v7809, %v7808
        %v7842 = vpack.c.b16 %v7811, %v7810
        %v7843 = vpack.c.b16 %v7813, %v7812
        %v7844 = vpack.c.b16 %v7815, %v7814
        %v7845 = vpack.c.b16 %v7817, %v7816
        %v7846 = vpack.c.b16 %v7819, %v7818
        %v7847 = vpack.c.b16 %v7821, %v7820
        %v7848 = vpack.c.b16 %v7823, %v7822
        %v7875 = vsel %vm1093, %v7559, 0
        %7877 = vmatprep.subr.bf16.mxu0 0
        %7878 = vmatpush1.bf16.msra.mxu0 %v7824
        %7879 = vmatprep.subr.bf16.mxu0 0
        %7880 = vmatpush1.bf16.msra.mxu0 %v7825
        %7881 = vmatprep.subr.bf16.mxu0 0
        %7882 = vmatpush1.bf16.msra.mxu0 %v7826
        %7883 = vmatprep.subr.bf16.mxu0 0
        %7884 = vmatpush1.bf16.msra.mxu0 %v7827
        %7885 = vmatprep.subr.bf16.mxu0 0
        %7886 = vmatpush1.bf16.msra.mxu0 %v7828
        %7887 = vmatprep.subr.bf16.mxu0 0
        %7888 = vmatpush1.bf16.msra.mxu0 %v7829
        %7889 = vmatprep.subr.bf16.mxu0 0
        %7890 = vmatpush1.bf16.msra.mxu0 %v7830
        %7891 = vmatprep.subr.bf16.mxu0 0
        %7892 = vmatpush1.bf16.msra.mxu0 %v7831
        %7893 = vmatprep.subr.bf16.mxu0 0
        %7894 = vmatpush1.bf16.msra.mxu0 %v7832
        %7895 = vmatprep.subr.bf16.mxu0 0
        %7896 = vmatpush1.bf16.msra.mxu0 %v7833
        %7897 = vmatprep.subr.bf16.mxu0 0
        %7898 = vmatpush1.bf16.msra.mxu0 %v7834
        %7899 = vmatprep.subr.bf16.mxu0 0
        %7900 = vmatpush1.bf16.msra.mxu0 %v7835
        %7901 = vmatprep.subr.bf16.mxu0 0
        %7902 = vmatpush1.bf16.msra.mxu0 %v7836
        %7903 = vmatprep.subr.bf16.mxu0 0
        %7904 = vmatpush1.bf16.msra.mxu0 %v7837
        %7905 = vmatprep.subr.bf16.mxu0 0
        %7906 = vmatpush1.bf16.msra.mxu0 %v7838
        %7907 = vmatprep.subr.bf16.mxu0 0
        %7908 = vmatpush1.bf16.msra.mxu0 %v7839
        %7909 = vmatprep.mubr.bf16.mxu0 %v7635
        %7910 = vmatmul.mubr.bf16.gmra.mrb[0].mxu0 %v7619
        %v7911 = vpop.f32.mrb[0].mxu0
        %v7912 = vadd.f32 0.0, %v7911
        %v7913 = vpop.f32.mrb[0].mxu0
        %v7914 = vpop.f32.mrb[0].mxu0
        %v7915 = vadd.f32 0.0, %v7914
        %v7916 = vpop.f32.mrb[0].mxu0
        %7917 = vdwg.mxu0
        %7918 = vmatprep.subr.bf16.mxu0 0
        %7919 = vmatpush1.bf16.msra.mxu0 %v7840
        %7920 = vmatprep.subr.bf16.mxu0 0
        %7921 = vmatpush1.bf16.msra.mxu0 %v7841
        %7922 = vmatprep.subr.bf16.mxu0 0
        %7923 = vmatpush1.bf16.msra.mxu0 %v7842
        %7924 = vmatprep.subr.bf16.mxu0 0
        %7925 = vmatpush1.bf16.msra.mxu0 %v7843
        %7926 = vmatprep.subr.bf16.mxu0 0
        %7927 = vmatpush1.bf16.msra.mxu0 %v7844
        %7928 = vmatprep.subr.bf16.mxu0 0
        %7929 = vmatpush1.bf16.msra.mxu0 %v7845
        %7930 = vmatprep.subr.bf16.mxu0 0
        %7931 = vmatpush1.bf16.msra.mxu0 %v7846
        %7932 = vmatprep.subr.bf16.mxu0 0
        %7933 = vmatpush1.bf16.msra.mxu0 %v7847
        %7934 = vmatprep.subr.bf16.mxu0 0
        %7935 = vmatpush1.bf16.msra.mxu0 %v7848
        %7936 = vmatprep.subr.bf16.mxu0 0
        %7937 = vmatpush1.bf16.msra.mxu0 0
        %7938 = vmatprep.subr.bf16.mxu0 0
        %7939 = vmatpush1.bf16.msra.mxu0 0
        %7940 = vmatprep.subr.bf16.mxu0 0
        %7941 = vmatpush1.bf16.msra.mxu0 0
        %7942 = vmatprep.subr.bf16.mxu0 0
        %7943 = vmatpush1.bf16.msra.mxu0 0
        %7944 = vmatprep.subr.bf16.mxu0 0
        %7945 = vmatpush1.bf16.msra.mxu0 0
        %7946 = vmatprep.subr.bf16.mxu0 0
        %7947 = vmatpush1.bf16.msra.mxu0 0
        %7948 = vmatprep.subr.bf16.mxu0 0
        %7949 = vmatpush1.bf16.msra.mxu0 0
        %7950 = vmatprep.mubr.bf16.mxu0 %v7875
        %7951 = vmatmul.mubr.bf16.gmra.mrb[0].mxu0 %v7672
        %v7952 = vpop.f32.mrb[0].mxu0
        %v7953 = vadd.f32 %v7912, %v7952
        %v7954 = vpop.f32.mrb[0].mxu0
        %v7955 = vpop.f32.mrb[0].mxu0
        %v7956 = vadd.f32 %v7915, %v7955
        %v7957 = vpop.f32.mrb[0].mxu0
        %7958 = vdwg.mxu0
        %v7959 = vld [vmem:[%s8] sm:$0x1]
        %v7961 = vlaneseq
        %v7962 = vshrl.u32 %v7961, 7
        %v7963 = vsub.s32 0, %v7962
        %v7964 = vrot.slane %v7959, %v7963
        %v7966 = vmul.f32 %v7953, %v7964
        %v7967 = vmul.f32 %v7956, %v7964
        %v7968 = vld [vmem:[%s9] sm:$0x1]
        %v7970 = vlaneseq
        %v7971 = vshrl.u32 %v7970, 7
        %v7972 = vsub.s32 0, %v7971
        %v7973 = vrot.slane %v7968, %v7972
        %v7975 = vadd.f32 %v7966, %v7973
        %v7976 = vadd.f32 %v7967, %v7973
        %v7977 = vmax.f32 %v7975, 0.0
        %v7978 = vmax.f32 %v7976, 0.0
        %v7979 = vpack.c.bf16 %v7978, %v7977
        %v7980 = vld [vmem:[%s10] sm:$0xf]
        %v7981 = vld [vmem:[%s10 + $0x4] sm:$0xf]
        %v7982 = vld [vmem:[%s10 + $0x8] sm:$0xf]
        %v7983 = vld [vmem:[%s10 + $0xc] sm:$0xf]
        %v7984 = vld [vmem:[%s10 + $0x10] sm:$0xf]
        %v7985 = vld [vmem:[%s10 + $0x14] sm:$0xf]
        %v7986 = vld [vmem:[%s10 + $0x18] sm:$0xf]
        %v7987 = vld [vmem:[%s10 + $0x1c] sm:$0xf]
        %v7988 = vld [vmem:[%s10 + $0x20] sm:$0xf]
        %v7989 = vld [vmem:[%s10 + $0x24] sm:$0xf]
        %v7990 = vld [vmem:[%s10 + $0x28] sm:$0xf]
        %v7991 = vld [vmem:[%s10 + $0x2c] sm:$0xf]
        %v7992 = vld [vmem:[%s10 + $0x30] sm:$0xf]
        %v7993 = vld [vmem:[%s10 + $0x34] sm:$0xf]
        %v7994 = vld [vmem:[%s10 + $0x38] sm:$0xf]
        %v8010 = vunpack.c.l.b16 %v7980
        %v8011 = vunpack.c.l.b16 %v7981
        %v8012 = vunpack.c.l.b16 %v7982
        %v8013 = vunpack.c.l.b16 %v7983
        %v8014 = vunpack.c.l.b16 %v7984
        %v8015 = vunpack.c.l.b16 %v7985
        %v8016 = vunpack.c.l.b16 %v7986
        %v8017 = vunpack.c.l.b16 %v7987
        %v8018 = vunpack.c.l.b16 %v7988
        %v8019 = vunpack.c.l.b16 %v7989
        %v8020 = vunpack.c.l.b16 %v7990
        %v8021 = vunpack.c.l.b16 %v7991
        %v8022 = vunpack.c.l.b16 %v7992
        %v8023 = vunpack.c.l.b16 %v7993
        %v8024 = vunpack.c.l.b16 %v7994
        %v8025 = vpack.c.b16 %v8011, %v8010
        %v8026 = vpack.c.b16 %v8013, %v8012
        %v8027 = vpack.c.b16 %v8015, %v8014
        %v8028 = vpack.c.b16 %v8017, %v8016
        %v8029 = vpack.c.b16 %v8019, %v8018
        %v8030 = vpack.c.b16 %v8021, %v8020
        %v8031 = vpack.c.b16 %v8023, %v8022
        %v8032 = vpack.c.b16 %v8024, %v8024
        %v8041 = vsel %vm5458, %v7979, 0
        %v8044 = vsel %vm6634, %v8032, 0
        %8046 = vmatprep.subr.bf16.mxu0 0
        %8047 = vmatpush1.bf16.msra.mxu0 %v8025
        %8048 = vmatprep.subr.bf16.mxu0 0
        %8049 = vmatpush1.bf16.msra.mxu0 %v8026
        %8050 = vmatprep.subr.bf16.mxu0 0
        %8051 = vmatpush1.bf16.msra.mxu0 %v8027
        %8052 = vmatprep.subr.bf16.mxu0 0
        %8053 = vmatpush1.bf16.msra.mxu0 %v8028
        %8054 = vmatprep.subr.bf16.mxu0 0
        %8055 = vmatpush1.bf16.msra.mxu0 %v8029
        %8056 = vmatprep.subr.bf16.mxu0 0
        %8057 = vmatpush1.bf16.msra.mxu0 %v8030
        %8058 = vmatprep.subr.bf16.mxu0 0
        %8059 = vmatpush1.bf16.msra.mxu0 %v8031
        %8060 = vmatprep.subr.bf16.mxu0 0
        %8061 = vmatpush1.bf16.msra.mxu0 %v8044
        %8062 = vmatprep.subr.bf16.mxu0 0
        %8063 = vmatpush1.bf16.msra.mxu0 0
        %8064 = vmatprep.subr.bf16.mxu0 0
        %8065 = vmatpush1.bf16.msra.mxu0 0
        %8066 = vmatprep.subr.bf16.mxu0 0
        %8067 = vmatpush1.bf16.msra.mxu0 0
        %8068 = vmatprep.subr.bf16.mxu0 0
        %8069 = vmatpush1.bf16.msra.mxu0 0
        %8070 = vmatprep.subr.bf16.mxu0 0
        %8071 = vmatpush1.bf16.msra.mxu0 0
        %8072 = vmatprep.subr.bf16.mxu0 0
        %8073 = vmatpush1.bf16.msra.mxu0 0
        %8074 = vmatprep.subr.bf16.mxu0 0
        %8075 = vmatpush1.bf16.msra.mxu0 0
        %8076 = vmatprep.subr.bf16.mxu0 0
        %8077 = vmatpush1.bf16.msra.mxu0 0
        %8078 = vmatprep.mubr.bf16.mxu0 0
        %8079 = vmatmul.mubr.bf16.gmra.mrb[0].mxu0 %v8041
        %v8080 = vpop.f32.mrb[0].mxu0
        %v8081 = vadd.f32 0.0, %v8080
        %v8082 = vpop.f32.mrb[0].mxu0
        %v8083 = vpop.f32.mrb[0].mxu0
        %v8084 = vadd.f32 0.0, %v8083
        %v8085 = vpop.f32.mrb[0].mxu0
        %8086 = vdwg.mxu0
        %v8087 = vld [vmem:[%s11] sm:$0x1]
        %v8089 = vlaneseq
        %v8090 = vshrl.u32 %v8089, 7
        %v8091 = vsub.s32 0, %v8090
        %v8092 = vrot.slane %v8087, %v8091
        %v8094 = vmul.f32 %v8081, %v8092
        %v8095 = vmul.f32 %v8084, %v8092
        %v8096 = vld [vmem:[%s12] sm:$0x1]
        %v8098 = vlaneseq
        %v8099 = vshrl.u32 %v8098, 7
        %v8100 = vsub.s32 0, %v8099
        %v8101 = vrot.slane %v8096, %v8100
        %v8103 = vadd.f32 %v8094, %v8101
        %v8104 = vadd.f32 %v8095, %v8101
        %v8105 = vmax.f32 %v8103, 0.0
        %v8106 = vmax.f32 %v8104, 0.0
        %v8107 = vpack.c.bf16 %v8106, %v8105
        %v8108 = vld [vmem:[%s13] sm:$0xf]
        %v8109 = vld [vmem:[%s13 + $0x4] sm:$0xf]
        %v8110 = vld [vmem:[%s13 + $0x8] sm:$0xf]
        %v8111 = vld [vmem:[%s13 + $0xc] sm:$0xf]
        %v8112 = vld [vmem:[%s13 + $0x10] sm:$0xf]
        %v8113 = vld [vmem:[%s13 + $0x14] sm:$0xf]
        %v8114 = vld [vmem:[%s13 + $0x18] sm:$0xf]
        %v8115 = vld [vmem:[%s13 + $0x1c] sm:$0xf]
        %v8116 = vld [vmem:[%s13 + $0x20] sm:$0xf]
        %v8117 = vld [vmem:[%s13 + $0x24] sm:$0xf]
        %v8118 = vld [vmem:[%s13 + $0x28] sm:$0x3]
        %v8119 = vld [vmem:[%s14] sm:$0x1]
        %v8121 = vlaneseq
        %v8122 = vshrl.u32 %v8121, 7
        %v8123 = vsub.s32 0, %v8122
        %v8124 = vrot.slane %v8119, %v8123
        %v8137 = vunpack.c.l.b16 %v8108
        %v8138 = vunpack.c.l.b16 %v8109
        %v8139 = vunpack.c.l.b16 %v8110
        %v8140 = vunpack.c.l.b16 %v8111
        %v8141 = vunpack.c.l.b16 %v8112
        %v8142 = vunpack.c.l.b16 %v8113
        %v8143 = vunpack.c.l.b16 %v8114
        %v8144 = vunpack.c.l.b16 %v8115
        %v8145 = vunpack.c.l.b16 %v8116
        %v8146 = vunpack.c.l.b16 %v8117
        %v8147 = vunpack.c.l.b16 %v8118
        %v8148 = vpack.c.b16 %v8138, %v8137
        %v8149 = vpack.c.b16 %v8140, %v8139
        %v8150 = vpack.c.b16 %v8142, %v8141
        %v8151 = vpack.c.b16 %v8144, %v8143
        %v8152 = vpack.c.b16 %v8146, %v8145
        %v8153 = vpack.c.b16 %v8147, %v8147
        %vm8159 = vcmask 687104
        %v8161 = vsel %vm8159, %v8107, 0
        %vm8163 = vcmask 1041408
        %v8165 = vsel %vm8163, %v8153, 0
        %8167 = vmatprep.subr.bf16.mxu0 0
        %8168 = vmatpush1.bf16.msra.mxu0 %v8148
        %8169 = vmatprep.subr.bf16.mxu0 0
        %8170 = vmatpush1.bf16.msra.mxu0 %v8149
        %8171 = vmatprep.subr.bf16.mxu0 0
        %8172 = vmatpush1.bf16.msra.mxu0 %v8150
        %8173 = vmatprep.subr.bf16.mxu0 0
        %8174 = vmatpush1.bf16.msra.mxu0 %v8151
        %8175 = vmatprep.subr.bf16.mxu0 0
        %8176 = vmatpush1.bf16.msra.mxu0 %v8152
        %8177 = vmatprep.subr.bf16.mxu0 0
        %8178 = vmatpush1.bf16.msra.mxu0 %v8165
        %8179 = vmatprep.subr.bf16.mxu0 0
        %8180 = vmatpush1.bf16.msra.mxu0 0
        %8181 = vmatprep.subr.bf16.mxu0 0
        %8182 = vmatpush1.bf16.msra.mxu0 0
        %8183 = vmatprep.subr.bf16.mxu0 0
        %8184 = vmatpush1.bf16.msra.mxu0 0
        %8185 = vmatprep.subr.bf16.mxu0 0
        %8186 = vmatpush1.bf16.msra.mxu0 0
        %8187 = vmatprep.subr.bf16.mxu0 0
        %8188 = vmatpush1.bf16.msra.mxu0 0
        %8189 = vmatprep.subr.bf16.mxu0 0
        %8190 = vmatpush1.bf16.msra.mxu0 0
        %8191 = vmatprep.subr.bf16.mxu0 0
        %8192 = vmatpush1.bf16.msra.mxu0 0
        %8193 = vmatprep.subr.bf16.mxu0 0
        %8194 = vmatpush1.bf16.msra.mxu0 0
        %8195 = vmatprep.subr.bf16.mxu0 0
        %8196 = vmatpush1.bf16.msra.mxu0 0
        %8197 = vmatprep.subr.bf16.mxu0 0
        %8198 = vmatpush1.bf16.msra.mxu0 0
        %8199 = vmatprep.mubr.bf16.mxu0 0
        %8200 = vmatmul.mubr.bf16.gmra.mrb[0].mxu0 %v8161
        %v8201 = vpop.f32.mrb[0].mxu0
        %v8202 = vadd.f32 %v8124, %v8201
        %v8203 = vpop.f32.mrb[0].mxu0
        %v8204 = vpop.f32.mrb[0].mxu0
        %v8205 = vadd.f32 %v8124, %v8204
        %v8206 = vpop.f32.mrb[0].mxu0
        %8207 = vdwg.mxu0
        %8208 = vst [vmem:[%s1045] sm:$0xff] %v8202
        %8209 = vst [vmem:[%s1045 + $0x8] sm:$0xff] %v8205
        %s8210 = smul.u32 2, %s26
        %p8211 = scmp.lt.s32.totalorder %s8210, 3
        %s8212 = scalar_select %p8211, %s8210, 3
        %s8213 = smul.addr %s8212, 8
        %s8214 = scalar_lea.vmem %s15, %s8213
        // Predicated region
        $region122: #{lenet5_bn_forward_prepared.1} parent=116 // pred_check
          %p8215 = pneg %p364
        $region123: #{lenet5_bn_forward_prepared.1} parent=116 // pred_check_branch
          %8217 = sbr.rel (%p8215) target = $region125
        $region124: #{lenet5_bn_forward_prepared.1} parent=116 // pred_region
          %s8218 = smul.u32 2, %s26
        $region125: #{lenet5_bn_forward_prepared.1} parent=116 // pred_fallthru
          _
      $region117: #{lenet5_bn_forward_prepared.1} parent=5 // pred_fallthru
        _
      %p8219 = scmp.le.s32.totalorder 2, %s21
      // Predicated region
      $region126: #{lenet5_bn_forward_prepared.1} parent=5 // pred_check
        %p8220 = pneg %p8219
      $region127: #{lenet5_bn_forward_prepared.1} parent=5 // pred_check_branch
        %8222 = sbr.rel (%p8220) target = $region129
      $region128: #{lenet5_bn_forward_prepared.1} parent=5 // pred_region
        %s8223 = ssub.s32 %s21, 2
        // Predicated region
        $region130: #{lenet5_bn_forward_prepared.1} parent=128 // pred_check
          %p8224 = pneg %p370
        $region131: #{lenet5_bn_forward_prepared.1} parent=128 // pred_check_branch
          %8226 = sbr.rel (%p8224) target = $region133
        $region132: #{lenet5_bn_forward_prepared.1} parent=128 // pred_region
          %s8227 = smul.u32 2, %s27
          %p8228 = scmp.lt.s32.totalorder %s8227, 3
          %s8229 = scalar_select %p8228, %s8227, 3
          %s8230 = smul.addr %s8229, 8
          %s8231 = scalar_lea.vmem %s15, %s8230
        $region133: #{lenet5_bn_forward_prepared.1} parent=128 // pred_fallthru
          _
      $region129: #{lenet5_bn_forward_prepared.1} parent=5 // pred_fallthru
        _
    $region6: #{lenet5_bn_forward_prepared.1} parent=1 // loop_footer
      %s25 = sadd.s32 1, %s21
    $region7: #{lenet5_bn_forward_prepared.1} parent=1 // loop_footer_branch
      %20 = sbr.rel target = $region3
    $region8: #{lenet5_bn_forward_prepared.1} parent=1 // loop_exit
      _

</llo_original>
